<compile_context>
chip_gen: v7x
topology: tpu7x:2x2x1
jax: 0.10.0
libtpu: 0.0.40
codegen_flags: <defaults>
</compile_context>

<pallas_src>
import math

import numpy as np
import jax
import jax.numpy as jnp
from jax.experimental import pallas as pl
from jax.experimental.pallas import tpu as pltpu

NUM_CLASSES = 26
B_TILE = 8                                     # images per grid step (sublanes)
_CONV1_BANDS = ((0, 8), (8, 8), (16, 8), (24, 4))   # H bands of the 28-row conv1 out


# ----------------------------------------------------------------------------
# Fused whole-network kernel
# ----------------------------------------------------------------------------
def _lenet_kernel(x_ref, w1t_ref, b1l_ref, w2t_ref, b2l_ref,
                  wf1_ref, bf1_ref, wf2_ref, bf2_ref, wf3_ref, bf3_ref,
                  o_ref, p1h_ref):
    """Whole LeNet forward for one batch tile (all f32).

    Layouts:
      x_ref   : (32, B, 128)  [H_in, batch, W_in padded 32->128 lanes]
      w1t_ref : (5, 128, 256) conv1 Toeplitz blocks, cols = oc*32 + w_out
      w2t_ref : (5, 256, 256) conv2 Toeplitz blocks, rows = ic*32 + 2*w1 + 1,
                              cols = oc2*16 + w2
      wf1_ref : (5, 256, 128) fc1 blocks per pooled row, rows = oc2*16 + 2*w + 1
      o_ref   : (B, 128)      logits in lanes 0..25
      p1h_ref : (14, B, 256)  scratch: H-pooled conv1 output
    """
    f32 = jnp.float32
    B = x_ref.shape[1]

    # ---- conv1 + bias + ReLU + 2x2 H-pool, processed in H bands (MXU) -------
    b1l = b1l_ref[...]                                         # (1, 256)
    for h0, hs in _CONV1_BANDS:
        acc = None
        for kh in range(5):
            lhs = x_ref[h0 + kh:h0 + kh + hs].reshape(hs * B, 128)
            d = jnp.dot(lhs, w1t_ref[kh], preferred_element_type=f32)
            acc = d if acc is None else acc + d
        a = jnp.maximum(acc + b1l, 0.0)                        # (hs*B, 256)
        a = a.reshape(hs, B, 256).reshape(hs // 2, 2, B, 256)
        p1h_ref[h0 // 2:h0 // 2 + hs // 2] = jnp.maximum(a[:, 0], a[:, 1])

    # ---- 2x2 W-pool via one lane roll; pooled value lands at odd lanes ------
    a1h = p1h_ref[...]                                         # (14, B, 256)
    p1 = jnp.maximum(a1h, pltpu.roll(a1h, shift=1, axis=2))    # valid @ ic*32+2*w1+1

    # ---- conv2 + bias + ReLU: 5 Toeplitz matmuls on the MXU ------------------
    acc2 = None
    for kh in range(5):
        lhs = p1[kh:kh + 10].reshape(10 * B, 256)
        d = jnp.dot(lhs, w2t_ref[kh], preferred_element_type=f32)
        acc2 = d if acc2 is None else acc2 + d
    a2 = jnp.maximum(acc2 + b2l_ref[...], 0.0)                 # (10*B, 256)
    a2 = a2.reshape(10, B, 256).reshape(5, 2, B, 256)

    # ---- 2x2 max pool --------------------------------------------------------
    a2h = jnp.maximum(a2[:, 0], a2[:, 1])                      # (5, B, 256)
    p2 = jnp.maximum(a2h, pltpu.roll(a2h, shift=1, axis=2))    # valid @ oc2*16+2*w+1

    # TODO(synk): Dropout(0.4) is identity in eval mode; training-mode RNG
    # masking (pltpu.prng_*) is not implemented.

    # ---- fc1 (+ReLU): one matmul per pooled row, accumulated in registers ----
    accf = None
    for h in range(5):
        d = jnp.dot(p2[h], wf1_ref[h], preferred_element_type=f32)
        accf = d if accf is None else accf + d
    h1 = jnp.maximum(accf + bf1_ref[...], 0.0)                 # (B, 128)

    # ---- fc2 (+ReLU) and fc3 (lane-dense 128-wide matmuls) -------------------
    h2 = jnp.maximum(
        jnp.dot(h1, wf2_ref[...], preferred_element_type=f32) + bf2_ref[...], 0.0)
    o_ref[...] = (jnp.dot(h2, wf3_ref[...], preferred_element_type=f32)
                  + bf3_ref[...])                              # lanes >=26 are 0


# ----------------------------------------------------------------------------
# Parameter handling (PyTorch layouts on the host, packed/padded for the kernel)
# ----------------------------------------------------------------------------
def init_params(key):
    """PyTorch-default-style init, stored in PyTorch layouts."""
    ks = jax.random.split(key, 10)

    def u(k, shape, fan_in):
        b = 1.0 / math.sqrt(fan_in)
        return jax.random.uniform(k, shape, jnp.float32, -b, b)

    return {
        "conv1_w": u(ks[0], (6, 1, 5, 5), 25), "conv1_b": u(ks[1], (6,), 25),
        "conv2_w": u(ks[2], (16, 6, 5, 5), 150), "conv2_b": u(ks[3], (16,), 150),
        "fc1_w": u(ks[4], (120, 400), 400), "fc1_b": u(ks[5], (120,), 400),
        "fc2_w": u(ks[6], (84, 120), 120), "fc2_b": u(ks[7], (84,), 120),
        "fc3_w": u(ks[8], (26, 84), 84), "fc3_b": u(ks[9], (26,), 84),
    }


def pack_params(p):
    """One-time host-side re-layout + zero-padding of weights for the kernel."""
    pn = {k: np.asarray(v, np.float32) for k, v in p.items()}
    w1, b1 = pn["conv1_w"], pn["conv1_b"]          # (6,1,5,5), (6,)
    w2, b2 = pn["conv2_w"], pn["conv2_b"]          # (16,6,5,5), (16,)

    # conv1 Toeplitz blocks (per kh): rows = padded-input W_in, cols = oc*32+w_out.
    w1t = np.zeros((5, 128, 256), np.float32)
    for kh in range(5):
        for oc in range(6):
            for w_out in range(28):
                for kw in range(5):
                    w1t[kh, w_out + kw, oc * 32 + w_out] = w1[oc, 0, kh, kw]
    b1l = np.zeros((1, 256), np.float32)
    for oc in range(6):
        b1l[0, oc * 32:oc * 32 + 28] = b1[oc]

    # conv2 Toeplitz blocks (per kh): rows address pool1's valid odd lanes
    # (ic*32 + 2*w1 + 1); cols = oc2*16 + w2.  Garbage lanes hit zero rows.
    w2t = np.zeros((5, 256, 256), np.float32)
    for kh in range(5):
        for oc2 in range(16):
            for ic in range(6):
                for w_out in range(10):
                    for kw in range(5):
                        w2t[kh, ic * 32 + 2 * (w_out + kw) + 1,
                            oc2 * 16 + w_out] = w2[oc2, ic, kh, kw]
    b2l = np.zeros((1, 256), np.float32)
    for oc2 in range(16):
        b2l[0, oc2 * 16:oc2 * 16 + 10] = b2[oc2]

    # fc1: PyTorch NCHW flatten order is c*25 + h*5 + w.  One (256,128) block
    # per pooled row h; rows address pool2's valid odd lanes (oc2*16 + 2*w + 1).
    f1 = pn["fc1_w"]                               # (120, 400)
    wf1 = np.zeros((5, 256, 128), np.float32)
    for h in range(5):
        for oc2 in range(16):
            for w in range(5):
                wf1[h, oc2 * 16 + 2 * w + 1, :120] = f1[:, oc2 * 25 + h * 5 + w]
    bf1 = np.zeros((1, 128), np.float32)
    bf1[0, :120] = pn["fc1_b"]

    wf2 = np.zeros((128, 128), np.float32)
    wf2[:120, :84] = pn["fc2_w"].T
    bf2 = np.zeros((1, 128), np.float32)
    bf2[0, :84] = pn["fc2_b"]
    wf3 = np.zeros((128, 128), np.float32)
    wf3[:84, :26] = pn["fc3_w"].T
    bf3 = np.zeros((1, 128), np.float32)
    bf3[0, :26] = pn["fc3_b"]

    packed = dict(w1t=w1t, b1l=b1l, w2t=w2t, b2l=b2l, wf1=wf1, bf1=bf1,
                  wf2=wf2, bf2=bf2, wf3=wf3, bf3=bf3)
    return {k: jnp.asarray(v) for k, v in packed.items()}


# ----------------------------------------------------------------------------
# Forward pass (single fused pallas_call) and a pure-JAX reference
# ----------------------------------------------------------------------------
def _resident_spec(shape):
    zeros = (0,) * len(shape)
    return pl.BlockSpec(shape, lambda i, _z=zeros: _z)   # weights stay resident


@jax.jit
def network_forward(packed, x):
    """x: (B, 1, 28, 28) float32 -> logits (B, 26)."""
    B = x.shape[0]
    B_pad = -(-B // B_TILE) * B_TILE
    # Input prep (layout plumbing only): zero-pad 28x28 -> 32 rows x 128 lanes,
    # pad batch to a multiple of B_TILE, move H to the leading dim.
    xp = jnp.pad(x[:, 0], ((0, B_pad - B), (2, 2), (2, 98)))    # (B_pad, 32, 128)
    xp = jnp.transpose(xp, (1, 0, 2))                           # (32, B_pad, 128)

    out = pl.pallas_call(
        _lenet_kernel,
        out_shape=jax.ShapeDtypeStruct((B_pad, 128), jnp.float32),
        grid=(B_pad // B_TILE,),
        in_specs=[
            pl.BlockSpec((32, B_TILE, 128), lambda i: (0, i, 0)),
            _resident_spec((5, 128, 256)), _resident_spec((1, 256)),
            _resident_spec((5, 256, 256)), _resident_spec((1, 256)),
            _resident_spec((5, 256, 128)), _resident_spec((1, 128)),
            _resident_spec((128, 128)), _resident_spec((1, 128)),
            _resident_spec((128, 128)), _resident_spec((1, 128)),
        ],
        out_specs=pl.BlockSpec((B_TILE, 128), lambda i: (i, 0)),
        scratch_shapes=[pltpu.VMEM((14, B_TILE, 256), jnp.float32)],
        compiler_params=pltpu.CompilerParams(
            dimension_semantics=("parallel",),
            vmem_limit_bytes=32 * 1024 * 1024),
    )(xp, packed["w1t"], packed["b1l"], packed["w2t"], packed["b2l"],
      packed["wf1"], packed["bf1"], packed["wf2"], packed["bf2"],
      packed["wf3"], packed["bf3"])
    return out[:B, :NUM_CLASSES]


def reference_forward(p, x):
    """Pure-JAX (XLA) reference with PyTorch semantics, for verification."""
    hi = jax.lax.Precision.HIGHEST
    y = jax.lax.conv_general_dilated(
        x, p["conv1_w"], (1, 1), ((2, 2), (2, 2)),
        dimension_numbers=("NCHW", "OIHW", "NCHW"), precision=hi)
    y = jax.nn.relu(y + p["conv1_b"][None, :, None, None])
    y = jax.lax.reduce_window(y, -jnp.inf, jax.lax.max,
                              (1, 1, 2, 2), (1, 1, 2, 2), "VALID")
    y = jax.lax.conv_general_dilated(
        y, p["conv2_w"], (1, 1), ((0, 0), (0, 0)),
        dimension_numbers=("NCHW", "OIHW", "NCHW"), precision=hi)
    y = jax.nn.relu(y + p["conv2_b"][None, :, None, None])
    y = jax.lax.reduce_window(y, -jnp.inf, jax.lax.max,
                              (1, 1, 2, 2), (1, 1, 2, 2), "VALID")
    y = y.reshape(y.shape[0], -1)
    y = jax.nn.relu(jnp.dot(y, p["fc1_w"].T, precision=hi) + p["fc1_b"])
    y = jax.nn.relu(jnp.dot(y, p["fc2_w"].T, precision=hi) + p["fc2_b"])
    return jnp.dot(y, p["fc3_w"].T, precision=hi) + p["fc3_b"]


if __name__ == "__main__":
    key = jax.random.PRNGKey(0)
    k_param, k_x = jax.random.split(key)
    params = init_params(k_param)
    packed = pack_params(params)
    # The module implies a 28x28 single-channel input (16*5*5 flatten).
    x = jax.random.normal(k_x, (2, 1, 28, 28), dtype=jnp.float32)

    out = jax.block_until_ready(network_forward(packed, x))
    assert out.shape == (2, NUM_CLASSES), out.shape
    assert out.dtype == jnp.float32

    ref = reference_forward(params, x)
    # Tolerance is bounded by the MXU's default f32 matmul path (bf16-input
    # passes), not by the layout: real packing/layout bugs give O(0.1..1)
    # errors and are caught, typical numerical error here is ~1e-3.
    assert jnp.allclose(out, ref, atol=1e-2, rtol=1e-2), \
        f"max_err={float(jnp.max(jnp.abs(out - ref)))}"
    print("KERNEL_OK")
</pallas_src>

<mosaic_0001>
module attributes {stable_mosaic.version = 11 : i64} {
  func.func @_lenet_kernel(%arg0: i32, %arg1: memref<32x8x128xf32, #tpu.memory_space<vmem>>, %arg2: memref<5x128x256xf32, #tpu.memory_space<vmem>>, %arg3: memref<1x256xf32, #tpu.memory_space<vmem>>, %arg4: memref<5x256x256xf32, #tpu.memory_space<vmem>>, %arg5: memref<1x256xf32, #tpu.memory_space<vmem>>, %arg6: memref<5x256x128xf32, #tpu.memory_space<vmem>>, %arg7: memref<1x128xf32, #tpu.memory_space<vmem>>, %arg8: memref<128x128xf32, #tpu.memory_space<vmem>>, %arg9: memref<1x128xf32, #tpu.memory_space<vmem>>, %arg10: memref<128x128xf32, #tpu.memory_space<vmem>>, %arg11: memref<1x128xf32, #tpu.memory_space<vmem>>, %arg12: memref<8x128xf32, #tpu.memory_space<vmem>>, %arg13: memref<14x8x256xf32, #tpu.memory_space<vmem>>) attributes {dimension_semantics = [#tpu.dimension_semantics<parallel>], iteration_bounds = array<i64: 1>, scalar_prefetch = 0 : i64, scratch_operands = 1 : i64, tpu.core_type = #tpu.core_type<tc>, window_params = [{transform_indices = @transform_0, window_bounds = array<i64: 32, 8, 128>}, {pipeline_mode = #tpu.pipeline_mode<synchronous>, transform_indices = @transform_1, window_bounds = array<i64: 5, 128, 256>}, {pipeline_mode = #tpu.pipeline_mode<synchronous>, transform_indices = @transform_2, window_bounds = array<i64: 1, 256>}, {pipeline_mode = #tpu.pipeline_mode<synchronous>, transform_indices = @transform_3, window_bounds = array<i64: 5, 256, 256>}, {pipeline_mode = #tpu.pipeline_mode<synchronous>, transform_indices = @transform_4, window_bounds = array<i64: 1, 256>}, {pipeline_mode = #tpu.pipeline_mode<synchronous>, transform_indices = @transform_5, window_bounds = array<i64: 5, 256, 128>}, {pipeline_mode = #tpu.pipeline_mode<synchronous>, transform_indices = @transform_6, window_bounds = array<i64: 1, 128>}, {pipeline_mode = #tpu.pipeline_mode<synchronous>, transform_indices = @transform_7, window_bounds = array<i64: 128, 128>}, {pipeline_mode = #tpu.pipeline_mode<synchronous>, transform_indices = @transform_8, window_bounds = array<i64: 1, 128>}, {pipeline_mode = #tpu.pipeline_mode<synchronous>, transform_indices = @transform_9, window_bounds = array<i64: 128, 128>}, {pipeline_mode = #tpu.pipeline_mode<synchronous>, transform_indices = @transform_10, window_bounds = array<i64: 1, 128>}, {transform_indices = @transform_11, window_bounds = array<i64: 8, 128>}]} {
    %c0 = arith.constant 0 : index
    %c0_0 = arith.constant 0 : index
    %0 = vector.load %arg3[%c0, %c0_0] : memref<1x256xf32, #tpu.memory_space<vmem>>, vector<1x256xf32>
    %c0_1 = arith.constant 0 : index
    %c0_2 = arith.constant 0 : index
    %c0_3 = arith.constant 0 : index
    %1 = vector.load %arg1[%c0_1, %c0_2, %c0_3] : memref<32x8x128xf32, #tpu.memory_space<vmem>>, vector<8x8x128xf32>
    %2 = vector.shape_cast %1 : vector<8x8x128xf32> to vector<64x128xf32>
    %c0_4 = arith.constant 0 : index
    %c0_5 = arith.constant 0 : index
    %c0_6 = arith.constant 0 : index
    %3 = vector.load %arg2[%c0_4, %c0_5, %c0_6] : memref<5x128x256xf32, #tpu.memory_space<vmem>>, vector<1x128x256xf32>
    %4 = vector.shape_cast %3 : vector<1x128x256xf32> to vector<128x256xf32>
    %cst = arith.constant dense<0.000000e+00> : vector<64x256xf32>
    %5 = tpu.matmul %2, %4, %cst {dimension_numbers = #tpu.dot_dimension_numbers<[1], [0], [0], [1], [0, 0, 1, 1], [], []>} : vector<64x128xf32>, vector<128x256xf32>, vector<64x256xf32> -> vector<64x256xf32>
    %c1 = arith.constant 1 : index
    %c0_7 = arith.constant 0 : index
    %c0_8 = arith.constant 0 : index
    %6 = vector.load %arg1[%c1, %c0_7, %c0_8] : memref<32x8x128xf32, #tpu.memory_space<vmem>>, vector<8x8x128xf32>
    %7 = vector.shape_cast %6 : vector<8x8x128xf32> to vector<64x128xf32>
    %c1_9 = arith.constant 1 : index
    %c0_10 = arith.constant 0 : index
    %c0_11 = arith.constant 0 : index
    %8 = vector.load %arg2[%c1_9, %c0_10, %c0_11] : memref<5x128x256xf32, #tpu.memory_space<vmem>>, vector<1x128x256xf32>
    %9 = vector.shape_cast %8 : vector<1x128x256xf32> to vector<128x256xf32>
    %cst_12 = arith.constant dense<0.000000e+00> : vector<64x256xf32>
    %10 = tpu.matmul %7, %9, %cst_12 {dimension_numbers = #tpu.dot_dimension_numbers<[1], [0], [0], [1], [0, 0, 1, 1], [], []>} : vector<64x128xf32>, vector<128x256xf32>, vector<64x256xf32> -> vector<64x256xf32>
    %11 = arith.addf %5, %10 : vector<64x256xf32>
    %c2 = arith.constant 2 : index
    %c0_13 = arith.constant 0 : index
    %c0_14 = arith.constant 0 : index
    %12 = vector.load %arg1[%c2, %c0_13, %c0_14] : memref<32x8x128xf32, #tpu.memory_space<vmem>>, vector<8x8x128xf32>
    %13 = vector.shape_cast %12 : vector<8x8x128xf32> to vector<64x128xf32>
    %c2_15 = arith.constant 2 : index
    %c0_16 = arith.constant 0 : index
    %c0_17 = arith.constant 0 : index
    %14 = vector.load %arg2[%c2_15, %c0_16, %c0_17] : memref<5x128x256xf32, #tpu.memory_space<vmem>>, vector<1x128x256xf32>
    %15 = vector.shape_cast %14 : vector<1x128x256xf32> to vector<128x256xf32>
    %cst_18 = arith.constant dense<0.000000e+00> : vector<64x256xf32>
    %16 = tpu.matmul %13, %15, %cst_18 {dimension_numbers = #tpu.dot_dimension_numbers<[1], [0], [0], [1], [0, 0, 1, 1], [], []>} : vector<64x128xf32>, vector<128x256xf32>, vector<64x256xf32> -> vector<64x256xf32>
    %17 = arith.addf %11, %16 : vector<64x256xf32>
    %c3 = arith.constant 3 : index
    %c0_19 = arith.constant 0 : index
    %c0_20 = arith.constant 0 : index
    %18 = vector.load %arg1[%c3, %c0_19, %c0_20] : memref<32x8x128xf32, #tpu.memory_space<vmem>>, vector<8x8x128xf32>
    %19 = vector.shape_cast %18 : vector<8x8x128xf32> to vector<64x128xf32>
    %c3_21 = arith.constant 3 : index
    %c0_22 = arith.constant 0 : index
    %c0_23 = arith.constant 0 : index
    %20 = vector.load %arg2[%c3_21, %c0_22, %c0_23] : memref<5x128x256xf32, #tpu.memory_space<vmem>>, vector<1x128x256xf32>
    %21 = vector.shape_cast %20 : vector<1x128x256xf32> to vector<128x256xf32>
    %cst_24 = arith.constant dense<0.000000e+00> : vector<64x256xf32>
    %22 = tpu.matmul %19, %21, %cst_24 {dimension_numbers = #tpu.dot_dimension_numbers<[1], [0], [0], [1], [0, 0, 1, 1], [], []>} : vector<64x128xf32>, vector<128x256xf32>, vector<64x256xf32> -> vector<64x256xf32>
    %23 = arith.addf %17, %22 : vector<64x256xf32>
    %c4 = arith.constant 4 : index
    %c0_25 = arith.constant 0 : index
    %c0_26 = arith.constant 0 : index
    %24 = vector.load %arg1[%c4, %c0_25, %c0_26] : memref<32x8x128xf32, #tpu.memory_space<vmem>>, vector<8x8x128xf32>
    %25 = vector.shape_cast %24 : vector<8x8x128xf32> to vector<64x128xf32>
    %c4_27 = arith.constant 4 : index
    %c0_28 = arith.constant 0 : index
    %c0_29 = arith.constant 0 : index
    %26 = vector.load %arg2[%c4_27, %c0_28, %c0_29] : memref<5x128x256xf32, #tpu.memory_space<vmem>>, vector<1x128x256xf32>
    %27 = vector.shape_cast %26 : vector<1x128x256xf32> to vector<128x256xf32>
    %cst_30 = arith.constant dense<0.000000e+00> : vector<64x256xf32>
    %28 = tpu.matmul %25, %27, %cst_30 {dimension_numbers = #tpu.dot_dimension_numbers<[1], [0], [0], [1], [0, 0, 1, 1], [], []>} : vector<64x128xf32>, vector<128x256xf32>, vector<64x256xf32> -> vector<64x256xf32>
    %29 = arith.addf %23, %28 : vector<64x256xf32>
    %30 = vector.broadcast %0 : vector<1x256xf32> to vector<64x256xf32>
    %31 = arith.addf %29, %30 : vector<64x256xf32>
    %cst_31 = arith.constant 0.000000e+00 : f32
    %32 = vector.broadcast %cst_31 : f32 to vector<64x256xf32>
    %33 = arith.maximumf %31, %32 : vector<64x256xf32>
    %34 = vector.shape_cast %33 : vector<64x256xf32> to vector<8x8x256xf32>
    %35 = vector.shape_cast %34 : vector<8x8x256xf32> to vector<4x2x8x256xf32>
    %36 = vector.extract_strided_slice %35 {offsets = [0, 0, 0, 0], sizes = [4, 1, 8, 256], strides = [1, 1, 1, 1]} : vector<4x2x8x256xf32> to vector<4x1x8x256xf32>
    %37 = vector.shape_cast %36 : vector<4x1x8x256xf32> to vector<4x8x256xf32>
    %38 = vector.extract_strided_slice %35 {offsets = [0, 1, 0, 0], sizes = [4, 1, 8, 256], strides = [1, 1, 1, 1]} : vector<4x2x8x256xf32> to vector<4x1x8x256xf32>
    %39 = vector.shape_cast %38 : vector<4x1x8x256xf32> to vector<4x8x256xf32>
    %40 = arith.maximumf %37, %39 : vector<4x8x256xf32>
    %c0_32 = arith.constant 0 : index
    %c0_33 = arith.constant 0 : index
    %c0_34 = arith.constant 0 : index
    %41 = vector.load %arg13[%c0_32, %c0_33, %c0_34] : memref<14x8x256xf32, #tpu.memory_space<vmem>>, vector<4x8x256xf32>
    tpu.vector_store %arg13[%c0_32, %c0_33, %c0_34], %40 {strides = array<i32>} : memref<14x8x256xf32, #tpu.memory_space<vmem>>, vector<4x8x256xf32>,
    %c8 = arith.constant 8 : index
    %c0_35 = arith.constant 0 : index
    %c0_36 = arith.constant 0 : index
    %42 = vector.load %arg1[%c8, %c0_35, %c0_36] : memref<32x8x128xf32, #tpu.memory_space<vmem>>, vector<8x8x128xf32>
    %43 = vector.shape_cast %42 : vector<8x8x128xf32> to vector<64x128xf32>
    %c0_37 = arith.constant 0 : index
    %c0_38 = arith.constant 0 : index
    %c0_39 = arith.constant 0 : index
    %44 = vector.load %arg2[%c0_37, %c0_38, %c0_39] : memref<5x128x256xf32, #tpu.memory_space<vmem>>, vector<1x128x256xf32>
    %45 = vector.shape_cast %44 : vector<1x128x256xf32> to vector<128x256xf32>
    %cst_40 = arith.constant dense<0.000000e+00> : vector<64x256xf32>
    %46 = tpu.matmul %43, %45, %cst_40 {dimension_numbers = #tpu.dot_dimension_numbers<[1], [0], [0], [1], [0, 0, 1, 1], [], []>} : vector<64x128xf32>, vector<128x256xf32>, vector<64x256xf32> -> vector<64x256xf32>
    %c9 = arith.constant 9 : index
    %c0_41 = arith.constant 0 : index
    %c0_42 = arith.constant 0 : index
    %47 = vector.load %arg1[%c9, %c0_41, %c0_42] : memref<32x8x128xf32, #tpu.memory_space<vmem>>, vector<8x8x128xf32>
    %48 = vector.shape_cast %47 : vector<8x8x128xf32> to vector<64x128xf32>
    %c1_43 = arith.constant 1 : index
    %c0_44 = arith.constant 0 : index
    %c0_45 = arith.constant 0 : index
    %49 = vector.load %arg2[%c1_43, %c0_44, %c0_45] : memref<5x128x256xf32, #tpu.memory_space<vmem>>, vector<1x128x256xf32>
    %50 = vector.shape_cast %49 : vector<1x128x256xf32> to vector<128x256xf32>
    %cst_46 = arith.constant dense<0.000000e+00> : vector<64x256xf32>
    %51 = tpu.matmul %48, %50, %cst_46 {dimension_numbers = #tpu.dot_dimension_numbers<[1], [0], [0], [1], [0, 0, 1, 1], [], []>} : vector<64x128xf32>, vector<128x256xf32>, vector<64x256xf32> -> vector<64x256xf32>
    %52 = arith.addf %46, %51 : vector<64x256xf32>
    %c10 = arith.constant 10 : index
    %c0_47 = arith.constant 0 : index
    %c0_48 = arith.constant 0 : index
    %53 = vector.load %arg1[%c10, %c0_47, %c0_48] : memref<32x8x128xf32, #tpu.memory_space<vmem>>, vector<8x8x128xf32>
    %54 = vector.shape_cast %53 : vector<8x8x128xf32> to vector<64x128xf32>
    %c2_49 = arith.constant 2 : index
    %c0_50 = arith.constant 0 : index
    %c0_51 = arith.constant 0 : index
    %55 = vector.load %arg2[%c2_49, %c0_50, %c0_51] : memref<5x128x256xf32, #tpu.memory_space<vmem>>, vector<1x128x256xf32>
    %56 = vector.shape_cast %55 : vector<1x128x256xf32> to vector<128x256xf32>
    %cst_52 = arith.constant dense<0.000000e+00> : vector<64x256xf32>
    %57 = tpu.matmul %54, %56, %cst_52 {dimension_numbers = #tpu.dot_dimension_numbers<[1], [0], [0], [1], [0, 0, 1, 1], [], []>} : vector<64x128xf32>, vector<128x256xf32>, vector<64x256xf32> -> vector<64x256xf32>
    %58 = arith.addf %52, %57 : vector<64x256xf32>
    %c11 = arith.constant 11 : index
    %c0_53 = arith.constant 0 : index
    %c0_54 = arith.constant 0 : index
    %59 = vector.load %arg1[%c11, %c0_53, %c0_54] : memref<32x8x128xf32, #tpu.memory_space<vmem>>, vector<8x8x128xf32>
    %60 = vector.shape_cast %59 : vector<8x8x128xf32> to vector<64x128xf32>
    %c3_55 = arith.constant 3 : index
    %c0_56 = arith.constant 0 : index
    %c0_57 = arith.constant 0 : index
    %61 = vector.load %arg2[%c3_55, %c0_56, %c0_57] : memref<5x128x256xf32, #tpu.memory_space<vmem>>, vector<1x128x256xf32>
    %62 = vector.shape_cast %61 : vector<1x128x256xf32> to vector<128x256xf32>
    %cst_58 = arith.constant dense<0.000000e+00> : vector<64x256xf32>
    %63 = tpu.matmul %60, %62, %cst_58 {dimension_numbers = #tpu.dot_dimension_numbers<[1], [0], [0], [1], [0, 0, 1, 1], [], []>} : vector<64x128xf32>, vector<128x256xf32>, vector<64x256xf32> -> vector<64x256xf32>
    %64 = arith.addf %58, %63 : vector<64x256xf32>
    %c12 = arith.constant 12 : index
    %c0_59 = arith.constant 0 : index
    %c0_60 = arith.constant 0 : index
    %65 = vector.load %arg1[%c12, %c0_59, %c0_60] : memref<32x8x128xf32, #tpu.memory_space<vmem>>, vector<8x8x128xf32>
    %66 = vector.shape_cast %65 : vector<8x8x128xf32> to vector<64x128xf32>
    %c4_61 = arith.constant 4 : index
    %c0_62 = arith.constant 0 : index
    %c0_63 = arith.constant 0 : index
    %67 = vector.load %arg2[%c4_61, %c0_62, %c0_63] : memref<5x128x256xf32, #tpu.memory_space<vmem>>, vector<1x128x256xf32>
    %68 = vector.shape_cast %67 : vector<1x128x256xf32> to vector<128x256xf32>
    %cst_64 = arith.constant dense<0.000000e+00> : vector<64x256xf32>
    %69 = tpu.matmul %66, %68, %cst_64 {dimension_numbers = #tpu.dot_dimension_numbers<[1], [0], [0], [1], [0, 0, 1, 1], [], []>} : vector<64x128xf32>, vector<128x256xf32>, vector<64x256xf32> -> vector<64x256xf32>
    %70 = arith.addf %64, %69 : vector<64x256xf32>
    %71 = vector.broadcast %0 : vector<1x256xf32> to vector<64x256xf32>
    %72 = arith.addf %70, %71 : vector<64x256xf32>
    %cst_65 = arith.constant 0.000000e+00 : f32
    %73 = vector.broadcast %cst_65 : f32 to vector<64x256xf32>
    %74 = arith.maximumf %72, %73 : vector<64x256xf32>
    %75 = vector.shape_cast %74 : vector<64x256xf32> to vector<8x8x256xf32>
    %76 = vector.shape_cast %75 : vector<8x8x256xf32> to vector<4x2x8x256xf32>
    %77 = vector.extract_strided_slice %76 {offsets = [0, 0, 0, 0], sizes = [4, 1, 8, 256], strides = [1, 1, 1, 1]} : vector<4x2x8x256xf32> to vector<4x1x8x256xf32>
    %78 = vector.shape_cast %77 : vector<4x1x8x256xf32> to vector<4x8x256xf32>
    %79 = vector.extract_strided_slice %76 {offsets = [0, 1, 0, 0], sizes = [4, 1, 8, 256], strides = [1, 1, 1, 1]} : vector<4x2x8x256xf32> to vector<4x1x8x256xf32>
    %80 = vector.shape_cast %79 : vector<4x1x8x256xf32> to vector<4x8x256xf32>
    %81 = arith.maximumf %78, %80 : vector<4x8x256xf32>
    %c4_66 = arith.constant 4 : index
    %c0_67 = arith.constant 0 : index
    %c0_68 = arith.constant 0 : index
    %82 = vector.load %arg13[%c4_66, %c0_67, %c0_68] : memref<14x8x256xf32, #tpu.memory_space<vmem>>, vector<4x8x256xf32>
    tpu.vector_store %arg13[%c4_66, %c0_67, %c0_68], %81 {strides = array<i32>} : memref<14x8x256xf32, #tpu.memory_space<vmem>>, vector<4x8x256xf32>,
    %c16 = arith.constant 16 : index
    %c0_69 = arith.constant 0 : index
    %c0_70 = arith.constant 0 : index
    %83 = vector.load %arg1[%c16, %c0_69, %c0_70] : memref<32x8x128xf32, #tpu.memory_space<vmem>>, vector<8x8x128xf32>
    %84 = vector.shape_cast %83 : vector<8x8x128xf32> to vector<64x128xf32>
    %c0_71 = arith.constant 0 : index
    %c0_72 = arith.constant 0 : index
    %c0_73 = arith.constant 0 : index
    %85 = vector.load %arg2[%c0_71, %c0_72, %c0_73] : memref<5x128x256xf32, #tpu.memory_space<vmem>>, vector<1x128x256xf32>
    %86 = vector.shape_cast %85 : vector<1x128x256xf32> to vector<128x256xf32>
    %cst_74 = arith.constant dense<0.000000e+00> : vector<64x256xf32>
    %87 = tpu.matmul %84, %86, %cst_74 {dimension_numbers = #tpu.dot_dimension_numbers<[1], [0], [0], [1], [0, 0, 1, 1], [], []>} : vector<64x128xf32>, vector<128x256xf32>, vector<64x256xf32> -> vector<64x256xf32>
    %c17 = arith.constant 17 : index
    %c0_75 = arith.constant 0 : index
    %c0_76 = arith.constant 0 : index
    %88 = vector.load %arg1[%c17, %c0_75, %c0_76] : memref<32x8x128xf32, #tpu.memory_space<vmem>>, vector<8x8x128xf32>
    %89 = vector.shape_cast %88 : vector<8x8x128xf32> to vector<64x128xf32>
    %c1_77 = arith.constant 1 : index
    %c0_78 = arith.constant 0 : index
    %c0_79 = arith.constant 0 : index
    %90 = vector.load %arg2[%c1_77, %c0_78, %c0_79] : memref<5x128x256xf32, #tpu.memory_space<vmem>>, vector<1x128x256xf32>
    %91 = vector.shape_cast %90 : vector<1x128x256xf32> to vector<128x256xf32>
    %cst_80 = arith.constant dense<0.000000e+00> : vector<64x256xf32>
    %92 = tpu.matmul %89, %91, %cst_80 {dimension_numbers = #tpu.dot_dimension_numbers<[1], [0], [0], [1], [0, 0, 1, 1], [], []>} : vector<64x128xf32>, vector<128x256xf32>, vector<64x256xf32> -> vector<64x256xf32>
    %93 = arith.addf %87, %92 : vector<64x256xf32>
    %c18 = arith.constant 18 : index
    %c0_81 = arith.constant 0 : index
    %c0_82 = arith.constant 0 : index
    %94 = vector.load %arg1[%c18, %c0_81, %c0_82] : memref<32x8x128xf32, #tpu.memory_space<vmem>>, vector<8x8x128xf32>
    %95 = vector.shape_cast %94 : vector<8x8x128xf32> to vector<64x128xf32>
    %c2_83 = arith.constant 2 : index
    %c0_84 = arith.constant 0 : index
    %c0_85 = arith.constant 0 : index
    %96 = vector.load %arg2[%c2_83, %c0_84, %c0_85] : memref<5x128x256xf32, #tpu.memory_space<vmem>>, vector<1x128x256xf32>
    %97 = vector.shape_cast %96 : vector<1x128x256xf32> to vector<128x256xf32>
    %cst_86 = arith.constant dense<0.000000e+00> : vector<64x256xf32>
    %98 = tpu.matmul %95, %97, %cst_86 {dimension_numbers = #tpu.dot_dimension_numbers<[1], [0], [0], [1], [0, 0, 1, 1], [], []>} : vector<64x128xf32>, vector<128x256xf32>, vector<64x256xf32> -> vector<64x256xf32>
    %99 = arith.addf %93, %98 : vector<64x256xf32>
    %c19 = arith.constant 19 : index
    %c0_87 = arith.constant 0 : index
    %c0_88 = arith.constant 0 : index
    %100 = vector.load %arg1[%c19, %c0_87, %c0_88] : memref<32x8x128xf32, #tpu.memory_space<vmem>>, vector<8x8x128xf32>
    %101 = vector.shape_cast %100 : vector<8x8x128xf32> to vector<64x128xf32>
    %c3_89 = arith.constant 3 : index
    %c0_90 = arith.constant 0 : index
    %c0_91 = arith.constant 0 : index
    %102 = vector.load %arg2[%c3_89, %c0_90, %c0_91] : memref<5x128x256xf32, #tpu.memory_space<vmem>>, vector<1x128x256xf32>
    %103 = vector.shape_cast %102 : vector<1x128x256xf32> to vector<128x256xf32>
    %cst_92 = arith.constant dense<0.000000e+00> : vector<64x256xf32>
    %104 = tpu.matmul %101, %103, %cst_92 {dimension_numbers = #tpu.dot_dimension_numbers<[1], [0], [0], [1], [0, 0, 1, 1], [], []>} : vector<64x128xf32>, vector<128x256xf32>, vector<64x256xf32> -> vector<64x256xf32>
    %105 = arith.addf %99, %104 : vector<64x256xf32>
    %c20 = arith.constant 20 : index
    %c0_93 = arith.constant 0 : index
    %c0_94 = arith.constant 0 : index
    %106 = vector.load %arg1[%c20, %c0_93, %c0_94] : memref<32x8x128xf32, #tpu.memory_space<vmem>>, vector<8x8x128xf32>
    %107 = vector.shape_cast %106 : vector<8x8x128xf32> to vector<64x128xf32>
    %c4_95 = arith.constant 4 : index
    %c0_96 = arith.constant 0 : index
    %c0_97 = arith.constant 0 : index
    %108 = vector.load %arg2[%c4_95, %c0_96, %c0_97] : memref<5x128x256xf32, #tpu.memory_space<vmem>>, vector<1x128x256xf32>
    %109 = vector.shape_cast %108 : vector<1x128x256xf32> to vector<128x256xf32>
    %cst_98 = arith.constant dense<0.000000e+00> : vector<64x256xf32>
    %110 = tpu.matmul %107, %109, %cst_98 {dimension_numbers = #tpu.dot_dimension_numbers<[1], [0], [0], [1], [0, 0, 1, 1], [], []>} : vector<64x128xf32>, vector<128x256xf32>, vector<64x256xf32> -> vector<64x256xf32>
    %111 = arith.addf %105, %110 : vector<64x256xf32>
    %112 = vector.broadcast %0 : vector<1x256xf32> to vector<64x256xf32>
    %113 = arith.addf %111, %112 : vector<64x256xf32>
    %cst_99 = arith.constant 0.000000e+00 : f32
    %114 = vector.broadcast %cst_99 : f32 to vector<64x256xf32>
    %115 = arith.maximumf %113, %114 : vector<64x256xf32>
    %116 = vector.shape_cast %115 : vector<64x256xf32> to vector<8x8x256xf32>
    %117 = vector.shape_cast %116 : vector<8x8x256xf32> to vector<4x2x8x256xf32>
    %118 = vector.extract_strided_slice %117 {offsets = [0, 0, 0, 0], sizes = [4, 1, 8, 256], strides = [1, 1, 1, 1]} : vector<4x2x8x256xf32> to vector<4x1x8x256xf32>
    %119 = vector.shape_cast %118 : vector<4x1x8x256xf32> to vector<4x8x256xf32>
    %120 = vector.extract_strided_slice %117 {offsets = [0, 1, 0, 0], sizes = [4, 1, 8, 256], strides = [1, 1, 1, 1]} : vector<4x2x8x256xf32> to vector<4x1x8x256xf32>
    %121 = vector.shape_cast %120 : vector<4x1x8x256xf32> to vector<4x8x256xf32>
    %122 = arith.maximumf %119, %121 : vector<4x8x256xf32>
    %c8_100 = arith.constant 8 : index
    %c0_101 = arith.constant 0 : index
    %c0_102 = arith.constant 0 : index
    %123 = vector.load %arg13[%c8_100, %c0_101, %c0_102] : memref<14x8x256xf32, #tpu.memory_space<vmem>>, vector<4x8x256xf32>
    tpu.vector_store %arg13[%c8_100, %c0_101, %c0_102], %122 {strides = array<i32>} : memref<14x8x256xf32, #tpu.memory_space<vmem>>, vector<4x8x256xf32>,
    %c24 = arith.constant 24 : index
    %c0_103 = arith.constant 0 : index
    %c0_104 = arith.constant 0 : index
    %124 = vector.load %arg1[%c24, %c0_103, %c0_104] : memref<32x8x128xf32, #tpu.memory_space<vmem>>, vector<4x8x128xf32>
    %125 = vector.shape_cast %124 : vector<4x8x128xf32> to vector<32x128xf32>
    %c0_105 = arith.constant 0 : index
    %c0_106 = arith.constant 0 : index
    %c0_107 = arith.constant 0 : index
    %126 = vector.load %arg2[%c0_105, %c0_106, %c0_107] : memref<5x128x256xf32, #tpu.memory_space<vmem>>, vector<1x128x256xf32>
    %127 = vector.shape_cast %126 : vector<1x128x256xf32> to vector<128x256xf32>
    %cst_108 = arith.constant dense<0.000000e+00> : vector<32x256xf32>
    %128 = tpu.matmul %125, %127, %cst_108 {dimension_numbers = #tpu.dot_dimension_numbers<[1], [0], [0], [1], [0, 0, 1, 1], [], []>} : vector<32x128xf32>, vector<128x256xf32>, vector<32x256xf32> -> vector<32x256xf32>
    %c25 = arith.constant 25 : index
    %c0_109 = arith.constant 0 : index
    %c0_110 = arith.constant 0 : index
    %129 = vector.load %arg1[%c25, %c0_109, %c0_110] : memref<32x8x128xf32, #tpu.memory_space<vmem>>, vector<4x8x128xf32>
    %130 = vector.shape_cast %129 : vector<4x8x128xf32> to vector<32x128xf32>
    %c1_111 = arith.constant 1 : index
    %c0_112 = arith.constant 0 : index
    %c0_113 = arith.constant 0 : index
    %131 = vector.load %arg2[%c1_111, %c0_112, %c0_113] : memref<5x128x256xf32, #tpu.memory_space<vmem>>, vector<1x128x256xf32>
    %132 = vector.shape_cast %131 : vector<1x128x256xf32> to vector<128x256xf32>
    %cst_114 = arith.constant dense<0.000000e+00> : vector<32x256xf32>
    %133 = tpu.matmul %130, %132, %cst_114 {dimension_numbers = #tpu.dot_dimension_numbers<[1], [0], [0], [1], [0, 0, 1, 1], [], []>} : vector<32x128xf32>, vector<128x256xf32>, vector<32x256xf32> -> vector<32x256xf32>
    %134 = arith.addf %128, %133 : vector<32x256xf32>
    %c26 = arith.constant 26 : index
    %c0_115 = arith.constant 0 : index
    %c0_116 = arith.constant 0 : index
    %135 = vector.load %arg1[%c26, %c0_115, %c0_116] : memref<32x8x128xf32, #tpu.memory_space<vmem>>, vector<4x8x128xf32>
    %136 = vector.shape_cast %135 : vector<4x8x128xf32> to vector<32x128xf32>
    %c2_117 = arith.constant 2 : index
    %c0_118 = arith.constant 0 : index
    %c0_119 = arith.constant 0 : index
    %137 = vector.load %arg2[%c2_117, %c0_118, %c0_119] : memref<5x128x256xf32, #tpu.memory_space<vmem>>, vector<1x128x256xf32>
    %138 = vector.shape_cast %137 : vector<1x128x256xf32> to vector<128x256xf32>
    %cst_120 = arith.constant dense<0.000000e+00> : vector<32x256xf32>
    %139 = tpu.matmul %136, %138, %cst_120 {dimension_numbers = #tpu.dot_dimension_numbers<[1], [0], [0], [1], [0, 0, 1, 1], [], []>} : vector<32x128xf32>, vector<128x256xf32>, vector<32x256xf32> -> vector<32x256xf32>
    %140 = arith.addf %134, %139 : vector<32x256xf32>
    %c27 = arith.constant 27 : index
    %c0_121 = arith.constant 0 : index
    %c0_122 = arith.constant 0 : index
    %141 = vector.load %arg1[%c27, %c0_121, %c0_122] : memref<32x8x128xf32, #tpu.memory_space<vmem>>, vector<4x8x128xf32>
    %142 = vector.shape_cast %141 : vector<4x8x128xf32> to vector<32x128xf32>
    %c3_123 = arith.constant 3 : index
    %c0_124 = arith.constant 0 : index
    %c0_125 = arith.constant 0 : index
    %143 = vector.load %arg2[%c3_123, %c0_124, %c0_125] : memref<5x128x256xf32, #tpu.memory_space<vmem>>, vector<1x128x256xf32>
    %144 = vector.shape_cast %143 : vector<1x128x256xf32> to vector<128x256xf32>
    %cst_126 = arith.constant dense<0.000000e+00> : vector<32x256xf32>
    %145 = tpu.matmul %142, %144, %cst_126 {dimension_numbers = #tpu.dot_dimension_numbers<[1], [0], [0], [1], [0, 0, 1, 1], [], []>} : vector<32x128xf32>, vector<128x256xf32>, vector<32x256xf32> -> vector<32x256xf32>
    %146 = arith.addf %140, %145 : vector<32x256xf32>
    %c28 = arith.constant 28 : index
    %c0_127 = arith.constant 0 : index
    %c0_128 = arith.constant 0 : index
    %147 = vector.load %arg1[%c28, %c0_127, %c0_128] : memref<32x8x128xf32, #tpu.memory_space<vmem>>, vector<4x8x128xf32>
    %148 = vector.shape_cast %147 : vector<4x8x128xf32> to vector<32x128xf32>
    %c4_129 = arith.constant 4 : index
    %c0_130 = arith.constant 0 : index
    %c0_131 = arith.constant 0 : index
    %149 = vector.load %arg2[%c4_129, %c0_130, %c0_131] : memref<5x128x256xf32, #tpu.memory_space<vmem>>, vector<1x128x256xf32>
    %150 = vector.shape_cast %149 : vector<1x128x256xf32> to vector<128x256xf32>
    %cst_132 = arith.constant dense<0.000000e+00> : vector<32x256xf32>
    %151 = tpu.matmul %148, %150, %cst_132 {dimension_numbers = #tpu.dot_dimension_numbers<[1], [0], [0], [1], [0, 0, 1, 1], [], []>} : vector<32x128xf32>, vector<128x256xf32>, vector<32x256xf32> -> vector<32x256xf32>
    %152 = arith.addf %146, %151 : vector<32x256xf32>
    %153 = vector.broadcast %0 : vector<1x256xf32> to vector<32x256xf32>
    %154 = arith.addf %152, %153 : vector<32x256xf32>
    %cst_133 = arith.constant 0.000000e+00 : f32
    %155 = vector.broadcast %cst_133 : f32 to vector<32x256xf32>
    %156 = arith.maximumf %154, %155 : vector<32x256xf32>
    %157 = vector.shape_cast %156 : vector<32x256xf32> to vector<4x8x256xf32>
    %158 = vector.shape_cast %157 : vector<4x8x256xf32> to vector<2x2x8x256xf32>
    %159 = vector.extract_strided_slice %158 {offsets = [0, 0, 0, 0], sizes = [2, 1, 8, 256], strides = [1, 1, 1, 1]} : vector<2x2x8x256xf32> to vector<2x1x8x256xf32>
    %160 = vector.shape_cast %159 : vector<2x1x8x256xf32> to vector<2x8x256xf32>
    %161 = vector.extract_strided_slice %158 {offsets = [0, 1, 0, 0], sizes = [2, 1, 8, 256], strides = [1, 1, 1, 1]} : vector<2x2x8x256xf32> to vector<2x1x8x256xf32>
    %162 = vector.shape_cast %161 : vector<2x1x8x256xf32> to vector<2x8x256xf32>
    %163 = arith.maximumf %160, %162 : vector<2x8x256xf32>
    %c12_134 = arith.constant 12 : index
    %c0_135 = arith.constant 0 : index
    %c0_136 = arith.constant 0 : index
    %164 = vector.load %arg13[%c12_134, %c0_135, %c0_136] : memref<14x8x256xf32, #tpu.memory_space<vmem>>, vector<2x8x256xf32>
    tpu.vector_store %arg13[%c12_134, %c0_135, %c0_136], %163 {strides = array<i32>} : memref<14x8x256xf32, #tpu.memory_space<vmem>>, vector<2x8x256xf32>,
    %c0_137 = arith.constant 0 : index
    %c0_138 = arith.constant 0 : index
    %c0_139 = arith.constant 0 : index
    %165 = vector.load %arg13[%c0_137, %c0_138, %c0_139] : memref<14x8x256xf32, #tpu.memory_space<vmem>>, vector<14x8x256xf32>
    %c1_i32 = arith.constant 1 : i32
    %166 = tpu.dynamic_rotate %165 by %c1_i32 dim 2 : vector<14x8x256xf32>, i32 -> vector<14x8x256xf32>
    %167 = arith.maximumf %165, %166 : vector<14x8x256xf32>
    %168 = vector.extract_strided_slice %167 {offsets = [0, 0, 0], sizes = [10, 8, 256], strides = [1, 1, 1]} : vector<14x8x256xf32> to vector<10x8x256xf32>
    %169 = vector.shape_cast %168 : vector<10x8x256xf32> to vector<80x256xf32>
    %c0_140 = arith.constant 0 : index
    %c0_141 = arith.constant 0 : index
    %c0_142 = arith.constant 0 : index
    %170 = vector.load %arg4[%c0_140, %c0_141, %c0_142] : memref<5x256x256xf32, #tpu.memory_space<vmem>>, vector<1x256x256xf32>
    %171 = vector.shape_cast %170 : vector<1x256x256xf32> to vector<256x256xf32>
    %cst_143 = arith.constant dense<0.000000e+00> : vector<80x256xf32>
    %172 = tpu.matmul %169, %171, %cst_143 {dimension_numbers = #tpu.dot_dimension_numbers<[1], [0], [0], [1], [0, 0, 1, 1], [], []>} : vector<80x256xf32>, vector<256x256xf32>, vector<80x256xf32> -> vector<80x256xf32>
    %173 = vector.extract_strided_slice %167 {offsets = [1, 0, 0], sizes = [10, 8, 256], strides = [1, 1, 1]} : vector<14x8x256xf32> to vector<10x8x256xf32>
    %174 = vector.shape_cast %173 : vector<10x8x256xf32> to vector<80x256xf32>
    %c1_144 = arith.constant 1 : index
    %c0_145 = arith.constant 0 : index
    %c0_146 = arith.constant 0 : index
    %175 = vector.load %arg4[%c1_144, %c0_145, %c0_146] : memref<5x256x256xf32, #tpu.memory_space<vmem>>, vector<1x256x256xf32>
    %176 = vector.shape_cast %175 : vector<1x256x256xf32> to vector<256x256xf32>
    %cst_147 = arith.constant dense<0.000000e+00> : vector<80x256xf32>
    %177 = tpu.matmul %174, %176, %cst_147 {dimension_numbers = #tpu.dot_dimension_numbers<[1], [0], [0], [1], [0, 0, 1, 1], [], []>} : vector<80x256xf32>, vector<256x256xf32>, vector<80x256xf32> -> vector<80x256xf32>
    %178 = arith.addf %172, %177 : vector<80x256xf32>
    %179 = vector.extract_strided_slice %167 {offsets = [2, 0, 0], sizes = [10, 8, 256], strides = [1, 1, 1]} : vector<14x8x256xf32> to vector<10x8x256xf32>
    %180 = vector.shape_cast %179 : vector<10x8x256xf32> to vector<80x256xf32>
    %c2_148 = arith.constant 2 : index
    %c0_149 = arith.constant 0 : index
    %c0_150 = arith.constant 0 : index
    %181 = vector.load %arg4[%c2_148, %c0_149, %c0_150] : memref<5x256x256xf32, #tpu.memory_space<vmem>>, vector<1x256x256xf32>
    %182 = vector.shape_cast %181 : vector<1x256x256xf32> to vector<256x256xf32>
    %cst_151 = arith.constant dense<0.000000e+00> : vector<80x256xf32>
    %183 = tpu.matmul %180, %182, %cst_151 {dimension_numbers = #tpu.dot_dimension_numbers<[1], [0], [0], [1], [0, 0, 1, 1], [], []>} : vector<80x256xf32>, vector<256x256xf32>, vector<80x256xf32> -> vector<80x256xf32>
    %184 = arith.addf %178, %183 : vector<80x256xf32>
    %185 = vector.extract_strided_slice %167 {offsets = [3, 0, 0], sizes = [10, 8, 256], strides = [1, 1, 1]} : vector<14x8x256xf32> to vector<10x8x256xf32>
    %186 = vector.shape_cast %185 : vector<10x8x256xf32> to vector<80x256xf32>
    %c3_152 = arith.constant 3 : index
    %c0_153 = arith.constant 0 : index
    %c0_154 = arith.constant 0 : index
    %187 = vector.load %arg4[%c3_152, %c0_153, %c0_154] : memref<5x256x256xf32, #tpu.memory_space<vmem>>, vector<1x256x256xf32>
    %188 = vector.shape_cast %187 : vector<1x256x256xf32> to vector<256x256xf32>
    %cst_155 = arith.constant dense<0.000000e+00> : vector<80x256xf32>
    %189 = tpu.matmul %186, %188, %cst_155 {dimension_numbers = #tpu.dot_dimension_numbers<[1], [0], [0], [1], [0, 0, 1, 1], [], []>} : vector<80x256xf32>, vector<256x256xf32>, vector<80x256xf32> -> vector<80x256xf32>
    %190 = arith.addf %184, %189 : vector<80x256xf32>
    %191 = vector.extract_strided_slice %167 {offsets = [4, 0, 0], sizes = [10, 8, 256], strides = [1, 1, 1]} : vector<14x8x256xf32> to vector<10x8x256xf32>
    %192 = vector.shape_cast %191 : vector<10x8x256xf32> to vector<80x256xf32>
    %c4_156 = arith.constant 4 : index
    %c0_157 = arith.constant 0 : index
    %c0_158 = arith.constant 0 : index
    %193 = vector.load %arg4[%c4_156, %c0_157, %c0_158] : memref<5x256x256xf32, #tpu.memory_space<vmem>>, vector<1x256x256xf32>
    %194 = vector.shape_cast %193 : vector<1x256x256xf32> to vector<256x256xf32>
    %cst_159 = arith.constant dense<0.000000e+00> : vector<80x256xf32>
    %195 = tpu.matmul %192, %194, %cst_159 {dimension_numbers = #tpu.dot_dimension_numbers<[1], [0], [0], [1], [0, 0, 1, 1], [], []>} : vector<80x256xf32>, vector<256x256xf32>, vector<80x256xf32> -> vector<80x256xf32>
    %196 = arith.addf %190, %195 : vector<80x256xf32>
    %c0_160 = arith.constant 0 : index
    %c0_161 = arith.constant 0 : index
    %197 = vector.load %arg5[%c0_160, %c0_161] : memref<1x256xf32, #tpu.memory_space<vmem>>, vector<1x256xf32>
    %198 = vector.broadcast %197 : vector<1x256xf32> to vector<80x256xf32>
    %199 = arith.addf %196, %198 : vector<80x256xf32>
    %cst_162 = arith.constant 0.000000e+00 : f32
    %200 = vector.broadcast %cst_162 : f32 to vector<80x256xf32>
    %201 = arith.maximumf %199, %200 : vector<80x256xf32>
    %202 = vector.shape_cast %201 : vector<80x256xf32> to vector<10x8x256xf32>
    %203 = vector.shape_cast %202 : vector<10x8x256xf32> to vector<5x2x8x256xf32>
    %204 = vector.extract_strided_slice %203 {offsets = [0, 0, 0, 0], sizes = [5, 1, 8, 256], strides = [1, 1, 1, 1]} : vector<5x2x8x256xf32> to vector<5x1x8x256xf32>
    %205 = vector.shape_cast %204 : vector<5x1x8x256xf32> to vector<5x8x256xf32>
    %206 = vector.extract_strided_slice %203 {offsets = [0, 1, 0, 0], sizes = [5, 1, 8, 256], strides = [1, 1, 1, 1]} : vector<5x2x8x256xf32> to vector<5x1x8x256xf32>
    %207 = vector.shape_cast %206 : vector<5x1x8x256xf32> to vector<5x8x256xf32>
    %208 = arith.maximumf %205, %207 : vector<5x8x256xf32>
    %c1_i32_163 = arith.constant 1 : i32
    %209 = tpu.dynamic_rotate %208 by %c1_i32_163 dim 2 : vector<5x8x256xf32>, i32 -> vector<5x8x256xf32>
    %210 = arith.maximumf %208, %209 : vector<5x8x256xf32>
    %211 = vector.extract_strided_slice %210 {offsets = [0, 0, 0], sizes = [1, 8, 256], strides = [1, 1, 1]} : vector<5x8x256xf32> to vector<1x8x256xf32>
    %212 = vector.shape_cast %211 : vector<1x8x256xf32> to vector<8x256xf32>
    %c0_164 = arith.constant 0 : index
    %c0_165 = arith.constant 0 : index
    %c0_166 = arith.constant 0 : index
    %213 = vector.load %arg6[%c0_164, %c0_165, %c0_166] : memref<5x256x128xf32, #tpu.memory_space<vmem>>, vector<1x256x128xf32>
    %214 = vector.shape_cast %213 : vector<1x256x128xf32> to vector<256x128xf32>
    %cst_167 = arith.constant dense<0.000000e+00> : vector<8x128xf32>
    %215 = tpu.matmul %212, %214, %cst_167 {dimension_numbers = #tpu.dot_dimension_numbers<[1], [0], [0], [1], [0, 0, 1, 1], [], []>} : vector<8x256xf32>, vector<256x128xf32>, vector<8x128xf32> -> vector<8x128xf32>
    %216 = vector.extract_strided_slice %210 {offsets = [1, 0, 0], sizes = [1, 8, 256], strides = [1, 1, 1]} : vector<5x8x256xf32> to vector<1x8x256xf32>
    %217 = vector.shape_cast %216 : vector<1x8x256xf32> to vector<8x256xf32>
    %c1_168 = arith.constant 1 : index
    %c0_169 = arith.constant 0 : index
    %c0_170 = arith.constant 0 : index
    %218 = vector.load %arg6[%c1_168, %c0_169, %c0_170] : memref<5x256x128xf32, #tpu.memory_space<vmem>>, vector<1x256x128xf32>
    %219 = vector.shape_cast %218 : vector<1x256x128xf32> to vector<256x128xf32>
    %cst_171 = arith.constant dense<0.000000e+00> : vector<8x128xf32>
    %220 = tpu.matmul %217, %219, %cst_171 {dimension_numbers = #tpu.dot_dimension_numbers<[1], [0], [0], [1], [0, 0, 1, 1], [], []>} : vector<8x256xf32>, vector<256x128xf32>, vector<8x128xf32> -> vector<8x128xf32>
    %221 = arith.addf %215, %220 : vector<8x128xf32>
    %222 = vector.extract_strided_slice %210 {offsets = [2, 0, 0], sizes = [1, 8, 256], strides = [1, 1, 1]} : vector<5x8x256xf32> to vector<1x8x256xf32>
    %223 = vector.shape_cast %222 : vector<1x8x256xf32> to vector<8x256xf32>
    %c2_172 = arith.constant 2 : index
    %c0_173 = arith.constant 0 : index
    %c0_174 = arith.constant 0 : index
    %224 = vector.load %arg6[%c2_172, %c0_173, %c0_174] : memref<5x256x128xf32, #tpu.memory_space<vmem>>, vector<1x256x128xf32>
    %225 = vector.shape_cast %224 : vector<1x256x128xf32> to vector<256x128xf32>
    %cst_175 = arith.constant dense<0.000000e+00> : vector<8x128xf32>
    %226 = tpu.matmul %223, %225, %cst_175 {dimension_numbers = #tpu.dot_dimension_numbers<[1], [0], [0], [1], [0, 0, 1, 1], [], []>} : vector<8x256xf32>, vector<256x128xf32>, vector<8x128xf32> -> vector<8x128xf32>
    %227 = arith.addf %221, %226 : vector<8x128xf32>
    %228 = vector.extract_strided_slice %210 {offsets = [3, 0, 0], sizes = [1, 8, 256], strides = [1, 1, 1]} : vector<5x8x256xf32> to vector<1x8x256xf32>
    %229 = vector.shape_cast %228 : vector<1x8x256xf32> to vector<8x256xf32>
    %c3_176 = arith.constant 3 : index
    %c0_177 = arith.constant 0 : index
    %c0_178 = arith.constant 0 : index
    %230 = vector.load %arg6[%c3_176, %c0_177, %c0_178] : memref<5x256x128xf32, #tpu.memory_space<vmem>>, vector<1x256x128xf32>
    %231 = vector.shape_cast %230 : vector<1x256x128xf32> to vector<256x128xf32>
    %cst_179 = arith.constant dense<0.000000e+00> : vector<8x128xf32>
    %232 = tpu.matmul %229, %231, %cst_179 {dimension_numbers = #tpu.dot_dimension_numbers<[1], [0], [0], [1], [0, 0, 1, 1], [], []>} : vector<8x256xf32>, vector<256x128xf32>, vector<8x128xf32> -> vector<8x128xf32>
    %233 = arith.addf %227, %232 : vector<8x128xf32>
    %234 = vector.extract_strided_slice %210 {offsets = [4, 0, 0], sizes = [1, 8, 256], strides = [1, 1, 1]} : vector<5x8x256xf32> to vector<1x8x256xf32>
    %235 = vector.shape_cast %234 : vector<1x8x256xf32> to vector<8x256xf32>
    %c4_180 = arith.constant 4 : index
    %c0_181 = arith.constant 0 : index
    %c0_182 = arith.constant 0 : index
    %236 = vector.load %arg6[%c4_180, %c0_181, %c0_182] : memref<5x256x128xf32, #tpu.memory_space<vmem>>, vector<1x256x128xf32>
    %237 = vector.shape_cast %236 : vector<1x256x128xf32> to vector<256x128xf32>
    %cst_183 = arith.constant dense<0.000000e+00> : vector<8x128xf32>
    %238 = tpu.matmul %235, %237, %cst_183 {dimension_numbers = #tpu.dot_dimension_numbers<[1], [0], [0], [1], [0, 0, 1, 1], [], []>} : vector<8x256xf32>, vector<256x128xf32>, vector<8x128xf32> -> vector<8x128xf32>
    %239 = arith.addf %233, %238 : vector<8x128xf32>
    %c0_184 = arith.constant 0 : index
    %c0_185 = arith.constant 0 : index
    %240 = vector.load %arg7[%c0_184, %c0_185] : memref<1x128xf32, #tpu.memory_space<vmem>>, vector<1x128xf32>
    %241 = vector.broadcast %240 : vector<1x128xf32> to vector<8x128xf32>
    %242 = arith.addf %239, %241 : vector<8x128xf32>
    %cst_186 = arith.constant 0.000000e+00 : f32
    %243 = vector.broadcast %cst_186 : f32 to vector<8x128xf32>
    %244 = arith.maximumf %242, %243 : vector<8x128xf32>
    %c0_187 = arith.constant 0 : index
    %c0_188 = arith.constant 0 : index
    %245 = vector.load %arg8[%c0_187, %c0_188] : memref<128x128xf32, #tpu.memory_space<vmem>>, vector<128x128xf32>
    %cst_189 = arith.constant dense<0.000000e+00> : vector<8x128xf32>
    %246 = tpu.matmul %244, %245, %cst_189 {dimension_numbers = #tpu.dot_dimension_numbers<[1], [0], [0], [1], [0, 0, 1, 1], [], []>} : vector<8x128xf32>, vector<128x128xf32>, vector<8x128xf32> -> vector<8x128xf32>
    %c0_190 = arith.constant 0 : index
    %c0_191 = arith.constant 0 : index
    %247 = vector.load %arg9[%c0_190, %c0_191] : memref<1x128xf32, #tpu.memory_space<vmem>>, vector<1x128xf32>
    %248 = vector.broadcast %247 : vector<1x128xf32> to vector<8x128xf32>
    %249 = arith.addf %246, %248 : vector<8x128xf32>
    %cst_192 = arith.constant 0.000000e+00 : f32
    %250 = vector.broadcast %cst_192 : f32 to vector<8x128xf32>
    %251 = arith.maximumf %249, %250 : vector<8x128xf32>
    %c0_193 = arith.constant 0 : index
    %c0_194 = arith.constant 0 : index
    %252 = vector.load %arg10[%c0_193, %c0_194] : memref<128x128xf32, #tpu.memory_space<vmem>>, vector<128x128xf32>
    %cst_195 = arith.constant dense<0.000000e+00> : vector<8x128xf32>
    %253 = tpu.matmul %251, %252, %cst_195 {dimension_numbers = #tpu.dot_dimension_numbers<[1], [0], [0], [1], [0, 0, 1, 1], [], []>} : vector<8x128xf32>, vector<128x128xf32>, vector<8x128xf32> -> vector<8x128xf32>
    %c0_196 = arith.constant 0 : index
    %c0_197 = arith.constant 0 : index
    %254 = vector.load %arg11[%c0_196, %c0_197] : memref<1x128xf32, #tpu.memory_space<vmem>>, vector<1x128xf32>
    %255 = vector.broadcast %254 : vector<1x128xf32> to vector<8x128xf32>
    %256 = arith.addf %253, %255 : vector<8x128xf32>
    %c0_198 = arith.constant 0 : index
    %c0_199 = arith.constant 0 : index
    %257 = vector.load %arg12[%c0_198, %c0_199] : memref<8x128xf32, #tpu.memory_space<vmem>>, vector<8x128xf32>
    tpu.vector_store %arg12[%c0_198, %c0_199], %256 {strides = array<i32>} : memref<8x128xf32, #tpu.memory_space<vmem>>, vector<8x128xf32>,
    return
  }
  func.func @transform_0(%arg0: i32) -> (i32, i32, i32) {
    %c0_i32 = arith.constant 0 : i32
    %c0_i32_0 = arith.constant 0 : i32
    %c0_i32_1 = arith.constant 0 : i32
    return %c0_i32, %arg0, %c0_i32_0 : i32, i32, i32
  }
  func.func @transform_1(%arg0: i32) -> (i32, i32, i32) {
    %c0_i32 = arith.constant 0 : i32
    %c0_i32_0 = arith.constant 0 : i32
    %c0_i32_1 = arith.constant 0 : i32
    %c0_i32_2 = arith.constant 0 : i32
    return %c0_i32, %c0_i32_0, %c0_i32_1 : i32, i32, i32
  }
  func.func @transform_2(%arg0: i32) -> (i32, i32) {
    %c0_i32 = arith.constant 0 : i32
    %c0_i32_0 = arith.constant 0 : i32
    %c0_i32_1 = arith.constant 0 : i32
    return %c0_i32, %c0_i32_0 : i32, i32
  }
  func.func @transform_3(%arg0: i32) -> (i32, i32, i32) {
    %c0_i32 = arith.constant 0 : i32
    %c0_i32_0 = arith.constant 0 : i32
    %c0_i32_1 = arith.constant 0 : i32
    %c0_i32_2 = arith.constant 0 : i32
    return %c0_i32, %c0_i32_0, %c0_i32_1 : i32, i32, i32
  }
  func.func @transform_4(%arg0: i32) -> (i32, i32) {
    %c0_i32 = arith.constant 0 : i32
    %c0_i32_0 = arith.constant 0 : i32
    %c0_i32_1 = arith.constant 0 : i32
    return %c0_i32, %c0_i32_0 : i32, i32
  }
  func.func @transform_5(%arg0: i32) -> (i32, i32, i32) {
    %c0_i32 = arith.constant 0 : i32
    %c0_i32_0 = arith.constant 0 : i32
    %c0_i32_1 = arith.constant 0 : i32
    %c0_i32_2 = arith.constant 0 : i32
    return %c0_i32, %c0_i32_0, %c0_i32_1 : i32, i32, i32
  }
  func.func @transform_6(%arg0: i32) -> (i32, i32) {
    %c0_i32 = arith.constant 0 : i32
    %c0_i32_0 = arith.constant 0 : i32
    %c0_i32_1 = arith.constant 0 : i32
    return %c0_i32, %c0_i32_0 : i32, i32
  }
  func.func @transform_7(%arg0: i32) -> (i32, i32) {
    %c0_i32 = arith.constant 0 : i32
    %c0_i32_0 = arith.constant 0 : i32
    %c0_i32_1 = arith.constant 0 : i32
    return %c0_i32, %c0_i32_0 : i32, i32
  }
  func.func @transform_8(%arg0: i32) -> (i32, i32) {
    %c0_i32 = arith.constant 0 : i32
    %c0_i32_0 = arith.constant 0 : i32
    %c0_i32_1 = arith.constant 0 : i32
    return %c0_i32, %c0_i32_0 : i32, i32
  }
  func.func @transform_9(%arg0: i32) -> (i32, i32) {
    %c0_i32 = arith.constant 0 : i32
    %c0_i32_0 = arith.constant 0 : i32
    %c0_i32_1 = arith.constant 0 : i32
    return %c0_i32, %c0_i32_0 : i32, i32
  }
  func.func @transform_10(%arg0: i32) -> (i32, i32) {
    %c0_i32 = arith.constant 0 : i32
    %c0_i32_0 = arith.constant 0 : i32
    %c0_i32_1 = arith.constant 0 : i32
    return %c0_i32, %c0_i32_0 : i32, i32
  }
  func.func @transform_11(%arg0: i32) -> (i32, i32) {
    %c0_i32 = arith.constant 0 : i32
    %c0_i32_0 = arith.constant 0 : i32
    return %arg0, %c0_i32 : i32, i32
  }
}

</mosaic_0001>

<llo_original>
// kernel: network_forward.1
$region0: #{network_forward.1}
  #allocation0 [shape = 'u32[]', space=smem, size = 0x4, offset = 0x4, fixed_abs, tag = 'smem constant byte address 0x4 - core index']
  #allocation1 [shape = 'u32[144,128]{1,0:T(1,128)}', space=vmem, size = 0x12000, scoped, tag = 'internal scratch']
  #allocation2 [shape = 'f32[14,8,256]{2,1,0:T(8,128)}', space=vmem, size = 0x1c000, scoped, tag = 'scratch operand']
  %s0 = inlined_call_operand.vmem [shape: f32[32,8,128], index: 0, kind: input, shape index: {}]
  %s1 = inlined_call_operand.hbm [shape: f32[5,128,256], index: 1, kind: input, shape index: {}]
  %s2 = inlined_call_operand.hbm [shape: f32[1,256], index: 2, kind: input, shape index: {}]
  %s3 = inlined_call_operand.hbm [shape: f32[5,256,256], index: 3, kind: input, shape index: {}]
  %s4 = inlined_call_operand.hbm [shape: f32[1,256], index: 4, kind: input, shape index: {}]
  %s5 = inlined_call_operand.hbm [shape: f32[5,256,128], index: 5, kind: input, shape index: {}]
  %s6 = inlined_call_operand.hbm [shape: f32[1,128], index: 6, kind: input, shape index: {}]
  %s7 = inlined_call_operand.hbm [shape: f32[128,128], index: 7, kind: input, shape index: {}]
  %s8 = inlined_call_operand.hbm [shape: f32[1,128], index: 8, kind: input, shape index: {}]
  %s9 = inlined_call_operand.hbm [shape: f32[128,128], index: 9, kind: input, shape index: {}]
  %s10 = inlined_call_operand.hbm [shape: f32[1,128], index: 10, kind: input, shape index: {}]
  %s11 = inlined_call_operand.vmem [shape: f32[8,128], index: 11, kind: output, shape index: {}]
  %s12 = sld [smem:[#allocation0]]
  $region94: #{network_forward.1} parent=0
    _
  %s14 = ssub.s32 1, %s12
  %s15 = scalar_select 0, %s14, %s12
  $region1: #{network_forward.1} parent=0
    #allocation3 [shape = 'u8[655360]{0}', space=vmem, size = 0xa0000, scoped, tag = 'input window, operand 1, single buffered']
    #allocation4 [shape = 's32[1]{0}', space=sflag, size = 0x4, scoped, tag = 'scoped memory for network_forward.1']
    #allocation5 [shape = 'u8[1024]{0}', space=vmem, size = 0x400, scoped, tag = 'input window, operand 2, single buffered']
    #allocation6 [shape = 's32[1]{0}', space=sflag, size = 0x4, scoped, tag = 'scoped memory for network_forward.1']
    #allocation7 [shape = 'u8[1310720]{0}', space=vmem, size = 0x140000, scoped, tag = 'input window, operand 3, single buffered']
    #allocation8 [shape = 'u8[1024]{0}', space=vmem, size = 0x400, scoped, tag = 'input window, operand 4, single buffered']
    #allocation9 [shape = 's32[1]{0}', space=sflag, size = 0x4, scoped, tag = 'scoped memory for network_forward.1']
    #allocation10 [shape = 'u8[655360]{0}', space=vmem, size = 0xa0000, scoped, tag = 'input window, operand 5, single buffered']
    #allocation11 [shape = 'u8[512]{0}', space=vmem, size = 0x400, scoped, tag = 'input window, operand 6, single buffered']
    #allocation12 [shape = 's32[1]{0}', space=sflag, size = 0x4, scoped, tag = 'scoped memory for network_forward.1']
    #allocation13 [shape = 'u8[65536]{0}', space=vmem, size = 0x10000, scoped, tag = 'input window, operand 7, single buffered']
    #allocation14 [shape = 'u8[512]{0}', space=vmem, size = 0x400, scoped, tag = 'input window, operand 8, single buffered']
    #allocation15 [shape = 's32[1]{0}', space=sflag, size = 0x4, scoped, tag = 'scoped memory for network_forward.1']
    #allocation16 [shape = 'u8[65536]{0}', space=vmem, size = 0x10000, scoped, tag = 'input window, operand 9, single buffered']
    #allocation17 [shape = 'u8[512]{0}', space=vmem, size = 0x400, scoped, tag = 'input window, operand 10, single buffered']
    #allocation18 [shape = 's32[1]{0}', space=sflag, size = 0x4, scoped, tag = 'scoped memory for network_forward.1']
    %16 = vsyncpa [#allocation4], 0
    %17 = vsyncpa [#allocation6], 0
    %18 = vsyncpa [#allocation9], 0
    %19 = vsyncpa [#allocation12], 0
    %20 = vsyncpa [#allocation15], 0
    %21 = vsyncpa [#allocation18], 0
    // Predicated region
    $region2: #{network_forward.1} parent=1 // pred_check
      _
    $region3: #{network_forward.1} parent=1 // pred_check_branch
      %23 = sbr.rel (0) target = $region5
    $region4: #{network_forward.1} parent=1 // pred_region
      _
    $region5: #{network_forward.1} parent=1 // pred_fallthru
      _
    // Predicated region
    $region6: #{network_forward.1} parent=1 // pred_check
      _
    $region7: #{network_forward.1} parent=1 // pred_check_branch
      %25 = sbr.rel (0) target = $region9
    $region8: #{network_forward.1} parent=1 // pred_region
      %s27 = ssub.s32 20480, 20480
      %28 = vsyncadd [#allocation4], %s27
      %s29 = sshll.u32 [#allocation3], 4
      %s30 = int_to_ptr.vmem [resolvable:$true] %s29
      %35 = dma.hbm_to_vmem [thread:$0]  %s1, 20480, %s30, [#allocation4], 256, 256, 16
    $region9: #{network_forward.1} parent=1 // pred_fallthru
      _
    // Predicated region
    $region10: #{network_forward.1} parent=1 // pred_check
      _
    $region11: #{network_forward.1} parent=1 // pred_check_branch
      %37 = sbr.rel (0) target = $region13
    $region12: #{network_forward.1} parent=1 // pred_region
      %s39 = ssub.s32 32, 32
      %40 = vsyncadd [#allocation6], %s39
      %s42 = sshll.u32 [#allocation5], 4
      %s43 = int_to_ptr.vmem [resolvable:$true] %s42
      %45 = dma.hbm_to_vmem [thread:$0]  %s2, 32, %s43, [#allocation6]
    $region13: #{network_forward.1} parent=1 // pred_fallthru
      _
    // Predicated region
    $region14: #{network_forward.1} parent=1 // pred_check
      _
    $region15: #{network_forward.1} parent=1 // pred_check_branch
      %47 = sbr.rel (0) target = $region17
    $region16: #{network_forward.1} parent=1 // pred_region
      %s49 = ssub.s32 40960, 40960
      %50 = vsyncadd [#allocation6], %s49
      %s51 = sshll.u32 [#allocation7], 4
      %s52 = int_to_ptr.vmem [resolvable:$true] %s51
      %57 = dma.hbm_to_vmem [thread:$0]  %s3, 40960, %s52, [#allocation6], 256, 256, 16
    $region17: #{network_forward.1} parent=1 // pred_fallthru
      _
    // Predicated region
    $region18: #{network_forward.1} parent=1 // pred_check
      _
    $region19: #{network_forward.1} parent=1 // pred_check_branch
      %59 = sbr.rel (0) target = $region21
    $region20: #{network_forward.1} parent=1 // pred_region
      %s61 = ssub.s32 32, 32
      %62 = vsyncadd [#allocation9], %s61
      %s64 = sshll.u32 [#allocation8], 4
      %s65 = int_to_ptr.vmem [resolvable:$true] %s64
      %67 = dma.hbm_to_vmem [thread:$0]  %s4, 32, %s65, [#allocation9]
    $region21: #{network_forward.1} parent=1 // pred_fallthru
      _
    // Predicated region
    $region22: #{network_forward.1} parent=1 // pred_check
      _
    $region23: #{network_forward.1} parent=1 // pred_check_branch
      %69 = sbr.rel (0) target = $region25
    $region24: #{network_forward.1} parent=1 // pred_region
      %s71 = ssub.s32 20480, 20480
      %72 = vsyncadd [#allocation9], %s71
      %s73 = sshll.u32 [#allocation10], 4
      %s74 = int_to_ptr.vmem [resolvable:$true] %s73
      %79 = dma.hbm_to_vmem [thread:$0]  %s5, 20480, %s74, [#allocation9], 128, 128, 8
    $region25: #{network_forward.1} parent=1 // pred_fallthru
      _
    // Predicated region
    $region26: #{network_forward.1} parent=1 // pred_check
      _
    $region27: #{network_forward.1} parent=1 // pred_check_branch
      %81 = sbr.rel (0) target = $region29
    $region28: #{network_forward.1} parent=1 // pred_region
      %s83 = ssub.s32 16, 16
      %84 = vsyncadd [#allocation12], %s83
      %s86 = sshll.u32 [#allocation11], 4
      %s87 = int_to_ptr.vmem [resolvable:$true] %s86
      %89 = dma.hbm_to_vmem [thread:$0]  %s6, 16, %s87, [#allocation12]
    $region29: #{network_forward.1} parent=1 // pred_fallthru
      _
    // Predicated region
    $region30: #{network_forward.1} parent=1 // pred_check
      _
    $region31: #{network_forward.1} parent=1 // pred_check_branch
      %91 = sbr.rel (0) target = $region33
    $region32: #{network_forward.1} parent=1 // pred_region
      %s93 = ssub.s32 2048, 2048
      %94 = vsyncadd [#allocation12], %s93
      %s95 = sshll.u32 [#allocation13], 4
      %s96 = int_to_ptr.vmem [resolvable:$true] %s95
      %101 = dma.hbm_to_vmem [thread:$0]  %s7, 2048, %s96, [#allocation12], 128, 128, 8
    $region33: #{network_forward.1} parent=1 // pred_fallthru
      _
    // Predicated region
    $region34: #{network_forward.1} parent=1 // pred_check
      _
    $region35: #{network_forward.1} parent=1 // pred_check_branch
      %103 = sbr.rel (0) target = $region37
    $region36: #{network_forward.1} parent=1 // pred_region
      %s105 = ssub.s32 16, 16
      %106 = vsyncadd [#allocation15], %s105
      %s108 = sshll.u32 [#allocation14], 4
      %s109 = int_to_ptr.vmem [resolvable:$true] %s108
      %111 = dma.hbm_to_vmem [thread:$0]  %s8, 16, %s109, [#allocation15]
    $region37: #{network_forward.1} parent=1 // pred_fallthru
      _
    // Predicated region
    $region38: #{network_forward.1} parent=1 // pred_check
      _
    $region39: #{network_forward.1} parent=1 // pred_check_branch
      %113 = sbr.rel (0) target = $region41
    $region40: #{network_forward.1} parent=1 // pred_region
      %s115 = ssub.s32 2048, 2048
      %116 = vsyncadd [#allocation15], %s115
      %s117 = sshll.u32 [#allocation16], 4
      %s118 = int_to_ptr.vmem [resolvable:$true] %s117
      %123 = dma.hbm_to_vmem [thread:$0]  %s9, 2048, %s118, [#allocation15], 128, 128, 8
    $region41: #{network_forward.1} parent=1 // pred_fallthru
      _
    // Predicated region
    $region42: #{network_forward.1} parent=1 // pred_check
      _
    $region43: #{network_forward.1} parent=1 // pred_check_branch
      %125 = sbr.rel (0) target = $region45
    $region44: #{network_forward.1} parent=1 // pred_region
      %s127 = ssub.s32 16, 16
      %128 = vsyncadd [#allocation18], %s127
      %s130 = sshll.u32 [#allocation17], 4
      %s131 = int_to_ptr.vmem [resolvable:$true] %s130
      %133 = dma.hbm_to_vmem [thread:$0]  %s10, 16, %s131, [#allocation18]
    $region45: #{network_forward.1} parent=1 // pred_fallthru
      _
    // Predicated region
    $region46: #{network_forward.1} parent=1 // pred_check
      _
    $region47: #{network_forward.1} parent=1 // pred_check_branch
      %135 = sbr.rel (0) target = $region49
    $region48: #{network_forward.1} parent=1 // pred_region
      %136 = dma.done [#allocation4], 20480
    $region49: #{network_forward.1} parent=1 // pred_fallthru
      _
    // Predicated region
    $region50: #{network_forward.1} parent=1 // pred_check
      _
    $region51: #{network_forward.1} parent=1 // pred_check_branch
      %138 = sbr.rel (0) target = $region53
    $region52: #{network_forward.1} parent=1 // pred_region
      %139 = dma.done [#allocation6], 32
    $region53: #{network_forward.1} parent=1 // pred_fallthru
      _
    // Predicated region
    $region54: #{network_forward.1} parent=1 // pred_check
      _
    $region55: #{network_forward.1} parent=1 // pred_check_branch
      %141 = sbr.rel (0) target = $region57
    $region56: #{network_forward.1} parent=1 // pred_region
      %142 = dma.done [#allocation6], 40960
    $region57: #{network_forward.1} parent=1 // pred_fallthru
      _
    // Predicated region
    $region58: #{network_forward.1} parent=1 // pred_check
      _
    $region59: #{network_forward.1} parent=1 // pred_check_branch
      %144 = sbr.rel (0) target = $region61
    $region60: #{network_forward.1} parent=1 // pred_region
      %145 = dma.done [#allocation9], 32
    $region61: #{network_forward.1} parent=1 // pred_fallthru
      _
    // Predicated region
    $region62: #{network_forward.1} parent=1 // pred_check
      _
    $region63: #{network_forward.1} parent=1 // pred_check_branch
      %147 = sbr.rel (0) target = $region65
    $region64: #{network_forward.1} parent=1 // pred_region
      %148 = dma.done [#allocation9], 20480
    $region65: #{network_forward.1} parent=1 // pred_fallthru
      _
    // Predicated region
    $region66: #{network_forward.1} parent=1 // pred_check
      _
    $region67: #{network_forward.1} parent=1 // pred_check_branch
      %150 = sbr.rel (0) target = $region69
    $region68: #{network_forward.1} parent=1 // pred_region
      %151 = dma.done [#allocation12], 16
    $region69: #{network_forward.1} parent=1 // pred_fallthru
      _
    // Predicated region
    $region70: #{network_forward.1} parent=1 // pred_check
      _
    $region71: #{network_forward.1} parent=1 // pred_check_branch
      %153 = sbr.rel (0) target = $region73
    $region72: #{network_forward.1} parent=1 // pred_region
      %154 = dma.done [#allocation12], 2048
    $region73: #{network_forward.1} parent=1 // pred_fallthru
      _
    // Predicated region
    $region74: #{network_forward.1} parent=1 // pred_check
      _
    $region75: #{network_forward.1} parent=1 // pred_check_branch
      %156 = sbr.rel (0) target = $region77
    $region76: #{network_forward.1} parent=1 // pred_region
      %157 = dma.done [#allocation15], 16
    $region77: #{network_forward.1} parent=1 // pred_fallthru
      _
    // Predicated region
    $region78: #{network_forward.1} parent=1 // pred_check
      _
    $region79: #{network_forward.1} parent=1 // pred_check_branch
      %159 = sbr.rel (0) target = $region81
    $region80: #{network_forward.1} parent=1 // pred_region
      %160 = dma.done [#allocation15], 2048
    $region81: #{network_forward.1} parent=1 // pred_fallthru
      _
    // Predicated region
    $region82: #{network_forward.1} parent=1 // pred_check
      _
    $region83: #{network_forward.1} parent=1 // pred_check_branch
      %162 = sbr.rel (0) target = $region85
    $region84: #{network_forward.1} parent=1 // pred_region
      %163 = dma.done [#allocation18], 16
    $region85: #{network_forward.1} parent=1 // pred_fallthru
      _
    %v164 = vld [vmem:[#allocation5] sm:$0x3]
    %v165 = vld [vmem:[%s0] sm:$0xff]
    %v166 = vld [vmem:[%s0 + $0x8] sm:$0xff]
    %v167 = vld [vmem:[%s0 + $0x10] sm:$0xff]
    %v168 = vld [vmem:[%s0 + $0x18] sm:$0xff]
    %v169 = vld [vmem:[%s0 + $0x20] sm:$0xff]
    %v170 = vld [vmem:[%s0 + $0x28] sm:$0xff]
    %v171 = vld [vmem:[%s0 + $0x30] sm:$0xff]
    %v172 = vld [vmem:[%s0 + $0x38] sm:$0xff]
    %v173 = vld [vmem:[#allocation3] sm:$0xff]
    %v174 = vld [vmem:[#allocation3 + $0x8] sm:$0xff]
    %v175 = vld [vmem:[#allocation3 + $0x10] sm:$0xff]
    %v176 = vld [vmem:[#allocation3 + $0x18] sm:$0xff]
    %v177 = vld [vmem:[#allocation3 + $0x20] sm:$0xff]
    %v178 = vld [vmem:[#allocation3 + $0x28] sm:$0xff]
    %v179 = vld [vmem:[#allocation3 + $0x30] sm:$0xff]
    %v180 = vld [vmem:[#allocation3 + $0x38] sm:$0xff]
    %v181 = vld [vmem:[#allocation3 + $0x40] sm:$0xff]
    %v182 = vld [vmem:[#allocation3 + $0x48] sm:$0xff]
    %v183 = vld [vmem:[#allocation3 + $0x50] sm:$0xff]
    %v184 = vld [vmem:[#allocation3 + $0x58] sm:$0xff]
    %v185 = vld [vmem:[#allocation3 + $0x60] sm:$0xff]
    %v186 = vld [vmem:[#allocation3 + $0x68] sm:$0xff]
    %v187 = vld [vmem:[#allocation3 + $0x70] sm:$0xff]
    %v188 = vld [vmem:[#allocation3 + $0x78] sm:$0xff]
    %v189 = vld [vmem:[#allocation3 + $0x80] sm:$0xff]
    %v190 = vld [vmem:[#allocation3 + $0x88] sm:$0xff]
    %v191 = vld [vmem:[#allocation3 + $0x90] sm:$0xff]
    %v192 = vld [vmem:[#allocation3 + $0x98] sm:$0xff]
    %v193 = vld [vmem:[#allocation3 + $0xa0] sm:$0xff]
    %v194 = vld [vmem:[#allocation3 + $0xa8] sm:$0xff]
    %v195 = vld [vmem:[#allocation3 + $0xb0] sm:$0xff]
    %v196 = vld [vmem:[#allocation3 + $0xb8] sm:$0xff]
    %v197 = vld [vmem:[#allocation3 + $0xc0] sm:$0xff]
    %v198 = vld [vmem:[#allocation3 + $0xc8] sm:$0xff]
    %v199 = vld [vmem:[#allocation3 + $0xd0] sm:$0xff]
    %v200 = vld [vmem:[#allocation3 + $0xd8] sm:$0xff]
    %v201 = vld [vmem:[#allocation3 + $0xe0] sm:$0xff]
    %v202 = vld [vmem:[#allocation3 + $0xe8] sm:$0xff]
    %v203 = vld [vmem:[#allocation3 + $0xf0] sm:$0xff]
    %v204 = vld [vmem:[#allocation3 + $0xf8] sm:$0xff]
    %s205 = scalar_lea.vmem %s0, 8
    %v206 = vld [vmem:[%s205] sm:$0xff]
    %v207 = vld [vmem:[%s205 + $0x8] sm:$0xff]
    %v208 = vld [vmem:[%s205 + $0x10] sm:$0xff]
    %v209 = vld [vmem:[%s205 + $0x18] sm:$0xff]
    %v210 = vld [vmem:[%s205 + $0x20] sm:$0xff]
    %v211 = vld [vmem:[%s205 + $0x28] sm:$0xff]
    %v212 = vld [vmem:[%s205 + $0x30] sm:$0xff]
    %v213 = vld [vmem:[%s205 + $0x38] sm:$0xff]
    %s214 = scalar_lea.vmem [#allocation3], 256
    %v215 = vld [vmem:[%s214] sm:$0xff]
    %v216 = vld [vmem:[%s214 + $0x8] sm:$0xff]
    %v217 = vld [vmem:[%s214 + $0x10] sm:$0xff]
    %v218 = vld [vmem:[%s214 + $0x18] sm:$0xff]
    %v219 = vld [vmem:[%s214 + $0x20] sm:$0xff]
    %v220 = vld [vmem:[%s214 + $0x28] sm:$0xff]
    %v221 = vld [vmem:[%s214 + $0x30] sm:$0xff]
    %v222 = vld [vmem:[%s214 + $0x38] sm:$0xff]
    %v223 = vld [vmem:[%s214 + $0x40] sm:$0xff]
    %v224 = vld [vmem:[%s214 + $0x48] sm:$0xff]
    %v225 = vld [vmem:[%s214 + $0x50] sm:$0xff]
    %v226 = vld [vmem:[%s214 + $0x58] sm:$0xff]
    %v227 = vld [vmem:[%s214 + $0x60] sm:$0xff]
    %v228 = vld [vmem:[%s214 + $0x68] sm:$0xff]
    %v229 = vld [vmem:[%s214 + $0x70] sm:$0xff]
    %v230 = vld [vmem:[%s214 + $0x78] sm:$0xff]
    %v231 = vld [vmem:[%s214 + $0x80] sm:$0xff]
    %v232 = vld [vmem:[%s214 + $0x88] sm:$0xff]
    %v233 = vld [vmem:[%s214 + $0x90] sm:$0xff]
    %v234 = vld [vmem:[%s214 + $0x98] sm:$0xff]
    %v235 = vld [vmem:[%s214 + $0xa0] sm:$0xff]
    %v236 = vld [vmem:[%s214 + $0xa8] sm:$0xff]
    %v237 = vld [vmem:[%s214 + $0xb0] sm:$0xff]
    %v238 = vld [vmem:[%s214 + $0xb8] sm:$0xff]
    %v239 = vld [vmem:[%s214 + $0xc0] sm:$0xff]
    %v240 = vld [vmem:[%s214 + $0xc8] sm:$0xff]
    %v241 = vld [vmem:[%s214 + $0xd0] sm:$0xff]
    %v242 = vld [vmem:[%s214 + $0xd8] sm:$0xff]
    %v243 = vld [vmem:[%s214 + $0xe0] sm:$0xff]
    %v244 = vld [vmem:[%s214 + $0xe8] sm:$0xff]
    %v245 = vld [vmem:[%s214 + $0xf0] sm:$0xff]
    %v246 = vld [vmem:[%s214 + $0xf8] sm:$0xff]
    %247 = vmatprep.subr.mxu0 %v216
    %248 = vmatpush1.msra.mxu0 %v215
    %249 = vmatprep.subr.mxu0 %v218
    %250 = vmatpush1.msra.mxu0 %v217
    %251 = vmatprep.subr.mxu0 %v220
    %252 = vmatpush1.msra.mxu0 %v219
    %253 = vmatprep.subr.mxu0 %v222
    %254 = vmatpush1.msra.mxu0 %v221
    %255 = vmatprep.subr.mxu0 %v224
    %256 = vmatpush1.msra.mxu0 %v223
    %257 = vmatprep.subr.mxu0 %v226
    %258 = vmatpush1.msra.mxu0 %v225
    %259 = vmatprep.subr.mxu0 %v228
    %260 = vmatpush1.msra.mxu0 %v227
    %261 = vmatprep.subr.mxu0 %v230
    %262 = vmatpush1.msra.mxu0 %v229
    %263 = vmatprep.subr.mxu0 %v232
    %264 = vmatpush1.msra.mxu0 %v231
    %265 = vmatprep.subr.mxu0 %v234
    %266 = vmatpush1.msra.mxu0 %v233
    %267 = vmatprep.subr.mxu0 %v236
    %268 = vmatpush1.msra.mxu0 %v235
    %269 = vmatprep.subr.mxu0 %v238
    %270 = vmatpush1.msra.mxu0 %v237
    %271 = vmatprep.subr.mxu0 %v240
    %272 = vmatpush1.msra.mxu0 %v239
    %273 = vmatprep.subr.mxu0 %v242
    %274 = vmatpush1.msra.mxu0 %v241
    %275 = vmatprep.subr.mxu0 %v244
    %276 = vmatpush1.msra.mxu0 %v243
    %277 = vmatprep.subr.mxu0 %v246
    %278 = vmatpush1.msra.mxu0 %v245
    %279 = vmatprep.subr.mxu0 0.0
    %280 = vmatpush1.msra.mxu0 0.0
    %281 = vmatprep.subr.mxu0 0.0
    %282 = vmatpush1.msra.mxu0 0.0
    %283 = vmatprep.subr.mxu0 0.0
    %284 = vmatpush1.msra.mxu0 0.0
    %285 = vmatprep.subr.mxu0 0.0
    %286 = vmatpush1.msra.mxu0 0.0
    %287 = vmatprep.subr.mxu0 0.0
    %288 = vmatpush1.msra.mxu0 0.0
    %289 = vmatprep.subr.mxu0 0.0
    %290 = vmatpush1.msra.mxu0 0.0
    %291 = vmatprep.subr.mxu0 0.0
    %292 = vmatpush1.msra.mxu0 0.0
    %293 = vmatprep.subr.mxu0 0.0
    %294 = vmatpush1.msra.mxu0 0.0
    %295 = vmatprep.subr.mxu0 0.0
    %296 = vmatpush1.msra.mxu0 0.0
    %297 = vmatprep.subr.mxu0 0.0
    %298 = vmatpush1.msra.mxu0 0.0
    %299 = vmatprep.subr.mxu0 0.0
    %300 = vmatpush1.msra.mxu0 0.0
    %301 = vmatprep.subr.mxu0 0.0
    %302 = vmatpush1.msra.mxu0 0.0
    %303 = vmatprep.subr.mxu0 0.0
    %304 = vmatpush1.msra.mxu0 0.0
    %305 = vmatprep.subr.mxu0 0.0
    %306 = vmatpush1.msra.mxu0 0.0
    %307 = vmatprep.subr.mxu0 0.0
    %308 = vmatpush1.msra.mxu0 0.0
    %309 = vmatprep.subr.mxu0 0.0
    %310 = vmatpush1.msra.mxu0 0.0
    %311 = vmatprep.mubr.f32.mxu0 0.0
    %312 = vmatmul.mubr.f32.gmra.mrb[0].mxu0 %v206
    %v313 = vpop.f32.mrb[0].mxu0
    %v314 = vadd.f32 0.0, %v313
    %v315 = vpop.f32.mrb[0].mxu0
    %v316 = vadd.f32 0.0, %v315
    %317 = vmatprep.mubr.f32.mxu0 0.0
    %318 = vmatmul.mubr.f32.gmra.mrb[0].mxu0 %v207
    %v319 = vpop.f32.mrb[0].mxu0
    %v320 = vadd.f32 0.0, %v319
    %v321 = vpop.f32.mrb[0].mxu0
    %v322 = vadd.f32 0.0, %v321
    %323 = vmatprep.mubr.f32.mxu0 0.0
    %324 = vmatmul.mubr.f32.gmra.mrb[0].mxu0 %v208
    %v325 = vpop.f32.mrb[0].mxu0
    %v326 = vadd.f32 0.0, %v325
    %v327 = vpop.f32.mrb[0].mxu0
    %v328 = vadd.f32 0.0, %v327
    %329 = vmatprep.mubr.f32.mxu0 0.0
    %330 = vmatmul.mubr.f32.gmra.mrb[0].mxu0 %v209
    %v331 = vpop.f32.mrb[0].mxu0
    %v332 = vadd.f32 0.0, %v331
    %v333 = vpop.f32.mrb[0].mxu0
    %v334 = vadd.f32 0.0, %v333
    %335 = vmatprep.mubr.f32.mxu0 0.0
    %336 = vmatmul.mubr.f32.gmra.mrb[0].mxu0 %v210
    %v337 = vpop.f32.mrb[0].mxu0
    %v338 = vadd.f32 0.0, %v337
    %v339 = vpop.f32.mrb[0].mxu0
    %v340 = vadd.f32 0.0, %v339
    %341 = vmatprep.mubr.f32.mxu0 0.0
    %342 = vmatmul.mubr.f32.gmra.mrb[0].mxu0 %v211
    %v343 = vpop.f32.mrb[0].mxu0
    %v344 = vadd.f32 0.0, %v343
    %v345 = vpop.f32.mrb[0].mxu0
    %v346 = vadd.f32 0.0, %v345
    %347 = vmatprep.mubr.f32.mxu0 0.0
    %348 = vmatmul.mubr.f32.gmra.mrb[0].mxu0 %v212
    %v349 = vpop.f32.mrb[0].mxu0
    %v350 = vadd.f32 0.0, %v349
    %v351 = vpop.f32.mrb[0].mxu0
    %v352 = vadd.f32 0.0, %v351
    %353 = vmatprep.mubr.f32.mxu0 0.0
    %354 = vmatmul.mubr.f32.gmra.mrb[0].mxu0 %v213
    %v355 = vpop.f32.mrb[0].mxu0
    %v356 = vadd.f32 0.0, %v355
    %v357 = vpop.f32.mrb[0].mxu0
    %v358 = vadd.f32 0.0, %v357
    %359 = vdwg.mxu0
    %360 = vmatprep.subr.mxu0 %v174
    %361 = vmatpush1.msra.mxu0 %v173
    %362 = vmatprep.subr.mxu0 %v176
    %363 = vmatpush1.msra.mxu0 %v175
    %364 = vmatprep.subr.mxu0 %v178
    %365 = vmatpush1.msra.mxu0 %v177
    %366 = vmatprep.subr.mxu0 %v180
    %367 = vmatpush1.msra.mxu0 %v179
    %368 = vmatprep.subr.mxu0 %v182
    %369 = vmatpush1.msra.mxu0 %v181
    %370 = vmatprep.subr.mxu0 %v184
    %371 = vmatpush1.msra.mxu0 %v183
    %372 = vmatprep.subr.mxu0 %v186
    %373 = vmatpush1.msra.mxu0 %v185
    %374 = vmatprep.subr.mxu0 %v188
    %375 = vmatpush1.msra.mxu0 %v187
    %376 = vmatprep.subr.mxu0 %v190
    %377 = vmatpush1.msra.mxu0 %v189
    %378 = vmatprep.subr.mxu0 %v192
    %379 = vmatpush1.msra.mxu0 %v191
    %380 = vmatprep.subr.mxu0 %v194
    %381 = vmatpush1.msra.mxu0 %v193
    %382 = vmatprep.subr.mxu0 %v196
    %383 = vmatpush1.msra.mxu0 %v195
    %384 = vmatprep.subr.mxu0 %v198
    %385 = vmatpush1.msra.mxu0 %v197
    %386 = vmatprep.subr.mxu0 %v200
    %387 = vmatpush1.msra.mxu0 %v199
    %388 = vmatprep.subr.mxu0 %v202
    %389 = vmatpush1.msra.mxu0 %v201
    %390 = vmatprep.subr.mxu0 %v204
    %391 = vmatpush1.msra.mxu0 %v203
    %392 = vmatprep.subr.mxu0 0.0
    %393 = vmatpush1.msra.mxu0 0.0
    %394 = vmatprep.subr.mxu0 0.0
    %395 = vmatpush1.msra.mxu0 0.0
    %396 = vmatprep.subr.mxu0 0.0
    %397 = vmatpush1.msra.mxu0 0.0
    %398 = vmatprep.subr.mxu0 0.0
    %399 = vmatpush1.msra.mxu0 0.0
    %400 = vmatprep.subr.mxu0 0.0
    %401 = vmatpush1.msra.mxu0 0.0
    %402 = vmatprep.subr.mxu0 0.0
    %403 = vmatpush1.msra.mxu0 0.0
    %404 = vmatprep.subr.mxu0 0.0
    %405 = vmatpush1.msra.mxu0 0.0
    %406 = vmatprep.subr.mxu0 0.0
    %407 = vmatpush1.msra.mxu0 0.0
    %408 = vmatprep.subr.mxu0 0.0
    %409 = vmatpush1.msra.mxu0 0.0
    %410 = vmatprep.subr.mxu0 0.0
    %411 = vmatpush1.msra.mxu0 0.0
    %412 = vmatprep.subr.mxu0 0.0
    %413 = vmatpush1.msra.mxu0 0.0
    %414 = vmatprep.subr.mxu0 0.0
    %415 = vmatpush1.msra.mxu0 0.0
    %416 = vmatprep.subr.mxu0 0.0
    %417 = vmatpush1.msra.mxu0 0.0
    %418 = vmatprep.subr.mxu0 0.0
    %419 = vmatpush1.msra.mxu0 0.0
    %420 = vmatprep.subr.mxu0 0.0
    %421 = vmatpush1.msra.mxu0 0.0
    %422 = vmatprep.subr.mxu0 0.0
    %423 = vmatpush1.msra.mxu0 0.0
    %424 = vmatprep.mubr.f32.mxu0 0.0
    %425 = vmatmul.mubr.f32.gmra.mrb[0].mxu0 %v165
    %v426 = vpop.f32.mrb[0].mxu0
    %v427 = vadd.f32 %v314, %v426
    %v428 = vpop.f32.mrb[0].mxu0
    %v429 = vadd.f32 %v316, %v428
    %430 = vmatprep.mubr.f32.mxu0 0.0
    %431 = vmatmul.mubr.f32.gmra.mrb[0].mxu0 %v166
    %v432 = vpop.f32.mrb[0].mxu0
    %v433 = vadd.f32 %v320, %v432
    %v434 = vpop.f32.mrb[0].mxu0
    %v435 = vadd.f32 %v322, %v434
    %436 = vmatprep.mubr.f32.mxu0 0.0
    %437 = vmatmul.mubr.f32.gmra.mrb[0].mxu0 %v167
    %v438 = vpop.f32.mrb[0].mxu0
    %v439 = vadd.f32 %v326, %v438
    %v440 = vpop.f32.mrb[0].mxu0
    %v441 = vadd.f32 %v328, %v440
    %442 = vmatprep.mubr.f32.mxu0 0.0
    %443 = vmatmul.mubr.f32.gmra.mrb[0].mxu0 %v168
    %v444 = vpop.f32.mrb[0].mxu0
    %v445 = vadd.f32 %v332, %v444
    %v446 = vpop.f32.mrb[0].mxu0
    %v447 = vadd.f32 %v334, %v446
    %448 = vmatprep.mubr.f32.mxu0 0.0
    %449 = vmatmul.mubr.f32.gmra.mrb[0].mxu0 %v169
    %v450 = vpop.f32.mrb[0].mxu0
    %v451 = vadd.f32 %v338, %v450
    %v452 = vpop.f32.mrb[0].mxu0
    %v453 = vadd.f32 %v340, %v452
    %454 = vmatprep.mubr.f32.mxu0 0.0
    %455 = vmatmul.mubr.f32.gmra.mrb[0].mxu0 %v170
    %v456 = vpop.f32.mrb[0].mxu0
    %v457 = vadd.f32 %v344, %v456
    %v458 = vpop.f32.mrb[0].mxu0
    %v459 = vadd.f32 %v346, %v458
    %460 = vmatprep.mubr.f32.mxu0 0.0
    %461 = vmatmul.mubr.f32.gmra.mrb[0].mxu0 %v171
    %v462 = vpop.f32.mrb[0].mxu0
    %v463 = vadd.f32 %v350, %v462
    %v464 = vpop.f32.mrb[0].mxu0
    %v465 = vadd.f32 %v352, %v464
    %466 = vmatprep.mubr.f32.mxu0 0.0
    %467 = vmatmul.mubr.f32.gmra.mrb[0].mxu0 %v172
    %v468 = vpop.f32.mrb[0].mxu0
    %v469 = vadd.f32 %v356, %v468
    %v470 = vpop.f32.mrb[0].mxu0
    %v471 = vadd.f32 %v358, %v470
    %472 = vdwg.mxu0
    %s473 = scalar_lea.vmem %s0, 16
    %v474 = vld [vmem:[%s473] sm:$0xff]
    %v475 = vld [vmem:[%s473 + $0x8] sm:$0xff]
    %v476 = vld [vmem:[%s473 + $0x10] sm:$0xff]
    %v477 = vld [vmem:[%s473 + $0x18] sm:$0xff]
    %v478 = vld [vmem:[%s473 + $0x20] sm:$0xff]
    %v479 = vld [vmem:[%s473 + $0x28] sm:$0xff]
    %v480 = vld [vmem:[%s473 + $0x30] sm:$0xff]
    %v481 = vld [vmem:[%s473 + $0x38] sm:$0xff]
    %s482 = scalar_lea.vmem [#allocation3], 512
    %v483 = vld [vmem:[%s482] sm:$0xff]
    %v484 = vld [vmem:[%s482 + $0x8] sm:$0xff]
    %v485 = vld [vmem:[%s482 + $0x10] sm:$0xff]
    %v486 = vld [vmem:[%s482 + $0x18] sm:$0xff]
    %v487 = vld [vmem:[%s482 + $0x20] sm:$0xff]
    %v488 = vld [vmem:[%s482 + $0x28] sm:$0xff]
    %v489 = vld [vmem:[%s482 + $0x30] sm:$0xff]
    %v490 = vld [vmem:[%s482 + $0x38] sm:$0xff]
    %v491 = vld [vmem:[%s482 + $0x40] sm:$0xff]
    %v492 = vld [vmem:[%s482 + $0x48] sm:$0xff]
    %v493 = vld [vmem:[%s482 + $0x50] sm:$0xff]
    %v494 = vld [vmem:[%s482 + $0x58] sm:$0xff]
    %v495 = vld [vmem:[%s482 + $0x60] sm:$0xff]
    %v496 = vld [vmem:[%s482 + $0x68] sm:$0xff]
    %v497 = vld [vmem:[%s482 + $0x70] sm:$0xff]
    %v498 = vld [vmem:[%s482 + $0x78] sm:$0xff]
    %v499 = vld [vmem:[%s482 + $0x80] sm:$0xff]
    %v500 = vld [vmem:[%s482 + $0x88] sm:$0xff]
    %v501 = vld [vmem:[%s482 + $0x90] sm:$0xff]
    %v502 = vld [vmem:[%s482 + $0x98] sm:$0xff]
    %v503 = vld [vmem:[%s482 + $0xa0] sm:$0xff]
    %v504 = vld [vmem:[%s482 + $0xa8] sm:$0xff]
    %v505 = vld [vmem:[%s482 + $0xb0] sm:$0xff]
    %v506 = vld [vmem:[%s482 + $0xb8] sm:$0xff]
    %v507 = vld [vmem:[%s482 + $0xc0] sm:$0xff]
    %v508 = vld [vmem:[%s482 + $0xc8] sm:$0xff]
    %v509 = vld [vmem:[%s482 + $0xd0] sm:$0xff]
    %v510 = vld [vmem:[%s482 + $0xd8] sm:$0xff]
    %v511 = vld [vmem:[%s482 + $0xe0] sm:$0xff]
    %v512 = vld [vmem:[%s482 + $0xe8] sm:$0xff]
    %v513 = vld [vmem:[%s482 + $0xf0] sm:$0xff]
    %v514 = vld [vmem:[%s482 + $0xf8] sm:$0xff]
    %515 = vmatprep.subr.mxu0 %v484
    %516 = vmatpush1.msra.mxu0 %v483
    %517 = vmatprep.subr.mxu0 %v486
    %518 = vmatpush1.msra.mxu0 %v485
    %519 = vmatprep.subr.mxu0 %v488
    %520 = vmatpush1.msra.mxu0 %v487
    %521 = vmatprep.subr.mxu0 %v490
    %522 = vmatpush1.msra.mxu0 %v489
    %523 = vmatprep.subr.mxu0 %v492
    %524 = vmatpush1.msra.mxu0 %v491
    %525 = vmatprep.subr.mxu0 %v494
    %526 = vmatpush1.msra.mxu0 %v493
    %527 = vmatprep.subr.mxu0 %v496
    %528 = vmatpush1.msra.mxu0 %v495
    %529 = vmatprep.subr.mxu0 %v498
    %530 = vmatpush1.msra.mxu0 %v497
    %531 = vmatprep.subr.mxu0 %v500
    %532 = vmatpush1.msra.mxu0 %v499
    %533 = vmatprep.subr.mxu0 %v502
    %534 = vmatpush1.msra.mxu0 %v501
    %535 = vmatprep.subr.mxu0 %v504
    %536 = vmatpush1.msra.mxu0 %v503
    %537 = vmatprep.subr.mxu0 %v506
    %538 = vmatpush1.msra.mxu0 %v505
    %539 = vmatprep.subr.mxu0 %v508
    %540 = vmatpush1.msra.mxu0 %v507
    %541 = vmatprep.subr.mxu0 %v510
    %542 = vmatpush1.msra.mxu0 %v509
    %543 = vmatprep.subr.mxu0 %v512
    %544 = vmatpush1.msra.mxu0 %v511
    %545 = vmatprep.subr.mxu0 %v514
    %546 = vmatpush1.msra.mxu0 %v513
    %547 = vmatprep.subr.mxu0 0.0
    %548 = vmatpush1.msra.mxu0 0.0
    %549 = vmatprep.subr.mxu0 0.0
    %550 = vmatpush1.msra.mxu0 0.0
    %551 = vmatprep.subr.mxu0 0.0
    %552 = vmatpush1.msra.mxu0 0.0
    %553 = vmatprep.subr.mxu0 0.0
    %554 = vmatpush1.msra.mxu0 0.0
    %555 = vmatprep.subr.mxu0 0.0
    %556 = vmatpush1.msra.mxu0 0.0
    %557 = vmatprep.subr.mxu0 0.0
    %558 = vmatpush1.msra.mxu0 0.0
    %559 = vmatprep.subr.mxu0 0.0
    %560 = vmatpush1.msra.mxu0 0.0
    %561 = vmatprep.subr.mxu0 0.0
    %562 = vmatpush1.msra.mxu0 0.0
    %563 = vmatprep.subr.mxu0 0.0
    %564 = vmatpush1.msra.mxu0 0.0
    %565 = vmatprep.subr.mxu0 0.0
    %566 = vmatpush1.msra.mxu0 0.0
    %567 = vmatprep.subr.mxu0 0.0
    %568 = vmatpush1.msra.mxu0 0.0
    %569 = vmatprep.subr.mxu0 0.0
    %570 = vmatpush1.msra.mxu0 0.0
    %571 = vmatprep.subr.mxu0 0.0
    %572 = vmatpush1.msra.mxu0 0.0
    %573 = vmatprep.subr.mxu0 0.0
    %574 = vmatpush1.msra.mxu0 0.0
    %575 = vmatprep.subr.mxu0 0.0
    %576 = vmatpush1.msra.mxu0 0.0
    %577 = vmatprep.subr.mxu0 0.0
    %578 = vmatpush1.msra.mxu0 0.0
    %579 = vmatprep.mubr.f32.mxu0 0.0
    %580 = vmatmul.mubr.f32.gmra.mrb[0].mxu0 %v474
    %v581 = vpop.f32.mrb[0].mxu0
    %v582 = vadd.f32 0.0, %v581
    %v583 = vpop.f32.mrb[0].mxu0
    %v584 = vadd.f32 0.0, %v583
    %585 = vmatprep.mubr.f32.mxu0 0.0
    %586 = vmatmul.mubr.f32.gmra.mrb[0].mxu0 %v475
    %v587 = vpop.f32.mrb[0].mxu0
    %v588 = vadd.f32 0.0, %v587
    %v589 = vpop.f32.mrb[0].mxu0
    %v590 = vadd.f32 0.0, %v589
    %591 = vmatprep.mubr.f32.mxu0 0.0
    %592 = vmatmul.mubr.f32.gmra.mrb[0].mxu0 %v476
    %v593 = vpop.f32.mrb[0].mxu0
    %v594 = vadd.f32 0.0, %v593
    %v595 = vpop.f32.mrb[0].mxu0
    %v596 = vadd.f32 0.0, %v595
    %597 = vmatprep.mubr.f32.mxu0 0.0
    %598 = vmatmul.mubr.f32.gmra.mrb[0].mxu0 %v477
    %v599 = vpop.f32.mrb[0].mxu0
    %v600 = vadd.f32 0.0, %v599
    %v601 = vpop.f32.mrb[0].mxu0
    %v602 = vadd.f32 0.0, %v601
    %603 = vmatprep.mubr.f32.mxu0 0.0
    %604 = vmatmul.mubr.f32.gmra.mrb[0].mxu0 %v478
    %v605 = vpop.f32.mrb[0].mxu0
    %v606 = vadd.f32 0.0, %v605
    %v607 = vpop.f32.mrb[0].mxu0
    %v608 = vadd.f32 0.0, %v607
    %609 = vmatprep.mubr.f32.mxu0 0.0
    %610 = vmatmul.mubr.f32.gmra.mrb[0].mxu0 %v479
    %v611 = vpop.f32.mrb[0].mxu0
    %v612 = vadd.f32 0.0, %v611
    %v613 = vpop.f32.mrb[0].mxu0
    %v614 = vadd.f32 0.0, %v613
    %615 = vmatprep.mubr.f32.mxu0 0.0
    %616 = vmatmul.mubr.f32.gmra.mrb[0].mxu0 %v480
    %v617 = vpop.f32.mrb[0].mxu0
    %v618 = vadd.f32 0.0, %v617
    %v619 = vpop.f32.mrb[0].mxu0
    %v620 = vadd.f32 0.0, %v619
    %621 = vmatprep.mubr.f32.mxu0 0.0
    %622 = vmatmul.mubr.f32.gmra.mrb[0].mxu0 %v481
    %v623 = vpop.f32.mrb[0].mxu0
    %v624 = vadd.f32 0.0, %v623
    %v625 = vpop.f32.mrb[0].mxu0
    %v626 = vadd.f32 0.0, %v625
    %627 = vdwg.mxu0
    %v628 = vadd.f32 %v427, %v582
    %v629 = vadd.f32 %v429, %v584
    %v630 = vadd.f32 %v433, %v588
    %v631 = vadd.f32 %v435, %v590
    %v632 = vadd.f32 %v439, %v594
    %v633 = vadd.f32 %v441, %v596
    %v634 = vadd.f32 %v445, %v600
    %v635 = vadd.f32 %v447, %v602
    %v636 = vadd.f32 %v451, %v606
    %v637 = vadd.f32 %v453, %v608
    %v638 = vadd.f32 %v457, %v612
    %v639 = vadd.f32 %v459, %v614
    %v640 = vadd.f32 %v463, %v618
    %v641 = vadd.f32 %v465, %v620
    %v642 = vadd.f32 %v469, %v624
    %v643 = vadd.f32 %v471, %v626
    %s644 = scalar_lea.vmem %s0, 24
    %v645 = vld [vmem:[%s644] sm:$0xff]
    %v646 = vld [vmem:[%s644 + $0x8] sm:$0xff]
    %v647 = vld [vmem:[%s644 + $0x10] sm:$0xff]
    %v648 = vld [vmem:[%s644 + $0x18] sm:$0xff]
    %v649 = vld [vmem:[%s644 + $0x20] sm:$0xff]
    %v650 = vld [vmem:[%s644 + $0x28] sm:$0xff]
    %v651 = vld [vmem:[%s644 + $0x30] sm:$0xff]
    %v652 = vld [vmem:[%s644 + $0x38] sm:$0xff]
    %s653 = scalar_lea.vmem [#allocation3], 768
    %v654 = vld [vmem:[%s653] sm:$0xff]
    %v655 = vld [vmem:[%s653 + $0x8] sm:$0xff]
    %v656 = vld [vmem:[%s653 + $0x10] sm:$0xff]
    %v657 = vld [vmem:[%s653 + $0x18] sm:$0xff]
    %v658 = vld [vmem:[%s653 + $0x20] sm:$0xff]
    %v659 = vld [vmem:[%s653 + $0x28] sm:$0xff]
    %v660 = vld [vmem:[%s653 + $0x30] sm:$0xff]
    %v661 = vld [vmem:[%s653 + $0x38] sm:$0xff]
    %v662 = vld [vmem:[%s653 + $0x40] sm:$0xff]
    %v663 = vld [vmem:[%s653 + $0x48] sm:$0xff]
    %v664 = vld [vmem:[%s653 + $0x50] sm:$0xff]
    %v665 = vld [vmem:[%s653 + $0x58] sm:$0xff]
    %v666 = vld [vmem:[%s653 + $0x60] sm:$0xff]
    %v667 = vld [vmem:[%s653 + $0x68] sm:$0xff]
    %v668 = vld [vmem:[%s653 + $0x70] sm:$0xff]
    %v669 = vld [vmem:[%s653 + $0x78] sm:$0xff]
    %v670 = vld [vmem:[%s653 + $0x80] sm:$0xff]
    %v671 = vld [vmem:[%s653 + $0x88] sm:$0xff]
    %v672 = vld [vmem:[%s653 + $0x90] sm:$0xff]
    %v673 = vld [vmem:[%s653 + $0x98] sm:$0xff]
    %v674 = vld [vmem:[%s653 + $0xa0] sm:$0xff]
    %v675 = vld [vmem:[%s653 + $0xa8] sm:$0xff]
    %v676 = vld [vmem:[%s653 + $0xb0] sm:$0xff]
    %v677 = vld [vmem:[%s653 + $0xb8] sm:$0xff]
    %v678 = vld [vmem:[%s653 + $0xc0] sm:$0xff]
    %v679 = vld [vmem:[%s653 + $0xc8] sm:$0xff]
    %v680 = vld [vmem:[%s653 + $0xd0] sm:$0xff]
    %v681 = vld [vmem:[%s653 + $0xd8] sm:$0xff]
    %v682 = vld [vmem:[%s653 + $0xe0] sm:$0xff]
    %v683 = vld [vmem:[%s653 + $0xe8] sm:$0xff]
    %v684 = vld [vmem:[%s653 + $0xf0] sm:$0xff]
    %v685 = vld [vmem:[%s653 + $0xf8] sm:$0xff]
    %686 = vmatprep.subr.mxu0 %v655
    %687 = vmatpush1.msra.mxu0 %v654
    %688 = vmatprep.subr.mxu0 %v657
    %689 = vmatpush1.msra.mxu0 %v656
    %690 = vmatprep.subr.mxu0 %v659
    %691 = vmatpush1.msra.mxu0 %v658
    %692 = vmatprep.subr.mxu0 %v661
    %693 = vmatpush1.msra.mxu0 %v660
    %694 = vmatprep.subr.mxu0 %v663
    %695 = vmatpush1.msra.mxu0 %v662
    %696 = vmatprep.subr.mxu0 %v665
    %697 = vmatpush1.msra.mxu0 %v664
    %698 = vmatprep.subr.mxu0 %v667
    %699 = vmatpush1.msra.mxu0 %v666
    %700 = vmatprep.subr.mxu0 %v669
    %701 = vmatpush1.msra.mxu0 %v668
    %702 = vmatprep.subr.mxu0 %v671
    %703 = vmatpush1.msra.mxu0 %v670
    %704 = vmatprep.subr.mxu0 %v673
    %705 = vmatpush1.msra.mxu0 %v672
    %706 = vmatprep.subr.mxu0 %v675
    %707 = vmatpush1.msra.mxu0 %v674
    %708 = vmatprep.subr.mxu0 %v677
    %709 = vmatpush1.msra.mxu0 %v676
    %710 = vmatprep.subr.mxu0 %v679
    %711 = vmatpush1.msra.mxu0 %v678
    %712 = vmatprep.subr.mxu0 %v681
    %713 = vmatpush1.msra.mxu0 %v680
    %714 = vmatprep.subr.mxu0 %v683
    %715 = vmatpush1.msra.mxu0 %v682
    %716 = vmatprep.subr.mxu0 %v685
    %717 = vmatpush1.msra.mxu0 %v684
    %718 = vmatprep.subr.mxu0 0.0
    %719 = vmatpush1.msra.mxu0 0.0
    %720 = vmatprep.subr.mxu0 0.0
    %721 = vmatpush1.msra.mxu0 0.0
    %722 = vmatprep.subr.mxu0 0.0
    %723 = vmatpush1.msra.mxu0 0.0
    %724 = vmatprep.subr.mxu0 0.0
    %725 = vmatpush1.msra.mxu0 0.0
    %726 = vmatprep.subr.mxu0 0.0
    %727 = vmatpush1.msra.mxu0 0.0
    %728 = vmatprep.subr.mxu0 0.0
    %729 = vmatpush1.msra.mxu0 0.0
    %730 = vmatprep.subr.mxu0 0.0
    %731 = vmatpush1.msra.mxu0 0.0
    %732 = vmatprep.subr.mxu0 0.0
    %733 = vmatpush1.msra.mxu0 0.0
    %734 = vmatprep.subr.mxu0 0.0
    %735 = vmatpush1.msra.mxu0 0.0
    %736 = vmatprep.subr.mxu0 0.0
    %737 = vmatpush1.msra.mxu0 0.0
    %738 = vmatprep.subr.mxu0 0.0
    %739 = vmatpush1.msra.mxu0 0.0
    %740 = vmatprep.subr.mxu0 0.0
    %741 = vmatpush1.msra.mxu0 0.0
    %742 = vmatprep.subr.mxu0 0.0
    %743 = vmatpush1.msra.mxu0 0.0
    %744 = vmatprep.subr.mxu0 0.0
    %745 = vmatpush1.msra.mxu0 0.0
    %746 = vmatprep.subr.mxu0 0.0
    %747 = vmatpush1.msra.mxu0 0.0
    %748 = vmatprep.subr.mxu0 0.0
    %749 = vmatpush1.msra.mxu0 0.0
    %750 = vmatprep.mubr.f32.mxu0 0.0
    %751 = vmatmul.mubr.f32.gmra.mrb[0].mxu0 %v645
    %v752 = vpop.f32.mrb[0].mxu0
    %v753 = vadd.f32 0.0, %v752
    %v754 = vpop.f32.mrb[0].mxu0
    %v755 = vadd.f32 0.0, %v754
    %756 = vmatprep.mubr.f32.mxu0 0.0
    %757 = vmatmul.mubr.f32.gmra.mrb[0].mxu0 %v646
    %v758 = vpop.f32.mrb[0].mxu0
    %v759 = vadd.f32 0.0, %v758
    %v760 = vpop.f32.mrb[0].mxu0
    %v761 = vadd.f32 0.0, %v760
    %762 = vmatprep.mubr.f32.mxu0 0.0
    %763 = vmatmul.mubr.f32.gmra.mrb[0].mxu0 %v647
    %v764 = vpop.f32.mrb[0].mxu0
    %v765 = vadd.f32 0.0, %v764
    %v766 = vpop.f32.mrb[0].mxu0
    %v767 = vadd.f32 0.0, %v766
    %768 = vmatprep.mubr.f32.mxu0 0.0
    %769 = vmatmul.mubr.f32.gmra.mrb[0].mxu0 %v648
    %v770 = vpop.f32.mrb[0].mxu0
    %v771 = vadd.f32 0.0, %v770
    %v772 = vpop.f32.mrb[0].mxu0
    %v773 = vadd.f32 0.0, %v772
    %774 = vmatprep.mubr.f32.mxu0 0.0
    %775 = vmatmul.mubr.f32.gmra.mrb[0].mxu0 %v649
    %v776 = vpop.f32.mrb[0].mxu0
    %v777 = vadd.f32 0.0, %v776
    %v778 = vpop.f32.mrb[0].mxu0
    %v779 = vadd.f32 0.0, %v778
    %780 = vmatprep.mubr.f32.mxu0 0.0
    %781 = vmatmul.mubr.f32.gmra.mrb[0].mxu0 %v650
    %v782 = vpop.f32.mrb[0].mxu0
    %v783 = vadd.f32 0.0, %v782
    %v784 = vpop.f32.mrb[0].mxu0
    %v785 = vadd.f32 0.0, %v784
    %786 = vmatprep.mubr.f32.mxu0 0.0
    %787 = vmatmul.mubr.f32.gmra.mrb[0].mxu0 %v651
    %v788 = vpop.f32.mrb[0].mxu0
    %v789 = vadd.f32 0.0, %v788
    %v790 = vpop.f32.mrb[0].mxu0
    %v791 = vadd.f32 0.0, %v790
    %792 = vmatprep.mubr.f32.mxu0 0.0
    %793 = vmatmul.mubr.f32.gmra.mrb[0].mxu0 %v652
    %v794 = vpop.f32.mrb[0].mxu0
    %v795 = vadd.f32 0.0, %v794
    %v796 = vpop.f32.mrb[0].mxu0
    %v797 = vadd.f32 0.0, %v796
    %798 = vdwg.mxu0
    %v799 = vadd.f32 %v628, %v753
    %v800 = vadd.f32 %v629, %v755
    %v801 = vadd.f32 %v630, %v759
    %v802 = vadd.f32 %v631, %v761
    %v803 = vadd.f32 %v632, %v765
    %v804 = vadd.f32 %v633, %v767
    %v805 = vadd.f32 %v634, %v771
    %v806 = vadd.f32 %v635, %v773
    %v807 = vadd.f32 %v636, %v777
    %v808 = vadd.f32 %v637, %v779
    %v809 = vadd.f32 %v638, %v783
    %v810 = vadd.f32 %v639, %v785
    %v811 = vadd.f32 %v640, %v789
    %v812 = vadd.f32 %v641, %v791
    %v813 = vadd.f32 %v642, %v795
    %v814 = vadd.f32 %v643, %v797
    %s815 = scalar_lea.vmem %s0, 32
    %v816 = vld [vmem:[%s815] sm:$0xff]
    %v817 = vld [vmem:[%s815 + $0x8] sm:$0xff]
    %v818 = vld [vmem:[%s815 + $0x10] sm:$0xff]
    %v819 = vld [vmem:[%s815 + $0x18] sm:$0xff]
    %v820 = vld [vmem:[%s815 + $0x20] sm:$0xff]
    %v821 = vld [vmem:[%s815 + $0x28] sm:$0xff]
    %v822 = vld [vmem:[%s815 + $0x30] sm:$0xff]
    %v823 = vld [vmem:[%s815 + $0x38] sm:$0xff]
    %s824 = scalar_lea.vmem [#allocation3], 1024
    %v825 = vld [vmem:[%s824] sm:$0xff]
    %v826 = vld [vmem:[%s824 + $0x8] sm:$0xff]
    %v827 = vld [vmem:[%s824 + $0x10] sm:$0xff]
    %v828 = vld [vmem:[%s824 + $0x18] sm:$0xff]
    %v829 = vld [vmem:[%s824 + $0x20] sm:$0xff]
    %v830 = vld [vmem:[%s824 + $0x28] sm:$0xff]
    %v831 = vld [vmem:[%s824 + $0x30] sm:$0xff]
    %v832 = vld [vmem:[%s824 + $0x38] sm:$0xff]
    %v833 = vld [vmem:[%s824 + $0x40] sm:$0xff]
    %v834 = vld [vmem:[%s824 + $0x48] sm:$0xff]
    %v835 = vld [vmem:[%s824 + $0x50] sm:$0xff]
    %v836 = vld [vmem:[%s824 + $0x58] sm:$0xff]
    %v837 = vld [vmem:[%s824 + $0x60] sm:$0xff]
    %v838 = vld [vmem:[%s824 + $0x68] sm:$0xff]
    %v839 = vld [vmem:[%s824 + $0x70] sm:$0xff]
    %v840 = vld [vmem:[%s824 + $0x78] sm:$0xff]
    %v841 = vld [vmem:[%s824 + $0x80] sm:$0xff]
    %v842 = vld [vmem:[%s824 + $0x88] sm:$0xff]
    %v843 = vld [vmem:[%s824 + $0x90] sm:$0xff]
    %v844 = vld [vmem:[%s824 + $0x98] sm:$0xff]
    %v845 = vld [vmem:[%s824 + $0xa0] sm:$0xff]
    %v846 = vld [vmem:[%s824 + $0xa8] sm:$0xff]
    %v847 = vld [vmem:[%s824 + $0xb0] sm:$0xff]
    %v848 = vld [vmem:[%s824 + $0xb8] sm:$0xff]
    %v849 = vld [vmem:[%s824 + $0xc0] sm:$0xff]
    %v850 = vld [vmem:[%s824 + $0xc8] sm:$0xff]
    %v851 = vld [vmem:[%s824 + $0xd0] sm:$0xff]
    %v852 = vld [vmem:[%s824 + $0xd8] sm:$0xff]
    %v853 = vld [vmem:[%s824 + $0xe0] sm:$0xff]
    %v854 = vld [vmem:[%s824 + $0xe8] sm:$0xff]
    %v855 = vld [vmem:[%s824 + $0xf0] sm:$0xff]
    %v856 = vld [vmem:[%s824 + $0xf8] sm:$0xff]
    %857 = vmatprep.subr.mxu0 %v826
    %858 = vmatpush1.msra.mxu0 %v825
    %859 = vmatprep.subr.mxu0 %v828
    %860 = vmatpush1.msra.mxu0 %v827
    %861 = vmatprep.subr.mxu0 %v830
    %862 = vmatpush1.msra.mxu0 %v829
    %863 = vmatprep.subr.mxu0 %v832
    %864 = vmatpush1.msra.mxu0 %v831
    %865 = vmatprep.subr.mxu0 %v834
    %866 = vmatpush1.msra.mxu0 %v833
    %867 = vmatprep.subr.mxu0 %v836
    %868 = vmatpush1.msra.mxu0 %v835
    %869 = vmatprep.subr.mxu0 %v838
    %870 = vmatpush1.msra.mxu0 %v837
    %871 = vmatprep.subr.mxu0 %v840
    %872 = vmatpush1.msra.mxu0 %v839
    %873 = vmatprep.subr.mxu0 %v842
    %874 = vmatpush1.msra.mxu0 %v841
    %875 = vmatprep.subr.mxu0 %v844
    %876 = vmatpush1.msra.mxu0 %v843
    %877 = vmatprep.subr.mxu0 %v846
    %878 = vmatpush1.msra.mxu0 %v845
    %879 = vmatprep.subr.mxu0 %v848
    %880 = vmatpush1.msra.mxu0 %v847
    %881 = vmatprep.subr.mxu0 %v850
    %882 = vmatpush1.msra.mxu0 %v849
    %883 = vmatprep.subr.mxu0 %v852
    %884 = vmatpush1.msra.mxu0 %v851
    %885 = vmatprep.subr.mxu0 %v854
    %886 = vmatpush1.msra.mxu0 %v853
    %887 = vmatprep.subr.mxu0 %v856
    %888 = vmatpush1.msra.mxu0 %v855
    %889 = vmatprep.subr.mxu0 0.0
    %890 = vmatpush1.msra.mxu0 0.0
    %891 = vmatprep.subr.mxu0 0.0
    %892 = vmatpush1.msra.mxu0 0.0
    %893 = vmatprep.subr.mxu0 0.0
    %894 = vmatpush1.msra.mxu0 0.0
    %895 = vmatprep.subr.mxu0 0.0
    %896 = vmatpush1.msra.mxu0 0.0
    %897 = vmatprep.subr.mxu0 0.0
    %898 = vmatpush1.msra.mxu0 0.0
    %899 = vmatprep.subr.mxu0 0.0
    %900 = vmatpush1.msra.mxu0 0.0
    %901 = vmatprep.subr.mxu0 0.0
    %902 = vmatpush1.msra.mxu0 0.0
    %903 = vmatprep.subr.mxu0 0.0
    %904 = vmatpush1.msra.mxu0 0.0
    %905 = vmatprep.subr.mxu0 0.0
    %906 = vmatpush1.msra.mxu0 0.0
    %907 = vmatprep.subr.mxu0 0.0
    %908 = vmatpush1.msra.mxu0 0.0
    %909 = vmatprep.subr.mxu0 0.0
    %910 = vmatpush1.msra.mxu0 0.0
    %911 = vmatprep.subr.mxu0 0.0
    %912 = vmatpush1.msra.mxu0 0.0
    %913 = vmatprep.subr.mxu0 0.0
    %914 = vmatpush1.msra.mxu0 0.0
    %915 = vmatprep.subr.mxu0 0.0
    %916 = vmatpush1.msra.mxu0 0.0
    %917 = vmatprep.subr.mxu0 0.0
    %918 = vmatpush1.msra.mxu0 0.0
    %919 = vmatprep.subr.mxu0 0.0
    %920 = vmatpush1.msra.mxu0 0.0
    %921 = vmatprep.mubr.f32.mxu0 0.0
    %922 = vmatmul.mubr.f32.gmra.mrb[0].mxu0 %v816
    %v923 = vpop.f32.mrb[0].mxu0
    %v924 = vadd.f32 0.0, %v923
    %v925 = vpop.f32.mrb[0].mxu0
    %v926 = vadd.f32 0.0, %v925
    %927 = vmatprep.mubr.f32.mxu0 0.0
    %928 = vmatmul.mubr.f32.gmra.mrb[0].mxu0 %v817
    %v929 = vpop.f32.mrb[0].mxu0
    %v930 = vadd.f32 0.0, %v929
    %v931 = vpop.f32.mrb[0].mxu0
    %v932 = vadd.f32 0.0, %v931
    %933 = vmatprep.mubr.f32.mxu0 0.0
    %934 = vmatmul.mubr.f32.gmra.mrb[0].mxu0 %v818
    %v935 = vpop.f32.mrb[0].mxu0
    %v936 = vadd.f32 0.0, %v935
    %v937 = vpop.f32.mrb[0].mxu0
    %v938 = vadd.f32 0.0, %v937
    %939 = vmatprep.mubr.f32.mxu0 0.0
    %940 = vmatmul.mubr.f32.gmra.mrb[0].mxu0 %v819
    %v941 = vpop.f32.mrb[0].mxu0
    %v942 = vadd.f32 0.0, %v941
    %v943 = vpop.f32.mrb[0].mxu0
    %v944 = vadd.f32 0.0, %v943
    %945 = vmatprep.mubr.f32.mxu0 0.0
    %946 = vmatmul.mubr.f32.gmra.mrb[0].mxu0 %v820
    %v947 = vpop.f32.mrb[0].mxu0
    %v948 = vadd.f32 0.0, %v947
    %v949 = vpop.f32.mrb[0].mxu0
    %v950 = vadd.f32 0.0, %v949
    %951 = vmatprep.mubr.f32.mxu0 0.0
    %952 = vmatmul.mubr.f32.gmra.mrb[0].mxu0 %v821
    %v953 = vpop.f32.mrb[0].mxu0
    %v954 = vadd.f32 0.0, %v953
    %v955 = vpop.f32.mrb[0].mxu0
    %v956 = vadd.f32 0.0, %v955
    %957 = vmatprep.mubr.f32.mxu0 0.0
    %958 = vmatmul.mubr.f32.gmra.mrb[0].mxu0 %v822
    %v959 = vpop.f32.mrb[0].mxu0
    %v960 = vadd.f32 0.0, %v959
    %v961 = vpop.f32.mrb[0].mxu0
    %v962 = vadd.f32 0.0, %v961
    %963 = vmatprep.mubr.f32.mxu0 0.0
    %964 = vmatmul.mubr.f32.gmra.mrb[0].mxu0 %v823
    %v965 = vpop.f32.mrb[0].mxu0
    %v966 = vadd.f32 0.0, %v965
    %v967 = vpop.f32.mrb[0].mxu0
    %v968 = vadd.f32 0.0, %v967
    %969 = vdwg.mxu0
    %v970 = vadd.f32 %v799, %v924
    %v971 = vadd.f32 %v800, %v926
    %v972 = vadd.f32 %v801, %v930
    %v973 = vadd.f32 %v802, %v932
    %v974 = vadd.f32 %v803, %v936
    %v975 = vadd.f32 %v804, %v938
    %v976 = vadd.f32 %v805, %v942
    %v977 = vadd.f32 %v806, %v944
    %v978 = vadd.f32 %v807, %v948
    %v979 = vadd.f32 %v808, %v950
    %v980 = vadd.f32 %v809, %v954
    %v981 = vadd.f32 %v810, %v956
    %v982 = vadd.f32 %v811, %v960
    %v983 = vadd.f32 %v812, %v962
    %v984 = vadd.f32 %v813, %v966
    %v985 = vadd.f32 %v814, %v968
    %v987 = vlaneseq
    %v988 = vshrl.u32 %v987, 7
    %v989 = vsub.s32 0, %v988
    %v990 = vrot.slane %v164, %v989
    %v991 = vlaneseq
    %v992 = vshrl.u32 %v991, 7
    %v993 = vsub.s32 1, %v992
    %v994 = vrot.slane %v164, %v993
    %v997 = vadd.f32 %v970, %v990
    %v998 = vadd.f32 %v971, %v994
    %v999 = vadd.f32 %v972, %v990
    %v1000 = vadd.f32 %v973, %v994
    %v1001 = vadd.f32 %v974, %v990
    %v1002 = vadd.f32 %v975, %v994
    %v1003 = vadd.f32 %v976, %v990
    %v1004 = vadd.f32 %v977, %v994
    %v1005 = vadd.f32 %v978, %v990
    %v1006 = vadd.f32 %v979, %v994
    %v1007 = vadd.f32 %v980, %v990
    %v1008 = vadd.f32 %v981, %v994
    %v1009 = vadd.f32 %v982, %v990
    %v1010 = vadd.f32 %v983, %v994
    %v1011 = vadd.f32 %v984, %v990
    %v1012 = vadd.f32 %v985, %v994
    %v1013 = vmax.f32 %v997, 0.0
    %v1014 = vmax.f32 %v998, 0.0
    %v1015 = vmax.f32 %v999, 0.0
    %v1016 = vmax.f32 %v1000, 0.0
    %v1017 = vmax.f32 %v1001, 0.0
    %v1018 = vmax.f32 %v1002, 0.0
    %v1019 = vmax.f32 %v1003, 0.0
    %v1020 = vmax.f32 %v1004, 0.0
    %v1021 = vmax.f32 %v1005, 0.0
    %v1022 = vmax.f32 %v1006, 0.0
    %v1023 = vmax.f32 %v1007, 0.0
    %v1024 = vmax.f32 %v1008, 0.0
    %v1025 = vmax.f32 %v1009, 0.0
    %v1026 = vmax.f32 %v1010, 0.0
    %v1027 = vmax.f32 %v1011, 0.0
    %v1028 = vmax.f32 %v1012, 0.0
    %v1029 = vmax.f32 %v1013, %v1015
    %v1030 = vmax.f32 %v1014, %v1016
    %v1031 = vmax.f32 %v1017, %v1019
    %v1032 = vmax.f32 %v1018, %v1020
    %v1033 = vmax.f32 %v1021, %v1023
    %v1034 = vmax.f32 %v1022, %v1024
    %v1035 = vmax.f32 %v1025, %v1027
    %v1036 = vmax.f32 %v1026, %v1028
    %1037 = vst [vmem:[#allocation2] sm:$0xff] %v1029
    %1038 = vst [vmem:[#allocation2 + $0x8] sm:$0xff] %v1030
    %1039 = vst [vmem:[#allocation2 + $0x10] sm:$0xff] %v1031
    %1040 = vst [vmem:[#allocation2 + $0x18] sm:$0xff] %v1032
    %1041 = vst [vmem:[#allocation2 + $0x20] sm:$0xff] %v1033
    %1042 = vst [vmem:[#allocation2 + $0x28] sm:$0xff] %v1034
    %1043 = vst [vmem:[#allocation2 + $0x30] sm:$0xff] %v1035
    %1044 = vst [vmem:[#allocation2 + $0x38] sm:$0xff] %v1036
    %s1045 = scalar_lea.vmem %s0, 64
    %v1046 = vld [vmem:[%s1045] sm:$0xff]
    %v1047 = vld [vmem:[%s1045 + $0x8] sm:$0xff]
    %v1048 = vld [vmem:[%s1045 + $0x10] sm:$0xff]
    %v1049 = vld [vmem:[%s1045 + $0x18] sm:$0xff]
    %v1050 = vld [vmem:[%s1045 + $0x20] sm:$0xff]
    %v1051 = vld [vmem:[%s1045 + $0x28] sm:$0xff]
    %v1052 = vld [vmem:[%s1045 + $0x30] sm:$0xff]
    %v1053 = vld [vmem:[%s1045 + $0x38] sm:$0xff]
    %v1054 = vld [vmem:[#allocation3] sm:$0xff]
    %v1055 = vld [vmem:[#allocation3 + $0x8] sm:$0xff]
    %v1056 = vld [vmem:[#allocation3 + $0x10] sm:$0xff]
    %v1057 = vld [vmem:[#allocation3 + $0x18] sm:$0xff]
    %v1058 = vld [vmem:[#allocation3 + $0x20] sm:$0xff]
    %v1059 = vld [vmem:[#allocation3 + $0x28] sm:$0xff]
    %v1060 = vld [vmem:[#allocation3 + $0x30] sm:$0xff]
    %v1061 = vld [vmem:[#allocation3 + $0x38] sm:$0xff]
    %v1062 = vld [vmem:[#allocation3 + $0x40] sm:$0xff]
    %v1063 = vld [vmem:[#allocation3 + $0x48] sm:$0xff]
    %v1064 = vld [vmem:[#allocation3 + $0x50] sm:$0xff]
    %v1065 = vld [vmem:[#allocation3 + $0x58] sm:$0xff]
    %v1066 = vld [vmem:[#allocation3 + $0x60] sm:$0xff]
    %v1067 = vld [vmem:[#allocation3 + $0x68] sm:$0xff]
    %v1068 = vld [vmem:[#allocation3 + $0x70] sm:$0xff]
    %v1069 = vld [vmem:[#allocation3 + $0x78] sm:$0xff]
    %v1070 = vld [vmem:[#allocation3 + $0x80] sm:$0xff]
    %v1071 = vld [vmem:[#allocation3 + $0x88] sm:$0xff]
    %v1072 = vld [vmem:[#allocation3 + $0x90] sm:$0xff]
    %v1073 = vld [vmem:[#allocation3 + $0x98] sm:$0xff]
    %v1074 = vld [vmem:[#allocation3 + $0xa0] sm:$0xff]
    %v1075 = vld [vmem:[#allocation3 + $0xa8] sm:$0xff]
    %v1076 = vld [vmem:[#allocation3 + $0xb0] sm:$0xff]
    %v1077 = vld [vmem:[#allocation3 + $0xb8] sm:$0xff]
    %v1078 = vld [vmem:[#allocation3 + $0xc0] sm:$0xff]
    %v1079 = vld [vmem:[#allocation3 + $0xc8] sm:$0xff]
    %v1080 = vld [vmem:[#allocation3 + $0xd0] sm:$0xff]
    %v1081 = vld [vmem:[#allocation3 + $0xd8] sm:$0xff]
    %v1082 = vld [vmem:[#allocation3 + $0xe0] sm:$0xff]
    %v1083 = vld [vmem:[#allocation3 + $0xe8] sm:$0xff]
    %v1084 = vld [vmem:[#allocation3 + $0xf0] sm:$0xff]
    %v1085 = vld [vmem:[#allocation3 + $0xf8] sm:$0xff]
    %s1086 = scalar_lea.vmem %s0, 72
    %v1087 = vld [vmem:[%s1086] sm:$0xff]
    %v1088 = vld [vmem:[%s1086 + $0x8] sm:$0xff]
    %v1089 = vld [vmem:[%s1086 + $0x10] sm:$0xff]
    %v1090 = vld [vmem:[%s1086 + $0x18] sm:$0xff]
    %v1091 = vld [vmem:[%s1086 + $0x20] sm:$0xff]
    %v1092 = vld [vmem:[%s1086 + $0x28] sm:$0xff]
    %v1093 = vld [vmem:[%s1086 + $0x30] sm:$0xff]
    %v1094 = vld [vmem:[%s1086 + $0x38] sm:$0xff]
    %v1095 = vld [vmem:[%s214] sm:$0xff]
    %v1096 = vld [vmem:[%s214 + $0x8] sm:$0xff]
    %v1097 = vld [vmem:[%s214 + $0x10] sm:$0xff]
    %v1098 = vld [vmem:[%s214 + $0x18] sm:$0xff]
    %v1099 = vld [vmem:[%s214 + $0x20] sm:$0xff]
    %v1100 = vld [vmem:[%s214 + $0x28] sm:$0xff]
    %v1101 = vld [vmem:[%s214 + $0x30] sm:$0xff]
    %v1102 = vld [vmem:[%s214 + $0x38] sm:$0xff]
    %v1103 = vld [vmem:[%s214 + $0x40] sm:$0xff]
    %v1104 = vld [vmem:[%s214 + $0x48] sm:$0xff]
    %v1105 = vld [vmem:[%s214 + $0x50] sm:$0xff]
    %v1106 = vld [vmem:[%s214 + $0x58] sm:$0xff]
    %v1107 = vld [vmem:[%s214 + $0x60] sm:$0xff]
    %v1108 = vld [vmem:[%s214 + $0x68] sm:$0xff]
    %v1109 = vld [vmem:[%s214 + $0x70] sm:$0xff]
    %v1110 = vld [vmem:[%s214 + $0x78] sm:$0xff]
    %v1111 = vld [vmem:[%s214 + $0x80] sm:$0xff]
    %v1112 = vld [vmem:[%s214 + $0x88] sm:$0xff]
    %v1113 = vld [vmem:[%s214 + $0x90] sm:$0xff]
    %v1114 = vld [vmem:[%s214 + $0x98] sm:$0xff]
    %v1115 = vld [vmem:[%s214 + $0xa0] sm:$0xff]
    %v1116 = vld [vmem:[%s214 + $0xa8] sm:$0xff]
    %v1117 = vld [vmem:[%s214 + $0xb0] sm:$0xff]
    %v1118 = vld [vmem:[%s214 + $0xb8] sm:$0xff]
    %v1119 = vld [vmem:[%s214 + $0xc0] sm:$0xff]
    %v1120 = vld [vmem:[%s214 + $0xc8] sm:$0xff]
    %v1121 = vld [vmem:[%s214 + $0xd0] sm:$0xff]
    %v1122 = vld [vmem:[%s214 + $0xd8] sm:$0xff]
    %v1123 = vld [vmem:[%s214 + $0xe0] sm:$0xff]
    %v1124 = vld [vmem:[%s214 + $0xe8] sm:$0xff]
    %v1125 = vld [vmem:[%s214 + $0xf0] sm:$0xff]
    %v1126 = vld [vmem:[%s214 + $0xf8] sm:$0xff]
    %1127 = vmatprep.subr.mxu0 %v1096
    %1128 = vmatpush1.msra.mxu0 %v1095
    %1129 = vmatprep.subr.mxu0 %v1098
    %1130 = vmatpush1.msra.mxu0 %v1097
    %1131 = vmatprep.subr.mxu0 %v1100
    %1132 = vmatpush1.msra.mxu0 %v1099
    %1133 = vmatprep.subr.mxu0 %v1102
    %1134 = vmatpush1.msra.mxu0 %v1101
    %1135 = vmatprep.subr.mxu0 %v1104
    %1136 = vmatpush1.msra.mxu0 %v1103
    %1137 = vmatprep.subr.mxu0 %v1106
    %1138 = vmatpush1.msra.mxu0 %v1105
    %1139 = vmatprep.subr.mxu0 %v1108
    %1140 = vmatpush1.msra.mxu0 %v1107
    %1141 = vmatprep.subr.mxu0 %v1110
    %1142 = vmatpush1.msra.mxu0 %v1109
    %1143 = vmatprep.subr.mxu0 %v1112
    %1144 = vmatpush1.msra.mxu0 %v1111
    %1145 = vmatprep.subr.mxu0 %v1114
    %1146 = vmatpush1.msra.mxu0 %v1113
    %1147 = vmatprep.subr.mxu0 %v1116
    %1148 = vmatpush1.msra.mxu0 %v1115
    %1149 = vmatprep.subr.mxu0 %v1118
    %1150 = vmatpush1.msra.mxu0 %v1117
    %1151 = vmatprep.subr.mxu0 %v1120
    %1152 = vmatpush1.msra.mxu0 %v1119
    %1153 = vmatprep.subr.mxu0 %v1122
    %1154 = vmatpush1.msra.mxu0 %v1121
    %1155 = vmatprep.subr.mxu0 %v1124
    %1156 = vmatpush1.msra.mxu0 %v1123
    %1157 = vmatprep.subr.mxu0 %v1126
    %1158 = vmatpush1.msra.mxu0 %v1125
    %1159 = vmatprep.subr.mxu0 0.0
    %1160 = vmatpush1.msra.mxu0 0.0
    %1161 = vmatprep.subr.mxu0 0.0
    %1162 = vmatpush1.msra.mxu0 0.0
    %1163 = vmatprep.subr.mxu0 0.0
    %1164 = vmatpush1.msra.mxu0 0.0
    %1165 = vmatprep.subr.mxu0 0.0
    %1166 = vmatpush1.msra.mxu0 0.0
    %1167 = vmatprep.subr.mxu0 0.0
    %1168 = vmatpush1.msra.mxu0 0.0
    %1169 = vmatprep.subr.mxu0 0.0
    %1170 = vmatpush1.msra.mxu0 0.0
    %1171 = vmatprep.subr.mxu0 0.0
    %1172 = vmatpush1.msra.mxu0 0.0
    %1173 = vmatprep.subr.mxu0 0.0
    %1174 = vmatpush1.msra.mxu0 0.0
    %1175 = vmatprep.subr.mxu0 0.0
    %1176 = vmatpush1.msra.mxu0 0.0
    %1177 = vmatprep.subr.mxu0 0.0
    %1178 = vmatpush1.msra.mxu0 0.0
    %1179 = vmatprep.subr.mxu0 0.0
    %1180 = vmatpush1.msra.mxu0 0.0
    %1181 = vmatprep.subr.mxu0 0.0
    %1182 = vmatpush1.msra.mxu0 0.0
    %1183 = vmatprep.subr.mxu0 0.0
    %1184 = vmatpush1.msra.mxu0 0.0
    %1185 = vmatprep.subr.mxu0 0.0
    %1186 = vmatpush1.msra.mxu0 0.0
    %1187 = vmatprep.subr.mxu0 0.0
    %1188 = vmatpush1.msra.mxu0 0.0
    %1189 = vmatprep.subr.mxu0 0.0
    %1190 = vmatpush1.msra.mxu0 0.0
    %1191 = vmatprep.mubr.f32.mxu0 0.0
    %1192 = vmatmul.mubr.f32.gmra.mrb[0].mxu0 %v1087
    %v1193 = vpop.f32.mrb[0].mxu0
    %v1194 = vadd.f32 0.0, %v1193
    %v1195 = vpop.f32.mrb[0].mxu0
    %v1196 = vadd.f32 0.0, %v1195
    %1197 = vmatprep.mubr.f32.mxu0 0.0
    %1198 = vmatmul.mubr.f32.gmra.mrb[0].mxu0 %v1088
    %v1199 = vpop.f32.mrb[0].mxu0
    %v1200 = vadd.f32 0.0, %v1199
    %v1201 = vpop.f32.mrb[0].mxu0
    %v1202 = vadd.f32 0.0, %v1201
    %1203 = vmatprep.mubr.f32.mxu0 0.0
    %1204 = vmatmul.mubr.f32.gmra.mrb[0].mxu0 %v1089
    %v1205 = vpop.f32.mrb[0].mxu0
    %v1206 = vadd.f32 0.0, %v1205
    %v1207 = vpop.f32.mrb[0].mxu0
    %v1208 = vadd.f32 0.0, %v1207
    %1209 = vmatprep.mubr.f32.mxu0 0.0
    %1210 = vmatmul.mubr.f32.gmra.mrb[0].mxu0 %v1090
    %v1211 = vpop.f32.mrb[0].mxu0
    %v1212 = vadd.f32 0.0, %v1211
    %v1213 = vpop.f32.mrb[0].mxu0
    %v1214 = vadd.f32 0.0, %v1213
    %1215 = vmatprep.mubr.f32.mxu0 0.0
    %1216 = vmatmul.mubr.f32.gmra.mrb[0].mxu0 %v1091
    %v1217 = vpop.f32.mrb[0].mxu0
    %v1218 = vadd.f32 0.0, %v1217
    %v1219 = vpop.f32.mrb[0].mxu0
    %v1220 = vadd.f32 0.0, %v1219
    %1221 = vmatprep.mubr.f32.mxu0 0.0
    %1222 = vmatmul.mubr.f32.gmra.mrb[0].mxu0 %v1092
    %v1223 = vpop.f32.mrb[0].mxu0
    %v1224 = vadd.f32 0.0, %v1223
    %v1225 = vpop.f32.mrb[0].mxu0
    %v1226 = vadd.f32 0.0, %v1225
    %1227 = vmatprep.mubr.f32.mxu0 0.0
    %1228 = vmatmul.mubr.f32.gmra.mrb[0].mxu0 %v1093
    %v1229 = vpop.f32.mrb[0].mxu0
    %v1230 = vadd.f32 0.0, %v1229
    %v1231 = vpop.f32.mrb[0].mxu0
    %v1232 = vadd.f32 0.0, %v1231
    %1233 = vmatprep.mubr.f32.mxu0 0.0
    %1234 = vmatmul.mubr.f32.gmra.mrb[0].mxu0 %v1094
    %v1235 = vpop.f32.mrb[0].mxu0
    %v1236 = vadd.f32 0.0, %v1235
    %v1237 = vpop.f32.mrb[0].mxu0
    %v1238 = vadd.f32 0.0, %v1237
    %1239 = vdwg.mxu0
    %1240 = vmatprep.subr.mxu0 %v1055
    %1241 = vmatpush1.msra.mxu0 %v1054
    %1242 = vmatprep.subr.mxu0 %v1057
    %1243 = vmatpush1.msra.mxu0 %v1056
    %1244 = vmatprep.subr.mxu0 %v1059
    %1245 = vmatpush1.msra.mxu0 %v1058
    %1246 = vmatprep.subr.mxu0 %v1061
    %1247 = vmatpush1.msra.mxu0 %v1060
    %1248 = vmatprep.subr.mxu0 %v1063
    %1249 = vmatpush1.msra.mxu0 %v1062
    %1250 = vmatprep.subr.mxu0 %v1065
    %1251 = vmatpush1.msra.mxu0 %v1064
    %1252 = vmatprep.subr.mxu0 %v1067
    %1253 = vmatpush1.msra.mxu0 %v1066
    %1254 = vmatprep.subr.mxu0 %v1069
    %1255 = vmatpush1.msra.mxu0 %v1068
    %1256 = vmatprep.subr.mxu0 %v1071
    %1257 = vmatpush1.msra.mxu0 %v1070
    %1258 = vmatprep.subr.mxu0 %v1073
    %1259 = vmatpush1.msra.mxu0 %v1072
    %1260 = vmatprep.subr.mxu0 %v1075
    %1261 = vmatpush1.msra.mxu0 %v1074
    %1262 = vmatprep.subr.mxu0 %v1077
    %1263 = vmatpush1.msra.mxu0 %v1076
    %1264 = vmatprep.subr.mxu0 %v1079
    %1265 = vmatpush1.msra.mxu0 %v1078
    %1266 = vmatprep.subr.mxu0 %v1081
    %1267 = vmatpush1.msra.mxu0 %v1080
    %1268 = vmatprep.subr.mxu0 %v1083
    %1269 = vmatpush1.msra.mxu0 %v1082
    %1270 = vmatprep.subr.mxu0 %v1085
    %1271 = vmatpush1.msra.mxu0 %v1084
    %1272 = vmatprep.subr.mxu0 0.0
    %1273 = vmatpush1.msra.mxu0 0.0
    %1274 = vmatprep.subr.mxu0 0.0
    %1275 = vmatpush1.msra.mxu0 0.0
    %1276 = vmatprep.subr.mxu0 0.0
    %1277 = vmatpush1.msra.mxu0 0.0
    %1278 = vmatprep.subr.mxu0 0.0
    %1279 = vmatpush1.msra.mxu0 0.0
    %1280 = vmatprep.subr.mxu0 0.0
    %1281 = vmatpush1.msra.mxu0 0.0
    %1282 = vmatprep.subr.mxu0 0.0
    %1283 = vmatpush1.msra.mxu0 0.0
    %1284 = vmatprep.subr.mxu0 0.0
    %1285 = vmatpush1.msra.mxu0 0.0
    %1286 = vmatprep.subr.mxu0 0.0
    %1287 = vmatpush1.msra.mxu0 0.0
    %1288 = vmatprep.subr.mxu0 0.0
    %1289 = vmatpush1.msra.mxu0 0.0
    %1290 = vmatprep.subr.mxu0 0.0
    %1291 = vmatpush1.msra.mxu0 0.0
    %1292 = vmatprep.subr.mxu0 0.0
    %1293 = vmatpush1.msra.mxu0 0.0
    %1294 = vmatprep.subr.mxu0 0.0
    %1295 = vmatpush1.msra.mxu0 0.0
    %1296 = vmatprep.subr.mxu0 0.0
    %1297 = vmatpush1.msra.mxu0 0.0
    %1298 = vmatprep.subr.mxu0 0.0
    %1299 = vmatpush1.msra.mxu0 0.0
    %1300 = vmatprep.subr.mxu0 0.0
    %1301 = vmatpush1.msra.mxu0 0.0
    %1302 = vmatprep.subr.mxu0 0.0
    %1303 = vmatpush1.msra.mxu0 0.0
    %1304 = vmatprep.mubr.f32.mxu0 0.0
    %1305 = vmatmul.mubr.f32.gmra.mrb[0].mxu0 %v1046
    %v1306 = vpop.f32.mrb[0].mxu0
    %v1307 = vadd.f32 %v1194, %v1306
    %v1308 = vpop.f32.mrb[0].mxu0
    %v1309 = vadd.f32 %v1196, %v1308
    %1310 = vmatprep.mubr.f32.mxu0 0.0
    %1311 = vmatmul.mubr.f32.gmra.mrb[0].mxu0 %v1047
    %v1312 = vpop.f32.mrb[0].mxu0
    %v1313 = vadd.f32 %v1200, %v1312
    %v1314 = vpop.f32.mrb[0].mxu0
    %v1315 = vadd.f32 %v1202, %v1314
    %1316 = vmatprep.mubr.f32.mxu0 0.0
    %1317 = vmatmul.mubr.f32.gmra.mrb[0].mxu0 %v1048
    %v1318 = vpop.f32.mrb[0].mxu0
    %v1319 = vadd.f32 %v1206, %v1318
    %v1320 = vpop.f32.mrb[0].mxu0
    %v1321 = vadd.f32 %v1208, %v1320
    %1322 = vmatprep.mubr.f32.mxu0 0.0
    %1323 = vmatmul.mubr.f32.gmra.mrb[0].mxu0 %v1049
    %v1324 = vpop.f32.mrb[0].mxu0
    %v1325 = vadd.f32 %v1212, %v1324
    %v1326 = vpop.f32.mrb[0].mxu0
    %v1327 = vadd.f32 %v1214, %v1326
    %1328 = vmatprep.mubr.f32.mxu0 0.0
    %1329 = vmatmul.mubr.f32.gmra.mrb[0].mxu0 %v1050
    %v1330 = vpop.f32.mrb[0].mxu0
    %v1331 = vadd.f32 %v1218, %v1330
    %v1332 = vpop.f32.mrb[0].mxu0
    %v1333 = vadd.f32 %v1220, %v1332
    %1334 = vmatprep.mubr.f32.mxu0 0.0
    %1335 = vmatmul.mubr.f32.gmra.mrb[0].mxu0 %v1051
    %v1336 = vpop.f32.mrb[0].mxu0
    %v1337 = vadd.f32 %v1224, %v1336
    %v1338 = vpop.f32.mrb[0].mxu0
    %v1339 = vadd.f32 %v1226, %v1338
    %1340 = vmatprep.mubr.f32.mxu0 0.0
    %1341 = vmatmul.mubr.f32.gmra.mrb[0].mxu0 %v1052
    %v1342 = vpop.f32.mrb[0].mxu0
    %v1343 = vadd.f32 %v1230, %v1342
    %v1344 = vpop.f32.mrb[0].mxu0
    %v1345 = vadd.f32 %v1232, %v1344
    %1346 = vmatprep.mubr.f32.mxu0 0.0
    %1347 = vmatmul.mubr.f32.gmra.mrb[0].mxu0 %v1053
    %v1348 = vpop.f32.mrb[0].mxu0
    %v1349 = vadd.f32 %v1236, %v1348
    %v1350 = vpop.f32.mrb[0].mxu0
    %v1351 = vadd.f32 %v1238, %v1350
    %1352 = vdwg.mxu0
    %s1353 = scalar_lea.vmem %s0, 80
    %v1354 = vld [vmem:[%s1353] sm:$0xff]
    %v1355 = vld [vmem:[%s1353 + $0x8] sm:$0xff]
    %v1356 = vld [vmem:[%s1353 + $0x10] sm:$0xff]
    %v1357 = vld [vmem:[%s1353 + $0x18] sm:$0xff]
    %v1358 = vld [vmem:[%s1353 + $0x20] sm:$0xff]
    %v1359 = vld [vmem:[%s1353 + $0x28] sm:$0xff]
    %v1360 = vld [vmem:[%s1353 + $0x30] sm:$0xff]
    %v1361 = vld [vmem:[%s1353 + $0x38] sm:$0xff]
    %v1362 = vld [vmem:[%s482] sm:$0xff]
    %v1363 = vld [vmem:[%s482 + $0x8] sm:$0xff]
    %v1364 = vld [vmem:[%s482 + $0x10] sm:$0xff]
    %v1365 = vld [vmem:[%s482 + $0x18] sm:$0xff]
    %v1366 = vld [vmem:[%s482 + $0x20] sm:$0xff]
    %v1367 = vld [vmem:[%s482 + $0x28] sm:$0xff]
    %v1368 = vld [vmem:[%s482 + $0x30] sm:$0xff]
    %v1369 = vld [vmem:[%s482 + $0x38] sm:$0xff]
    %v1370 = vld [vmem:[%s482 + $0x40] sm:$0xff]
    %v1371 = vld [vmem:[%s482 + $0x48] sm:$0xff]
    %v1372 = vld [vmem:[%s482 + $0x50] sm:$0xff]
    %v1373 = vld [vmem:[%s482 + $0x58] sm:$0xff]
    %v1374 = vld [vmem:[%s482 + $0x60] sm:$0xff]
    %v1375 = vld [vmem:[%s482 + $0x68] sm:$0xff]
    %v1376 = vld [vmem:[%s482 + $0x70] sm:$0xff]
    %v1377 = vld [vmem:[%s482 + $0x78] sm:$0xff]
    %v1378 = vld [vmem:[%s482 + $0x80] sm:$0xff]
    %v1379 = vld [vmem:[%s482 + $0x88] sm:$0xff]
    %v1380 = vld [vmem:[%s482 + $0x90] sm:$0xff]
    %v1381 = vld [vmem:[%s482 + $0x98] sm:$0xff]
    %v1382 = vld [vmem:[%s482 + $0xa0] sm:$0xff]
    %v1383 = vld [vmem:[%s482 + $0xa8] sm:$0xff]
    %v1384 = vld [vmem:[%s482 + $0xb0] sm:$0xff]
    %v1385 = vld [vmem:[%s482 + $0xb8] sm:$0xff]
    %v1386 = vld [vmem:[%s482 + $0xc0] sm:$0xff]
    %v1387 = vld [vmem:[%s482 + $0xc8] sm:$0xff]
    %v1388 = vld [vmem:[%s482 + $0xd0] sm:$0xff]
    %v1389 = vld [vmem:[%s482 + $0xd8] sm:$0xff]
    %v1390 = vld [vmem:[%s482 + $0xe0] sm:$0xff]
    %v1391 = vld [vmem:[%s482 + $0xe8] sm:$0xff]
    %v1392 = vld [vmem:[%s482 + $0xf0] sm:$0xff]
    %v1393 = vld [vmem:[%s482 + $0xf8] sm:$0xff]
    %1394 = vmatprep.subr.mxu0 %v1363
    %1395 = vmatpush1.msra.mxu0 %v1362
    %1396 = vmatprep.subr.mxu0 %v1365
    %1397 = vmatpush1.msra.mxu0 %v1364
    %1398 = vmatprep.subr.mxu0 %v1367
    %1399 = vmatpush1.msra.mxu0 %v1366
    %1400 = vmatprep.subr.mxu0 %v1369
    %1401 = vmatpush1.msra.mxu0 %v1368
    %1402 = vmatprep.subr.mxu0 %v1371
    %1403 = vmatpush1.msra.mxu0 %v1370
    %1404 = vmatprep.subr.mxu0 %v1373
    %1405 = vmatpush1.msra.mxu0 %v1372
    %1406 = vmatprep.subr.mxu0 %v1375
    %1407 = vmatpush1.msra.mxu0 %v1374
    %1408 = vmatprep.subr.mxu0 %v1377
    %1409 = vmatpush1.msra.mxu0 %v1376
    %1410 = vmatprep.subr.mxu0 %v1379
    %1411 = vmatpush1.msra.mxu0 %v1378
    %1412 = vmatprep.subr.mxu0 %v1381
    %1413 = vmatpush1.msra.mxu0 %v1380
    %1414 = vmatprep.subr.mxu0 %v1383
    %1415 = vmatpush1.msra.mxu0 %v1382
    %1416 = vmatprep.subr.mxu0 %v1385
    %1417 = vmatpush1.msra.mxu0 %v1384
    %1418 = vmatprep.subr.mxu0 %v1387
    %1419 = vmatpush1.msra.mxu0 %v1386
    %1420 = vmatprep.subr.mxu0 %v1389
    %1421 = vmatpush1.msra.mxu0 %v1388
    %1422 = vmatprep.subr.mxu0 %v1391
    %1423 = vmatpush1.msra.mxu0 %v1390
    %1424 = vmatprep.subr.mxu0 %v1393
    %1425 = vmatpush1.msra.mxu0 %v1392
    %1426 = vmatprep.subr.mxu0 0.0
    %1427 = vmatpush1.msra.mxu0 0.0
    %1428 = vmatprep.subr.mxu0 0.0
    %1429 = vmatpush1.msra.mxu0 0.0
    %1430 = vmatprep.subr.mxu0 0.0
    %1431 = vmatpush1.msra.mxu0 0.0
    %1432 = vmatprep.subr.mxu0 0.0
    %1433 = vmatpush1.msra.mxu0 0.0
    %1434 = vmatprep.subr.mxu0 0.0
    %1435 = vmatpush1.msra.mxu0 0.0
    %1436 = vmatprep.subr.mxu0 0.0
    %1437 = vmatpush1.msra.mxu0 0.0
    %1438 = vmatprep.subr.mxu0 0.0
    %1439 = vmatpush1.msra.mxu0 0.0
    %1440 = vmatprep.subr.mxu0 0.0
    %1441 = vmatpush1.msra.mxu0 0.0
    %1442 = vmatprep.subr.mxu0 0.0
    %1443 = vmatpush1.msra.mxu0 0.0
    %1444 = vmatprep.subr.mxu0 0.0
    %1445 = vmatpush1.msra.mxu0 0.0
    %1446 = vmatprep.subr.mxu0 0.0
    %1447 = vmatpush1.msra.mxu0 0.0
    %1448 = vmatprep.subr.mxu0 0.0
    %1449 = vmatpush1.msra.mxu0 0.0
    %1450 = vmatprep.subr.mxu0 0.0
    %1451 = vmatpush1.msra.mxu0 0.0
    %1452 = vmatprep.subr.mxu0 0.0
    %1453 = vmatpush1.msra.mxu0 0.0
    %1454 = vmatprep.subr.mxu0 0.0
    %1455 = vmatpush1.msra.mxu0 0.0
    %1456 = vmatprep.subr.mxu0 0.0
    %1457 = vmatpush1.msra.mxu0 0.0
    %1458 = vmatprep.mubr.f32.mxu0 0.0
    %1459 = vmatmul.mubr.f32.gmra.mrb[0].mxu0 %v1354
    %v1460 = vpop.f32.mrb[0].mxu0
    %v1461 = vadd.f32 0.0, %v1460
    %v1462 = vpop.f32.mrb[0].mxu0
    %v1463 = vadd.f32 0.0, %v1462
    %1464 = vmatprep.mubr.f32.mxu0 0.0
    %1465 = vmatmul.mubr.f32.gmra.mrb[0].mxu0 %v1355
    %v1466 = vpop.f32.mrb[0].mxu0
    %v1467 = vadd.f32 0.0, %v1466
    %v1468 = vpop.f32.mrb[0].mxu0
    %v1469 = vadd.f32 0.0, %v1468
    %1470 = vmatprep.mubr.f32.mxu0 0.0
    %1471 = vmatmul.mubr.f32.gmra.mrb[0].mxu0 %v1356
    %v1472 = vpop.f32.mrb[0].mxu0
    %v1473 = vadd.f32 0.0, %v1472
    %v1474 = vpop.f32.mrb[0].mxu0
    %v1475 = vadd.f32 0.0, %v1474
    %1476 = vmatprep.mubr.f32.mxu0 0.0
    %1477 = vmatmul.mubr.f32.gmra.mrb[0].mxu0 %v1357
    %v1478 = vpop.f32.mrb[0].mxu0
    %v1479 = vadd.f32 0.0, %v1478
    %v1480 = vpop.f32.mrb[0].mxu0
    %v1481 = vadd.f32 0.0, %v1480
    %1482 = vmatprep.mubr.f32.mxu0 0.0
    %1483 = vmatmul.mubr.f32.gmra.mrb[0].mxu0 %v1358
    %v1484 = vpop.f32.mrb[0].mxu0
    %v1485 = vadd.f32 0.0, %v1484
    %v1486 = vpop.f32.mrb[0].mxu0
    %v1487 = vadd.f32 0.0, %v1486
    %1488 = vmatprep.mubr.f32.mxu0 0.0
    %1489 = vmatmul.mubr.f32.gmra.mrb[0].mxu0 %v1359
    %v1490 = vpop.f32.mrb[0].mxu0
    %v1491 = vadd.f32 0.0, %v1490
    %v1492 = vpop.f32.mrb[0].mxu0
    %v1493 = vadd.f32 0.0, %v1492
    %1494 = vmatprep.mubr.f32.mxu0 0.0
    %1495 = vmatmul.mubr.f32.gmra.mrb[0].mxu0 %v1360
    %v1496 = vpop.f32.mrb[0].mxu0
    %v1497 = vadd.f32 0.0, %v1496
    %v1498 = vpop.f32.mrb[0].mxu0
    %v1499 = vadd.f32 0.0, %v1498
    %1500 = vmatprep.mubr.f32.mxu0 0.0
    %1501 = vmatmul.mubr.f32.gmra.mrb[0].mxu0 %v1361
    %v1502 = vpop.f32.mrb[0].mxu0
    %v1503 = vadd.f32 0.0, %v1502
    %v1504 = vpop.f32.mrb[0].mxu0
    %v1505 = vadd.f32 0.0, %v1504
    %1506 = vdwg.mxu0
    %v1507 = vadd.f32 %v1307, %v1461
    %v1508 = vadd.f32 %v1309, %v1463
    %v1509 = vadd.f32 %v1313, %v1467
    %v1510 = vadd.f32 %v1315, %v1469
    %v1511 = vadd.f32 %v1319, %v1473
    %v1512 = vadd.f32 %v1321, %v1475
    %v1513 = vadd.f32 %v1325, %v1479
    %v1514 = vadd.f32 %v1327, %v1481
    %v1515 = vadd.f32 %v1331, %v1485
    %v1516 = vadd.f32 %v1333, %v1487
    %v1517 = vadd.f32 %v1337, %v1491
    %v1518 = vadd.f32 %v1339, %v1493
    %v1519 = vadd.f32 %v1343, %v1497
    %v1520 = vadd.f32 %v1345, %v1499
    %v1521 = vadd.f32 %v1349, %v1503
    %v1522 = vadd.f32 %v1351, %v1505
    %s1523 = scalar_lea.vmem %s0, 88
    %v1524 = vld [vmem:[%s1523] sm:$0xff]
    %v1525 = vld [vmem:[%s1523 + $0x8] sm:$0xff]
    %v1526 = vld [vmem:[%s1523 + $0x10] sm:$0xff]
    %v1527 = vld [vmem:[%s1523 + $0x18] sm:$0xff]
    %v1528 = vld [vmem:[%s1523 + $0x20] sm:$0xff]
    %v1529 = vld [vmem:[%s1523 + $0x28] sm:$0xff]
    %v1530 = vld [vmem:[%s1523 + $0x30] sm:$0xff]
    %v1531 = vld [vmem:[%s1523 + $0x38] sm:$0xff]
    %v1532 = vld [vmem:[%s653] sm:$0xff]
    %v1533 = vld [vmem:[%s653 + $0x8] sm:$0xff]
    %v1534 = vld [vmem:[%s653 + $0x10] sm:$0xff]
    %v1535 = vld [vmem:[%s653 + $0x18] sm:$0xff]
    %v1536 = vld [vmem:[%s653 + $0x20] sm:$0xff]
    %v1537 = vld [vmem:[%s653 + $0x28] sm:$0xff]
    %v1538 = vld [vmem:[%s653 + $0x30] sm:$0xff]
    %v1539 = vld [vmem:[%s653 + $0x38] sm:$0xff]
    %v1540 = vld [vmem:[%s653 + $0x40] sm:$0xff]
    %v1541 = vld [vmem:[%s653 + $0x48] sm:$0xff]
    %v1542 = vld [vmem:[%s653 + $0x50] sm:$0xff]
    %v1543 = vld [vmem:[%s653 + $0x58] sm:$0xff]
    %v1544 = vld [vmem:[%s653 + $0x60] sm:$0xff]
    %v1545 = vld [vmem:[%s653 + $0x68] sm:$0xff]
    %v1546 = vld [vmem:[%s653 + $0x70] sm:$0xff]
    %v1547 = vld [vmem:[%s653 + $0x78] sm:$0xff]
    %v1548 = vld [vmem:[%s653 + $0x80] sm:$0xff]
    %v1549 = vld [vmem:[%s653 + $0x88] sm:$0xff]
    %v1550 = vld [vmem:[%s653 + $0x90] sm:$0xff]
    %v1551 = vld [vmem:[%s653 + $0x98] sm:$0xff]
    %v1552 = vld [vmem:[%s653 + $0xa0] sm:$0xff]
    %v1553 = vld [vmem:[%s653 + $0xa8] sm:$0xff]
    %v1554 = vld [vmem:[%s653 + $0xb0] sm:$0xff]
    %v1555 = vld [vmem:[%s653 + $0xb8] sm:$0xff]
    %v1556 = vld [vmem:[%s653 + $0xc0] sm:$0xff]
    %v1557 = vld [vmem:[%s653 + $0xc8] sm:$0xff]
    %v1558 = vld [vmem:[%s653 + $0xd0] sm:$0xff]
    %v1559 = vld [vmem:[%s653 + $0xd8] sm:$0xff]
    %v1560 = vld [vmem:[%s653 + $0xe0] sm:$0xff]
    %v1561 = vld [vmem:[%s653 + $0xe8] sm:$0xff]
    %v1562 = vld [vmem:[%s653 + $0xf0] sm:$0xff]
    %v1563 = vld [vmem:[%s653 + $0xf8] sm:$0xff]
    %1564 = vmatprep.subr.mxu0 %v1533
    %1565 = vmatpush1.msra.mxu0 %v1532
    %1566 = vmatprep.subr.mxu0 %v1535
    %1567 = vmatpush1.msra.mxu0 %v1534
    %1568 = vmatprep.subr.mxu0 %v1537
    %1569 = vmatpush1.msra.mxu0 %v1536
    %1570 = vmatprep.subr.mxu0 %v1539
    %1571 = vmatpush1.msra.mxu0 %v1538
    %1572 = vmatprep.subr.mxu0 %v1541
    %1573 = vmatpush1.msra.mxu0 %v1540
    %1574 = vmatprep.subr.mxu0 %v1543
    %1575 = vmatpush1.msra.mxu0 %v1542
    %1576 = vmatprep.subr.mxu0 %v1545
    %1577 = vmatpush1.msra.mxu0 %v1544
    %1578 = vmatprep.subr.mxu0 %v1547
    %1579 = vmatpush1.msra.mxu0 %v1546
    %1580 = vmatprep.subr.mxu0 %v1549
    %1581 = vmatpush1.msra.mxu0 %v1548
    %1582 = vmatprep.subr.mxu0 %v1551
    %1583 = vmatpush1.msra.mxu0 %v1550
    %1584 = vmatprep.subr.mxu0 %v1553
    %1585 = vmatpush1.msra.mxu0 %v1552
    %1586 = vmatprep.subr.mxu0 %v1555
    %1587 = vmatpush1.msra.mxu0 %v1554
    %1588 = vmatprep.subr.mxu0 %v1557
    %1589 = vmatpush1.msra.mxu0 %v1556
    %1590 = vmatprep.subr.mxu0 %v1559
    %1591 = vmatpush1.msra.mxu0 %v1558
    %1592 = vmatprep.subr.mxu0 %v1561
    %1593 = vmatpush1.msra.mxu0 %v1560
    %1594 = vmatprep.subr.mxu0 %v1563
    %1595 = vmatpush1.msra.mxu0 %v1562
    %1596 = vmatprep.subr.mxu0 0.0
    %1597 = vmatpush1.msra.mxu0 0.0
    %1598 = vmatprep.subr.mxu0 0.0
    %1599 = vmatpush1.msra.mxu0 0.0
    %1600 = vmatprep.subr.mxu0 0.0
    %1601 = vmatpush1.msra.mxu0 0.0
    %1602 = vmatprep.subr.mxu0 0.0
    %1603 = vmatpush1.msra.mxu0 0.0
    %1604 = vmatprep.subr.mxu0 0.0
    %1605 = vmatpush1.msra.mxu0 0.0
    %1606 = vmatprep.subr.mxu0 0.0
    %1607 = vmatpush1.msra.mxu0 0.0
    %1608 = vmatprep.subr.mxu0 0.0
    %1609 = vmatpush1.msra.mxu0 0.0
    %1610 = vmatprep.subr.mxu0 0.0
    %1611 = vmatpush1.msra.mxu0 0.0
    %1612 = vmatprep.subr.mxu0 0.0
    %1613 = vmatpush1.msra.mxu0 0.0
    %1614 = vmatprep.subr.mxu0 0.0
    %1615 = vmatpush1.msra.mxu0 0.0
    %1616 = vmatprep.subr.mxu0 0.0
    %1617 = vmatpush1.msra.mxu0 0.0
    %1618 = vmatprep.subr.mxu0 0.0
    %1619 = vmatpush1.msra.mxu0 0.0
    %1620 = vmatprep.subr.mxu0 0.0
    %1621 = vmatpush1.msra.mxu0 0.0
    %1622 = vmatprep.subr.mxu0 0.0
    %1623 = vmatpush1.msra.mxu0 0.0
    %1624 = vmatprep.subr.mxu0 0.0
    %1625 = vmatpush1.msra.mxu0 0.0
    %1626 = vmatprep.subr.mxu0 0.0
    %1627 = vmatpush1.msra.mxu0 0.0
    %1628 = vmatprep.mubr.f32.mxu0 0.0
    %1629 = vmatmul.mubr.f32.gmra.mrb[0].mxu0 %v1524
    %v1630 = vpop.f32.mrb[0].mxu0
    %v1631 = vadd.f32 0.0, %v1630
    %v1632 = vpop.f32.mrb[0].mxu0
    %v1633 = vadd.f32 0.0, %v1632
    %1634 = vmatprep.mubr.f32.mxu0 0.0
    %1635 = vmatmul.mubr.f32.gmra.mrb[0].mxu0 %v1525
    %v1636 = vpop.f32.mrb[0].mxu0
    %v1637 = vadd.f32 0.0, %v1636
    %v1638 = vpop.f32.mrb[0].mxu0
    %v1639 = vadd.f32 0.0, %v1638
    %1640 = vmatprep.mubr.f32.mxu0 0.0
    %1641 = vmatmul.mubr.f32.gmra.mrb[0].mxu0 %v1526
    %v1642 = vpop.f32.mrb[0].mxu0
    %v1643 = vadd.f32 0.0, %v1642
    %v1644 = vpop.f32.mrb[0].mxu0
    %v1645 = vadd.f32 0.0, %v1644
    %1646 = vmatprep.mubr.f32.mxu0 0.0
    %1647 = vmatmul.mubr.f32.gmra.mrb[0].mxu0 %v1527
    %v1648 = vpop.f32.mrb[0].mxu0
    %v1649 = vadd.f32 0.0, %v1648
    %v1650 = vpop.f32.mrb[0].mxu0
    %v1651 = vadd.f32 0.0, %v1650
    %1652 = vmatprep.mubr.f32.mxu0 0.0
    %1653 = vmatmul.mubr.f32.gmra.mrb[0].mxu0 %v1528
    %v1654 = vpop.f32.mrb[0].mxu0
    %v1655 = vadd.f32 0.0, %v1654
    %v1656 = vpop.f32.mrb[0].mxu0
    %v1657 = vadd.f32 0.0, %v1656
    %1658 = vmatprep.mubr.f32.mxu0 0.0
    %1659 = vmatmul.mubr.f32.gmra.mrb[0].mxu0 %v1529
    %v1660 = vpop.f32.mrb[0].mxu0
    %v1661 = vadd.f32 0.0, %v1660
    %v1662 = vpop.f32.mrb[0].mxu0
    %v1663 = vadd.f32 0.0, %v1662
    %1664 = vmatprep.mubr.f32.mxu0 0.0
    %1665 = vmatmul.mubr.f32.gmra.mrb[0].mxu0 %v1530
    %v1666 = vpop.f32.mrb[0].mxu0
    %v1667 = vadd.f32 0.0, %v1666
    %v1668 = vpop.f32.mrb[0].mxu0
    %v1669 = vadd.f32 0.0, %v1668
    %1670 = vmatprep.mubr.f32.mxu0 0.0
    %1671 = vmatmul.mubr.f32.gmra.mrb[0].mxu0 %v1531
    %v1672 = vpop.f32.mrb[0].mxu0
    %v1673 = vadd.f32 0.0, %v1672
    %v1674 = vpop.f32.mrb[0].mxu0
    %v1675 = vadd.f32 0.0, %v1674
    %1676 = vdwg.mxu0
    %v1677 = vadd.f32 %v1507, %v1631
    %v1678 = vadd.f32 %v1508, %v1633
    %v1679 = vadd.f32 %v1509, %v1637
    %v1680 = vadd.f32 %v1510, %v1639
    %v1681 = vadd.f32 %v1511, %v1643
    %v1682 = vadd.f32 %v1512, %v1645
    %v1683 = vadd.f32 %v1513, %v1649
    %v1684 = vadd.f32 %v1514, %v1651
    %v1685 = vadd.f32 %v1515, %v1655
    %v1686 = vadd.f32 %v1516, %v1657
    %v1687 = vadd.f32 %v1517, %v1661
    %v1688 = vadd.f32 %v1518, %v1663
    %v1689 = vadd.f32 %v1519, %v1667
    %v1690 = vadd.f32 %v1520, %v1669
    %v1691 = vadd.f32 %v1521, %v1673
    %v1692 = vadd.f32 %v1522, %v1675
    %s1693 = scalar_lea.vmem %s0, 96
    %v1694 = vld [vmem:[%s1693] sm:$0xff]
    %v1695 = vld [vmem:[%s1693 + $0x8] sm:$0xff]
    %v1696 = vld [vmem:[%s1693 + $0x10] sm:$0xff]
    %v1697 = vld [vmem:[%s1693 + $0x18] sm:$0xff]
    %v1698 = vld [vmem:[%s1693 + $0x20] sm:$0xff]
    %v1699 = vld [vmem:[%s1693 + $0x28] sm:$0xff]
    %v1700 = vld [vmem:[%s1693 + $0x30] sm:$0xff]
    %v1701 = vld [vmem:[%s1693 + $0x38] sm:$0xff]
    %v1702 = vld [vmem:[%s824] sm:$0xff]
    %v1703 = vld [vmem:[%s824 + $0x8] sm:$0xff]
    %v1704 = vld [vmem:[%s824 + $0x10] sm:$0xff]
    %v1705 = vld [vmem:[%s824 + $0x18] sm:$0xff]
    %v1706 = vld [vmem:[%s824 + $0x20] sm:$0xff]
    %v1707 = vld [vmem:[%s824 + $0x28] sm:$0xff]
    %v1708 = vld [vmem:[%s824 + $0x30] sm:$0xff]
    %v1709 = vld [vmem:[%s824 + $0x38] sm:$0xff]
    %v1710 = vld [vmem:[%s824 + $0x40] sm:$0xff]
    %v1711 = vld [vmem:[%s824 + $0x48] sm:$0xff]
    %v1712 = vld [vmem:[%s824 + $0x50] sm:$0xff]
    %v1713 = vld [vmem:[%s824 + $0x58] sm:$0xff]
    %v1714 = vld [vmem:[%s824 + $0x60] sm:$0xff]
    %v1715 = vld [vmem:[%s824 + $0x68] sm:$0xff]
    %v1716 = vld [vmem:[%s824 + $0x70] sm:$0xff]
    %v1717 = vld [vmem:[%s824 + $0x78] sm:$0xff]
    %v1718 = vld [vmem:[%s824 + $0x80] sm:$0xff]
    %v1719 = vld [vmem:[%s824 + $0x88] sm:$0xff]
    %v1720 = vld [vmem:[%s824 + $0x90] sm:$0xff]
    %v1721 = vld [vmem:[%s824 + $0x98] sm:$0xff]
    %v1722 = vld [vmem:[%s824 + $0xa0] sm:$0xff]
    %v1723 = vld [vmem:[%s824 + $0xa8] sm:$0xff]
    %v1724 = vld [vmem:[%s824 + $0xb0] sm:$0xff]
    %v1725 = vld [vmem:[%s824 + $0xb8] sm:$0xff]
    %v1726 = vld [vmem:[%s824 + $0xc0] sm:$0xff]
    %v1727 = vld [vmem:[%s824 + $0xc8] sm:$0xff]
    %v1728 = vld [vmem:[%s824 + $0xd0] sm:$0xff]
    %v1729 = vld [vmem:[%s824 + $0xd8] sm:$0xff]
    %v1730 = vld [vmem:[%s824 + $0xe0] sm:$0xff]
    %v1731 = vld [vmem:[%s824 + $0xe8] sm:$0xff]
    %v1732 = vld [vmem:[%s824 + $0xf0] sm:$0xff]
    %v1733 = vld [vmem:[%s824 + $0xf8] sm:$0xff]
    %1734 = vmatprep.subr.mxu0 %v1703
    %1735 = vmatpush1.msra.mxu0 %v1702
    %1736 = vmatprep.subr.mxu0 %v1705
    %1737 = vmatpush1.msra.mxu0 %v1704
    %1738 = vmatprep.subr.mxu0 %v1707
    %1739 = vmatpush1.msra.mxu0 %v1706
    %1740 = vmatprep.subr.mxu0 %v1709
    %1741 = vmatpush1.msra.mxu0 %v1708
    %1742 = vmatprep.subr.mxu0 %v1711
    %1743 = vmatpush1.msra.mxu0 %v1710
    %1744 = vmatprep.subr.mxu0 %v1713
    %1745 = vmatpush1.msra.mxu0 %v1712
    %1746 = vmatprep.subr.mxu0 %v1715
    %1747 = vmatpush1.msra.mxu0 %v1714
    %1748 = vmatprep.subr.mxu0 %v1717
    %1749 = vmatpush1.msra.mxu0 %v1716
    %1750 = vmatprep.subr.mxu0 %v1719
    %1751 = vmatpush1.msra.mxu0 %v1718
    %1752 = vmatprep.subr.mxu0 %v1721
    %1753 = vmatpush1.msra.mxu0 %v1720
    %1754 = vmatprep.subr.mxu0 %v1723
    %1755 = vmatpush1.msra.mxu0 %v1722
    %1756 = vmatprep.subr.mxu0 %v1725
    %1757 = vmatpush1.msra.mxu0 %v1724
    %1758 = vmatprep.subr.mxu0 %v1727
    %1759 = vmatpush1.msra.mxu0 %v1726
    %1760 = vmatprep.subr.mxu0 %v1729
    %1761 = vmatpush1.msra.mxu0 %v1728
    %1762 = vmatprep.subr.mxu0 %v1731
    %1763 = vmatpush1.msra.mxu0 %v1730
    %1764 = vmatprep.subr.mxu0 %v1733
    %1765 = vmatpush1.msra.mxu0 %v1732
    %1766 = vmatprep.subr.mxu0 0.0
    %1767 = vmatpush1.msra.mxu0 0.0
    %1768 = vmatprep.subr.mxu0 0.0
    %1769 = vmatpush1.msra.mxu0 0.0
    %1770 = vmatprep.subr.mxu0 0.0
    %1771 = vmatpush1.msra.mxu0 0.0
    %1772 = vmatprep.subr.mxu0 0.0
    %1773 = vmatpush1.msra.mxu0 0.0
    %1774 = vmatprep.subr.mxu0 0.0
    %1775 = vmatpush1.msra.mxu0 0.0
    %1776 = vmatprep.subr.mxu0 0.0
    %1777 = vmatpush1.msra.mxu0 0.0
    %1778 = vmatprep.subr.mxu0 0.0
    %1779 = vmatpush1.msra.mxu0 0.0
    %1780 = vmatprep.subr.mxu0 0.0
    %1781 = vmatpush1.msra.mxu0 0.0
    %1782 = vmatprep.subr.mxu0 0.0
    %1783 = vmatpush1.msra.mxu0 0.0
    %1784 = vmatprep.subr.mxu0 0.0
    %1785 = vmatpush1.msra.mxu0 0.0
    %1786 = vmatprep.subr.mxu0 0.0
    %1787 = vmatpush1.msra.mxu0 0.0
    %1788 = vmatprep.subr.mxu0 0.0
    %1789 = vmatpush1.msra.mxu0 0.0
    %1790 = vmatprep.subr.mxu0 0.0
    %1791 = vmatpush1.msra.mxu0 0.0
    %1792 = vmatprep.subr.mxu0 0.0
    %1793 = vmatpush1.msra.mxu0 0.0
    %1794 = vmatprep.subr.mxu0 0.0
    %1795 = vmatpush1.msra.mxu0 0.0
    %1796 = vmatprep.subr.mxu0 0.0
    %1797 = vmatpush1.msra.mxu0 0.0
    %1798 = vmatprep.mubr.f32.mxu0 0.0
    %1799 = vmatmul.mubr.f32.gmra.mrb[0].mxu0 %v1694
    %v1800 = vpop.f32.mrb[0].mxu0
    %v1801 = vadd.f32 0.0, %v1800
    %v1802 = vpop.f32.mrb[0].mxu0
    %v1803 = vadd.f32 0.0, %v1802
    %1804 = vmatprep.mubr.f32.mxu0 0.0
    %1805 = vmatmul.mubr.f32.gmra.mrb[0].mxu0 %v1695
    %v1806 = vpop.f32.mrb[0].mxu0
    %v1807 = vadd.f32 0.0, %v1806
    %v1808 = vpop.f32.mrb[0].mxu0
    %v1809 = vadd.f32 0.0, %v1808
    %1810 = vmatprep.mubr.f32.mxu0 0.0
    %1811 = vmatmul.mubr.f32.gmra.mrb[0].mxu0 %v1696
    %v1812 = vpop.f32.mrb[0].mxu0
    %v1813 = vadd.f32 0.0, %v1812
    %v1814 = vpop.f32.mrb[0].mxu0
    %v1815 = vadd.f32 0.0, %v1814
    %1816 = vmatprep.mubr.f32.mxu0 0.0
    %1817 = vmatmul.mubr.f32.gmra.mrb[0].mxu0 %v1697
    %v1818 = vpop.f32.mrb[0].mxu0
    %v1819 = vadd.f32 0.0, %v1818
    %v1820 = vpop.f32.mrb[0].mxu0
    %v1821 = vadd.f32 0.0, %v1820
    %1822 = vmatprep.mubr.f32.mxu0 0.0
    %1823 = vmatmul.mubr.f32.gmra.mrb[0].mxu0 %v1698
    %v1824 = vpop.f32.mrb[0].mxu0
    %v1825 = vadd.f32 0.0, %v1824
    %v1826 = vpop.f32.mrb[0].mxu0
    %v1827 = vadd.f32 0.0, %v1826
    %1828 = vmatprep.mubr.f32.mxu0 0.0
    %1829 = vmatmul.mubr.f32.gmra.mrb[0].mxu0 %v1699
    %v1830 = vpop.f32.mrb[0].mxu0
    %v1831 = vadd.f32 0.0, %v1830
    %v1832 = vpop.f32.mrb[0].mxu0
    %v1833 = vadd.f32 0.0, %v1832
    %1834 = vmatprep.mubr.f32.mxu0 0.0
    %1835 = vmatmul.mubr.f32.gmra.mrb[0].mxu0 %v1700
    %v1836 = vpop.f32.mrb[0].mxu0
    %v1837 = vadd.f32 0.0, %v1836
    %v1838 = vpop.f32.mrb[0].mxu0
    %v1839 = vadd.f32 0.0, %v1838
    %1840 = vmatprep.mubr.f32.mxu0 0.0
    %1841 = vmatmul.mubr.f32.gmra.mrb[0].mxu0 %v1701
    %v1842 = vpop.f32.mrb[0].mxu0
    %v1843 = vadd.f32 0.0, %v1842
    %v1844 = vpop.f32.mrb[0].mxu0
    %v1845 = vadd.f32 0.0, %v1844
    %1846 = vdwg.mxu0
    %v1847 = vadd.f32 %v1677, %v1801
    %v1848 = vadd.f32 %v1678, %v1803
    %v1849 = vadd.f32 %v1679, %v1807
    %v1850 = vadd.f32 %v1680, %v1809
    %v1851 = vadd.f32 %v1681, %v1813
    %v1852 = vadd.f32 %v1682, %v1815
    %v1853 = vadd.f32 %v1683, %v1819
    %v1854 = vadd.f32 %v1684, %v1821
    %v1855 = vadd.f32 %v1685, %v1825
    %v1856 = vadd.f32 %v1686, %v1827
    %v1857 = vadd.f32 %v1687, %v1831
    %v1858 = vadd.f32 %v1688, %v1833
    %v1859 = vadd.f32 %v1689, %v1837
    %v1860 = vadd.f32 %v1690, %v1839
    %v1861 = vadd.f32 %v1691, %v1843
    %v1862 = vadd.f32 %v1692, %v1845
    %v1863 = vadd.f32 %v1847, %v990
    %v1864 = vadd.f32 %v1848, %v994
    %v1865 = vadd.f32 %v1849, %v990
    %v1866 = vadd.f32 %v1850, %v994
    %v1867 = vadd.f32 %v1851, %v990
    %v1868 = vadd.f32 %v1852, %v994
    %v1869 = vadd.f32 %v1853, %v990
    %v1870 = vadd.f32 %v1854, %v994
    %v1871 = vadd.f32 %v1855, %v990
    %v1872 = vadd.f32 %v1856, %v994
    %v1873 = vadd.f32 %v1857, %v990
    %v1874 = vadd.f32 %v1858, %v994
    %v1875 = vadd.f32 %v1859, %v990
    %v1876 = vadd.f32 %v1860, %v994
    %v1877 = vadd.f32 %v1861, %v990
    %v1878 = vadd.f32 %v1862, %v994
    %v1879 = vmax.f32 %v1863, 0.0
    %v1880 = vmax.f32 %v1864, 0.0
    %v1881 = vmax.f32 %v1865, 0.0
    %v1882 = vmax.f32 %v1866, 0.0
    %v1883 = vmax.f32 %v1867, 0.0
    %v1884 = vmax.f32 %v1868, 0.0
    %v1885 = vmax.f32 %v1869, 0.0
    %v1886 = vmax.f32 %v1870, 0.0
    %v1887 = vmax.f32 %v1871, 0.0
    %v1888 = vmax.f32 %v1872, 0.0
    %v1889 = vmax.f32 %v1873, 0.0
    %v1890 = vmax.f32 %v1874, 0.0
    %v1891 = vmax.f32 %v1875, 0.0
    %v1892 = vmax.f32 %v1876, 0.0
    %v1893 = vmax.f32 %v1877, 0.0
    %v1894 = vmax.f32 %v1878, 0.0
    %v1895 = vmax.f32 %v1879, %v1881
    %v1896 = vmax.f32 %v1880, %v1882
    %v1897 = vmax.f32 %v1883, %v1885
    %v1898 = vmax.f32 %v1884, %v1886
    %v1899 = vmax.f32 %v1887, %v1889
    %v1900 = vmax.f32 %v1888, %v1890
    %v1901 = vmax.f32 %v1891, %v1893
    %v1902 = vmax.f32 %v1892, %v1894
    %s1903 = scalar_lea.vmem [#allocation2], 64
    %1904 = vst [vmem:[%s1903] sm:$0xff] %v1895
    %1905 = vst [vmem:[%s1903 + $0x8] sm:$0xff] %v1896
    %1906 = vst [vmem:[%s1903 + $0x10] sm:$0xff] %v1897
    %1907 = vst [vmem:[%s1903 + $0x18] sm:$0xff] %v1898
    %1908 = vst [vmem:[%s1903 + $0x20] sm:$0xff] %v1899
    %1909 = vst [vmem:[%s1903 + $0x28] sm:$0xff] %v1900
    %1910 = vst [vmem:[%s1903 + $0x30] sm:$0xff] %v1901
    %1911 = vst [vmem:[%s1903 + $0x38] sm:$0xff] %v1902
    %s1912 = scalar_lea.vmem %s0, 128
    %v1913 = vld [vmem:[%s1912] sm:$0xff]
    %v1914 = vld [vmem:[%s1912 + $0x8] sm:$0xff]
    %v1915 = vld [vmem:[%s1912 + $0x10] sm:$0xff]
    %v1916 = vld [vmem:[%s1912 + $0x18] sm:$0xff]
    %v1917 = vld [vmem:[%s1912 + $0x20] sm:$0xff]
    %v1918 = vld [vmem:[%s1912 + $0x28] sm:$0xff]
    %v1919 = vld [vmem:[%s1912 + $0x30] sm:$0xff]
    %v1920 = vld [vmem:[%s1912 + $0x38] sm:$0xff]
    %v1921 = vld [vmem:[#allocation3] sm:$0xff]
    %v1922 = vld [vmem:[#allocation3 + $0x8] sm:$0xff]
    %v1923 = vld [vmem:[#allocation3 + $0x10] sm:$0xff]
    %v1924 = vld [vmem:[#allocation3 + $0x18] sm:$0xff]
    %v1925 = vld [vmem:[#allocation3 + $0x20] sm:$0xff]
    %v1926 = vld [vmem:[#allocation3 + $0x28] sm:$0xff]
    %v1927 = vld [vmem:[#allocation3 + $0x30] sm:$0xff]
    %v1928 = vld [vmem:[#allocation3 + $0x38] sm:$0xff]
    %v1929 = vld [vmem:[#allocation3 + $0x40] sm:$0xff]
    %v1930 = vld [vmem:[#allocation3 + $0x48] sm:$0xff]
    %v1931 = vld [vmem:[#allocation3 + $0x50] sm:$0xff]
    %v1932 = vld [vmem:[#allocation3 + $0x58] sm:$0xff]
    %v1933 = vld [vmem:[#allocation3 + $0x60] sm:$0xff]
    %v1934 = vld [vmem:[#allocation3 + $0x68] sm:$0xff]
    %v1935 = vld [vmem:[#allocation3 + $0x70] sm:$0xff]
    %v1936 = vld [vmem:[#allocation3 + $0x78] sm:$0xff]
    %v1937 = vld [vmem:[#allocation3 + $0x80] sm:$0xff]
    %v1938 = vld [vmem:[#allocation3 + $0x88] sm:$0xff]
    %v1939 = vld [vmem:[#allocation3 + $0x90] sm:$0xff]
    %v1940 = vld [vmem:[#allocation3 + $0x98] sm:$0xff]
    %v1941 = vld [vmem:[#allocation3 + $0xa0] sm:$0xff]
    %v1942 = vld [vmem:[#allocation3 + $0xa8] sm:$0xff]
    %v1943 = vld [vmem:[#allocation3 + $0xb0] sm:$0xff]
    %v1944 = vld [vmem:[#allocation3 + $0xb8] sm:$0xff]
    %v1945 = vld [vmem:[#allocation3 + $0xc0] sm:$0xff]
    %v1946 = vld [vmem:[#allocation3 + $0xc8] sm:$0xff]
    %v1947 = vld [vmem:[#allocation3 + $0xd0] sm:$0xff]
    %v1948 = vld [vmem:[#allocation3 + $0xd8] sm:$0xff]
    %v1949 = vld [vmem:[#allocation3 + $0xe0] sm:$0xff]
    %v1950 = vld [vmem:[#allocation3 + $0xe8] sm:$0xff]
    %v1951 = vld [vmem:[#allocation3 + $0xf0] sm:$0xff]
    %v1952 = vld [vmem:[#allocation3 + $0xf8] sm:$0xff]
    %s1953 = scalar_lea.vmem %s0, 136
    %v1954 = vld [vmem:[%s1953] sm:$0xff]
    %v1955 = vld [vmem:[%s1953 + $0x8] sm:$0xff]
    %v1956 = vld [vmem:[%s1953 + $0x10] sm:$0xff]
    %v1957 = vld [vmem:[%s1953 + $0x18] sm:$0xff]
    %v1958 = vld [vmem:[%s1953 + $0x20] sm:$0xff]
    %v1959 = vld [vmem:[%s1953 + $0x28] sm:$0xff]
    %v1960 = vld [vmem:[%s1953 + $0x30] sm:$0xff]
    %v1961 = vld [vmem:[%s1953 + $0x38] sm:$0xff]
    %v1962 = vld [vmem:[%s214] sm:$0xff]
    %v1963 = vld [vmem:[%s214 + $0x8] sm:$0xff]
    %v1964 = vld [vmem:[%s214 + $0x10] sm:$0xff]
    %v1965 = vld [vmem:[%s214 + $0x18] sm:$0xff]
    %v1966 = vld [vmem:[%s214 + $0x20] sm:$0xff]
    %v1967 = vld [vmem:[%s214 + $0x28] sm:$0xff]
    %v1968 = vld [vmem:[%s214 + $0x30] sm:$0xff]
    %v1969 = vld [vmem:[%s214 + $0x38] sm:$0xff]
    %v1970 = vld [vmem:[%s214 + $0x40] sm:$0xff]
    %v1971 = vld [vmem:[%s214 + $0x48] sm:$0xff]
    %v1972 = vld [vmem:[%s214 + $0x50] sm:$0xff]
    %v1973 = vld [vmem:[%s214 + $0x58] sm:$0xff]
    %v1974 = vld [vmem:[%s214 + $0x60] sm:$0xff]
    %v1975 = vld [vmem:[%s214 + $0x68] sm:$0xff]
    %v1976 = vld [vmem:[%s214 + $0x70] sm:$0xff]
    %v1977 = vld [vmem:[%s214 + $0x78] sm:$0xff]
    %v1978 = vld [vmem:[%s214 + $0x80] sm:$0xff]
    %v1979 = vld [vmem:[%s214 + $0x88] sm:$0xff]
    %v1980 = vld [vmem:[%s214 + $0x90] sm:$0xff]
    %v1981 = vld [vmem:[%s214 + $0x98] sm:$0xff]
    %v1982 = vld [vmem:[%s214 + $0xa0] sm:$0xff]
    %v1983 = vld [vmem:[%s214 + $0xa8] sm:$0xff]
    %v1984 = vld [vmem:[%s214 + $0xb0] sm:$0xff]
    %v1985 = vld [vmem:[%s214 + $0xb8] sm:$0xff]
    %v1986 = vld [vmem:[%s214 + $0xc0] sm:$0xff]
    %v1987 = vld [vmem:[%s214 + $0xc8] sm:$0xff]
    %v1988 = vld [vmem:[%s214 + $0xd0] sm:$0xff]
    %v1989 = vld [vmem:[%s214 + $0xd8] sm:$0xff]
    %v1990 = vld [vmem:[%s214 + $0xe0] sm:$0xff]
    %v1991 = vld [vmem:[%s214 + $0xe8] sm:$0xff]
    %v1992 = vld [vmem:[%s214 + $0xf0] sm:$0xff]
    %v1993 = vld [vmem:[%s214 + $0xf8] sm:$0xff]
    %1994 = vmatprep.subr.mxu0 %v1963
    %1995 = vmatpush1.msra.mxu0 %v1962
    %1996 = vmatprep.subr.mxu0 %v1965
    %1997 = vmatpush1.msra.mxu0 %v1964
    %1998 = vmatprep.subr.mxu0 %v1967
    %1999 = vmatpush1.msra.mxu0 %v1966
    %2000 = vmatprep.subr.mxu0 %v1969
    %2001 = vmatpush1.msra.mxu0 %v1968
    %2002 = vmatprep.subr.mxu0 %v1971
    %2003 = vmatpush1.msra.mxu0 %v1970
    %2004 = vmatprep.subr.mxu0 %v1973
    %2005 = vmatpush1.msra.mxu0 %v1972
    %2006 = vmatprep.subr.mxu0 %v1975
    %2007 = vmatpush1.msra.mxu0 %v1974
    %2008 = vmatprep.subr.mxu0 %v1977
    %2009 = vmatpush1.msra.mxu0 %v1976
    %2010 = vmatprep.subr.mxu0 %v1979
    %2011 = vmatpush1.msra.mxu0 %v1978
    %2012 = vmatprep.subr.mxu0 %v1981
    %2013 = vmatpush1.msra.mxu0 %v1980
    %2014 = vmatprep.subr.mxu0 %v1983
    %2015 = vmatpush1.msra.mxu0 %v1982
    %2016 = vmatprep.subr.mxu0 %v1985
    %2017 = vmatpush1.msra.mxu0 %v1984
    %2018 = vmatprep.subr.mxu0 %v1987
    %2019 = vmatpush1.msra.mxu0 %v1986
    %2020 = vmatprep.subr.mxu0 %v1989
    %2021 = vmatpush1.msra.mxu0 %v1988
    %2022 = vmatprep.subr.mxu0 %v1991
    %2023 = vmatpush1.msra.mxu0 %v1990
    %2024 = vmatprep.subr.mxu0 %v1993
    %2025 = vmatpush1.msra.mxu0 %v1992
    %2026 = vmatprep.subr.mxu0 0.0
    %2027 = vmatpush1.msra.mxu0 0.0
    %2028 = vmatprep.subr.mxu0 0.0
    %2029 = vmatpush1.msra.mxu0 0.0
    %2030 = vmatprep.subr.mxu0 0.0
    %2031 = vmatpush1.msra.mxu0 0.0
    %2032 = vmatprep.subr.mxu0 0.0
    %2033 = vmatpush1.msra.mxu0 0.0
    %2034 = vmatprep.subr.mxu0 0.0
    %2035 = vmatpush1.msra.mxu0 0.0
    %2036 = vmatprep.subr.mxu0 0.0
    %2037 = vmatpush1.msra.mxu0 0.0
    %2038 = vmatprep.subr.mxu0 0.0
    %2039 = vmatpush1.msra.mxu0 0.0
    %2040 = vmatprep.subr.mxu0 0.0
    %2041 = vmatpush1.msra.mxu0 0.0
    %2042 = vmatprep.subr.mxu0 0.0
    %2043 = vmatpush1.msra.mxu0 0.0
    %2044 = vmatprep.subr.mxu0 0.0
    %2045 = vmatpush1.msra.mxu0 0.0
    %2046 = vmatprep.subr.mxu0 0.0
    %2047 = vmatpush1.msra.mxu0 0.0
    %2048 = vmatprep.subr.mxu0 0.0
    %2049 = vmatpush1.msra.mxu0 0.0
    %2050 = vmatprep.subr.mxu0 0.0
    %2051 = vmatpush1.msra.mxu0 0.0
    %2052 = vmatprep.subr.mxu0 0.0
    %2053 = vmatpush1.msra.mxu0 0.0
    %2054 = vmatprep.subr.mxu0 0.0
    %2055 = vmatpush1.msra.mxu0 0.0
    %2056 = vmatprep.subr.mxu0 0.0
    %2057 = vmatpush1.msra.mxu0 0.0
    %2058 = vmatprep.mubr.f32.mxu0 0.0
    %2059 = vmatmul.mubr.f32.gmra.mrb[0].mxu0 %v1954
    %v2060 = vpop.f32.mrb[0].mxu0
    %v2061 = vadd.f32 0.0, %v2060
    %v2062 = vpop.f32.mrb[0].mxu0
    %v2063 = vadd.f32 0.0, %v2062
    %2064 = vmatprep.mubr.f32.mxu0 0.0
    %2065 = vmatmul.mubr.f32.gmra.mrb[0].mxu0 %v1955
    %v2066 = vpop.f32.mrb[0].mxu0
    %v2067 = vadd.f32 0.0, %v2066
    %v2068 = vpop.f32.mrb[0].mxu0
    %v2069 = vadd.f32 0.0, %v2068
    %2070 = vmatprep.mubr.f32.mxu0 0.0
    %2071 = vmatmul.mubr.f32.gmra.mrb[0].mxu0 %v1956
    %v2072 = vpop.f32.mrb[0].mxu0
    %v2073 = vadd.f32 0.0, %v2072
    %v2074 = vpop.f32.mrb[0].mxu0
    %v2075 = vadd.f32 0.0, %v2074
    %2076 = vmatprep.mubr.f32.mxu0 0.0
    %2077 = vmatmul.mubr.f32.gmra.mrb[0].mxu0 %v1957
    %v2078 = vpop.f32.mrb[0].mxu0
    %v2079 = vadd.f32 0.0, %v2078
    %v2080 = vpop.f32.mrb[0].mxu0
    %v2081 = vadd.f32 0.0, %v2080
    %2082 = vmatprep.mubr.f32.mxu0 0.0
    %2083 = vmatmul.mubr.f32.gmra.mrb[0].mxu0 %v1958
    %v2084 = vpop.f32.mrb[0].mxu0
    %v2085 = vadd.f32 0.0, %v2084
    %v2086 = vpop.f32.mrb[0].mxu0
    %v2087 = vadd.f32 0.0, %v2086
    %2088 = vmatprep.mubr.f32.mxu0 0.0
    %2089 = vmatmul.mubr.f32.gmra.mrb[0].mxu0 %v1959
    %v2090 = vpop.f32.mrb[0].mxu0
    %v2091 = vadd.f32 0.0, %v2090
    %v2092 = vpop.f32.mrb[0].mxu0
    %v2093 = vadd.f32 0.0, %v2092
    %2094 = vmatprep.mubr.f32.mxu0 0.0
    %2095 = vmatmul.mubr.f32.gmra.mrb[0].mxu0 %v1960
    %v2096 = vpop.f32.mrb[0].mxu0
    %v2097 = vadd.f32 0.0, %v2096
    %v2098 = vpop.f32.mrb[0].mxu0
    %v2099 = vadd.f32 0.0, %v2098
    %2100 = vmatprep.mubr.f32.mxu0 0.0
    %2101 = vmatmul.mubr.f32.gmra.mrb[0].mxu0 %v1961
    %v2102 = vpop.f32.mrb[0].mxu0
    %v2103 = vadd.f32 0.0, %v2102
    %v2104 = vpop.f32.mrb[0].mxu0
    %v2105 = vadd.f32 0.0, %v2104
    %2106 = vdwg.mxu0
    %2107 = vmatprep.subr.mxu0 %v1922
    %2108 = vmatpush1.msra.mxu0 %v1921
    %2109 = vmatprep.subr.mxu0 %v1924
    %2110 = vmatpush1.msra.mxu0 %v1923
    %2111 = vmatprep.subr.mxu0 %v1926
    %2112 = vmatpush1.msra.mxu0 %v1925
    %2113 = vmatprep.subr.mxu0 %v1928
    %2114 = vmatpush1.msra.mxu0 %v1927
    %2115 = vmatprep.subr.mxu0 %v1930
    %2116 = vmatpush1.msra.mxu0 %v1929
    %2117 = vmatprep.subr.mxu0 %v1932
    %2118 = vmatpush1.msra.mxu0 %v1931
    %2119 = vmatprep.subr.mxu0 %v1934
    %2120 = vmatpush1.msra.mxu0 %v1933
    %2121 = vmatprep.subr.mxu0 %v1936
    %2122 = vmatpush1.msra.mxu0 %v1935
    %2123 = vmatprep.subr.mxu0 %v1938
    %2124 = vmatpush1.msra.mxu0 %v1937
    %2125 = vmatprep.subr.mxu0 %v1940
    %2126 = vmatpush1.msra.mxu0 %v1939
    %2127 = vmatprep.subr.mxu0 %v1942
    %2128 = vmatpush1.msra.mxu0 %v1941
    %2129 = vmatprep.subr.mxu0 %v1944
    %2130 = vmatpush1.msra.mxu0 %v1943
    %2131 = vmatprep.subr.mxu0 %v1946
    %2132 = vmatpush1.msra.mxu0 %v1945
    %2133 = vmatprep.subr.mxu0 %v1948
    %2134 = vmatpush1.msra.mxu0 %v1947
    %2135 = vmatprep.subr.mxu0 %v1950
    %2136 = vmatpush1.msra.mxu0 %v1949
    %2137 = vmatprep.subr.mxu0 %v1952
    %2138 = vmatpush1.msra.mxu0 %v1951
    %2139 = vmatprep.subr.mxu0 0.0
    %2140 = vmatpush1.msra.mxu0 0.0
    %2141 = vmatprep.subr.mxu0 0.0
    %2142 = vmatpush1.msra.mxu0 0.0
    %2143 = vmatprep.subr.mxu0 0.0
    %2144 = vmatpush1.msra.mxu0 0.0
    %2145 = vmatprep.subr.mxu0 0.0
    %2146 = vmatpush1.msra.mxu0 0.0
    %2147 = vmatprep.subr.mxu0 0.0
    %2148 = vmatpush1.msra.mxu0 0.0
    %2149 = vmatprep.subr.mxu0 0.0
    %2150 = vmatpush1.msra.mxu0 0.0
    %2151 = vmatprep.subr.mxu0 0.0
    %2152 = vmatpush1.msra.mxu0 0.0
    %2153 = vmatprep.subr.mxu0 0.0
    %2154 = vmatpush1.msra.mxu0 0.0
    %2155 = vmatprep.subr.mxu0 0.0
    %2156 = vmatpush1.msra.mxu0 0.0
    %2157 = vmatprep.subr.mxu0 0.0
    %2158 = vmatpush1.msra.mxu0 0.0
    %2159 = vmatprep.subr.mxu0 0.0
    %2160 = vmatpush1.msra.mxu0 0.0
    %2161 = vmatprep.subr.mxu0 0.0
    %2162 = vmatpush1.msra.mxu0 0.0
    %2163 = vmatprep.subr.mxu0 0.0
    %2164 = vmatpush1.msra.mxu0 0.0
    %2165 = vmatprep.subr.mxu0 0.0
    %2166 = vmatpush1.msra.mxu0 0.0
    %2167 = vmatprep.subr.mxu0 0.0
    %2168 = vmatpush1.msra.mxu0 0.0
    %2169 = vmatprep.subr.mxu0 0.0
    %2170 = vmatpush1.msra.mxu0 0.0
    %2171 = vmatprep.mubr.f32.mxu0 0.0
    %2172 = vmatmul.mubr.f32.gmra.mrb[0].mxu0 %v1913
    %v2173 = vpop.f32.mrb[0].mxu0
    %v2174 = vadd.f32 %v2061, %v2173
    %v2175 = vpop.f32.mrb[0].mxu0
    %v2176 = vadd.f32 %v2063, %v2175
    %2177 = vmatprep.mubr.f32.mxu0 0.0
    %2178 = vmatmul.mubr.f32.gmra.mrb[0].mxu0 %v1914
    %v2179 = vpop.f32.mrb[0].mxu0
    %v2180 = vadd.f32 %v2067, %v2179
    %v2181 = vpop.f32.mrb[0].mxu0
    %v2182 = vadd.f32 %v2069, %v2181
    %2183 = vmatprep.mubr.f32.mxu0 0.0
    %2184 = vmatmul.mubr.f32.gmra.mrb[0].mxu0 %v1915
    %v2185 = vpop.f32.mrb[0].mxu0
    %v2186 = vadd.f32 %v2073, %v2185
    %v2187 = vpop.f32.mrb[0].mxu0
    %v2188 = vadd.f32 %v2075, %v2187
    %2189 = vmatprep.mubr.f32.mxu0 0.0
    %2190 = vmatmul.mubr.f32.gmra.mrb[0].mxu0 %v1916
    %v2191 = vpop.f32.mrb[0].mxu0
    %v2192 = vadd.f32 %v2079, %v2191
    %v2193 = vpop.f32.mrb[0].mxu0
    %v2194 = vadd.f32 %v2081, %v2193
    %2195 = vmatprep.mubr.f32.mxu0 0.0
    %2196 = vmatmul.mubr.f32.gmra.mrb[0].mxu0 %v1917
    %v2197 = vpop.f32.mrb[0].mxu0
    %v2198 = vadd.f32 %v2085, %v2197
    %v2199 = vpop.f32.mrb[0].mxu0
    %v2200 = vadd.f32 %v2087, %v2199
    %2201 = vmatprep.mubr.f32.mxu0 0.0
    %2202 = vmatmul.mubr.f32.gmra.mrb[0].mxu0 %v1918
    %v2203 = vpop.f32.mrb[0].mxu0
    %v2204 = vadd.f32 %v2091, %v2203
    %v2205 = vpop.f32.mrb[0].mxu0
    %v2206 = vadd.f32 %v2093, %v2205
    %2207 = vmatprep.mubr.f32.mxu0 0.0
    %2208 = vmatmul.mubr.f32.gmra.mrb[0].mxu0 %v1919
    %v2209 = vpop.f32.mrb[0].mxu0
    %v2210 = vadd.f32 %v2097, %v2209
    %v2211 = vpop.f32.mrb[0].mxu0
    %v2212 = vadd.f32 %v2099, %v2211
    %2213 = vmatprep.mubr.f32.mxu0 0.0
    %2214 = vmatmul.mubr.f32.gmra.mrb[0].mxu0 %v1920
    %v2215 = vpop.f32.mrb[0].mxu0
    %v2216 = vadd.f32 %v2103, %v2215
    %v2217 = vpop.f32.mrb[0].mxu0
    %v2218 = vadd.f32 %v2105, %v2217
    %2219 = vdwg.mxu0
    %s2220 = scalar_lea.vmem %s0, 144
    %v2221 = vld [vmem:[%s2220] sm:$0xff]
    %v2222 = vld [vmem:[%s2220 + $0x8] sm:$0xff]
    %v2223 = vld [vmem:[%s2220 + $0x10] sm:$0xff]
    %v2224 = vld [vmem:[%s2220 + $0x18] sm:$0xff]
    %v2225 = vld [vmem:[%s2220 + $0x20] sm:$0xff]
    %v2226 = vld [vmem:[%s2220 + $0x28] sm:$0xff]
    %v2227 = vld [vmem:[%s2220 + $0x30] sm:$0xff]
    %v2228 = vld [vmem:[%s2220 + $0x38] sm:$0xff]
    %v2229 = vld [vmem:[%s482] sm:$0xff]
    %v2230 = vld [vmem:[%s482 + $0x8] sm:$0xff]
    %v2231 = vld [vmem:[%s482 + $0x10] sm:$0xff]
    %v2232 = vld [vmem:[%s482 + $0x18] sm:$0xff]
    %v2233 = vld [vmem:[%s482 + $0x20] sm:$0xff]
    %v2234 = vld [vmem:[%s482 + $0x28] sm:$0xff]
    %v2235 = vld [vmem:[%s482 + $0x30] sm:$0xff]
    %v2236 = vld [vmem:[%s482 + $0x38] sm:$0xff]
    %v2237 = vld [vmem:[%s482 + $0x40] sm:$0xff]
    %v2238 = vld [vmem:[%s482 + $0x48] sm:$0xff]
    %v2239 = vld [vmem:[%s482 + $0x50] sm:$0xff]
    %v2240 = vld [vmem:[%s482 + $0x58] sm:$0xff]
    %v2241 = vld [vmem:[%s482 + $0x60] sm:$0xff]
    %v2242 = vld [vmem:[%s482 + $0x68] sm:$0xff]
    %v2243 = vld [vmem:[%s482 + $0x70] sm:$0xff]
    %v2244 = vld [vmem:[%s482 + $0x78] sm:$0xff]
    %v2245 = vld [vmem:[%s482 + $0x80] sm:$0xff]
    %v2246 = vld [vmem:[%s482 + $0x88] sm:$0xff]
    %v2247 = vld [vmem:[%s482 + $0x90] sm:$0xff]
    %v2248 = vld [vmem:[%s482 + $0x98] sm:$0xff]
    %v2249 = vld [vmem:[%s482 + $0xa0] sm:$0xff]
    %v2250 = vld [vmem:[%s482 + $0xa8] sm:$0xff]
    %v2251 = vld [vmem:[%s482 + $0xb0] sm:$0xff]
    %v2252 = vld [vmem:[%s482 + $0xb8] sm:$0xff]
    %v2253 = vld [vmem:[%s482 + $0xc0] sm:$0xff]
    %v2254 = vld [vmem:[%s482 + $0xc8] sm:$0xff]
    %v2255 = vld [vmem:[%s482 + $0xd0] sm:$0xff]
    %v2256 = vld [vmem:[%s482 + $0xd8] sm:$0xff]
    %v2257 = vld [vmem:[%s482 + $0xe0] sm:$0xff]
    %v2258 = vld [vmem:[%s482 + $0xe8] sm:$0xff]
    %v2259 = vld [vmem:[%s482 + $0xf0] sm:$0xff]
    %v2260 = vld [vmem:[%s482 + $0xf8] sm:$0xff]
    %2261 = vmatprep.subr.mxu0 %v2230
    %2262 = vmatpush1.msra.mxu0 %v2229
    %2263 = vmatprep.subr.mxu0 %v2232
    %2264 = vmatpush1.msra.mxu0 %v2231
    %2265 = vmatprep.subr.mxu0 %v2234
    %2266 = vmatpush1.msra.mxu0 %v2233
    %2267 = vmatprep.subr.mxu0 %v2236
    %2268 = vmatpush1.msra.mxu0 %v2235
    %2269 = vmatprep.subr.mxu0 %v2238
    %2270 = vmatpush1.msra.mxu0 %v2237
    %2271 = vmatprep.subr.mxu0 %v2240
    %2272 = vmatpush1.msra.mxu0 %v2239
    %2273 = vmatprep.subr.mxu0 %v2242
    %2274 = vmatpush1.msra.mxu0 %v2241
    %2275 = vmatprep.subr.mxu0 %v2244
    %2276 = vmatpush1.msra.mxu0 %v2243
    %2277 = vmatprep.subr.mxu0 %v2246
    %2278 = vmatpush1.msra.mxu0 %v2245
    %2279 = vmatprep.subr.mxu0 %v2248
    %2280 = vmatpush1.msra.mxu0 %v2247
    %2281 = vmatprep.subr.mxu0 %v2250
    %2282 = vmatpush1.msra.mxu0 %v2249
    %2283 = vmatprep.subr.mxu0 %v2252
    %2284 = vmatpush1.msra.mxu0 %v2251
    %2285 = vmatprep.subr.mxu0 %v2254
    %2286 = vmatpush1.msra.mxu0 %v2253
    %2287 = vmatprep.subr.mxu0 %v2256
    %2288 = vmatpush1.msra.mxu0 %v2255
    %2289 = vmatprep.subr.mxu0 %v2258
    %2290 = vmatpush1.msra.mxu0 %v2257
    %2291 = vmatprep.subr.mxu0 %v2260
    %2292 = vmatpush1.msra.mxu0 %v2259
    %2293 = vmatprep.subr.mxu0 0.0
    %2294 = vmatpush1.msra.mxu0 0.0
    %2295 = vmatprep.subr.mxu0 0.0
    %2296 = vmatpush1.msra.mxu0 0.0
    %2297 = vmatprep.subr.mxu0 0.0
    %2298 = vmatpush1.msra.mxu0 0.0
    %2299 = vmatprep.subr.mxu0 0.0
    %2300 = vmatpush1.msra.mxu0 0.0
    %2301 = vmatprep.subr.mxu0 0.0
    %2302 = vmatpush1.msra.mxu0 0.0
    %2303 = vmatprep.subr.mxu0 0.0
    %2304 = vmatpush1.msra.mxu0 0.0
    %2305 = vmatprep.subr.mxu0 0.0
    %2306 = vmatpush1.msra.mxu0 0.0
    %2307 = vmatprep.subr.mxu0 0.0
    %2308 = vmatpush1.msra.mxu0 0.0
    %2309 = vmatprep.subr.mxu0 0.0
    %2310 = vmatpush1.msra.mxu0 0.0
    %2311 = vmatprep.subr.mxu0 0.0
    %2312 = vmatpush1.msra.mxu0 0.0
    %2313 = vmatprep.subr.mxu0 0.0
    %2314 = vmatpush1.msra.mxu0 0.0
    %2315 = vmatprep.subr.mxu0 0.0
    %2316 = vmatpush1.msra.mxu0 0.0
    %2317 = vmatprep.subr.mxu0 0.0
    %2318 = vmatpush1.msra.mxu0 0.0
    %2319 = vmatprep.subr.mxu0 0.0
    %2320 = vmatpush1.msra.mxu0 0.0
    %2321 = vmatprep.subr.mxu0 0.0
    %2322 = vmatpush1.msra.mxu0 0.0
    %2323 = vmatprep.subr.mxu0 0.0
    %2324 = vmatpush1.msra.mxu0 0.0
    %2325 = vmatprep.mubr.f32.mxu0 0.0
    %2326 = vmatmul.mubr.f32.gmra.mrb[0].mxu0 %v2221
    %v2327 = vpop.f32.mrb[0].mxu0
    %v2328 = vadd.f32 0.0, %v2327
    %v2329 = vpop.f32.mrb[0].mxu0
    %v2330 = vadd.f32 0.0, %v2329
    %2331 = vmatprep.mubr.f32.mxu0 0.0
    %2332 = vmatmul.mubr.f32.gmra.mrb[0].mxu0 %v2222
    %v2333 = vpop.f32.mrb[0].mxu0
    %v2334 = vadd.f32 0.0, %v2333
    %v2335 = vpop.f32.mrb[0].mxu0
    %v2336 = vadd.f32 0.0, %v2335
    %2337 = vmatprep.mubr.f32.mxu0 0.0
    %2338 = vmatmul.mubr.f32.gmra.mrb[0].mxu0 %v2223
    %v2339 = vpop.f32.mrb[0].mxu0
    %v2340 = vadd.f32 0.0, %v2339
    %v2341 = vpop.f32.mrb[0].mxu0
    %v2342 = vadd.f32 0.0, %v2341
    %2343 = vmatprep.mubr.f32.mxu0 0.0
    %2344 = vmatmul.mubr.f32.gmra.mrb[0].mxu0 %v2224
    %v2345 = vpop.f32.mrb[0].mxu0
    %v2346 = vadd.f32 0.0, %v2345
    %v2347 = vpop.f32.mrb[0].mxu0
    %v2348 = vadd.f32 0.0, %v2347
    %2349 = vmatprep.mubr.f32.mxu0 0.0
    %2350 = vmatmul.mubr.f32.gmra.mrb[0].mxu0 %v2225
    %v2351 = vpop.f32.mrb[0].mxu0
    %v2352 = vadd.f32 0.0, %v2351
    %v2353 = vpop.f32.mrb[0].mxu0
    %v2354 = vadd.f32 0.0, %v2353
    %2355 = vmatprep.mubr.f32.mxu0 0.0
    %2356 = vmatmul.mubr.f32.gmra.mrb[0].mxu0 %v2226
    %v2357 = vpop.f32.mrb[0].mxu0
    %v2358 = vadd.f32 0.0, %v2357
    %v2359 = vpop.f32.mrb[0].mxu0
    %v2360 = vadd.f32 0.0, %v2359
    %2361 = vmatprep.mubr.f32.mxu0 0.0
    %2362 = vmatmul.mubr.f32.gmra.mrb[0].mxu0 %v2227
    %v2363 = vpop.f32.mrb[0].mxu0
    %v2364 = vadd.f32 0.0, %v2363
    %v2365 = vpop.f32.mrb[0].mxu0
    %v2366 = vadd.f32 0.0, %v2365
    %2367 = vmatprep.mubr.f32.mxu0 0.0
    %2368 = vmatmul.mubr.f32.gmra.mrb[0].mxu0 %v2228
    %v2369 = vpop.f32.mrb[0].mxu0
    %v2370 = vadd.f32 0.0, %v2369
    %v2371 = vpop.f32.mrb[0].mxu0
    %v2372 = vadd.f32 0.0, %v2371
    %2373 = vdwg.mxu0
    %v2374 = vadd.f32 %v2174, %v2328
    %v2375 = vadd.f32 %v2176, %v2330
    %v2376 = vadd.f32 %v2180, %v2334
    %v2377 = vadd.f32 %v2182, %v2336
    %v2378 = vadd.f32 %v2186, %v2340
    %v2379 = vadd.f32 %v2188, %v2342
    %v2380 = vadd.f32 %v2192, %v2346
    %v2381 = vadd.f32 %v2194, %v2348
    %v2382 = vadd.f32 %v2198, %v2352
    %v2383 = vadd.f32 %v2200, %v2354
    %v2384 = vadd.f32 %v2204, %v2358
    %v2385 = vadd.f32 %v2206, %v2360
    %v2386 = vadd.f32 %v2210, %v2364
    %v2387 = vadd.f32 %v2212, %v2366
    %v2388 = vadd.f32 %v2216, %v2370
    %v2389 = vadd.f32 %v2218, %v2372
    %s2390 = scalar_lea.vmem %s0, 152
    %v2391 = vld [vmem:[%s2390] sm:$0xff]
    %v2392 = vld [vmem:[%s2390 + $0x8] sm:$0xff]
    %v2393 = vld [vmem:[%s2390 + $0x10] sm:$0xff]
    %v2394 = vld [vmem:[%s2390 + $0x18] sm:$0xff]
    %v2395 = vld [vmem:[%s2390 + $0x20] sm:$0xff]
    %v2396 = vld [vmem:[%s2390 + $0x28] sm:$0xff]
    %v2397 = vld [vmem:[%s2390 + $0x30] sm:$0xff]
    %v2398 = vld [vmem:[%s2390 + $0x38] sm:$0xff]
    %v2399 = vld [vmem:[%s653] sm:$0xff]
    %v2400 = vld [vmem:[%s653 + $0x8] sm:$0xff]
    %v2401 = vld [vmem:[%s653 + $0x10] sm:$0xff]
    %v2402 = vld [vmem:[%s653 + $0x18] sm:$0xff]
    %v2403 = vld [vmem:[%s653 + $0x20] sm:$0xff]
    %v2404 = vld [vmem:[%s653 + $0x28] sm:$0xff]
    %v2405 = vld [vmem:[%s653 + $0x30] sm:$0xff]
    %v2406 = vld [vmem:[%s653 + $0x38] sm:$0xff]
    %v2407 = vld [vmem:[%s653 + $0x40] sm:$0xff]
    %v2408 = vld [vmem:[%s653 + $0x48] sm:$0xff]
    %v2409 = vld [vmem:[%s653 + $0x50] sm:$0xff]
    %v2410 = vld [vmem:[%s653 + $0x58] sm:$0xff]
    %v2411 = vld [vmem:[%s653 + $0x60] sm:$0xff]
    %v2412 = vld [vmem:[%s653 + $0x68] sm:$0xff]
    %v2413 = vld [vmem:[%s653 + $0x70] sm:$0xff]
    %v2414 = vld [vmem:[%s653 + $0x78] sm:$0xff]
    %v2415 = vld [vmem:[%s653 + $0x80] sm:$0xff]
    %v2416 = vld [vmem:[%s653 + $0x88] sm:$0xff]
    %v2417 = vld [vmem:[%s653 + $0x90] sm:$0xff]
    %v2418 = vld [vmem:[%s653 + $0x98] sm:$0xff]
    %v2419 = vld [vmem:[%s653 + $0xa0] sm:$0xff]
    %v2420 = vld [vmem:[%s653 + $0xa8] sm:$0xff]
    %v2421 = vld [vmem:[%s653 + $0xb0] sm:$0xff]
    %v2422 = vld [vmem:[%s653 + $0xb8] sm:$0xff]
    %v2423 = vld [vmem:[%s653 + $0xc0] sm:$0xff]
    %v2424 = vld [vmem:[%s653 + $0xc8] sm:$0xff]
    %v2425 = vld [vmem:[%s653 + $0xd0] sm:$0xff]
    %v2426 = vld [vmem:[%s653 + $0xd8] sm:$0xff]
    %v2427 = vld [vmem:[%s653 + $0xe0] sm:$0xff]
    %v2428 = vld [vmem:[%s653 + $0xe8] sm:$0xff]
    %v2429 = vld [vmem:[%s653 + $0xf0] sm:$0xff]
    %v2430 = vld [vmem:[%s653 + $0xf8] sm:$0xff]
    %2431 = vmatprep.subr.mxu0 %v2400
    %2432 = vmatpush1.msra.mxu0 %v2399
    %2433 = vmatprep.subr.mxu0 %v2402
    %2434 = vmatpush1.msra.mxu0 %v2401
    %2435 = vmatprep.subr.mxu0 %v2404
    %2436 = vmatpush1.msra.mxu0 %v2403
    %2437 = vmatprep.subr.mxu0 %v2406
    %2438 = vmatpush1.msra.mxu0 %v2405
    %2439 = vmatprep.subr.mxu0 %v2408
    %2440 = vmatpush1.msra.mxu0 %v2407
    %2441 = vmatprep.subr.mxu0 %v2410
    %2442 = vmatpush1.msra.mxu0 %v2409
    %2443 = vmatprep.subr.mxu0 %v2412
    %2444 = vmatpush1.msra.mxu0 %v2411
    %2445 = vmatprep.subr.mxu0 %v2414
    %2446 = vmatpush1.msra.mxu0 %v2413
    %2447 = vmatprep.subr.mxu0 %v2416
    %2448 = vmatpush1.msra.mxu0 %v2415
    %2449 = vmatprep.subr.mxu0 %v2418
    %2450 = vmatpush1.msra.mxu0 %v2417
    %2451 = vmatprep.subr.mxu0 %v2420
    %2452 = vmatpush1.msra.mxu0 %v2419
    %2453 = vmatprep.subr.mxu0 %v2422
    %2454 = vmatpush1.msra.mxu0 %v2421
    %2455 = vmatprep.subr.mxu0 %v2424
    %2456 = vmatpush1.msra.mxu0 %v2423
    %2457 = vmatprep.subr.mxu0 %v2426
    %2458 = vmatpush1.msra.mxu0 %v2425
    %2459 = vmatprep.subr.mxu0 %v2428
    %2460 = vmatpush1.msra.mxu0 %v2427
    %2461 = vmatprep.subr.mxu0 %v2430
    %2462 = vmatpush1.msra.mxu0 %v2429
    %2463 = vmatprep.subr.mxu0 0.0
    %2464 = vmatpush1.msra.mxu0 0.0
    %2465 = vmatprep.subr.mxu0 0.0
    %2466 = vmatpush1.msra.mxu0 0.0
    %2467 = vmatprep.subr.mxu0 0.0
    %2468 = vmatpush1.msra.mxu0 0.0
    %2469 = vmatprep.subr.mxu0 0.0
    %2470 = vmatpush1.msra.mxu0 0.0
    %2471 = vmatprep.subr.mxu0 0.0
    %2472 = vmatpush1.msra.mxu0 0.0
    %2473 = vmatprep.subr.mxu0 0.0
    %2474 = vmatpush1.msra.mxu0 0.0
    %2475 = vmatprep.subr.mxu0 0.0
    %2476 = vmatpush1.msra.mxu0 0.0
    %2477 = vmatprep.subr.mxu0 0.0
    %2478 = vmatpush1.msra.mxu0 0.0
    %2479 = vmatprep.subr.mxu0 0.0
    %2480 = vmatpush1.msra.mxu0 0.0
    %2481 = vmatprep.subr.mxu0 0.0
    %2482 = vmatpush1.msra.mxu0 0.0
    %2483 = vmatprep.subr.mxu0 0.0
    %2484 = vmatpush1.msra.mxu0 0.0
    %2485 = vmatprep.subr.mxu0 0.0
    %2486 = vmatpush1.msra.mxu0 0.0
    %2487 = vmatprep.subr.mxu0 0.0
    %2488 = vmatpush1.msra.mxu0 0.0
    %2489 = vmatprep.subr.mxu0 0.0
    %2490 = vmatpush1.msra.mxu0 0.0
    %2491 = vmatprep.subr.mxu0 0.0
    %2492 = vmatpush1.msra.mxu0 0.0
    %2493 = vmatprep.subr.mxu0 0.0
    %2494 = vmatpush1.msra.mxu0 0.0
    %2495 = vmatprep.mubr.f32.mxu0 0.0
    %2496 = vmatmul.mubr.f32.gmra.mrb[0].mxu0 %v2391
    %v2497 = vpop.f32.mrb[0].mxu0
    %v2498 = vadd.f32 0.0, %v2497
    %v2499 = vpop.f32.mrb[0].mxu0
    %v2500 = vadd.f32 0.0, %v2499
    %2501 = vmatprep.mubr.f32.mxu0 0.0
    %2502 = vmatmul.mubr.f32.gmra.mrb[0].mxu0 %v2392
    %v2503 = vpop.f32.mrb[0].mxu0
    %v2504 = vadd.f32 0.0, %v2503
    %v2505 = vpop.f32.mrb[0].mxu0
    %v2506 = vadd.f32 0.0, %v2505
    %2507 = vmatprep.mubr.f32.mxu0 0.0
    %2508 = vmatmul.mubr.f32.gmra.mrb[0].mxu0 %v2393
    %v2509 = vpop.f32.mrb[0].mxu0
    %v2510 = vadd.f32 0.0, %v2509
    %v2511 = vpop.f32.mrb[0].mxu0
    %v2512 = vadd.f32 0.0, %v2511
    %2513 = vmatprep.mubr.f32.mxu0 0.0
    %2514 = vmatmul.mubr.f32.gmra.mrb[0].mxu0 %v2394
    %v2515 = vpop.f32.mrb[0].mxu0
    %v2516 = vadd.f32 0.0, %v2515
    %v2517 = vpop.f32.mrb[0].mxu0
    %v2518 = vadd.f32 0.0, %v2517
    %2519 = vmatprep.mubr.f32.mxu0 0.0
    %2520 = vmatmul.mubr.f32.gmra.mrb[0].mxu0 %v2395
    %v2521 = vpop.f32.mrb[0].mxu0
    %v2522 = vadd.f32 0.0, %v2521
    %v2523 = vpop.f32.mrb[0].mxu0
    %v2524 = vadd.f32 0.0, %v2523
    %2525 = vmatprep.mubr.f32.mxu0 0.0
    %2526 = vmatmul.mubr.f32.gmra.mrb[0].mxu0 %v2396
    %v2527 = vpop.f32.mrb[0].mxu0
    %v2528 = vadd.f32 0.0, %v2527
    %v2529 = vpop.f32.mrb[0].mxu0
    %v2530 = vadd.f32 0.0, %v2529
    %2531 = vmatprep.mubr.f32.mxu0 0.0
    %2532 = vmatmul.mubr.f32.gmra.mrb[0].mxu0 %v2397
    %v2533 = vpop.f32.mrb[0].mxu0
    %v2534 = vadd.f32 0.0, %v2533
    %v2535 = vpop.f32.mrb[0].mxu0
    %v2536 = vadd.f32 0.0, %v2535
    %2537 = vmatprep.mubr.f32.mxu0 0.0
    %2538 = vmatmul.mubr.f32.gmra.mrb[0].mxu0 %v2398
    %v2539 = vpop.f32.mrb[0].mxu0
    %v2540 = vadd.f32 0.0, %v2539
    %v2541 = vpop.f32.mrb[0].mxu0
    %v2542 = vadd.f32 0.0, %v2541
    %2543 = vdwg.mxu0
    %v2544 = vadd.f32 %v2374, %v2498
    %v2545 = vadd.f32 %v2375, %v2500
    %v2546 = vadd.f32 %v2376, %v2504
    %v2547 = vadd.f32 %v2377, %v2506
    %v2548 = vadd.f32 %v2378, %v2510
    %v2549 = vadd.f32 %v2379, %v2512
    %v2550 = vadd.f32 %v2380, %v2516
    %v2551 = vadd.f32 %v2381, %v2518
    %v2552 = vadd.f32 %v2382, %v2522
    %v2553 = vadd.f32 %v2383, %v2524
    %v2554 = vadd.f32 %v2384, %v2528
    %v2555 = vadd.f32 %v2385, %v2530
    %v2556 = vadd.f32 %v2386, %v2534
    %v2557 = vadd.f32 %v2387, %v2536
    %v2558 = vadd.f32 %v2388, %v2540
    %v2559 = vadd.f32 %v2389, %v2542
    %s2560 = scalar_lea.vmem %s0, 160
    %v2561 = vld [vmem:[%s2560] sm:$0xff]
    %v2562 = vld [vmem:[%s2560 + $0x8] sm:$0xff]
    %v2563 = vld [vmem:[%s2560 + $0x10] sm:$0xff]
    %v2564 = vld [vmem:[%s2560 + $0x18] sm:$0xff]
    %v2565 = vld [vmem:[%s2560 + $0x20] sm:$0xff]
    %v2566 = vld [vmem:[%s2560 + $0x28] sm:$0xff]
    %v2567 = vld [vmem:[%s2560 + $0x30] sm:$0xff]
    %v2568 = vld [vmem:[%s2560 + $0x38] sm:$0xff]
    %v2569 = vld [vmem:[%s824] sm:$0xff]
    %v2570 = vld [vmem:[%s824 + $0x8] sm:$0xff]
    %v2571 = vld [vmem:[%s824 + $0x10] sm:$0xff]
    %v2572 = vld [vmem:[%s824 + $0x18] sm:$0xff]
    %v2573 = vld [vmem:[%s824 + $0x20] sm:$0xff]
    %v2574 = vld [vmem:[%s824 + $0x28] sm:$0xff]
    %v2575 = vld [vmem:[%s824 + $0x30] sm:$0xff]
    %v2576 = vld [vmem:[%s824 + $0x38] sm:$0xff]
    %v2577 = vld [vmem:[%s824 + $0x40] sm:$0xff]
    %v2578 = vld [vmem:[%s824 + $0x48] sm:$0xff]
    %v2579 = vld [vmem:[%s824 + $0x50] sm:$0xff]
    %v2580 = vld [vmem:[%s824 + $0x58] sm:$0xff]
    %v2581 = vld [vmem:[%s824 + $0x60] sm:$0xff]
    %v2582 = vld [vmem:[%s824 + $0x68] sm:$0xff]
    %v2583 = vld [vmem:[%s824 + $0x70] sm:$0xff]
    %v2584 = vld [vmem:[%s824 + $0x78] sm:$0xff]
    %v2585 = vld [vmem:[%s824 + $0x80] sm:$0xff]
    %v2586 = vld [vmem:[%s824 + $0x88] sm:$0xff]
    %v2587 = vld [vmem:[%s824 + $0x90] sm:$0xff]
    %v2588 = vld [vmem:[%s824 + $0x98] sm:$0xff]
    %v2589 = vld [vmem:[%s824 + $0xa0] sm:$0xff]
    %v2590 = vld [vmem:[%s824 + $0xa8] sm:$0xff]
    %v2591 = vld [vmem:[%s824 + $0xb0] sm:$0xff]
    %v2592 = vld [vmem:[%s824 + $0xb8] sm:$0xff]
    %v2593 = vld [vmem:[%s824 + $0xc0] sm:$0xff]
    %v2594 = vld [vmem:[%s824 + $0xc8] sm:$0xff]
    %v2595 = vld [vmem:[%s824 + $0xd0] sm:$0xff]
    %v2596 = vld [vmem:[%s824 + $0xd8] sm:$0xff]
    %v2597 = vld [vmem:[%s824 + $0xe0] sm:$0xff]
    %v2598 = vld [vmem:[%s824 + $0xe8] sm:$0xff]
    %v2599 = vld [vmem:[%s824 + $0xf0] sm:$0xff]
    %v2600 = vld [vmem:[%s824 + $0xf8] sm:$0xff]
    %2601 = vmatprep.subr.mxu0 %v2570
    %2602 = vmatpush1.msra.mxu0 %v2569
    %2603 = vmatprep.subr.mxu0 %v2572
    %2604 = vmatpush1.msra.mxu0 %v2571
    %2605 = vmatprep.subr.mxu0 %v2574
    %2606 = vmatpush1.msra.mxu0 %v2573
    %2607 = vmatprep.subr.mxu0 %v2576
    %2608 = vmatpush1.msra.mxu0 %v2575
    %2609 = vmatprep.subr.mxu0 %v2578
    %2610 = vmatpush1.msra.mxu0 %v2577
    %2611 = vmatprep.subr.mxu0 %v2580
    %2612 = vmatpush1.msra.mxu0 %v2579
    %2613 = vmatprep.subr.mxu0 %v2582
    %2614 = vmatpush1.msra.mxu0 %v2581
    %2615 = vmatprep.subr.mxu0 %v2584
    %2616 = vmatpush1.msra.mxu0 %v2583
    %2617 = vmatprep.subr.mxu0 %v2586
    %2618 = vmatpush1.msra.mxu0 %v2585
    %2619 = vmatprep.subr.mxu0 %v2588
    %2620 = vmatpush1.msra.mxu0 %v2587
    %2621 = vmatprep.subr.mxu0 %v2590
    %2622 = vmatpush1.msra.mxu0 %v2589
    %2623 = vmatprep.subr.mxu0 %v2592
    %2624 = vmatpush1.msra.mxu0 %v2591
    %2625 = vmatprep.subr.mxu0 %v2594
    %2626 = vmatpush1.msra.mxu0 %v2593
    %2627 = vmatprep.subr.mxu0 %v2596
    %2628 = vmatpush1.msra.mxu0 %v2595
    %2629 = vmatprep.subr.mxu0 %v2598
    %2630 = vmatpush1.msra.mxu0 %v2597
    %2631 = vmatprep.subr.mxu0 %v2600
    %2632 = vmatpush1.msra.mxu0 %v2599
    %2633 = vmatprep.subr.mxu0 0.0
    %2634 = vmatpush1.msra.mxu0 0.0
    %2635 = vmatprep.subr.mxu0 0.0
    %2636 = vmatpush1.msra.mxu0 0.0
    %2637 = vmatprep.subr.mxu0 0.0
    %2638 = vmatpush1.msra.mxu0 0.0
    %2639 = vmatprep.subr.mxu0 0.0
    %2640 = vmatpush1.msra.mxu0 0.0
    %2641 = vmatprep.subr.mxu0 0.0
    %2642 = vmatpush1.msra.mxu0 0.0
    %2643 = vmatprep.subr.mxu0 0.0
    %2644 = vmatpush1.msra.mxu0 0.0
    %2645 = vmatprep.subr.mxu0 0.0
    %2646 = vmatpush1.msra.mxu0 0.0
    %2647 = vmatprep.subr.mxu0 0.0
    %2648 = vmatpush1.msra.mxu0 0.0
    %2649 = vmatprep.subr.mxu0 0.0
    %2650 = vmatpush1.msra.mxu0 0.0
    %2651 = vmatprep.subr.mxu0 0.0
    %2652 = vmatpush1.msra.mxu0 0.0
    %2653 = vmatprep.subr.mxu0 0.0
    %2654 = vmatpush1.msra.mxu0 0.0
    %2655 = vmatprep.subr.mxu0 0.0
    %2656 = vmatpush1.msra.mxu0 0.0
    %2657 = vmatprep.subr.mxu0 0.0
    %2658 = vmatpush1.msra.mxu0 0.0
    %2659 = vmatprep.subr.mxu0 0.0
    %2660 = vmatpush1.msra.mxu0 0.0
    %2661 = vmatprep.subr.mxu0 0.0
    %2662 = vmatpush1.msra.mxu0 0.0
    %2663 = vmatprep.subr.mxu0 0.0
    %2664 = vmatpush1.msra.mxu0 0.0
    %2665 = vmatprep.mubr.f32.mxu0 0.0
    %2666 = vmatmul.mubr.f32.gmra.mrb[0].mxu0 %v2561
    %v2667 = vpop.f32.mrb[0].mxu0
    %v2668 = vadd.f32 0.0, %v2667
    %v2669 = vpop.f32.mrb[0].mxu0
    %v2670 = vadd.f32 0.0, %v2669
    %2671 = vmatprep.mubr.f32.mxu0 0.0
    %2672 = vmatmul.mubr.f32.gmra.mrb[0].mxu0 %v2562
    %v2673 = vpop.f32.mrb[0].mxu0
    %v2674 = vadd.f32 0.0, %v2673
    %v2675 = vpop.f32.mrb[0].mxu0
    %v2676 = vadd.f32 0.0, %v2675
    %2677 = vmatprep.mubr.f32.mxu0 0.0
    %2678 = vmatmul.mubr.f32.gmra.mrb[0].mxu0 %v2563
    %v2679 = vpop.f32.mrb[0].mxu0
    %v2680 = vadd.f32 0.0, %v2679
    %v2681 = vpop.f32.mrb[0].mxu0
    %v2682 = vadd.f32 0.0, %v2681
    %2683 = vmatprep.mubr.f32.mxu0 0.0
    %2684 = vmatmul.mubr.f32.gmra.mrb[0].mxu0 %v2564
    %v2685 = vpop.f32.mrb[0].mxu0
    %v2686 = vadd.f32 0.0, %v2685
    %v2687 = vpop.f32.mrb[0].mxu0
    %v2688 = vadd.f32 0.0, %v2687
    %2689 = vmatprep.mubr.f32.mxu0 0.0
    %2690 = vmatmul.mubr.f32.gmra.mrb[0].mxu0 %v2565
    %v2691 = vpop.f32.mrb[0].mxu0
    %v2692 = vadd.f32 0.0, %v2691
    %v2693 = vpop.f32.mrb[0].mxu0
    %v2694 = vadd.f32 0.0, %v2693
    %2695 = vmatprep.mubr.f32.mxu0 0.0
    %2696 = vmatmul.mubr.f32.gmra.mrb[0].mxu0 %v2566
    %v2697 = vpop.f32.mrb[0].mxu0
    %v2698 = vadd.f32 0.0, %v2697
    %v2699 = vpop.f32.mrb[0].mxu0
    %v2700 = vadd.f32 0.0, %v2699
    %2701 = vmatprep.mubr.f32.mxu0 0.0
    %2702 = vmatmul.mubr.f32.gmra.mrb[0].mxu0 %v2567
    %v2703 = vpop.f32.mrb[0].mxu0
    %v2704 = vadd.f32 0.0, %v2703
    %v2705 = vpop.f32.mrb[0].mxu0
    %v2706 = vadd.f32 0.0, %v2705
    %2707 = vmatprep.mubr.f32.mxu0 0.0
    %2708 = vmatmul.mubr.f32.gmra.mrb[0].mxu0 %v2568
    %v2709 = vpop.f32.mrb[0].mxu0
    %v2710 = vadd.f32 0.0, %v2709
    %v2711 = vpop.f32.mrb[0].mxu0
    %v2712 = vadd.f32 0.0, %v2711
    %2713 = vdwg.mxu0
    %v2714 = vadd.f32 %v2544, %v2668
    %v2715 = vadd.f32 %v2545, %v2670
    %v2716 = vadd.f32 %v2546, %v2674
    %v2717 = vadd.f32 %v2547, %v2676
    %v2718 = vadd.f32 %v2548, %v2680
    %v2719 = vadd.f32 %v2549, %v2682
    %v2720 = vadd.f32 %v2550, %v2686
    %v2721 = vadd.f32 %v2551, %v2688
    %v2722 = vadd.f32 %v2552, %v2692
    %v2723 = vadd.f32 %v2553, %v2694
    %v2724 = vadd.f32 %v2554, %v2698
    %v2725 = vadd.f32 %v2555, %v2700
    %v2726 = vadd.f32 %v2556, %v2704
    %v2727 = vadd.f32 %v2557, %v2706
    %v2728 = vadd.f32 %v2558, %v2710
    %v2729 = vadd.f32 %v2559, %v2712
    %v2730 = vadd.f32 %v2714, %v990
    %v2731 = vadd.f32 %v2715, %v994
    %v2732 = vadd.f32 %v2716, %v990
    %v2733 = vadd.f32 %v2717, %v994
    %v2734 = vadd.f32 %v2718, %v990
    %v2735 = vadd.f32 %v2719, %v994
    %v2736 = vadd.f32 %v2720, %v990
    %v2737 = vadd.f32 %v2721, %v994
    %v2738 = vadd.f32 %v2722, %v990
    %v2739 = vadd.f32 %v2723, %v994
    %v2740 = vadd.f32 %v2724, %v990
    %v2741 = vadd.f32 %v2725, %v994
    %v2742 = vadd.f32 %v2726, %v990
    %v2743 = vadd.f32 %v2727, %v994
    %v2744 = vadd.f32 %v2728, %v990
    %v2745 = vadd.f32 %v2729, %v994
    %v2746 = vmax.f32 %v2730, 0.0
    %v2747 = vmax.f32 %v2731, 0.0
    %v2748 = vmax.f32 %v2732, 0.0
    %v2749 = vmax.f32 %v2733, 0.0
    %v2750 = vmax.f32 %v2734, 0.0
    %v2751 = vmax.f32 %v2735, 0.0
    %v2752 = vmax.f32 %v2736, 0.0
    %v2753 = vmax.f32 %v2737, 0.0
    %v2754 = vmax.f32 %v2738, 0.0
    %v2755 = vmax.f32 %v2739, 0.0
    %v2756 = vmax.f32 %v2740, 0.0
    %v2757 = vmax.f32 %v2741, 0.0
    %v2758 = vmax.f32 %v2742, 0.0
    %v2759 = vmax.f32 %v2743, 0.0
    %v2760 = vmax.f32 %v2744, 0.0
    %v2761 = vmax.f32 %v2745, 0.0
    %v2762 = vmax.f32 %v2746, %v2748
    %v2763 = vmax.f32 %v2747, %v2749
    %v2764 = vmax.f32 %v2750, %v2752
    %v2765 = vmax.f32 %v2751, %v2753
    %v2766 = vmax.f32 %v2754, %v2756
    %v2767 = vmax.f32 %v2755, %v2757
    %v2768 = vmax.f32 %v2758, %v2760
    %v2769 = vmax.f32 %v2759, %v2761
    %s2770 = scalar_lea.vmem [#allocation2], 128
    %2771 = vst [vmem:[%s2770] sm:$0xff] %v2762
    %2772 = vst [vmem:[%s2770 + $0x8] sm:$0xff] %v2763
    %2773 = vst [vmem:[%s2770 + $0x10] sm:$0xff] %v2764
    %2774 = vst [vmem:[%s2770 + $0x18] sm:$0xff] %v2765
    %2775 = vst [vmem:[%s2770 + $0x20] sm:$0xff] %v2766
    %2776 = vst [vmem:[%s2770 + $0x28] sm:$0xff] %v2767
    %2777 = vst [vmem:[%s2770 + $0x30] sm:$0xff] %v2768
    %2778 = vst [vmem:[%s2770 + $0x38] sm:$0xff] %v2769
    %s2779 = scalar_lea.vmem %s0, 192
    %v2780 = vld [vmem:[%s2779] sm:$0xff]
    %v2781 = vld [vmem:[%s2779 + $0x8] sm:$0xff]
    %v2782 = vld [vmem:[%s2779 + $0x10] sm:$0xff]
    %v2783 = vld [vmem:[%s2779 + $0x18] sm:$0xff]
    %v2784 = vld [vmem:[#allocation3] sm:$0xff]
    %v2785 = vld [vmem:[#allocation3 + $0x8] sm:$0xff]
    %v2786 = vld [vmem:[#allocation3 + $0x10] sm:$0xff]
    %v2787 = vld [vmem:[#allocation3 + $0x18] sm:$0xff]
    %v2788 = vld [vmem:[#allocation3 + $0x20] sm:$0xff]
    %v2789 = vld [vmem:[#allocation3 + $0x28] sm:$0xff]
    %v2790 = vld [vmem:[#allocation3 + $0x30] sm:$0xff]
    %v2791 = vld [vmem:[#allocation3 + $0x38] sm:$0xff]
    %v2792 = vld [vmem:[#allocation3 + $0x40] sm:$0xff]
    %v2793 = vld [vmem:[#allocation3 + $0x48] sm:$0xff]
    %v2794 = vld [vmem:[#allocation3 + $0x50] sm:$0xff]
    %v2795 = vld [vmem:[#allocation3 + $0x58] sm:$0xff]
    %v2796 = vld [vmem:[#allocation3 + $0x60] sm:$0xff]
    %v2797 = vld [vmem:[#allocation3 + $0x68] sm:$0xff]
    %v2798 = vld [vmem:[#allocation3 + $0x70] sm:$0xff]
    %v2799 = vld [vmem:[#allocation3 + $0x78] sm:$0xff]
    %v2800 = vld [vmem:[#allocation3 + $0x80] sm:$0xff]
    %v2801 = vld [vmem:[#allocation3 + $0x88] sm:$0xff]
    %v2802 = vld [vmem:[#allocation3 + $0x90] sm:$0xff]
    %v2803 = vld [vmem:[#allocation3 + $0x98] sm:$0xff]
    %v2804 = vld [vmem:[#allocation3 + $0xa0] sm:$0xff]
    %v2805 = vld [vmem:[#allocation3 + $0xa8] sm:$0xff]
    %v2806 = vld [vmem:[#allocation3 + $0xb0] sm:$0xff]
    %v2807 = vld [vmem:[#allocation3 + $0xb8] sm:$0xff]
    %v2808 = vld [vmem:[#allocation3 + $0xc0] sm:$0xff]
    %v2809 = vld [vmem:[#allocation3 + $0xc8] sm:$0xff]
    %v2810 = vld [vmem:[#allocation3 + $0xd0] sm:$0xff]
    %v2811 = vld [vmem:[#allocation3 + $0xd8] sm:$0xff]
    %v2812 = vld [vmem:[#allocation3 + $0xe0] sm:$0xff]
    %v2813 = vld [vmem:[#allocation3 + $0xe8] sm:$0xff]
    %v2814 = vld [vmem:[#allocation3 + $0xf0] sm:$0xff]
    %v2815 = vld [vmem:[#allocation3 + $0xf8] sm:$0xff]
    %s2816 = scalar_lea.vmem %s0, 200
    %v2817 = vld [vmem:[%s2816] sm:$0xff]
    %v2818 = vld [vmem:[%s2816 + $0x8] sm:$0xff]
    %v2819 = vld [vmem:[%s2816 + $0x10] sm:$0xff]
    %v2820 = vld [vmem:[%s2816 + $0x18] sm:$0xff]
    %v2821 = vld [vmem:[%s214] sm:$0xff]
    %v2822 = vld [vmem:[%s214 + $0x8] sm:$0xff]
    %v2823 = vld [vmem:[%s214 + $0x10] sm:$0xff]
    %v2824 = vld [vmem:[%s214 + $0x18] sm:$0xff]
    %v2825 = vld [vmem:[%s214 + $0x20] sm:$0xff]
    %v2826 = vld [vmem:[%s214 + $0x28] sm:$0xff]
    %v2827 = vld [vmem:[%s214 + $0x30] sm:$0xff]
    %v2828 = vld [vmem:[%s214 + $0x38] sm:$0xff]
    %v2829 = vld [vmem:[%s214 + $0x40] sm:$0xff]
    %v2830 = vld [vmem:[%s214 + $0x48] sm:$0xff]
    %v2831 = vld [vmem:[%s214 + $0x50] sm:$0xff]
    %v2832 = vld [vmem:[%s214 + $0x58] sm:$0xff]
    %v2833 = vld [vmem:[%s214 + $0x60] sm:$0xff]
    %v2834 = vld [vmem:[%s214 + $0x68] sm:$0xff]
    %v2835 = vld [vmem:[%s214 + $0x70] sm:$0xff]
    %v2836 = vld [vmem:[%s214 + $0x78] sm:$0xff]
    %v2837 = vld [vmem:[%s214 + $0x80] sm:$0xff]
    %v2838 = vld [vmem:[%s214 + $0x88] sm:$0xff]
    %v2839 = vld [vmem:[%s214 + $0x90] sm:$0xff]
    %v2840 = vld [vmem:[%s214 + $0x98] sm:$0xff]
    %v2841 = vld [vmem:[%s214 + $0xa0] sm:$0xff]
    %v2842 = vld [vmem:[%s214 + $0xa8] sm:$0xff]
    %v2843 = vld [vmem:[%s214 + $0xb0] sm:$0xff]
    %v2844 = vld [vmem:[%s214 + $0xb8] sm:$0xff]
    %v2845 = vld [vmem:[%s214 + $0xc0] sm:$0xff]
    %v2846 = vld [vmem:[%s214 + $0xc8] sm:$0xff]
    %v2847 = vld [vmem:[%s214 + $0xd0] sm:$0xff]
    %v2848 = vld [vmem:[%s214 + $0xd8] sm:$0xff]
    %v2849 = vld [vmem:[%s214 + $0xe0] sm:$0xff]
    %v2850 = vld [vmem:[%s214 + $0xe8] sm:$0xff]
    %v2851 = vld [vmem:[%s214 + $0xf0] sm:$0xff]
    %v2852 = vld [vmem:[%s214 + $0xf8] sm:$0xff]
    %2853 = vmatprep.subr.mxu0 %v2822
    %2854 = vmatpush1.msra.mxu0 %v2821
    %2855 = vmatprep.subr.mxu0 %v2824
    %2856 = vmatpush1.msra.mxu0 %v2823
    %2857 = vmatprep.subr.mxu0 %v2826
    %2858 = vmatpush1.msra.mxu0 %v2825
    %2859 = vmatprep.subr.mxu0 %v2828
    %2860 = vmatpush1.msra.mxu0 %v2827
    %2861 = vmatprep.subr.mxu0 %v2830
    %2862 = vmatpush1.msra.mxu0 %v2829
    %2863 = vmatprep.subr.mxu0 %v2832
    %2864 = vmatpush1.msra.mxu0 %v2831
    %2865 = vmatprep.subr.mxu0 %v2834
    %2866 = vmatpush1.msra.mxu0 %v2833
    %2867 = vmatprep.subr.mxu0 %v2836
    %2868 = vmatpush1.msra.mxu0 %v2835
    %2869 = vmatprep.subr.mxu0 %v2838
    %2870 = vmatpush1.msra.mxu0 %v2837
    %2871 = vmatprep.subr.mxu0 %v2840
    %2872 = vmatpush1.msra.mxu0 %v2839
    %2873 = vmatprep.subr.mxu0 %v2842
    %2874 = vmatpush1.msra.mxu0 %v2841
    %2875 = vmatprep.subr.mxu0 %v2844
    %2876 = vmatpush1.msra.mxu0 %v2843
    %2877 = vmatprep.subr.mxu0 %v2846
    %2878 = vmatpush1.msra.mxu0 %v2845
    %2879 = vmatprep.subr.mxu0 %v2848
    %2880 = vmatpush1.msra.mxu0 %v2847
    %2881 = vmatprep.subr.mxu0 %v2850
    %2882 = vmatpush1.msra.mxu0 %v2849
    %2883 = vmatprep.subr.mxu0 %v2852
    %2884 = vmatpush1.msra.mxu0 %v2851
    %2885 = vmatprep.subr.mxu0 0.0
    %2886 = vmatpush1.msra.mxu0 0.0
    %2887 = vmatprep.subr.mxu0 0.0
    %2888 = vmatpush1.msra.mxu0 0.0
    %2889 = vmatprep.subr.mxu0 0.0
    %2890 = vmatpush1.msra.mxu0 0.0
    %2891 = vmatprep.subr.mxu0 0.0
    %2892 = vmatpush1.msra.mxu0 0.0
    %2893 = vmatprep.subr.mxu0 0.0
    %2894 = vmatpush1.msra.mxu0 0.0
    %2895 = vmatprep.subr.mxu0 0.0
    %2896 = vmatpush1.msra.mxu0 0.0
    %2897 = vmatprep.subr.mxu0 0.0
    %2898 = vmatpush1.msra.mxu0 0.0
    %2899 = vmatprep.subr.mxu0 0.0
    %2900 = vmatpush1.msra.mxu0 0.0
    %2901 = vmatprep.subr.mxu0 0.0
    %2902 = vmatpush1.msra.mxu0 0.0
    %2903 = vmatprep.subr.mxu0 0.0
    %2904 = vmatpush1.msra.mxu0 0.0
    %2905 = vmatprep.subr.mxu0 0.0
    %2906 = vmatpush1.msra.mxu0 0.0
    %2907 = vmatprep.subr.mxu0 0.0
    %2908 = vmatpush1.msra.mxu0 0.0
    %2909 = vmatprep.subr.mxu0 0.0
    %2910 = vmatpush1.msra.mxu0 0.0
    %2911 = vmatprep.subr.mxu0 0.0
    %2912 = vmatpush1.msra.mxu0 0.0
    %2913 = vmatprep.subr.mxu0 0.0
    %2914 = vmatpush1.msra.mxu0 0.0
    %2915 = vmatprep.subr.mxu0 0.0
    %2916 = vmatpush1.msra.mxu0 0.0
    %2917 = vmatprep.mubr.f32.mxu0 0.0
    %2918 = vmatmul.mubr.f32.gmra.mrb[0].mxu0 %v2817
    %v2919 = vpop.f32.mrb[0].mxu0
    %v2920 = vadd.f32 0.0, %v2919
    %v2921 = vpop.f32.mrb[0].mxu0
    %v2922 = vadd.f32 0.0, %v2921
    %2923 = vmatprep.mubr.f32.mxu0 0.0
    %2924 = vmatmul.mubr.f32.gmra.mrb[0].mxu0 %v2818
    %v2925 = vpop.f32.mrb[0].mxu0
    %v2926 = vadd.f32 0.0, %v2925
    %v2927 = vpop.f32.mrb[0].mxu0
    %v2928 = vadd.f32 0.0, %v2927
    %2929 = vmatprep.mubr.f32.mxu0 0.0
    %2930 = vmatmul.mubr.f32.gmra.mrb[0].mxu0 %v2819
    %v2931 = vpop.f32.mrb[0].mxu0
    %v2932 = vadd.f32 0.0, %v2931
    %v2933 = vpop.f32.mrb[0].mxu0
    %v2934 = vadd.f32 0.0, %v2933
    %2935 = vmatprep.mubr.f32.mxu0 0.0
    %2936 = vmatmul.mubr.f32.gmra.mrb[0].mxu0 %v2820
    %v2937 = vpop.f32.mrb[0].mxu0
    %v2938 = vadd.f32 0.0, %v2937
    %v2939 = vpop.f32.mrb[0].mxu0
    %v2940 = vadd.f32 0.0, %v2939
    %2941 = vdwg.mxu0
    %2942 = vmatprep.subr.mxu0 %v2785
    %2943 = vmatpush1.msra.mxu0 %v2784
    %2944 = vmatprep.subr.mxu0 %v2787
    %2945 = vmatpush1.msra.mxu0 %v2786
    %2946 = vmatprep.subr.mxu0 %v2789
    %2947 = vmatpush1.msra.mxu0 %v2788
    %2948 = vmatprep.subr.mxu0 %v2791
    %2949 = vmatpush1.msra.mxu0 %v2790
    %2950 = vmatprep.subr.mxu0 %v2793
    %2951 = vmatpush1.msra.mxu0 %v2792
    %2952 = vmatprep.subr.mxu0 %v2795
    %2953 = vmatpush1.msra.mxu0 %v2794
    %2954 = vmatprep.subr.mxu0 %v2797
    %2955 = vmatpush1.msra.mxu0 %v2796
    %2956 = vmatprep.subr.mxu0 %v2799
    %2957 = vmatpush1.msra.mxu0 %v2798
    %2958 = vmatprep.subr.mxu0 %v2801
    %2959 = vmatpush1.msra.mxu0 %v2800
    %2960 = vmatprep.subr.mxu0 %v2803
    %2961 = vmatpush1.msra.mxu0 %v2802
    %2962 = vmatprep.subr.mxu0 %v2805
    %2963 = vmatpush1.msra.mxu0 %v2804
    %2964 = vmatprep.subr.mxu0 %v2807
    %2965 = vmatpush1.msra.mxu0 %v2806
    %2966 = vmatprep.subr.mxu0 %v2809
    %2967 = vmatpush1.msra.mxu0 %v2808
    %2968 = vmatprep.subr.mxu0 %v2811
    %2969 = vmatpush1.msra.mxu0 %v2810
    %2970 = vmatprep.subr.mxu0 %v2813
    %2971 = vmatpush1.msra.mxu0 %v2812
    %2972 = vmatprep.subr.mxu0 %v2815
    %2973 = vmatpush1.msra.mxu0 %v2814
    %2974 = vmatprep.subr.mxu0 0.0
    %2975 = vmatpush1.msra.mxu0 0.0
    %2976 = vmatprep.subr.mxu0 0.0
    %2977 = vmatpush1.msra.mxu0 0.0
    %2978 = vmatprep.subr.mxu0 0.0
    %2979 = vmatpush1.msra.mxu0 0.0
    %2980 = vmatprep.subr.mxu0 0.0
    %2981 = vmatpush1.msra.mxu0 0.0
    %2982 = vmatprep.subr.mxu0 0.0
    %2983 = vmatpush1.msra.mxu0 0.0
    %2984 = vmatprep.subr.mxu0 0.0
    %2985 = vmatpush1.msra.mxu0 0.0
    %2986 = vmatprep.subr.mxu0 0.0
    %2987 = vmatpush1.msra.mxu0 0.0
    %2988 = vmatprep.subr.mxu0 0.0
    %2989 = vmatpush1.msra.mxu0 0.0
    %2990 = vmatprep.subr.mxu0 0.0
    %2991 = vmatpush1.msra.mxu0 0.0
    %2992 = vmatprep.subr.mxu0 0.0
    %2993 = vmatpush1.msra.mxu0 0.0
    %2994 = vmatprep.subr.mxu0 0.0
    %2995 = vmatpush1.msra.mxu0 0.0
    %2996 = vmatprep.subr.mxu0 0.0
    %2997 = vmatpush1.msra.mxu0 0.0
    %2998 = vmatprep.subr.mxu0 0.0
    %2999 = vmatpush1.msra.mxu0 0.0
    %3000 = vmatprep.subr.mxu0 0.0
    %3001 = vmatpush1.msra.mxu0 0.0
    %3002 = vmatprep.subr.mxu0 0.0
    %3003 = vmatpush1.msra.mxu0 0.0
    %3004 = vmatprep.subr.mxu0 0.0
    %3005 = vmatpush1.msra.mxu0 0.0
    %3006 = vmatprep.mubr.f32.mxu0 0.0
    %3007 = vmatmul.mubr.f32.gmra.mrb[0].mxu0 %v2780
    %v3008 = vpop.f32.mrb[0].mxu0
    %v3009 = vadd.f32 %v2920, %v3008
    %v3010 = vpop.f32.mrb[0].mxu0
    %v3011 = vadd.f32 %v2922, %v3010
    %3012 = vmatprep.mubr.f32.mxu0 0.0
    %3013 = vmatmul.mubr.f32.gmra.mrb[0].mxu0 %v2781
    %v3014 = vpop.f32.mrb[0].mxu0
    %v3015 = vadd.f32 %v2926, %v3014
    %v3016 = vpop.f32.mrb[0].mxu0
    %v3017 = vadd.f32 %v2928, %v3016
    %3018 = vmatprep.mubr.f32.mxu0 0.0
    %3019 = vmatmul.mubr.f32.gmra.mrb[0].mxu0 %v2782
    %v3020 = vpop.f32.mrb[0].mxu0
    %v3021 = vadd.f32 %v2932, %v3020
    %v3022 = vpop.f32.mrb[0].mxu0
    %v3023 = vadd.f32 %v2934, %v3022
    %3024 = vmatprep.mubr.f32.mxu0 0.0
    %3025 = vmatmul.mubr.f32.gmra.mrb[0].mxu0 %v2783
    %v3026 = vpop.f32.mrb[0].mxu0
    %v3027 = vadd.f32 %v2938, %v3026
    %v3028 = vpop.f32.mrb[0].mxu0
    %v3029 = vadd.f32 %v2940, %v3028
    %3030 = vdwg.mxu0
    %s3031 = scalar_lea.vmem %s0, 208
    %v3032 = vld [vmem:[%s3031] sm:$0xff]
    %v3033 = vld [vmem:[%s3031 + $0x8] sm:$0xff]
    %v3034 = vld [vmem:[%s3031 + $0x10] sm:$0xff]
    %v3035 = vld [vmem:[%s3031 + $0x18] sm:$0xff]
    %v3036 = vld [vmem:[%s482] sm:$0xff]
    %v3037 = vld [vmem:[%s482 + $0x8] sm:$0xff]
    %v3038 = vld [vmem:[%s482 + $0x10] sm:$0xff]
    %v3039 = vld [vmem:[%s482 + $0x18] sm:$0xff]
    %v3040 = vld [vmem:[%s482 + $0x20] sm:$0xff]
    %v3041 = vld [vmem:[%s482 + $0x28] sm:$0xff]
    %v3042 = vld [vmem:[%s482 + $0x30] sm:$0xff]
    %v3043 = vld [vmem:[%s482 + $0x38] sm:$0xff]
    %v3044 = vld [vmem:[%s482 + $0x40] sm:$0xff]
    %v3045 = vld [vmem:[%s482 + $0x48] sm:$0xff]
    %v3046 = vld [vmem:[%s482 + $0x50] sm:$0xff]
    %v3047 = vld [vmem:[%s482 + $0x58] sm:$0xff]
    %v3048 = vld [vmem:[%s482 + $0x60] sm:$0xff]
    %v3049 = vld [vmem:[%s482 + $0x68] sm:$0xff]
    %v3050 = vld [vmem:[%s482 + $0x70] sm:$0xff]
    %v3051 = vld [vmem:[%s482 + $0x78] sm:$0xff]
    %v3052 = vld [vmem:[%s482 + $0x80] sm:$0xff]
    %v3053 = vld [vmem:[%s482 + $0x88] sm:$0xff]
    %v3054 = vld [vmem:[%s482 + $0x90] sm:$0xff]
    %v3055 = vld [vmem:[%s482 + $0x98] sm:$0xff]
    %v3056 = vld [vmem:[%s482 + $0xa0] sm:$0xff]
    %v3057 = vld [vmem:[%s482 + $0xa8] sm:$0xff]
    %v3058 = vld [vmem:[%s482 + $0xb0] sm:$0xff]
    %v3059 = vld [vmem:[%s482 + $0xb8] sm:$0xff]
    %v3060 = vld [vmem:[%s482 + $0xc0] sm:$0xff]
    %v3061 = vld [vmem:[%s482 + $0xc8] sm:$0xff]
    %v3062 = vld [vmem:[%s482 + $0xd0] sm:$0xff]
    %v3063 = vld [vmem:[%s482 + $0xd8] sm:$0xff]
    %v3064 = vld [vmem:[%s482 + $0xe0] sm:$0xff]
    %v3065 = vld [vmem:[%s482 + $0xe8] sm:$0xff]
    %v3066 = vld [vmem:[%s482 + $0xf0] sm:$0xff]
    %v3067 = vld [vmem:[%s482 + $0xf8] sm:$0xff]
    %3068 = vmatprep.subr.mxu0 %v3037
    %3069 = vmatpush1.msra.mxu0 %v3036
    %3070 = vmatprep.subr.mxu0 %v3039
    %3071 = vmatpush1.msra.mxu0 %v3038
    %3072 = vmatprep.subr.mxu0 %v3041
    %3073 = vmatpush1.msra.mxu0 %v3040
    %3074 = vmatprep.subr.mxu0 %v3043
    %3075 = vmatpush1.msra.mxu0 %v3042
    %3076 = vmatprep.subr.mxu0 %v3045
    %3077 = vmatpush1.msra.mxu0 %v3044
    %3078 = vmatprep.subr.mxu0 %v3047
    %3079 = vmatpush1.msra.mxu0 %v3046
    %3080 = vmatprep.subr.mxu0 %v3049
    %3081 = vmatpush1.msra.mxu0 %v3048
    %3082 = vmatprep.subr.mxu0 %v3051
    %3083 = vmatpush1.msra.mxu0 %v3050
    %3084 = vmatprep.subr.mxu0 %v3053
    %3085 = vmatpush1.msra.mxu0 %v3052
    %3086 = vmatprep.subr.mxu0 %v3055
    %3087 = vmatpush1.msra.mxu0 %v3054
    %3088 = vmatprep.subr.mxu0 %v3057
    %3089 = vmatpush1.msra.mxu0 %v3056
    %3090 = vmatprep.subr.mxu0 %v3059
    %3091 = vmatpush1.msra.mxu0 %v3058
    %3092 = vmatprep.subr.mxu0 %v3061
    %3093 = vmatpush1.msra.mxu0 %v3060
    %3094 = vmatprep.subr.mxu0 %v3063
    %3095 = vmatpush1.msra.mxu0 %v3062
    %3096 = vmatprep.subr.mxu0 %v3065
    %3097 = vmatpush1.msra.mxu0 %v3064
    %3098 = vmatprep.subr.mxu0 %v3067
    %3099 = vmatpush1.msra.mxu0 %v3066
    %3100 = vmatprep.subr.mxu0 0.0
    %3101 = vmatpush1.msra.mxu0 0.0
    %3102 = vmatprep.subr.mxu0 0.0
    %3103 = vmatpush1.msra.mxu0 0.0
    %3104 = vmatprep.subr.mxu0 0.0
    %3105 = vmatpush1.msra.mxu0 0.0
    %3106 = vmatprep.subr.mxu0 0.0
    %3107 = vmatpush1.msra.mxu0 0.0
    %3108 = vmatprep.subr.mxu0 0.0
    %3109 = vmatpush1.msra.mxu0 0.0
    %3110 = vmatprep.subr.mxu0 0.0
    %3111 = vmatpush1.msra.mxu0 0.0
    %3112 = vmatprep.subr.mxu0 0.0
    %3113 = vmatpush1.msra.mxu0 0.0
    %3114 = vmatprep.subr.mxu0 0.0
    %3115 = vmatpush1.msra.mxu0 0.0
    %3116 = vmatprep.subr.mxu0 0.0
    %3117 = vmatpush1.msra.mxu0 0.0
    %3118 = vmatprep.subr.mxu0 0.0
    %3119 = vmatpush1.msra.mxu0 0.0
    %3120 = vmatprep.subr.mxu0 0.0
    %3121 = vmatpush1.msra.mxu0 0.0
    %3122 = vmatprep.subr.mxu0 0.0
    %3123 = vmatpush1.msra.mxu0 0.0
    %3124 = vmatprep.subr.mxu0 0.0
    %3125 = vmatpush1.msra.mxu0 0.0
    %3126 = vmatprep.subr.mxu0 0.0
    %3127 = vmatpush1.msra.mxu0 0.0
    %3128 = vmatprep.subr.mxu0 0.0
    %3129 = vmatpush1.msra.mxu0 0.0
    %3130 = vmatprep.subr.mxu0 0.0
    %3131 = vmatpush1.msra.mxu0 0.0
    %3132 = vmatprep.mubr.f32.mxu0 0.0
    %3133 = vmatmul.mubr.f32.gmra.mrb[0].mxu0 %v3032
    %v3134 = vpop.f32.mrb[0].mxu0
    %v3135 = vadd.f32 0.0, %v3134
    %v3136 = vpop.f32.mrb[0].mxu0
    %v3137 = vadd.f32 0.0, %v3136
    %3138 = vmatprep.mubr.f32.mxu0 0.0
    %3139 = vmatmul.mubr.f32.gmra.mrb[0].mxu0 %v3033
    %v3140 = vpop.f32.mrb[0].mxu0
    %v3141 = vadd.f32 0.0, %v3140
    %v3142 = vpop.f32.mrb[0].mxu0
    %v3143 = vadd.f32 0.0, %v3142
    %3144 = vmatprep.mubr.f32.mxu0 0.0
    %3145 = vmatmul.mubr.f32.gmra.mrb[0].mxu0 %v3034
    %v3146 = vpop.f32.mrb[0].mxu0
    %v3147 = vadd.f32 0.0, %v3146
    %v3148 = vpop.f32.mrb[0].mxu0
    %v3149 = vadd.f32 0.0, %v3148
    %3150 = vmatprep.mubr.f32.mxu0 0.0
    %3151 = vmatmul.mubr.f32.gmra.mrb[0].mxu0 %v3035
    %v3152 = vpop.f32.mrb[0].mxu0
    %v3153 = vadd.f32 0.0, %v3152
    %v3154 = vpop.f32.mrb[0].mxu0
    %v3155 = vadd.f32 0.0, %v3154
    %3156 = vdwg.mxu0
    %v3157 = vadd.f32 %v3009, %v3135
    %v3158 = vadd.f32 %v3011, %v3137
    %v3159 = vadd.f32 %v3015, %v3141
    %v3160 = vadd.f32 %v3017, %v3143
    %v3161 = vadd.f32 %v3021, %v3147
    %v3162 = vadd.f32 %v3023, %v3149
    %v3163 = vadd.f32 %v3027, %v3153
    %v3164 = vadd.f32 %v3029, %v3155
    %s3165 = scalar_lea.vmem %s0, 216
    %v3166 = vld [vmem:[%s3165] sm:$0xff]
    %v3167 = vld [vmem:[%s3165 + $0x8] sm:$0xff]
    %v3168 = vld [vmem:[%s3165 + $0x10] sm:$0xff]
    %v3169 = vld [vmem:[%s3165 + $0x18] sm:$0xff]
    %v3170 = vld [vmem:[%s653] sm:$0xff]
    %v3171 = vld [vmem:[%s653 + $0x8] sm:$0xff]
    %v3172 = vld [vmem:[%s653 + $0x10] sm:$0xff]
    %v3173 = vld [vmem:[%s653 + $0x18] sm:$0xff]
    %v3174 = vld [vmem:[%s653 + $0x20] sm:$0xff]
    %v3175 = vld [vmem:[%s653 + $0x28] sm:$0xff]
    %v3176 = vld [vmem:[%s653 + $0x30] sm:$0xff]
    %v3177 = vld [vmem:[%s653 + $0x38] sm:$0xff]
    %v3178 = vld [vmem:[%s653 + $0x40] sm:$0xff]
    %v3179 = vld [vmem:[%s653 + $0x48] sm:$0xff]
    %v3180 = vld [vmem:[%s653 + $0x50] sm:$0xff]
    %v3181 = vld [vmem:[%s653 + $0x58] sm:$0xff]
    %v3182 = vld [vmem:[%s653 + $0x60] sm:$0xff]
    %v3183 = vld [vmem:[%s653 + $0x68] sm:$0xff]
    %v3184 = vld [vmem:[%s653 + $0x70] sm:$0xff]
    %v3185 = vld [vmem:[%s653 + $0x78] sm:$0xff]
    %v3186 = vld [vmem:[%s653 + $0x80] sm:$0xff]
    %v3187 = vld [vmem:[%s653 + $0x88] sm:$0xff]
    %v3188 = vld [vmem:[%s653 + $0x90] sm:$0xff]
    %v3189 = vld [vmem:[%s653 + $0x98] sm:$0xff]
    %v3190 = vld [vmem:[%s653 + $0xa0] sm:$0xff]
    %v3191 = vld [vmem:[%s653 + $0xa8] sm:$0xff]
    %v3192 = vld [vmem:[%s653 + $0xb0] sm:$0xff]
    %v3193 = vld [vmem:[%s653 + $0xb8] sm:$0xff]
    %v3194 = vld [vmem:[%s653 + $0xc0] sm:$0xff]
    %v3195 = vld [vmem:[%s653 + $0xc8] sm:$0xff]
    %v3196 = vld [vmem:[%s653 + $0xd0] sm:$0xff]
    %v3197 = vld [vmem:[%s653 + $0xd8] sm:$0xff]
    %v3198 = vld [vmem:[%s653 + $0xe0] sm:$0xff]
    %v3199 = vld [vmem:[%s653 + $0xe8] sm:$0xff]
    %v3200 = vld [vmem:[%s653 + $0xf0] sm:$0xff]
    %v3201 = vld [vmem:[%s653 + $0xf8] sm:$0xff]
    %3202 = vmatprep.subr.mxu0 %v3171
    %3203 = vmatpush1.msra.mxu0 %v3170
    %3204 = vmatprep.subr.mxu0 %v3173
    %3205 = vmatpush1.msra.mxu0 %v3172
    %3206 = vmatprep.subr.mxu0 %v3175
    %3207 = vmatpush1.msra.mxu0 %v3174
    %3208 = vmatprep.subr.mxu0 %v3177
    %3209 = vmatpush1.msra.mxu0 %v3176
    %3210 = vmatprep.subr.mxu0 %v3179
    %3211 = vmatpush1.msra.mxu0 %v3178
    %3212 = vmatprep.subr.mxu0 %v3181
    %3213 = vmatpush1.msra.mxu0 %v3180
    %3214 = vmatprep.subr.mxu0 %v3183
    %3215 = vmatpush1.msra.mxu0 %v3182
    %3216 = vmatprep.subr.mxu0 %v3185
    %3217 = vmatpush1.msra.mxu0 %v3184
    %3218 = vmatprep.subr.mxu0 %v3187
    %3219 = vmatpush1.msra.mxu0 %v3186
    %3220 = vmatprep.subr.mxu0 %v3189
    %3221 = vmatpush1.msra.mxu0 %v3188
    %3222 = vmatprep.subr.mxu0 %v3191
    %3223 = vmatpush1.msra.mxu0 %v3190
    %3224 = vmatprep.subr.mxu0 %v3193
    %3225 = vmatpush1.msra.mxu0 %v3192
    %3226 = vmatprep.subr.mxu0 %v3195
    %3227 = vmatpush1.msra.mxu0 %v3194
    %3228 = vmatprep.subr.mxu0 %v3197
    %3229 = vmatpush1.msra.mxu0 %v3196
    %3230 = vmatprep.subr.mxu0 %v3199
    %3231 = vmatpush1.msra.mxu0 %v3198
    %3232 = vmatprep.subr.mxu0 %v3201
    %3233 = vmatpush1.msra.mxu0 %v3200
    %3234 = vmatprep.subr.mxu0 0.0
    %3235 = vmatpush1.msra.mxu0 0.0
    %3236 = vmatprep.subr.mxu0 0.0
    %3237 = vmatpush1.msra.mxu0 0.0
    %3238 = vmatprep.subr.mxu0 0.0
    %3239 = vmatpush1.msra.mxu0 0.0
    %3240 = vmatprep.subr.mxu0 0.0
    %3241 = vmatpush1.msra.mxu0 0.0
    %3242 = vmatprep.subr.mxu0 0.0
    %3243 = vmatpush1.msra.mxu0 0.0
    %3244 = vmatprep.subr.mxu0 0.0
    %3245 = vmatpush1.msra.mxu0 0.0
    %3246 = vmatprep.subr.mxu0 0.0
    %3247 = vmatpush1.msra.mxu0 0.0
    %3248 = vmatprep.subr.mxu0 0.0
    %3249 = vmatpush1.msra.mxu0 0.0
    %3250 = vmatprep.subr.mxu0 0.0
    %3251 = vmatpush1.msra.mxu0 0.0
    %3252 = vmatprep.subr.mxu0 0.0
    %3253 = vmatpush1.msra.mxu0 0.0
    %3254 = vmatprep.subr.mxu0 0.0
    %3255 = vmatpush1.msra.mxu0 0.0
    %3256 = vmatprep.subr.mxu0 0.0
    %3257 = vmatpush1.msra.mxu0 0.0
    %3258 = vmatprep.subr.mxu0 0.0
    %3259 = vmatpush1.msra.mxu0 0.0
    %3260 = vmatprep.subr.mxu0 0.0
    %3261 = vmatpush1.msra.mxu0 0.0
    %3262 = vmatprep.subr.mxu0 0.0
    %3263 = vmatpush1.msra.mxu0 0.0
    %3264 = vmatprep.subr.mxu0 0.0
    %3265 = vmatpush1.msra.mxu0 0.0
    %3266 = vmatprep.mubr.f32.mxu0 0.0
    %3267 = vmatmul.mubr.f32.gmra.mrb[0].mxu0 %v3166
    %v3268 = vpop.f32.mrb[0].mxu0
    %v3269 = vadd.f32 0.0, %v3268
    %v3270 = vpop.f32.mrb[0].mxu0
    %v3271 = vadd.f32 0.0, %v3270
    %3272 = vmatprep.mubr.f32.mxu0 0.0
    %3273 = vmatmul.mubr.f32.gmra.mrb[0].mxu0 %v3167
    %v3274 = vpop.f32.mrb[0].mxu0
    %v3275 = vadd.f32 0.0, %v3274
    %v3276 = vpop.f32.mrb[0].mxu0
    %v3277 = vadd.f32 0.0, %v3276
    %3278 = vmatprep.mubr.f32.mxu0 0.0
    %3279 = vmatmul.mubr.f32.gmra.mrb[0].mxu0 %v3168
    %v3280 = vpop.f32.mrb[0].mxu0
    %v3281 = vadd.f32 0.0, %v3280
    %v3282 = vpop.f32.mrb[0].mxu0
    %v3283 = vadd.f32 0.0, %v3282
    %3284 = vmatprep.mubr.f32.mxu0 0.0
    %3285 = vmatmul.mubr.f32.gmra.mrb[0].mxu0 %v3169
    %v3286 = vpop.f32.mrb[0].mxu0
    %v3287 = vadd.f32 0.0, %v3286
    %v3288 = vpop.f32.mrb[0].mxu0
    %v3289 = vadd.f32 0.0, %v3288
    %3290 = vdwg.mxu0
    %v3291 = vadd.f32 %v3157, %v3269
    %v3292 = vadd.f32 %v3158, %v3271
    %v3293 = vadd.f32 %v3159, %v3275
    %v3294 = vadd.f32 %v3160, %v3277
    %v3295 = vadd.f32 %v3161, %v3281
    %v3296 = vadd.f32 %v3162, %v3283
    %v3297 = vadd.f32 %v3163, %v3287
    %v3298 = vadd.f32 %v3164, %v3289
    %s3299 = scalar_lea.vmem %s0, 224
    %v3300 = vld [vmem:[%s3299] sm:$0xff]
    %v3301 = vld [vmem:[%s3299 + $0x8] sm:$0xff]
    %v3302 = vld [vmem:[%s3299 + $0x10] sm:$0xff]
    %v3303 = vld [vmem:[%s3299 + $0x18] sm:$0xff]
    %v3304 = vld [vmem:[%s824] sm:$0xff]
    %v3305 = vld [vmem:[%s824 + $0x8] sm:$0xff]
    %v3306 = vld [vmem:[%s824 + $0x10] sm:$0xff]
    %v3307 = vld [vmem:[%s824 + $0x18] sm:$0xff]
    %v3308 = vld [vmem:[%s824 + $0x20] sm:$0xff]
    %v3309 = vld [vmem:[%s824 + $0x28] sm:$0xff]
    %v3310 = vld [vmem:[%s824 + $0x30] sm:$0xff]
    %v3311 = vld [vmem:[%s824 + $0x38] sm:$0xff]
    %v3312 = vld [vmem:[%s824 + $0x40] sm:$0xff]
    %v3313 = vld [vmem:[%s824 + $0x48] sm:$0xff]
    %v3314 = vld [vmem:[%s824 + $0x50] sm:$0xff]
    %v3315 = vld [vmem:[%s824 + $0x58] sm:$0xff]
    %v3316 = vld [vmem:[%s824 + $0x60] sm:$0xff]
    %v3317 = vld [vmem:[%s824 + $0x68] sm:$0xff]
    %v3318 = vld [vmem:[%s824 + $0x70] sm:$0xff]
    %v3319 = vld [vmem:[%s824 + $0x78] sm:$0xff]
    %v3320 = vld [vmem:[%s824 + $0x80] sm:$0xff]
    %v3321 = vld [vmem:[%s824 + $0x88] sm:$0xff]
    %v3322 = vld [vmem:[%s824 + $0x90] sm:$0xff]
    %v3323 = vld [vmem:[%s824 + $0x98] sm:$0xff]
    %v3324 = vld [vmem:[%s824 + $0xa0] sm:$0xff]
    %v3325 = vld [vmem:[%s824 + $0xa8] sm:$0xff]
    %v3326 = vld [vmem:[%s824 + $0xb0] sm:$0xff]
    %v3327 = vld [vmem:[%s824 + $0xb8] sm:$0xff]
    %v3328 = vld [vmem:[%s824 + $0xc0] sm:$0xff]
    %v3329 = vld [vmem:[%s824 + $0xc8] sm:$0xff]
    %v3330 = vld [vmem:[%s824 + $0xd0] sm:$0xff]
    %v3331 = vld [vmem:[%s824 + $0xd8] sm:$0xff]
    %v3332 = vld [vmem:[%s824 + $0xe0] sm:$0xff]
    %v3333 = vld [vmem:[%s824 + $0xe8] sm:$0xff]
    %v3334 = vld [vmem:[%s824 + $0xf0] sm:$0xff]
    %v3335 = vld [vmem:[%s824 + $0xf8] sm:$0xff]
    %3336 = vmatprep.subr.mxu0 %v3305
    %3337 = vmatpush1.msra.mxu0 %v3304
    %3338 = vmatprep.subr.mxu0 %v3307
    %3339 = vmatpush1.msra.mxu0 %v3306
    %3340 = vmatprep.subr.mxu0 %v3309
    %3341 = vmatpush1.msra.mxu0 %v3308
    %3342 = vmatprep.subr.mxu0 %v3311
    %3343 = vmatpush1.msra.mxu0 %v3310
    %3344 = vmatprep.subr.mxu0 %v3313
    %3345 = vmatpush1.msra.mxu0 %v3312
    %3346 = vmatprep.subr.mxu0 %v3315
    %3347 = vmatpush1.msra.mxu0 %v3314
    %3348 = vmatprep.subr.mxu0 %v3317
    %3349 = vmatpush1.msra.mxu0 %v3316
    %3350 = vmatprep.subr.mxu0 %v3319
    %3351 = vmatpush1.msra.mxu0 %v3318
    %3352 = vmatprep.subr.mxu0 %v3321
    %3353 = vmatpush1.msra.mxu0 %v3320
    %3354 = vmatprep.subr.mxu0 %v3323
    %3355 = vmatpush1.msra.mxu0 %v3322
    %3356 = vmatprep.subr.mxu0 %v3325
    %3357 = vmatpush1.msra.mxu0 %v3324
    %3358 = vmatprep.subr.mxu0 %v3327
    %3359 = vmatpush1.msra.mxu0 %v3326
    %3360 = vmatprep.subr.mxu0 %v3329
    %3361 = vmatpush1.msra.mxu0 %v3328
    %3362 = vmatprep.subr.mxu0 %v3331
    %3363 = vmatpush1.msra.mxu0 %v3330
    %3364 = vmatprep.subr.mxu0 %v3333
    %3365 = vmatpush1.msra.mxu0 %v3332
    %3366 = vmatprep.subr.mxu0 %v3335
    %3367 = vmatpush1.msra.mxu0 %v3334
    %3368 = vmatprep.subr.mxu0 0.0
    %3369 = vmatpush1.msra.mxu0 0.0
    %3370 = vmatprep.subr.mxu0 0.0
    %3371 = vmatpush1.msra.mxu0 0.0
    %3372 = vmatprep.subr.mxu0 0.0
    %3373 = vmatpush1.msra.mxu0 0.0
    %3374 = vmatprep.subr.mxu0 0.0
    %3375 = vmatpush1.msra.mxu0 0.0
    %3376 = vmatprep.subr.mxu0 0.0
    %3377 = vmatpush1.msra.mxu0 0.0
    %3378 = vmatprep.subr.mxu0 0.0
    %3379 = vmatpush1.msra.mxu0 0.0
    %3380 = vmatprep.subr.mxu0 0.0
    %3381 = vmatpush1.msra.mxu0 0.0
    %3382 = vmatprep.subr.mxu0 0.0
    %3383 = vmatpush1.msra.mxu0 0.0
    %3384 = vmatprep.subr.mxu0 0.0
    %3385 = vmatpush1.msra.mxu0 0.0
    %3386 = vmatprep.subr.mxu0 0.0
    %3387 = vmatpush1.msra.mxu0 0.0
    %3388 = vmatprep.subr.mxu0 0.0
    %3389 = vmatpush1.msra.mxu0 0.0
    %3390 = vmatprep.subr.mxu0 0.0
    %3391 = vmatpush1.msra.mxu0 0.0
    %3392 = vmatprep.subr.mxu0 0.0
    %3393 = vmatpush1.msra.mxu0 0.0
    %3394 = vmatprep.subr.mxu0 0.0
    %3395 = vmatpush1.msra.mxu0 0.0
    %3396 = vmatprep.subr.mxu0 0.0
    %3397 = vmatpush1.msra.mxu0 0.0
    %3398 = vmatprep.subr.mxu0 0.0
    %3399 = vmatpush1.msra.mxu0 0.0
    %3400 = vmatprep.mubr.f32.mxu0 0.0
    %3401 = vmatmul.mubr.f32.gmra.mrb[0].mxu0 %v3300
    %v3402 = vpop.f32.mrb[0].mxu0
    %v3403 = vadd.f32 0.0, %v3402
    %v3404 = vpop.f32.mrb[0].mxu0
    %v3405 = vadd.f32 0.0, %v3404
    %3406 = vmatprep.mubr.f32.mxu0 0.0
    %3407 = vmatmul.mubr.f32.gmra.mrb[0].mxu0 %v3301
    %v3408 = vpop.f32.mrb[0].mxu0
    %v3409 = vadd.f32 0.0, %v3408
    %v3410 = vpop.f32.mrb[0].mxu0
    %v3411 = vadd.f32 0.0, %v3410
    %3412 = vmatprep.mubr.f32.mxu0 0.0
    %3413 = vmatmul.mubr.f32.gmra.mrb[0].mxu0 %v3302
    %v3414 = vpop.f32.mrb[0].mxu0
    %v3415 = vadd.f32 0.0, %v3414
    %v3416 = vpop.f32.mrb[0].mxu0
    %v3417 = vadd.f32 0.0, %v3416
    %3418 = vmatprep.mubr.f32.mxu0 0.0
    %3419 = vmatmul.mubr.f32.gmra.mrb[0].mxu0 %v3303
    %v3420 = vpop.f32.mrb[0].mxu0
    %v3421 = vadd.f32 0.0, %v3420
    %v3422 = vpop.f32.mrb[0].mxu0
    %v3423 = vadd.f32 0.0, %v3422
    %3424 = vdwg.mxu0
    %v3425 = vadd.f32 %v3291, %v3403
    %v3426 = vadd.f32 %v3292, %v3405
    %v3427 = vadd.f32 %v3293, %v3409
    %v3428 = vadd.f32 %v3294, %v3411
    %v3429 = vadd.f32 %v3295, %v3415
    %v3430 = vadd.f32 %v3296, %v3417
    %v3431 = vadd.f32 %v3297, %v3421
    %v3432 = vadd.f32 %v3298, %v3423
    %v3433 = vadd.f32 %v3425, %v990
    %v3434 = vadd.f32 %v3426, %v994
    %v3435 = vadd.f32 %v3427, %v990
    %v3436 = vadd.f32 %v3428, %v994
    %v3437 = vadd.f32 %v3429, %v990
    %v3438 = vadd.f32 %v3430, %v994
    %v3439 = vadd.f32 %v3431, %v990
    %v3440 = vadd.f32 %v3432, %v994
    %v3441 = vmax.f32 %v3433, 0.0
    %v3442 = vmax.f32 %v3434, 0.0
    %v3443 = vmax.f32 %v3435, 0.0
    %v3444 = vmax.f32 %v3436, 0.0
    %v3445 = vmax.f32 %v3437, 0.0
    %v3446 = vmax.f32 %v3438, 0.0
    %v3447 = vmax.f32 %v3439, 0.0
    %v3448 = vmax.f32 %v3440, 0.0
    %v3449 = vmax.f32 %v3441, %v3443
    %v3450 = vmax.f32 %v3442, %v3444
    %v3451 = vmax.f32 %v3445, %v3447
    %v3452 = vmax.f32 %v3446, %v3448
    %s3453 = scalar_lea.vmem [#allocation2], 192
    %3454 = vst [vmem:[%s3453] sm:$0xff] %v3449
    %3455 = vst [vmem:[%s3453 + $0x8] sm:$0xff] %v3450
    %3456 = vst [vmem:[%s3453 + $0x10] sm:$0xff] %v3451
    %3457 = vst [vmem:[%s3453 + $0x18] sm:$0xff] %v3452
    %v3458 = vld [vmem:[#allocation2] sm:$0xff]
    %v3459 = vld [vmem:[#allocation2 + $0x8] sm:$0xff]
    %v3460 = vld [vmem:[#allocation2 + $0x10] sm:$0xff]
    %v3461 = vld [vmem:[#allocation2 + $0x18] sm:$0xff]
    %v3462 = vld [vmem:[#allocation2 + $0x20] sm:$0xff]
    %v3463 = vld [vmem:[#allocation2 + $0x28] sm:$0xff]
    %v3464 = vld [vmem:[#allocation2 + $0x30] sm:$0xff]
    %v3465 = vld [vmem:[#allocation2 + $0x38] sm:$0xff]
    %v3466 = vld [vmem:[#allocation2 + $0x40] sm:$0xff]
    %v3467 = vld [vmem:[#allocation2 + $0x48] sm:$0xff]
    %v3468 = vld [vmem:[#allocation2 + $0x50] sm:$0xff]
    %v3469 = vld [vmem:[#allocation2 + $0x58] sm:$0xff]
    %v3470 = vld [vmem:[#allocation2 + $0x60] sm:$0xff]
    %v3471 = vld [vmem:[#allocation2 + $0x68] sm:$0xff]
    %v3472 = vld [vmem:[#allocation2 + $0x70] sm:$0xff]
    %v3473 = vld [vmem:[#allocation2 + $0x78] sm:$0xff]
    %v3474 = vld [vmem:[#allocation2 + $0x80] sm:$0xff]
    %v3475 = vld [vmem:[#allocation2 + $0x88] sm:$0xff]
    %v3476 = vld [vmem:[#allocation2 + $0x90] sm:$0xff]
    %v3477 = vld [vmem:[#allocation2 + $0x98] sm:$0xff]
    %v3478 = vld [vmem:[#allocation2 + $0xa0] sm:$0xff]
    %v3479 = vld [vmem:[#allocation2 + $0xa8] sm:$0xff]
    %v3480 = vld [vmem:[#allocation2 + $0xb0] sm:$0xff]
    %v3481 = vld [vmem:[#allocation2 + $0xb8] sm:$0xff]
    %v3482 = vld [vmem:[#allocation2 + $0xc0] sm:$0xff]
    %v3483 = vld [vmem:[#allocation2 + $0xc8] sm:$0xff]
    %v3484 = vld [vmem:[#allocation2 + $0xd0] sm:$0xff]
    %v3485 = vld [vmem:[#allocation2 + $0xd8] sm:$0xff]
    %3486 = vrot.lane.b32.xlu0 %v3458, 1
    %v3487 = vpop.permute.xlu0 %3486
    %3488 = vrot.lane.b32.xlu0 %v3460, 1
    %v3489 = vpop.permute.xlu0 %3488
    %3490 = vrot.lane.b32.xlu0 %v3462, 1
    %v3491 = vpop.permute.xlu0 %3490
    %3492 = vrot.lane.b32.xlu0 %v3464, 1
    %v3493 = vpop.permute.xlu0 %3492
    %3494 = vrot.lane.b32.xlu0 %v3466, 1
    %v3495 = vpop.permute.xlu0 %3494
    %3496 = vrot.lane.b32.xlu0 %v3468, 1
    %v3497 = vpop.permute.xlu0 %3496
    %3498 = vrot.lane.b32.xlu0 %v3470, 1
    %v3499 = vpop.permute.xlu0 %3498
    %3500 = vrot.lane.b32.xlu0 %v3472, 1
    %v3501 = vpop.permute.xlu0 %3500
    %3502 = vrot.lane.b32.xlu0 %v3474, 1
    %v3503 = vpop.permute.xlu0 %3502
    %3504 = vrot.lane.b32.xlu0 %v3476, 1
    %v3505 = vpop.permute.xlu0 %3504
    %3506 = vrot.lane.b32.xlu0 %v3478, 1
    %v3507 = vpop.permute.xlu0 %3506
    %3508 = vrot.lane.b32.xlu0 %v3480, 1
    %v3509 = vpop.permute.xlu0 %3508
    %3510 = vrot.lane.b32.xlu0 %v3482, 1
    %v3511 = vpop.permute.xlu0 %3510
    %3512 = vrot.lane.b32.xlu0 %v3484, 1
    %v3513 = vpop.permute.xlu0 %3512
    %3514 = vrot.lane.b32.xlu0 %v3459, 1
    %v3515 = vpop.permute.xlu0 %3514
    %3516 = vrot.lane.b32.xlu0 %v3461, 1
    %v3517 = vpop.permute.xlu0 %3516
    %3518 = vrot.lane.b32.xlu0 %v3463, 1
    %v3519 = vpop.permute.xlu0 %3518
    %3520 = vrot.lane.b32.xlu0 %v3465, 1
    %v3521 = vpop.permute.xlu0 %3520
    %3522 = vrot.lane.b32.xlu0 %v3467, 1
    %v3523 = vpop.permute.xlu0 %3522
    %3524 = vrot.lane.b32.xlu0 %v3469, 1
    %v3525 = vpop.permute.xlu0 %3524
    %3526 = vrot.lane.b32.xlu0 %v3471, 1
    %v3527 = vpop.permute.xlu0 %3526
    %3528 = vrot.lane.b32.xlu0 %v3473, 1
    %v3529 = vpop.permute.xlu0 %3528
    %3530 = vrot.lane.b32.xlu0 %v3475, 1
    %v3531 = vpop.permute.xlu0 %3530
    %3532 = vrot.lane.b32.xlu0 %v3477, 1
    %v3533 = vpop.permute.xlu0 %3532
    %3534 = vrot.lane.b32.xlu0 %v3479, 1
    %v3535 = vpop.permute.xlu0 %3534
    %3536 = vrot.lane.b32.xlu0 %v3481, 1
    %v3537 = vpop.permute.xlu0 %3536
    %3538 = vrot.lane.b32.xlu0 %v3483, 1
    %v3539 = vpop.permute.xlu0 %3538
    %3540 = vrot.lane.b32.xlu0 %v3485, 1
    %v3541 = vpop.permute.xlu0 %3540
    %v3542 = vlaneseq
    %v3543 = vand.u32 %v3542, 127
    %vm3544 = vcmp.lt.s32.totalorder %v3543, 1
    %v3545 = vsel %vm3544, %v3487, %v3515
    %v3546 = vsel %vm3544, %v3489, %v3517
    %v3547 = vsel %vm3544, %v3491, %v3519
    %v3548 = vsel %vm3544, %v3493, %v3521
    %v3549 = vsel %vm3544, %v3495, %v3523
    %v3550 = vsel %vm3544, %v3497, %v3525
    %v3551 = vsel %vm3544, %v3499, %v3527
    %v3552 = vsel %vm3544, %v3501, %v3529
    %v3553 = vsel %vm3544, %v3503, %v3531
    %v3554 = vsel %vm3544, %v3505, %v3533
    %v3555 = vsel %vm3544, %v3507, %v3535
    %v3556 = vsel %vm3544, %v3509, %v3537
    %v3557 = vsel %vm3544, %v3511, %v3539
    %v3558 = vsel %vm3544, %v3513, %v3541
    %v3559 = vsel %vm3544, %v3515, %v3487
    %v3560 = vsel %vm3544, %v3517, %v3489
    %v3561 = vsel %vm3544, %v3519, %v3491
    %v3562 = vsel %vm3544, %v3521, %v3493
    %v3563 = vsel %vm3544, %v3523, %v3495
    %v3564 = vsel %vm3544, %v3525, %v3497
    %v3565 = vsel %vm3544, %v3527, %v3499
    %v3566 = vsel %vm3544, %v3529, %v3501
    %v3567 = vsel %vm3544, %v3531, %v3503
    %v3568 = vsel %vm3544, %v3533, %v3505
    %v3569 = vsel %vm3544, %v3535, %v3507
    %v3570 = vsel %vm3544, %v3537, %v3509
    %v3571 = vsel %vm3544, %v3539, %v3511
    %v3572 = vsel %vm3544, %v3541, %v3513
    %v3573 = vmax.f32 %v3458, %v3559
    %v3574 = vmax.f32 %v3459, %v3545
    %v3575 = vmax.f32 %v3460, %v3560
    %v3576 = vmax.f32 %v3461, %v3546
    %v3577 = vmax.f32 %v3462, %v3561
    %v3578 = vmax.f32 %v3463, %v3547
    %v3579 = vmax.f32 %v3464, %v3562
    %v3580 = vmax.f32 %v3465, %v3548
    %v3581 = vmax.f32 %v3466, %v3563
    %v3582 = vmax.f32 %v3467, %v3549
    %v3583 = vmax.f32 %v3468, %v3564
    %v3584 = vmax.f32 %v3469, %v3550
    %v3585 = vmax.f32 %v3470, %v3565
    %v3586 = vmax.f32 %v3471, %v3551
    %v3587 = vmax.f32 %v3472, %v3566
    %v3588 = vmax.f32 %v3473, %v3552
    %v3589 = vmax.f32 %v3474, %v3567
    %v3590 = vmax.f32 %v3475, %v3553
    %v3591 = vmax.f32 %v3476, %v3568
    %v3592 = vmax.f32 %v3477, %v3554
    %v3593 = vmax.f32 %v3478, %v3569
    %v3594 = vmax.f32 %v3479, %v3555
    %v3595 = vmax.f32 %v3480, %v3570
    %v3596 = vmax.f32 %v3481, %v3556
    %v3597 = vmax.f32 %v3482, %v3571
    %v3598 = vmax.f32 %v3483, %v3557
    %v3599 = vmax.f32 %v3484, %v3572
    %v3600 = vmax.f32 %v3485, %v3558
    %v3601 = vld [vmem:[#allocation7] sm:$0xff]
    %v3602 = vld [vmem:[#allocation7 + $0x8] sm:$0xff]
    %v3603 = vld [vmem:[#allocation7 + $0x10] sm:$0xff]
    %v3604 = vld [vmem:[#allocation7 + $0x18] sm:$0xff]
    %v3605 = vld [vmem:[#allocation7 + $0x20] sm:$0xff]
    %v3606 = vld [vmem:[#allocation7 + $0x28] sm:$0xff]
    %v3607 = vld [vmem:[#allocation7 + $0x30] sm:$0xff]
    %v3608 = vld [vmem:[#allocation7 + $0x38] sm:$0xff]
    %v3609 = vld [vmem:[#allocation7 + $0x40] sm:$0xff]
    %v3610 = vld [vmem:[#allocation7 + $0x48] sm:$0xff]
    %v3611 = vld [vmem:[#allocation7 + $0x50] sm:$0xff]
    %v3612 = vld [vmem:[#allocation7 + $0x58] sm:$0xff]
    %v3613 = vld [vmem:[#allocation7 + $0x60] sm:$0xff]
    %v3614 = vld [vmem:[#allocation7 + $0x68] sm:$0xff]
    %v3615 = vld [vmem:[#allocation7 + $0x70] sm:$0xff]
    %v3616 = vld [vmem:[#allocation7 + $0x78] sm:$0xff]
    %v3617 = vld [vmem:[#allocation7 + $0x80] sm:$0xff]
    %v3618 = vld [vmem:[#allocation7 + $0x88] sm:$0xff]
    %v3619 = vld [vmem:[#allocation7 + $0x90] sm:$0xff]
    %v3620 = vld [vmem:[#allocation7 + $0x98] sm:$0xff]
    %v3621 = vld [vmem:[#allocation7 + $0xa0] sm:$0xff]
    %v3622 = vld [vmem:[#allocation7 + $0xa8] sm:$0xff]
    %v3623 = vld [vmem:[#allocation7 + $0xb0] sm:$0xff]
    %v3624 = vld [vmem:[#allocation7 + $0xb8] sm:$0xff]
    %v3625 = vld [vmem:[#allocation7 + $0xc0] sm:$0xff]
    %v3626 = vld [vmem:[#allocation7 + $0xc8] sm:$0xff]
    %v3627 = vld [vmem:[#allocation7 + $0xd0] sm:$0xff]
    %v3628 = vld [vmem:[#allocation7 + $0xd8] sm:$0xff]
    %v3629 = vld [vmem:[#allocation7 + $0xe0] sm:$0xff]
    %v3630 = vld [vmem:[#allocation7 + $0xe8] sm:$0xff]
    %v3631 = vld [vmem:[#allocation7 + $0xf0] sm:$0xff]
    %v3632 = vld [vmem:[#allocation7 + $0xf8] sm:$0xff]
    %v3633 = vld [vmem:[#allocation7 + $0x100] sm:$0xff]
    %v3634 = vld [vmem:[#allocation7 + $0x108] sm:$0xff]
    %v3635 = vld [vmem:[#allocation7 + $0x110] sm:$0xff]
    %v3636 = vld [vmem:[#allocation7 + $0x118] sm:$0xff]
    %v3637 = vld [vmem:[#allocation7 + $0x120] sm:$0xff]
    %v3638 = vld [vmem:[#allocation7 + $0x128] sm:$0xff]
    %v3639 = vld [vmem:[#allocation7 + $0x130] sm:$0xff]
    %v3640 = vld [vmem:[#allocation7 + $0x138] sm:$0xff]
    %v3641 = vld [vmem:[#allocation7 + $0x140] sm:$0xff]
    %v3642 = vld [vmem:[#allocation7 + $0x148] sm:$0xff]
    %v3643 = vld [vmem:[#allocation7 + $0x150] sm:$0xff]
    %v3644 = vld [vmem:[#allocation7 + $0x158] sm:$0xff]
    %v3645 = vld [vmem:[#allocation7 + $0x160] sm:$0xff]
    %v3646 = vld [vmem:[#allocation7 + $0x168] sm:$0xff]
    %v3647 = vld [vmem:[#allocation7 + $0x170] sm:$0xff]
    %v3648 = vld [vmem:[#allocation7 + $0x178] sm:$0xff]
    %v3649 = vld [vmem:[#allocation7 + $0x180] sm:$0xff]
    %v3650 = vld [vmem:[#allocation7 + $0x188] sm:$0xff]
    %v3651 = vld [vmem:[#allocation7 + $0x190] sm:$0xff]
    %v3652 = vld [vmem:[#allocation7 + $0x198] sm:$0xff]
    %v3653 = vld [vmem:[#allocation7 + $0x1a0] sm:$0xff]
    %v3654 = vld [vmem:[#allocation7 + $0x1a8] sm:$0xff]
    %v3655 = vld [vmem:[#allocation7 + $0x1b0] sm:$0xff]
    %v3656 = vld [vmem:[#allocation7 + $0x1b8] sm:$0xff]
    %v3657 = vld [vmem:[#allocation7 + $0x1c0] sm:$0xff]
    %v3658 = vld [vmem:[#allocation7 + $0x1c8] sm:$0xff]
    %v3659 = vld [vmem:[#allocation7 + $0x1d0] sm:$0xff]
    %v3660 = vld [vmem:[#allocation7 + $0x1d8] sm:$0xff]
    %v3661 = vld [vmem:[#allocation7 + $0x1e0] sm:$0xff]
    %v3662 = vld [vmem:[#allocation7 + $0x1e8] sm:$0xff]
    %v3663 = vld [vmem:[#allocation7 + $0x1f0] sm:$0xff]
    %v3664 = vld [vmem:[#allocation7 + $0x1f8] sm:$0xff]
    %s3665 = scalar_lea.vmem [#allocation7], 512
    %v3666 = vld [vmem:[%s3665] sm:$0xff]
    %v3667 = vld [vmem:[%s3665 + $0x8] sm:$0xff]
    %v3668 = vld [vmem:[%s3665 + $0x10] sm:$0xff]
    %v3669 = vld [vmem:[%s3665 + $0x18] sm:$0xff]
    %v3670 = vld [vmem:[%s3665 + $0x20] sm:$0xff]
    %v3671 = vld [vmem:[%s3665 + $0x28] sm:$0xff]
    %v3672 = vld [vmem:[%s3665 + $0x30] sm:$0xff]
    %v3673 = vld [vmem:[%s3665 + $0x38] sm:$0xff]
    %v3674 = vld [vmem:[%s3665 + $0x40] sm:$0xff]
    %v3675 = vld [vmem:[%s3665 + $0x48] sm:$0xff]
    %v3676 = vld [vmem:[%s3665 + $0x50] sm:$0xff]
    %v3677 = vld [vmem:[%s3665 + $0x58] sm:$0xff]
    %v3678 = vld [vmem:[%s3665 + $0x60] sm:$0xff]
    %v3679 = vld [vmem:[%s3665 + $0x68] sm:$0xff]
    %v3680 = vld [vmem:[%s3665 + $0x70] sm:$0xff]
    %v3681 = vld [vmem:[%s3665 + $0x78] sm:$0xff]
    %v3682 = vld [vmem:[%s3665 + $0x80] sm:$0xff]
    %v3683 = vld [vmem:[%s3665 + $0x88] sm:$0xff]
    %v3684 = vld [vmem:[%s3665 + $0x90] sm:$0xff]
    %v3685 = vld [vmem:[%s3665 + $0x98] sm:$0xff]
    %v3686 = vld [vmem:[%s3665 + $0xa0] sm:$0xff]
    %v3687 = vld [vmem:[%s3665 + $0xa8] sm:$0xff]
    %v3688 = vld [vmem:[%s3665 + $0xb0] sm:$0xff]
    %v3689 = vld [vmem:[%s3665 + $0xb8] sm:$0xff]
    %v3690 = vld [vmem:[%s3665 + $0xc0] sm:$0xff]
    %v3691 = vld [vmem:[%s3665 + $0xc8] sm:$0xff]
    %v3692 = vld [vmem:[%s3665 + $0xd0] sm:$0xff]
    %v3693 = vld [vmem:[%s3665 + $0xd8] sm:$0xff]
    %v3694 = vld [vmem:[%s3665 + $0xe0] sm:$0xff]
    %v3695 = vld [vmem:[%s3665 + $0xe8] sm:$0xff]
    %v3696 = vld [vmem:[%s3665 + $0xf0] sm:$0xff]
    %v3697 = vld [vmem:[%s3665 + $0xf8] sm:$0xff]
    %v3698 = vld [vmem:[%s3665 + $0x100] sm:$0xff]
    %v3699 = vld [vmem:[%s3665 + $0x108] sm:$0xff]
    %v3700 = vld [vmem:[%s3665 + $0x110] sm:$0xff]
    %v3701 = vld [vmem:[%s3665 + $0x118] sm:$0xff]
    %v3702 = vld [vmem:[%s3665 + $0x120] sm:$0xff]
    %v3703 = vld [vmem:[%s3665 + $0x128] sm:$0xff]
    %v3704 = vld [vmem:[%s3665 + $0x130] sm:$0xff]
    %v3705 = vld [vmem:[%s3665 + $0x138] sm:$0xff]
    %v3706 = vld [vmem:[%s3665 + $0x140] sm:$0xff]
    %v3707 = vld [vmem:[%s3665 + $0x148] sm:$0xff]
    %v3708 = vld [vmem:[%s3665 + $0x150] sm:$0xff]
    %v3709 = vld [vmem:[%s3665 + $0x158] sm:$0xff]
    %v3710 = vld [vmem:[%s3665 + $0x160] sm:$0xff]
    %v3711 = vld [vmem:[%s3665 + $0x168] sm:$0xff]
    %v3712 = vld [vmem:[%s3665 + $0x170] sm:$0xff]
    %v3713 = vld [vmem:[%s3665 + $0x178] sm:$0xff]
    %v3714 = vld [vmem:[%s3665 + $0x180] sm:$0xff]
    %v3715 = vld [vmem:[%s3665 + $0x188] sm:$0xff]
    %v3716 = vld [vmem:[%s3665 + $0x190] sm:$0xff]
    %v3717 = vld [vmem:[%s3665 + $0x198] sm:$0xff]
    %v3718 = vld [vmem:[%s3665 + $0x1a0] sm:$0xff]
    %v3719 = vld [vmem:[%s3665 + $0x1a8] sm:$0xff]
    %v3720 = vld [vmem:[%s3665 + $0x1b0] sm:$0xff]
    %v3721 = vld [vmem:[%s3665 + $0x1b8] sm:$0xff]
    %v3722 = vld [vmem:[%s3665 + $0x1c0] sm:$0xff]
    %v3723 = vld [vmem:[%s3665 + $0x1c8] sm:$0xff]
    %v3724 = vld [vmem:[%s3665 + $0x1d0] sm:$0xff]
    %v3725 = vld [vmem:[%s3665 + $0x1d8] sm:$0xff]
    %v3726 = vld [vmem:[%s3665 + $0x1e0] sm:$0xff]
    %v3727 = vld [vmem:[%s3665 + $0x1e8] sm:$0xff]
    %v3728 = vld [vmem:[%s3665 + $0x1f0] sm:$0xff]
    %v3729 = vld [vmem:[%s3665 + $0x1f8] sm:$0xff]
    %3730 = vmatprep.subr.mxu0 %v3667
    %3731 = vmatpush1.msra.mxu0 %v3666
    %3732 = vmatprep.subr.mxu0 %v3669
    %3733 = vmatpush1.msra.mxu0 %v3668
    %3734 = vmatprep.subr.mxu0 %v3671
    %3735 = vmatpush1.msra.mxu0 %v3670
    %3736 = vmatprep.subr.mxu0 %v3673
    %3737 = vmatpush1.msra.mxu0 %v3672
    %3738 = vmatprep.subr.mxu0 %v3675
    %3739 = vmatpush1.msra.mxu0 %v3674
    %3740 = vmatprep.subr.mxu0 %v3677
    %3741 = vmatpush1.msra.mxu0 %v3676
    %3742 = vmatprep.subr.mxu0 %v3679
    %3743 = vmatpush1.msra.mxu0 %v3678
    %3744 = vmatprep.subr.mxu0 %v3681
    %3745 = vmatpush1.msra.mxu0 %v3680
    %3746 = vmatprep.subr.mxu0 %v3683
    %3747 = vmatpush1.msra.mxu0 %v3682
    %3748 = vmatprep.subr.mxu0 %v3685
    %3749 = vmatpush1.msra.mxu0 %v3684
    %3750 = vmatprep.subr.mxu0 %v3687
    %3751 = vmatpush1.msra.mxu0 %v3686
    %3752 = vmatprep.subr.mxu0 %v3689
    %3753 = vmatpush1.msra.mxu0 %v3688
    %3754 = vmatprep.subr.mxu0 %v3691
    %3755 = vmatpush1.msra.mxu0 %v3690
    %3756 = vmatprep.subr.mxu0 %v3693
    %3757 = vmatpush1.msra.mxu0 %v3692
    %3758 = vmatprep.subr.mxu0 %v3695
    %3759 = vmatpush1.msra.mxu0 %v3694
    %3760 = vmatprep.subr.mxu0 %v3697
    %3761 = vmatpush1.msra.mxu0 %v3696
    %3762 = vmatprep.subr.mxu0 %v3699
    %3763 = vmatpush1.msra.mxu0 %v3698
    %3764 = vmatprep.subr.mxu0 %v3701
    %3765 = vmatpush1.msra.mxu0 %v3700
    %3766 = vmatprep.subr.mxu0 %v3703
    %3767 = vmatpush1.msra.mxu0 %v3702
    %3768 = vmatprep.subr.mxu0 %v3705
    %3769 = vmatpush1.msra.mxu0 %v3704
    %3770 = vmatprep.subr.mxu0 %v3707
    %3771 = vmatpush1.msra.mxu0 %v3706
    %3772 = vmatprep.subr.mxu0 %v3709
    %3773 = vmatpush1.msra.mxu0 %v3708
    %3774 = vmatprep.subr.mxu0 %v3711
    %3775 = vmatpush1.msra.mxu0 %v3710
    %3776 = vmatprep.subr.mxu0 %v3713
    %3777 = vmatpush1.msra.mxu0 %v3712
    %3778 = vmatprep.subr.mxu0 %v3715
    %3779 = vmatpush1.msra.mxu0 %v3714
    %3780 = vmatprep.subr.mxu0 %v3717
    %3781 = vmatpush1.msra.mxu0 %v3716
    %3782 = vmatprep.subr.mxu0 %v3719
    %3783 = vmatpush1.msra.mxu0 %v3718
    %3784 = vmatprep.subr.mxu0 %v3721
    %3785 = vmatpush1.msra.mxu0 %v3720
    %3786 = vmatprep.subr.mxu0 %v3723
    %3787 = vmatpush1.msra.mxu0 %v3722
    %3788 = vmatprep.subr.mxu0 %v3725
    %3789 = vmatpush1.msra.mxu0 %v3724
    %3790 = vmatprep.subr.mxu0 %v3727
    %3791 = vmatpush1.msra.mxu0 %v3726
    %3792 = vmatprep.subr.mxu0 %v3729
    %3793 = vmatpush1.msra.mxu0 %v3728
    %3794 = vmatprep.mubr.f32.mxu0 %v3576
    %3795 = vmatmul.mubr.f32.gmra.mrb[0].mxu0 %v3575
    %v3796 = vpop.f32.mrb[0].mxu0
    %v3797 = vadd.f32 0.0, %v3796
    %v3798 = vpop.f32.mrb[0].mxu0
    %v3799 = vadd.f32 0.0, %v3798
    %3800 = vmatprep.mubr.f32.mxu0 %v3578
    %3801 = vmatmul.mubr.f32.gmra.mrb[0].mxu0 %v3577
    %v3802 = vpop.f32.mrb[0].mxu0
    %v3803 = vadd.f32 0.0, %v3802
    %v3804 = vpop.f32.mrb[0].mxu0
    %v3805 = vadd.f32 0.0, %v3804
    %3806 = vmatprep.mubr.f32.mxu0 %v3580
    %3807 = vmatmul.mubr.f32.gmra.mrb[0].mxu0 %v3579
    %v3808 = vpop.f32.mrb[0].mxu0
    %v3809 = vadd.f32 0.0, %v3808
    %v3810 = vpop.f32.mrb[0].mxu0
    %v3811 = vadd.f32 0.0, %v3810
    %3812 = vmatprep.mubr.f32.mxu0 %v3582
    %3813 = vmatmul.mubr.f32.gmra.mrb[0].mxu0 %v3581
    %v3814 = vpop.f32.mrb[0].mxu0
    %v3815 = vadd.f32 0.0, %v3814
    %v3816 = vpop.f32.mrb[0].mxu0
    %v3817 = vadd.f32 0.0, %v3816
    %3818 = vmatprep.mubr.f32.mxu0 %v3584
    %3819 = vmatmul.mubr.f32.gmra.mrb[0].mxu0 %v3583
    %v3820 = vpop.f32.mrb[0].mxu0
    %v3821 = vadd.f32 0.0, %v3820
    %v3822 = vpop.f32.mrb[0].mxu0
    %v3823 = vadd.f32 0.0, %v3822
    %3824 = vmatprep.mubr.f32.mxu0 %v3586
    %3825 = vmatmul.mubr.f32.gmra.mrb[0].mxu0 %v3585
    %v3826 = vpop.f32.mrb[0].mxu0
    %v3827 = vadd.f32 0.0, %v3826
    %v3828 = vpop.f32.mrb[0].mxu0
    %v3829 = vadd.f32 0.0, %v3828
    %3830 = vmatprep.mubr.f32.mxu0 %v3588
    %3831 = vmatmul.mubr.f32.gmra.mrb[0].mxu0 %v3587
    %v3832 = vpop.f32.mrb[0].mxu0
    %v3833 = vadd.f32 0.0, %v3832
    %v3834 = vpop.f32.mrb[0].mxu0
    %v3835 = vadd.f32 0.0, %v3834
    %3836 = vmatprep.mubr.f32.mxu0 %v3590
    %3837 = vmatmul.mubr.f32.gmra.mrb[0].mxu0 %v3589
    %v3838 = vpop.f32.mrb[0].mxu0
    %v3839 = vadd.f32 0.0, %v3838
    %v3840 = vpop.f32.mrb[0].mxu0
    %v3841 = vadd.f32 0.0, %v3840
    %3842 = vmatprep.mubr.f32.mxu0 %v3592
    %3843 = vmatmul.mubr.f32.gmra.mrb[0].mxu0 %v3591
    %v3844 = vpop.f32.mrb[0].mxu0
    %v3845 = vadd.f32 0.0, %v3844
    %v3846 = vpop.f32.mrb[0].mxu0
    %v3847 = vadd.f32 0.0, %v3846
    %3848 = vmatprep.mubr.f32.mxu0 %v3594
    %3849 = vmatmul.mubr.f32.gmra.mrb[0].mxu0 %v3593
    %v3850 = vpop.f32.mrb[0].mxu0
    %v3851 = vadd.f32 0.0, %v3850
    %v3852 = vpop.f32.mrb[0].mxu0
    %v3853 = vadd.f32 0.0, %v3852
    %3854 = vdwg.mxu0
    %3855 = vmatprep.subr.mxu0 %v3602
    %3856 = vmatpush1.msra.mxu0 %v3601
    %3857 = vmatprep.subr.mxu0 %v3604
    %3858 = vmatpush1.msra.mxu0 %v3603
    %3859 = vmatprep.subr.mxu0 %v3606
    %3860 = vmatpush1.msra.mxu0 %v3605
    %3861 = vmatprep.subr.mxu0 %v3608
    %3862 = vmatpush1.msra.mxu0 %v3607
    %3863 = vmatprep.subr.mxu0 %v3610
    %3864 = vmatpush1.msra.mxu0 %v3609
    %3865 = vmatprep.subr.mxu0 %v3612
    %3866 = vmatpush1.msra.mxu0 %v3611
    %3867 = vmatprep.subr.mxu0 %v3614
    %3868 = vmatpush1.msra.mxu0 %v3613
    %3869 = vmatprep.subr.mxu0 %v3616
    %3870 = vmatpush1.msra.mxu0 %v3615
    %3871 = vmatprep.subr.mxu0 %v3618
    %3872 = vmatpush1.msra.mxu0 %v3617
    %3873 = vmatprep.subr.mxu0 %v3620
    %3874 = vmatpush1.msra.mxu0 %v3619
    %3875 = vmatprep.subr.mxu0 %v3622
    %3876 = vmatpush1.msra.mxu0 %v3621
    %3877 = vmatprep.subr.mxu0 %v3624
    %3878 = vmatpush1.msra.mxu0 %v3623
    %3879 = vmatprep.subr.mxu0 %v3626
    %3880 = vmatpush1.msra.mxu0 %v3625
    %3881 = vmatprep.subr.mxu0 %v3628
    %3882 = vmatpush1.msra.mxu0 %v3627
    %3883 = vmatprep.subr.mxu0 %v3630
    %3884 = vmatpush1.msra.mxu0 %v3629
    %3885 = vmatprep.subr.mxu0 %v3632
    %3886 = vmatpush1.msra.mxu0 %v3631
    %3887 = vmatprep.subr.mxu0 %v3634
    %3888 = vmatpush1.msra.mxu0 %v3633
    %3889 = vmatprep.subr.mxu0 %v3636
    %3890 = vmatpush1.msra.mxu0 %v3635
    %3891 = vmatprep.subr.mxu0 %v3638
    %3892 = vmatpush1.msra.mxu0 %v3637
    %3893 = vmatprep.subr.mxu0 %v3640
    %3894 = vmatpush1.msra.mxu0 %v3639
    %3895 = vmatprep.subr.mxu0 %v3642
    %3896 = vmatpush1.msra.mxu0 %v3641
    %3897 = vmatprep.subr.mxu0 %v3644
    %3898 = vmatpush1.msra.mxu0 %v3643
    %3899 = vmatprep.subr.mxu0 %v3646
    %3900 = vmatpush1.msra.mxu0 %v3645
    %3901 = vmatprep.subr.mxu0 %v3648
    %3902 = vmatpush1.msra.mxu0 %v3647
    %3903 = vmatprep.subr.mxu0 %v3650
    %3904 = vmatpush1.msra.mxu0 %v3649
    %3905 = vmatprep.subr.mxu0 %v3652
    %3906 = vmatpush1.msra.mxu0 %v3651
    %3907 = vmatprep.subr.mxu0 %v3654
    %3908 = vmatpush1.msra.mxu0 %v3653
    %3909 = vmatprep.subr.mxu0 %v3656
    %3910 = vmatpush1.msra.mxu0 %v3655
    %3911 = vmatprep.subr.mxu0 %v3658
    %3912 = vmatpush1.msra.mxu0 %v3657
    %3913 = vmatprep.subr.mxu0 %v3660
    %3914 = vmatpush1.msra.mxu0 %v3659
    %3915 = vmatprep.subr.mxu0 %v3662
    %3916 = vmatpush1.msra.mxu0 %v3661
    %3917 = vmatprep.subr.mxu0 %v3664
    %3918 = vmatpush1.msra.mxu0 %v3663
    %3919 = vmatprep.mubr.f32.mxu0 %v3574
    %3920 = vmatmul.mubr.f32.gmra.mrb[0].mxu0 %v3573
    %v3921 = vpop.f32.mrb[0].mxu0
    %v3922 = vadd.f32 %v3797, %v3921
    %v3923 = vpop.f32.mrb[0].mxu0
    %v3924 = vadd.f32 %v3799, %v3923
    %3925 = vmatprep.mubr.f32.mxu0 %v3576
    %3926 = vmatmul.mubr.f32.gmra.mrb[0].mxu0 %v3575
    %v3927 = vpop.f32.mrb[0].mxu0
    %v3928 = vadd.f32 %v3803, %v3927
    %v3929 = vpop.f32.mrb[0].mxu0
    %v3930 = vadd.f32 %v3805, %v3929
    %3931 = vmatprep.mubr.f32.mxu0 %v3578
    %3932 = vmatmul.mubr.f32.gmra.mrb[0].mxu0 %v3577
    %v3933 = vpop.f32.mrb[0].mxu0
    %v3934 = vadd.f32 %v3809, %v3933
    %v3935 = vpop.f32.mrb[0].mxu0
    %v3936 = vadd.f32 %v3811, %v3935
    %3937 = vmatprep.mubr.f32.mxu0 %v3580
    %3938 = vmatmul.mubr.f32.gmra.mrb[0].mxu0 %v3579
    %v3939 = vpop.f32.mrb[0].mxu0
    %v3940 = vadd.f32 %v3815, %v3939
    %v3941 = vpop.f32.mrb[0].mxu0
    %v3942 = vadd.f32 %v3817, %v3941
    %3943 = vmatprep.mubr.f32.mxu0 %v3582
    %3944 = vmatmul.mubr.f32.gmra.mrb[0].mxu0 %v3581
    %v3945 = vpop.f32.mrb[0].mxu0
    %v3946 = vadd.f32 %v3821, %v3945
    %v3947 = vpop.f32.mrb[0].mxu0
    %v3948 = vadd.f32 %v3823, %v3947
    %3949 = vmatprep.mubr.f32.mxu0 %v3584
    %3950 = vmatmul.mubr.f32.gmra.mrb[0].mxu0 %v3583
    %v3951 = vpop.f32.mrb[0].mxu0
    %v3952 = vadd.f32 %v3827, %v3951
    %v3953 = vpop.f32.mrb[0].mxu0
    %v3954 = vadd.f32 %v3829, %v3953
    %3955 = vmatprep.mubr.f32.mxu0 %v3586
    %3956 = vmatmul.mubr.f32.gmra.mrb[0].mxu0 %v3585
    %v3957 = vpop.f32.mrb[0].mxu0
    %v3958 = vadd.f32 %v3833, %v3957
    %v3959 = vpop.f32.mrb[0].mxu0
    %v3960 = vadd.f32 %v3835, %v3959
    %3961 = vmatprep.mubr.f32.mxu0 %v3588
    %3962 = vmatmul.mubr.f32.gmra.mrb[0].mxu0 %v3587
    %v3963 = vpop.f32.mrb[0].mxu0
    %v3964 = vadd.f32 %v3839, %v3963
    %v3965 = vpop.f32.mrb[0].mxu0
    %v3966 = vadd.f32 %v3841, %v3965
    %3967 = vmatprep.mubr.f32.mxu0 %v3590
    %3968 = vmatmul.mubr.f32.gmra.mrb[0].mxu0 %v3589
    %v3969 = vpop.f32.mrb[0].mxu0
    %v3970 = vadd.f32 %v3845, %v3969
    %v3971 = vpop.f32.mrb[0].mxu0
    %v3972 = vadd.f32 %v3847, %v3971
    %3973 = vmatprep.mubr.f32.mxu0 %v3592
    %3974 = vmatmul.mubr.f32.gmra.mrb[0].mxu0 %v3591
    %v3975 = vpop.f32.mrb[0].mxu0
    %v3976 = vadd.f32 %v3851, %v3975
    %v3977 = vpop.f32.mrb[0].mxu0
    %v3978 = vadd.f32 %v3853, %v3977
    %3979 = vdwg.mxu0
    %s3980 = scalar_lea.vmem [#allocation7], 1024
    %v3981 = vld [vmem:[%s3980] sm:$0xff]
    %v3982 = vld [vmem:[%s3980 + $0x8] sm:$0xff]
    %v3983 = vld [vmem:[%s3980 + $0x10] sm:$0xff]
    %v3984 = vld [vmem:[%s3980 + $0x18] sm:$0xff]
    %v3985 = vld [vmem:[%s3980 + $0x20] sm:$0xff]
    %v3986 = vld [vmem:[%s3980 + $0x28] sm:$0xff]
    %v3987 = vld [vmem:[%s3980 + $0x30] sm:$0xff]
    %v3988 = vld [vmem:[%s3980 + $0x38] sm:$0xff]
    %v3989 = vld [vmem:[%s3980 + $0x40] sm:$0xff]
    %v3990 = vld [vmem:[%s3980 + $0x48] sm:$0xff]
    %v3991 = vld [vmem:[%s3980 + $0x50] sm:$0xff]
    %v3992 = vld [vmem:[%s3980 + $0x58] sm:$0xff]
    %v3993 = vld [vmem:[%s3980 + $0x60] sm:$0xff]
    %v3994 = vld [vmem:[%s3980 + $0x68] sm:$0xff]
    %v3995 = vld [vmem:[%s3980 + $0x70] sm:$0xff]
    %v3996 = vld [vmem:[%s3980 + $0x78] sm:$0xff]
    %v3997 = vld [vmem:[%s3980 + $0x80] sm:$0xff]
    %v3998 = vld [vmem:[%s3980 + $0x88] sm:$0xff]
    %v3999 = vld [vmem:[%s3980 + $0x90] sm:$0xff]
    %v4000 = vld [vmem:[%s3980 + $0x98] sm:$0xff]
    %v4001 = vld [vmem:[%s3980 + $0xa0] sm:$0xff]
    %v4002 = vld [vmem:[%s3980 + $0xa8] sm:$0xff]
    %v4003 = vld [vmem:[%s3980 + $0xb0] sm:$0xff]
    %v4004 = vld [vmem:[%s3980 + $0xb8] sm:$0xff]
    %v4005 = vld [vmem:[%s3980 + $0xc0] sm:$0xff]
    %v4006 = vld [vmem:[%s3980 + $0xc8] sm:$0xff]
    %v4007 = vld [vmem:[%s3980 + $0xd0] sm:$0xff]
    %v4008 = vld [vmem:[%s3980 + $0xd8] sm:$0xff]
    %v4009 = vld [vmem:[%s3980 + $0xe0] sm:$0xff]
    %v4010 = vld [vmem:[%s3980 + $0xe8] sm:$0xff]
    %v4011 = vld [vmem:[%s3980 + $0xf0] sm:$0xff]
    %v4012 = vld [vmem:[%s3980 + $0xf8] sm:$0xff]
    %v4013 = vld [vmem:[%s3980 + $0x100] sm:$0xff]
    %v4014 = vld [vmem:[%s3980 + $0x108] sm:$0xff]
    %v4015 = vld [vmem:[%s3980 + $0x110] sm:$0xff]
    %v4016 = vld [vmem:[%s3980 + $0x118] sm:$0xff]
    %v4017 = vld [vmem:[%s3980 + $0x120] sm:$0xff]
    %v4018 = vld [vmem:[%s3980 + $0x128] sm:$0xff]
    %v4019 = vld [vmem:[%s3980 + $0x130] sm:$0xff]
    %v4020 = vld [vmem:[%s3980 + $0x138] sm:$0xff]
    %v4021 = vld [vmem:[%s3980 + $0x140] sm:$0xff]
    %v4022 = vld [vmem:[%s3980 + $0x148] sm:$0xff]
    %v4023 = vld [vmem:[%s3980 + $0x150] sm:$0xff]
    %v4024 = vld [vmem:[%s3980 + $0x158] sm:$0xff]
    %v4025 = vld [vmem:[%s3980 + $0x160] sm:$0xff]
    %v4026 = vld [vmem:[%s3980 + $0x168] sm:$0xff]
    %v4027 = vld [vmem:[%s3980 + $0x170] sm:$0xff]
    %v4028 = vld [vmem:[%s3980 + $0x178] sm:$0xff]
    %v4029 = vld [vmem:[%s3980 + $0x180] sm:$0xff]
    %v4030 = vld [vmem:[%s3980 + $0x188] sm:$0xff]
    %v4031 = vld [vmem:[%s3980 + $0x190] sm:$0xff]
    %v4032 = vld [vmem:[%s3980 + $0x198] sm:$0xff]
    %v4033 = vld [vmem:[%s3980 + $0x1a0] sm:$0xff]
    %v4034 = vld [vmem:[%s3980 + $0x1a8] sm:$0xff]
    %v4035 = vld [vmem:[%s3980 + $0x1b0] sm:$0xff]
    %v4036 = vld [vmem:[%s3980 + $0x1b8] sm:$0xff]
    %v4037 = vld [vmem:[%s3980 + $0x1c0] sm:$0xff]
    %v4038 = vld [vmem:[%s3980 + $0x1c8] sm:$0xff]
    %v4039 = vld [vmem:[%s3980 + $0x1d0] sm:$0xff]
    %v4040 = vld [vmem:[%s3980 + $0x1d8] sm:$0xff]
    %v4041 = vld [vmem:[%s3980 + $0x1e0] sm:$0xff]
    %v4042 = vld [vmem:[%s3980 + $0x1e8] sm:$0xff]
    %v4043 = vld [vmem:[%s3980 + $0x1f0] sm:$0xff]
    %v4044 = vld [vmem:[%s3980 + $0x1f8] sm:$0xff]
    %4045 = vmatprep.subr.mxu0 %v3982
    %4046 = vmatpush1.msra.mxu0 %v3981
    %4047 = vmatprep.subr.mxu0 %v3984
    %4048 = vmatpush1.msra.mxu0 %v3983
    %4049 = vmatprep.subr.mxu0 %v3986
    %4050 = vmatpush1.msra.mxu0 %v3985
    %4051 = vmatprep.subr.mxu0 %v3988
    %4052 = vmatpush1.msra.mxu0 %v3987
    %4053 = vmatprep.subr.mxu0 %v3990
    %4054 = vmatpush1.msra.mxu0 %v3989
    %4055 = vmatprep.subr.mxu0 %v3992
    %4056 = vmatpush1.msra.mxu0 %v3991
    %4057 = vmatprep.subr.mxu0 %v3994
    %4058 = vmatpush1.msra.mxu0 %v3993
    %4059 = vmatprep.subr.mxu0 %v3996
    %4060 = vmatpush1.msra.mxu0 %v3995
    %4061 = vmatprep.subr.mxu0 %v3998
    %4062 = vmatpush1.msra.mxu0 %v3997
    %4063 = vmatprep.subr.mxu0 %v4000
    %4064 = vmatpush1.msra.mxu0 %v3999
    %4065 = vmatprep.subr.mxu0 %v4002
    %4066 = vmatpush1.msra.mxu0 %v4001
    %4067 = vmatprep.subr.mxu0 %v4004
    %4068 = vmatpush1.msra.mxu0 %v4003
    %4069 = vmatprep.subr.mxu0 %v4006
    %4070 = vmatpush1.msra.mxu0 %v4005
    %4071 = vmatprep.subr.mxu0 %v4008
    %4072 = vmatpush1.msra.mxu0 %v4007
    %4073 = vmatprep.subr.mxu0 %v4010
    %4074 = vmatpush1.msra.mxu0 %v4009
    %4075 = vmatprep.subr.mxu0 %v4012
    %4076 = vmatpush1.msra.mxu0 %v4011
    %4077 = vmatprep.subr.mxu0 %v4014
    %4078 = vmatpush1.msra.mxu0 %v4013
    %4079 = vmatprep.subr.mxu0 %v4016
    %4080 = vmatpush1.msra.mxu0 %v4015
    %4081 = vmatprep.subr.mxu0 %v4018
    %4082 = vmatpush1.msra.mxu0 %v4017
    %4083 = vmatprep.subr.mxu0 %v4020
    %4084 = vmatpush1.msra.mxu0 %v4019
    %4085 = vmatprep.subr.mxu0 %v4022
    %4086 = vmatpush1.msra.mxu0 %v4021
    %4087 = vmatprep.subr.mxu0 %v4024
    %4088 = vmatpush1.msra.mxu0 %v4023
    %4089 = vmatprep.subr.mxu0 %v4026
    %4090 = vmatpush1.msra.mxu0 %v4025
    %4091 = vmatprep.subr.mxu0 %v4028
    %4092 = vmatpush1.msra.mxu0 %v4027
    %4093 = vmatprep.subr.mxu0 %v4030
    %4094 = vmatpush1.msra.mxu0 %v4029
    %4095 = vmatprep.subr.mxu0 %v4032
    %4096 = vmatpush1.msra.mxu0 %v4031
    %4097 = vmatprep.subr.mxu0 %v4034
    %4098 = vmatpush1.msra.mxu0 %v4033
    %4099 = vmatprep.subr.mxu0 %v4036
    %4100 = vmatpush1.msra.mxu0 %v4035
    %4101 = vmatprep.subr.mxu0 %v4038
    %4102 = vmatpush1.msra.mxu0 %v4037
    %4103 = vmatprep.subr.mxu0 %v4040
    %4104 = vmatpush1.msra.mxu0 %v4039
    %4105 = vmatprep.subr.mxu0 %v4042
    %4106 = vmatpush1.msra.mxu0 %v4041
    %4107 = vmatprep.subr.mxu0 %v4044
    %4108 = vmatpush1.msra.mxu0 %v4043
    %4109 = vmatprep.mubr.f32.mxu0 %v3578
    %4110 = vmatmul.mubr.f32.gmra.mrb[0].mxu0 %v3577
    %v4111 = vpop.f32.mrb[0].mxu0
    %v4112 = vadd.f32 0.0, %v4111
    %v4113 = vpop.f32.mrb[0].mxu0
    %v4114 = vadd.f32 0.0, %v4113
    %4115 = vmatprep.mubr.f32.mxu0 %v3580
    %4116 = vmatmul.mubr.f32.gmra.mrb[0].mxu0 %v3579
    %v4117 = vpop.f32.mrb[0].mxu0
    %v4118 = vadd.f32 0.0, %v4117
    %v4119 = vpop.f32.mrb[0].mxu0
    %v4120 = vadd.f32 0.0, %v4119
    %4121 = vmatprep.mubr.f32.mxu0 %v3582
    %4122 = vmatmul.mubr.f32.gmra.mrb[0].mxu0 %v3581
    %v4123 = vpop.f32.mrb[0].mxu0
    %v4124 = vadd.f32 0.0, %v4123
    %v4125 = vpop.f32.mrb[0].mxu0
    %v4126 = vadd.f32 0.0, %v4125
    %4127 = vmatprep.mubr.f32.mxu0 %v3584
    %4128 = vmatmul.mubr.f32.gmra.mrb[0].mxu0 %v3583
    %v4129 = vpop.f32.mrb[0].mxu0
    %v4130 = vadd.f32 0.0, %v4129
    %v4131 = vpop.f32.mrb[0].mxu0
    %v4132 = vadd.f32 0.0, %v4131
    %4133 = vmatprep.mubr.f32.mxu0 %v3586
    %4134 = vmatmul.mubr.f32.gmra.mrb[0].mxu0 %v3585
    %v4135 = vpop.f32.mrb[0].mxu0
    %v4136 = vadd.f32 0.0, %v4135
    %v4137 = vpop.f32.mrb[0].mxu0
    %v4138 = vadd.f32 0.0, %v4137
    %4139 = vmatprep.mubr.f32.mxu0 %v3588
    %4140 = vmatmul.mubr.f32.gmra.mrb[0].mxu0 %v3587
    %v4141 = vpop.f32.mrb[0].mxu0
    %v4142 = vadd.f32 0.0, %v4141
    %v4143 = vpop.f32.mrb[0].mxu0
    %v4144 = vadd.f32 0.0, %v4143
    %4145 = vmatprep.mubr.f32.mxu0 %v3590
    %4146 = vmatmul.mubr.f32.gmra.mrb[0].mxu0 %v3589
    %v4147 = vpop.f32.mrb[0].mxu0
    %v4148 = vadd.f32 0.0, %v4147
    %v4149 = vpop.f32.mrb[0].mxu0
    %v4150 = vadd.f32 0.0, %v4149
    %4151 = vmatprep.mubr.f32.mxu0 %v3592
    %4152 = vmatmul.mubr.f32.gmra.mrb[0].mxu0 %v3591
    %v4153 = vpop.f32.mrb[0].mxu0
    %v4154 = vadd.f32 0.0, %v4153
    %v4155 = vpop.f32.mrb[0].mxu0
    %v4156 = vadd.f32 0.0, %v4155
    %4157 = vmatprep.mubr.f32.mxu0 %v3594
    %4158 = vmatmul.mubr.f32.gmra.mrb[0].mxu0 %v3593
    %v4159 = vpop.f32.mrb[0].mxu0
    %v4160 = vadd.f32 0.0, %v4159
    %v4161 = vpop.f32.mrb[0].mxu0
    %v4162 = vadd.f32 0.0, %v4161
    %4163 = vmatprep.mubr.f32.mxu0 %v3596
    %4164 = vmatmul.mubr.f32.gmra.mrb[0].mxu0 %v3595
    %v4165 = vpop.f32.mrb[0].mxu0
    %v4166 = vadd.f32 0.0, %v4165
    %v4167 = vpop.f32.mrb[0].mxu0
    %v4168 = vadd.f32 0.0, %v4167
    %4169 = vdwg.mxu0
    %v4170 = vadd.f32 %v3922, %v4112
    %v4171 = vadd.f32 %v3924, %v4114
    %v4172 = vadd.f32 %v3928, %v4118
    %v4173 = vadd.f32 %v3930, %v4120
    %v4174 = vadd.f32 %v3934, %v4124
    %v4175 = vadd.f32 %v3936, %v4126
    %v4176 = vadd.f32 %v3940, %v4130
    %v4177 = vadd.f32 %v3942, %v4132
    %v4178 = vadd.f32 %v3946, %v4136
    %v4179 = vadd.f32 %v3948, %v4138
    %v4180 = vadd.f32 %v3952, %v4142
    %v4181 = vadd.f32 %v3954, %v4144
    %v4182 = vadd.f32 %v3958, %v4148
    %v4183 = vadd.f32 %v3960, %v4150
    %v4184 = vadd.f32 %v3964, %v4154
    %v4185 = vadd.f32 %v3966, %v4156
    %v4186 = vadd.f32 %v3970, %v4160
    %v4187 = vadd.f32 %v3972, %v4162
    %v4188 = vadd.f32 %v3976, %v4166
    %v4189 = vadd.f32 %v3978, %v4168
    %s4190 = scalar_lea.vmem [#allocation7], 1536
    %v4191 = vld [vmem:[%s4190] sm:$0xff]
    %v4192 = vld [vmem:[%s4190 + $0x8] sm:$0xff]
    %v4193 = vld [vmem:[%s4190 + $0x10] sm:$0xff]
    %v4194 = vld [vmem:[%s4190 + $0x18] sm:$0xff]
    %v4195 = vld [vmem:[%s4190 + $0x20] sm:$0xff]
    %v4196 = vld [vmem:[%s4190 + $0x28] sm:$0xff]
    %v4197 = vld [vmem:[%s4190 + $0x30] sm:$0xff]
    %v4198 = vld [vmem:[%s4190 + $0x38] sm:$0xff]
    %v4199 = vld [vmem:[%s4190 + $0x40] sm:$0xff]
    %v4200 = vld [vmem:[%s4190 + $0x48] sm:$0xff]
    %v4201 = vld [vmem:[%s4190 + $0x50] sm:$0xff]
    %v4202 = vld [vmem:[%s4190 + $0x58] sm:$0xff]
    %v4203 = vld [vmem:[%s4190 + $0x60] sm:$0xff]
    %v4204 = vld [vmem:[%s4190 + $0x68] sm:$0xff]
    %v4205 = vld [vmem:[%s4190 + $0x70] sm:$0xff]
    %v4206 = vld [vmem:[%s4190 + $0x78] sm:$0xff]
    %v4207 = vld [vmem:[%s4190 + $0x80] sm:$0xff]
    %v4208 = vld [vmem:[%s4190 + $0x88] sm:$0xff]
    %v4209 = vld [vmem:[%s4190 + $0x90] sm:$0xff]
    %v4210 = vld [vmem:[%s4190 + $0x98] sm:$0xff]
    %v4211 = vld [vmem:[%s4190 + $0xa0] sm:$0xff]
    %v4212 = vld [vmem:[%s4190 + $0xa8] sm:$0xff]
    %v4213 = vld [vmem:[%s4190 + $0xb0] sm:$0xff]
    %v4214 = vld [vmem:[%s4190 + $0xb8] sm:$0xff]
    %v4215 = vld [vmem:[%s4190 + $0xc0] sm:$0xff]
    %v4216 = vld [vmem:[%s4190 + $0xc8] sm:$0xff]
    %v4217 = vld [vmem:[%s4190 + $0xd0] sm:$0xff]
    %v4218 = vld [vmem:[%s4190 + $0xd8] sm:$0xff]
    %v4219 = vld [vmem:[%s4190 + $0xe0] sm:$0xff]
    %v4220 = vld [vmem:[%s4190 + $0xe8] sm:$0xff]
    %v4221 = vld [vmem:[%s4190 + $0xf0] sm:$0xff]
    %v4222 = vld [vmem:[%s4190 + $0xf8] sm:$0xff]
    %v4223 = vld [vmem:[%s4190 + $0x100] sm:$0xff]
    %v4224 = vld [vmem:[%s4190 + $0x108] sm:$0xff]
    %v4225 = vld [vmem:[%s4190 + $0x110] sm:$0xff]
    %v4226 = vld [vmem:[%s4190 + $0x118] sm:$0xff]
    %v4227 = vld [vmem:[%s4190 + $0x120] sm:$0xff]
    %v4228 = vld [vmem:[%s4190 + $0x128] sm:$0xff]
    %v4229 = vld [vmem:[%s4190 + $0x130] sm:$0xff]
    %v4230 = vld [vmem:[%s4190 + $0x138] sm:$0xff]
    %v4231 = vld [vmem:[%s4190 + $0x140] sm:$0xff]
    %v4232 = vld [vmem:[%s4190 + $0x148] sm:$0xff]
    %v4233 = vld [vmem:[%s4190 + $0x150] sm:$0xff]
    %v4234 = vld [vmem:[%s4190 + $0x158] sm:$0xff]
    %v4235 = vld [vmem:[%s4190 + $0x160] sm:$0xff]
    %v4236 = vld [vmem:[%s4190 + $0x168] sm:$0xff]
    %v4237 = vld [vmem:[%s4190 + $0x170] sm:$0xff]
    %v4238 = vld [vmem:[%s4190 + $0x178] sm:$0xff]
    %v4239 = vld [vmem:[%s4190 + $0x180] sm:$0xff]
    %v4240 = vld [vmem:[%s4190 + $0x188] sm:$0xff]
    %v4241 = vld [vmem:[%s4190 + $0x190] sm:$0xff]
    %v4242 = vld [vmem:[%s4190 + $0x198] sm:$0xff]
    %v4243 = vld [vmem:[%s4190 + $0x1a0] sm:$0xff]
    %v4244 = vld [vmem:[%s4190 + $0x1a8] sm:$0xff]
    %v4245 = vld [vmem:[%s4190 + $0x1b0] sm:$0xff]
    %v4246 = vld [vmem:[%s4190 + $0x1b8] sm:$0xff]
    %v4247 = vld [vmem:[%s4190 + $0x1c0] sm:$0xff]
    %v4248 = vld [vmem:[%s4190 + $0x1c8] sm:$0xff]
    %v4249 = vld [vmem:[%s4190 + $0x1d0] sm:$0xff]
    %v4250 = vld [vmem:[%s4190 + $0x1d8] sm:$0xff]
    %v4251 = vld [vmem:[%s4190 + $0x1e0] sm:$0xff]
    %v4252 = vld [vmem:[%s4190 + $0x1e8] sm:$0xff]
    %v4253 = vld [vmem:[%s4190 + $0x1f0] sm:$0xff]
    %v4254 = vld [vmem:[%s4190 + $0x1f8] sm:$0xff]
    %4255 = vmatprep.subr.mxu0 %v4192
    %4256 = vmatpush1.msra.mxu0 %v4191
    %4257 = vmatprep.subr.mxu0 %v4194
    %4258 = vmatpush1.msra.mxu0 %v4193
    %4259 = vmatprep.subr.mxu0 %v4196
    %4260 = vmatpush1.msra.mxu0 %v4195
    %4261 = vmatprep.subr.mxu0 %v4198
    %4262 = vmatpush1.msra.mxu0 %v4197
    %4263 = vmatprep.subr.mxu0 %v4200
    %4264 = vmatpush1.msra.mxu0 %v4199
    %4265 = vmatprep.subr.mxu0 %v4202
    %4266 = vmatpush1.msra.mxu0 %v4201
    %4267 = vmatprep.subr.mxu0 %v4204
    %4268 = vmatpush1.msra.mxu0 %v4203
    %4269 = vmatprep.subr.mxu0 %v4206
    %4270 = vmatpush1.msra.mxu0 %v4205
    %4271 = vmatprep.subr.mxu0 %v4208
    %4272 = vmatpush1.msra.mxu0 %v4207
    %4273 = vmatprep.subr.mxu0 %v4210
    %4274 = vmatpush1.msra.mxu0 %v4209
    %4275 = vmatprep.subr.mxu0 %v4212
    %4276 = vmatpush1.msra.mxu0 %v4211
    %4277 = vmatprep.subr.mxu0 %v4214
    %4278 = vmatpush1.msra.mxu0 %v4213
    %4279 = vmatprep.subr.mxu0 %v4216
    %4280 = vmatpush1.msra.mxu0 %v4215
    %4281 = vmatprep.subr.mxu0 %v4218
    %4282 = vmatpush1.msra.mxu0 %v4217
    %4283 = vmatprep.subr.mxu0 %v4220
    %4284 = vmatpush1.msra.mxu0 %v4219
    %4285 = vmatprep.subr.mxu0 %v4222
    %4286 = vmatpush1.msra.mxu0 %v4221
    %4287 = vmatprep.subr.mxu0 %v4224
    %4288 = vmatpush1.msra.mxu0 %v4223
    %4289 = vmatprep.subr.mxu0 %v4226
    %4290 = vmatpush1.msra.mxu0 %v4225
    %4291 = vmatprep.subr.mxu0 %v4228
    %4292 = vmatpush1.msra.mxu0 %v4227
    %4293 = vmatprep.subr.mxu0 %v4230
    %4294 = vmatpush1.msra.mxu0 %v4229
    %4295 = vmatprep.subr.mxu0 %v4232
    %4296 = vmatpush1.msra.mxu0 %v4231
    %4297 = vmatprep.subr.mxu0 %v4234
    %4298 = vmatpush1.msra.mxu0 %v4233
    %4299 = vmatprep.subr.mxu0 %v4236
    %4300 = vmatpush1.msra.mxu0 %v4235
    %4301 = vmatprep.subr.mxu0 %v4238
    %4302 = vmatpush1.msra.mxu0 %v4237
    %4303 = vmatprep.subr.mxu0 %v4240
    %4304 = vmatpush1.msra.mxu0 %v4239
    %4305 = vmatprep.subr.mxu0 %v4242
    %4306 = vmatpush1.msra.mxu0 %v4241
    %4307 = vmatprep.subr.mxu0 %v4244
    %4308 = vmatpush1.msra.mxu0 %v4243
    %4309 = vmatprep.subr.mxu0 %v4246
    %4310 = vmatpush1.msra.mxu0 %v4245
    %4311 = vmatprep.subr.mxu0 %v4248
    %4312 = vmatpush1.msra.mxu0 %v4247
    %4313 = vmatprep.subr.mxu0 %v4250
    %4314 = vmatpush1.msra.mxu0 %v4249
    %4315 = vmatprep.subr.mxu0 %v4252
    %4316 = vmatpush1.msra.mxu0 %v4251
    %4317 = vmatprep.subr.mxu0 %v4254
    %4318 = vmatpush1.msra.mxu0 %v4253
    %4319 = vmatprep.mubr.f32.mxu0 %v3580
    %4320 = vmatmul.mubr.f32.gmra.mrb[0].mxu0 %v3579
    %v4321 = vpop.f32.mrb[0].mxu0
    %v4322 = vadd.f32 0.0, %v4321
    %v4323 = vpop.f32.mrb[0].mxu0
    %v4324 = vadd.f32 0.0, %v4323
    %4325 = vmatprep.mubr.f32.mxu0 %v3582
    %4326 = vmatmul.mubr.f32.gmra.mrb[0].mxu0 %v3581
    %v4327 = vpop.f32.mrb[0].mxu0
    %v4328 = vadd.f32 0.0, %v4327
    %v4329 = vpop.f32.mrb[0].mxu0
    %v4330 = vadd.f32 0.0, %v4329
    %4331 = vmatprep.mubr.f32.mxu0 %v3584
    %4332 = vmatmul.mubr.f32.gmra.mrb[0].mxu0 %v3583
    %v4333 = vpop.f32.mrb[0].mxu0
    %v4334 = vadd.f32 0.0, %v4333
    %v4335 = vpop.f32.mrb[0].mxu0
    %v4336 = vadd.f32 0.0, %v4335
    %4337 = vmatprep.mubr.f32.mxu0 %v3586
    %4338 = vmatmul.mubr.f32.gmra.mrb[0].mxu0 %v3585
    %v4339 = vpop.f32.mrb[0].mxu0
    %v4340 = vadd.f32 0.0, %v4339
    %v4341 = vpop.f32.mrb[0].mxu0
    %v4342 = vadd.f32 0.0, %v4341
    %4343 = vmatprep.mubr.f32.mxu0 %v3588
    %4344 = vmatmul.mubr.f32.gmra.mrb[0].mxu0 %v3587
    %v4345 = vpop.f32.mrb[0].mxu0
    %v4346 = vadd.f32 0.0, %v4345
    %v4347 = vpop.f32.mrb[0].mxu0
    %v4348 = vadd.f32 0.0, %v4347
    %4349 = vmatprep.mubr.f32.mxu0 %v3590
    %4350 = vmatmul.mubr.f32.gmra.mrb[0].mxu0 %v3589
    %v4351 = vpop.f32.mrb[0].mxu0
    %v4352 = vadd.f32 0.0, %v4351
    %v4353 = vpop.f32.mrb[0].mxu0
    %v4354 = vadd.f32 0.0, %v4353
    %4355 = vmatprep.mubr.f32.mxu0 %v3592
    %4356 = vmatmul.mubr.f32.gmra.mrb[0].mxu0 %v3591
    %v4357 = vpop.f32.mrb[0].mxu0
    %v4358 = vadd.f32 0.0, %v4357
    %v4359 = vpop.f32.mrb[0].mxu0
    %v4360 = vadd.f32 0.0, %v4359
    %4361 = vmatprep.mubr.f32.mxu0 %v3594
    %4362 = vmatmul.mubr.f32.gmra.mrb[0].mxu0 %v3593
    %v4363 = vpop.f32.mrb[0].mxu0
    %v4364 = vadd.f32 0.0, %v4363
    %v4365 = vpop.f32.mrb[0].mxu0
    %v4366 = vadd.f32 0.0, %v4365
    %4367 = vmatprep.mubr.f32.mxu0 %v3596
    %4368 = vmatmul.mubr.f32.gmra.mrb[0].mxu0 %v3595
    %v4369 = vpop.f32.mrb[0].mxu0
    %v4370 = vadd.f32 0.0, %v4369
    %v4371 = vpop.f32.mrb[0].mxu0
    %v4372 = vadd.f32 0.0, %v4371
    %4373 = vmatprep.mubr.f32.mxu0 %v3598
    %4374 = vmatmul.mubr.f32.gmra.mrb[0].mxu0 %v3597
    %v4375 = vpop.f32.mrb[0].mxu0
    %v4376 = vadd.f32 0.0, %v4375
    %v4377 = vpop.f32.mrb[0].mxu0
    %v4378 = vadd.f32 0.0, %v4377
    %4379 = vdwg.mxu0
    %v4380 = vadd.f32 %v4170, %v4322
    %v4381 = vadd.f32 %v4171, %v4324
    %v4382 = vadd.f32 %v4172, %v4328
    %v4383 = vadd.f32 %v4173, %v4330
    %v4384 = vadd.f32 %v4174, %v4334
    %v4385 = vadd.f32 %v4175, %v4336
    %v4386 = vadd.f32 %v4176, %v4340
    %v4387 = vadd.f32 %v4177, %v4342
    %v4388 = vadd.f32 %v4178, %v4346
    %v4389 = vadd.f32 %v4179, %v4348
    %v4390 = vadd.f32 %v4180, %v4352
    %v4391 = vadd.f32 %v4181, %v4354
    %v4392 = vadd.f32 %v4182, %v4358
    %v4393 = vadd.f32 %v4183, %v4360
    %v4394 = vadd.f32 %v4184, %v4364
    %v4395 = vadd.f32 %v4185, %v4366
    %v4396 = vadd.f32 %v4186, %v4370
    %v4397 = vadd.f32 %v4187, %v4372
    %v4398 = vadd.f32 %v4188, %v4376
    %v4399 = vadd.f32 %v4189, %v4378
    %s4400 = scalar_lea.vmem [#allocation7], 2048
    %v4401 = vld [vmem:[%s4400] sm:$0xff]
    %v4402 = vld [vmem:[%s4400 + $0x8] sm:$0xff]
    %v4403 = vld [vmem:[%s4400 + $0x10] sm:$0xff]
    %v4404 = vld [vmem:[%s4400 + $0x18] sm:$0xff]
    %v4405 = vld [vmem:[%s4400 + $0x20] sm:$0xff]
    %v4406 = vld [vmem:[%s4400 + $0x28] sm:$0xff]
    %v4407 = vld [vmem:[%s4400 + $0x30] sm:$0xff]
    %v4408 = vld [vmem:[%s4400 + $0x38] sm:$0xff]
    %v4409 = vld [vmem:[%s4400 + $0x40] sm:$0xff]
    %v4410 = vld [vmem:[%s4400 + $0x48] sm:$0xff]
    %v4411 = vld [vmem:[%s4400 + $0x50] sm:$0xff]
    %v4412 = vld [vmem:[%s4400 + $0x58] sm:$0xff]
    %v4413 = vld [vmem:[%s4400 + $0x60] sm:$0xff]
    %v4414 = vld [vmem:[%s4400 + $0x68] sm:$0xff]
    %v4415 = vld [vmem:[%s4400 + $0x70] sm:$0xff]
    %v4416 = vld [vmem:[%s4400 + $0x78] sm:$0xff]
    %v4417 = vld [vmem:[%s4400 + $0x80] sm:$0xff]
    %v4418 = vld [vmem:[%s4400 + $0x88] sm:$0xff]
    %v4419 = vld [vmem:[%s4400 + $0x90] sm:$0xff]
    %v4420 = vld [vmem:[%s4400 + $0x98] sm:$0xff]
    %v4421 = vld [vmem:[%s4400 + $0xa0] sm:$0xff]
    %v4422 = vld [vmem:[%s4400 + $0xa8] sm:$0xff]
    %v4423 = vld [vmem:[%s4400 + $0xb0] sm:$0xff]
    %v4424 = vld [vmem:[%s4400 + $0xb8] sm:$0xff]
    %v4425 = vld [vmem:[%s4400 + $0xc0] sm:$0xff]
    %v4426 = vld [vmem:[%s4400 + $0xc8] sm:$0xff]
    %v4427 = vld [vmem:[%s4400 + $0xd0] sm:$0xff]
    %v4428 = vld [vmem:[%s4400 + $0xd8] sm:$0xff]
    %v4429 = vld [vmem:[%s4400 + $0xe0] sm:$0xff]
    %v4430 = vld [vmem:[%s4400 + $0xe8] sm:$0xff]
    %v4431 = vld [vmem:[%s4400 + $0xf0] sm:$0xff]
    %v4432 = vld [vmem:[%s4400 + $0xf8] sm:$0xff]
    %v4433 = vld [vmem:[%s4400 + $0x100] sm:$0xff]
    %v4434 = vld [vmem:[%s4400 + $0x108] sm:$0xff]
    %v4435 = vld [vmem:[%s4400 + $0x110] sm:$0xff]
    %v4436 = vld [vmem:[%s4400 + $0x118] sm:$0xff]
    %v4437 = vld [vmem:[%s4400 + $0x120] sm:$0xff]
    %v4438 = vld [vmem:[%s4400 + $0x128] sm:$0xff]
    %v4439 = vld [vmem:[%s4400 + $0x130] sm:$0xff]
    %v4440 = vld [vmem:[%s4400 + $0x138] sm:$0xff]
    %v4441 = vld [vmem:[%s4400 + $0x140] sm:$0xff]
    %v4442 = vld [vmem:[%s4400 + $0x148] sm:$0xff]
    %v4443 = vld [vmem:[%s4400 + $0x150] sm:$0xff]
    %v4444 = vld [vmem:[%s4400 + $0x158] sm:$0xff]
    %v4445 = vld [vmem:[%s4400 + $0x160] sm:$0xff]
    %v4446 = vld [vmem:[%s4400 + $0x168] sm:$0xff]
    %v4447 = vld [vmem:[%s4400 + $0x170] sm:$0xff]
    %v4448 = vld [vmem:[%s4400 + $0x178] sm:$0xff]
    %v4449 = vld [vmem:[%s4400 + $0x180] sm:$0xff]
    %v4450 = vld [vmem:[%s4400 + $0x188] sm:$0xff]
    %v4451 = vld [vmem:[%s4400 + $0x190] sm:$0xff]
    %v4452 = vld [vmem:[%s4400 + $0x198] sm:$0xff]
    %v4453 = vld [vmem:[%s4400 + $0x1a0] sm:$0xff]
    %v4454 = vld [vmem:[%s4400 + $0x1a8] sm:$0xff]
    %v4455 = vld [vmem:[%s4400 + $0x1b0] sm:$0xff]
    %v4456 = vld [vmem:[%s4400 + $0x1b8] sm:$0xff]
    %v4457 = vld [vmem:[%s4400 + $0x1c0] sm:$0xff]
    %v4458 = vld [vmem:[%s4400 + $0x1c8] sm:$0xff]
    %v4459 = vld [vmem:[%s4400 + $0x1d0] sm:$0xff]
    %v4460 = vld [vmem:[%s4400 + $0x1d8] sm:$0xff]
    %v4461 = vld [vmem:[%s4400 + $0x1e0] sm:$0xff]
    %v4462 = vld [vmem:[%s4400 + $0x1e8] sm:$0xff]
    %v4463 = vld [vmem:[%s4400 + $0x1f0] sm:$0xff]
    %v4464 = vld [vmem:[%s4400 + $0x1f8] sm:$0xff]
    %4465 = vmatprep.subr.mxu0 %v4402
    %4466 = vmatpush1.msra.mxu0 %v4401
    %4467 = vmatprep.subr.mxu0 %v4404
    %4468 = vmatpush1.msra.mxu0 %v4403
    %4469 = vmatprep.subr.mxu0 %v4406
    %4470 = vmatpush1.msra.mxu0 %v4405
    %4471 = vmatprep.subr.mxu0 %v4408
    %4472 = vmatpush1.msra.mxu0 %v4407
    %4473 = vmatprep.subr.mxu0 %v4410
    %4474 = vmatpush1.msra.mxu0 %v4409
    %4475 = vmatprep.subr.mxu0 %v4412
    %4476 = vmatpush1.msra.mxu0 %v4411
    %4477 = vmatprep.subr.mxu0 %v4414
    %4478 = vmatpush1.msra.mxu0 %v4413
    %4479 = vmatprep.subr.mxu0 %v4416
    %4480 = vmatpush1.msra.mxu0 %v4415
    %4481 = vmatprep.subr.mxu0 %v4418
    %4482 = vmatpush1.msra.mxu0 %v4417
    %4483 = vmatprep.subr.mxu0 %v4420
    %4484 = vmatpush1.msra.mxu0 %v4419
    %4485 = vmatprep.subr.mxu0 %v4422
    %4486 = vmatpush1.msra.mxu0 %v4421
    %4487 = vmatprep.subr.mxu0 %v4424
    %4488 = vmatpush1.msra.mxu0 %v4423
    %4489 = vmatprep.subr.mxu0 %v4426
    %4490 = vmatpush1.msra.mxu0 %v4425
    %4491 = vmatprep.subr.mxu0 %v4428
    %4492 = vmatpush1.msra.mxu0 %v4427
    %4493 = vmatprep.subr.mxu0 %v4430
    %4494 = vmatpush1.msra.mxu0 %v4429
    %4495 = vmatprep.subr.mxu0 %v4432
    %4496 = vmatpush1.msra.mxu0 %v4431
    %4497 = vmatprep.subr.mxu0 %v4434
    %4498 = vmatpush1.msra.mxu0 %v4433
    %4499 = vmatprep.subr.mxu0 %v4436
    %4500 = vmatpush1.msra.mxu0 %v4435
    %4501 = vmatprep.subr.mxu0 %v4438
    %4502 = vmatpush1.msra.mxu0 %v4437
    %4503 = vmatprep.subr.mxu0 %v4440
    %4504 = vmatpush1.msra.mxu0 %v4439
    %4505 = vmatprep.subr.mxu0 %v4442
    %4506 = vmatpush1.msra.mxu0 %v4441
    %4507 = vmatprep.subr.mxu0 %v4444
    %4508 = vmatpush1.msra.mxu0 %v4443
    %4509 = vmatprep.subr.mxu0 %v4446
    %4510 = vmatpush1.msra.mxu0 %v4445
    %4511 = vmatprep.subr.mxu0 %v4448
    %4512 = vmatpush1.msra.mxu0 %v4447
    %4513 = vmatprep.subr.mxu0 %v4450
    %4514 = vmatpush1.msra.mxu0 %v4449
    %4515 = vmatprep.subr.mxu0 %v4452
    %4516 = vmatpush1.msra.mxu0 %v4451
    %4517 = vmatprep.subr.mxu0 %v4454
    %4518 = vmatpush1.msra.mxu0 %v4453
    %4519 = vmatprep.subr.mxu0 %v4456
    %4520 = vmatpush1.msra.mxu0 %v4455
    %4521 = vmatprep.subr.mxu0 %v4458
    %4522 = vmatpush1.msra.mxu0 %v4457
    %4523 = vmatprep.subr.mxu0 %v4460
    %4524 = vmatpush1.msra.mxu0 %v4459
    %4525 = vmatprep.subr.mxu0 %v4462
    %4526 = vmatpush1.msra.mxu0 %v4461
    %4527 = vmatprep.subr.mxu0 %v4464
    %4528 = vmatpush1.msra.mxu0 %v4463
    %4529 = vmatprep.mubr.f32.mxu0 %v3582
    %4530 = vmatmul.mubr.f32.gmra.mrb[0].mxu0 %v3581
    %v4531 = vpop.f32.mrb[0].mxu0
    %v4532 = vadd.f32 0.0, %v4531
    %v4533 = vpop.f32.mrb[0].mxu0
    %v4534 = vadd.f32 0.0, %v4533
    %4535 = vmatprep.mubr.f32.mxu0 %v3584
    %4536 = vmatmul.mubr.f32.gmra.mrb[0].mxu0 %v3583
    %v4537 = vpop.f32.mrb[0].mxu0
    %v4538 = vadd.f32 0.0, %v4537
    %v4539 = vpop.f32.mrb[0].mxu0
    %v4540 = vadd.f32 0.0, %v4539
    %4541 = vmatprep.mubr.f32.mxu0 %v3586
    %4542 = vmatmul.mubr.f32.gmra.mrb[0].mxu0 %v3585
    %v4543 = vpop.f32.mrb[0].mxu0
    %v4544 = vadd.f32 0.0, %v4543
    %v4545 = vpop.f32.mrb[0].mxu0
    %v4546 = vadd.f32 0.0, %v4545
    %4547 = vmatprep.mubr.f32.mxu0 %v3588
    %4548 = vmatmul.mubr.f32.gmra.mrb[0].mxu0 %v3587
    %v4549 = vpop.f32.mrb[0].mxu0
    %v4550 = vadd.f32 0.0, %v4549
    %v4551 = vpop.f32.mrb[0].mxu0
    %v4552 = vadd.f32 0.0, %v4551
    %4553 = vmatprep.mubr.f32.mxu0 %v3590
    %4554 = vmatmul.mubr.f32.gmra.mrb[0].mxu0 %v3589
    %v4555 = vpop.f32.mrb[0].mxu0
    %v4556 = vadd.f32 0.0, %v4555
    %v4557 = vpop.f32.mrb[0].mxu0
    %v4558 = vadd.f32 0.0, %v4557
    %4559 = vmatprep.mubr.f32.mxu0 %v3592
    %4560 = vmatmul.mubr.f32.gmra.mrb[0].mxu0 %v3591
    %v4561 = vpop.f32.mrb[0].mxu0
    %v4562 = vadd.f32 0.0, %v4561
    %v4563 = vpop.f32.mrb[0].mxu0
    %v4564 = vadd.f32 0.0, %v4563
    %4565 = vmatprep.mubr.f32.mxu0 %v3594
    %4566 = vmatmul.mubr.f32.gmra.mrb[0].mxu0 %v3593
    %v4567 = vpop.f32.mrb[0].mxu0
    %v4568 = vadd.f32 0.0, %v4567
    %v4569 = vpop.f32.mrb[0].mxu0
    %v4570 = vadd.f32 0.0, %v4569
    %4571 = vmatprep.mubr.f32.mxu0 %v3596
    %4572 = vmatmul.mubr.f32.gmra.mrb[0].mxu0 %v3595
    %v4573 = vpop.f32.mrb[0].mxu0
    %v4574 = vadd.f32 0.0, %v4573
    %v4575 = vpop.f32.mrb[0].mxu0
    %v4576 = vadd.f32 0.0, %v4575
    %4577 = vmatprep.mubr.f32.mxu0 %v3598
    %4578 = vmatmul.mubr.f32.gmra.mrb[0].mxu0 %v3597
    %v4579 = vpop.f32.mrb[0].mxu0
    %v4580 = vadd.f32 0.0, %v4579
    %v4581 = vpop.f32.mrb[0].mxu0
    %v4582 = vadd.f32 0.0, %v4581
    %4583 = vmatprep.mubr.f32.mxu0 %v3600
    %4584 = vmatmul.mubr.f32.gmra.mrb[0].mxu0 %v3599
    %v4585 = vpop.f32.mrb[0].mxu0
    %v4586 = vadd.f32 0.0, %v4585
    %v4587 = vpop.f32.mrb[0].mxu0
    %v4588 = vadd.f32 0.0, %v4587
    %4589 = vdwg.mxu0
    %v4590 = vadd.f32 %v4380, %v4532
    %v4591 = vadd.f32 %v4381, %v4534
    %v4592 = vadd.f32 %v4382, %v4538
    %v4593 = vadd.f32 %v4383, %v4540
    %v4594 = vadd.f32 %v4384, %v4544
    %v4595 = vadd.f32 %v4385, %v4546
    %v4596 = vadd.f32 %v4386, %v4550
    %v4597 = vadd.f32 %v4387, %v4552
    %v4598 = vadd.f32 %v4388, %v4556
    %v4599 = vadd.f32 %v4389, %v4558
    %v4600 = vadd.f32 %v4390, %v4562
    %v4601 = vadd.f32 %v4391, %v4564
    %v4602 = vadd.f32 %v4392, %v4568
    %v4603 = vadd.f32 %v4393, %v4570
    %v4604 = vadd.f32 %v4394, %v4574
    %v4605 = vadd.f32 %v4395, %v4576
    %v4606 = vadd.f32 %v4396, %v4580
    %v4607 = vadd.f32 %v4397, %v4582
    %v4608 = vadd.f32 %v4398, %v4586
    %v4609 = vadd.f32 %v4399, %v4588
    %v4610 = vld [vmem:[#allocation8] sm:$0x3]
    %v4612 = vlaneseq
    %v4613 = vshrl.u32 %v4612, 7
    %v4614 = vsub.s32 0, %v4613
    %v4615 = vrot.slane %v4610, %v4614
    %v4616 = vlaneseq
    %v4617 = vshrl.u32 %v4616, 7
    %v4618 = vsub.s32 1, %v4617
    %v4619 = vrot.slane %v4610, %v4618
    %v4622 = vadd.f32 %v4590, %v4615
    %v4623 = vadd.f32 %v4591, %v4619
    %v4624 = vadd.f32 %v4592, %v4615
    %v4625 = vadd.f32 %v4593, %v4619
    %v4626 = vadd.f32 %v4594, %v4615
    %v4627 = vadd.f32 %v4595, %v4619
    %v4628 = vadd.f32 %v4596, %v4615
    %v4629 = vadd.f32 %v4597, %v4619
    %v4630 = vadd.f32 %v4598, %v4615
    %v4631 = vadd.f32 %v4599, %v4619
    %v4632 = vadd.f32 %v4600, %v4615
    %v4633 = vadd.f32 %v4601, %v4619
    %v4634 = vadd.f32 %v4602, %v4615
    %v4635 = vadd.f32 %v4603, %v4619
    %v4636 = vadd.f32 %v4604, %v4615
    %v4637 = vadd.f32 %v4605, %v4619
    %v4638 = vadd.f32 %v4606, %v4615
    %v4639 = vadd.f32 %v4607, %v4619
    %v4640 = vadd.f32 %v4608, %v4615
    %v4641 = vadd.f32 %v4609, %v4619
    %v4642 = vmax.f32 %v4622, 0.0
    %v4643 = vmax.f32 %v4623, 0.0
    %v4644 = vmax.f32 %v4624, 0.0
    %v4645 = vmax.f32 %v4625, 0.0
    %v4646 = vmax.f32 %v4626, 0.0
    %v4647 = vmax.f32 %v4627, 0.0
    %v4648 = vmax.f32 %v4628, 0.0
    %v4649 = vmax.f32 %v4629, 0.0
    %v4650 = vmax.f32 %v4630, 0.0
    %v4651 = vmax.f32 %v4631, 0.0
    %v4652 = vmax.f32 %v4632, 0.0
    %v4653 = vmax.f32 %v4633, 0.0
    %v4654 = vmax.f32 %v4634, 0.0
    %v4655 = vmax.f32 %v4635, 0.0
    %v4656 = vmax.f32 %v4636, 0.0
    %v4657 = vmax.f32 %v4637, 0.0
    %v4658 = vmax.f32 %v4638, 0.0
    %v4659 = vmax.f32 %v4639, 0.0
    %v4660 = vmax.f32 %v4640, 0.0
    %v4661 = vmax.f32 %v4641, 0.0
    %v4662 = vmax.f32 %v4642, %v4644
    %v4663 = vmax.f32 %v4643, %v4645
    %v4664 = vmax.f32 %v4646, %v4648
    %v4665 = vmax.f32 %v4647, %v4649
    %v4666 = vmax.f32 %v4650, %v4652
    %v4667 = vmax.f32 %v4651, %v4653
    %v4668 = vmax.f32 %v4654, %v4656
    %v4669 = vmax.f32 %v4655, %v4657
    %v4670 = vmax.f32 %v4658, %v4660
    %v4671 = vmax.f32 %v4659, %v4661
    %4672 = vrot.lane.b32.xlu0 %v4662, 1
    %v4673 = vpop.permute.xlu0 %4672
    %4674 = vrot.lane.b32.xlu0 %v4664, 1
    %v4675 = vpop.permute.xlu0 %4674
    %4676 = vrot.lane.b32.xlu0 %v4666, 1
    %v4677 = vpop.permute.xlu0 %4676
    %4678 = vrot.lane.b32.xlu0 %v4668, 1
    %v4679 = vpop.permute.xlu0 %4678
    %4680 = vrot.lane.b32.xlu0 %v4670, 1
    %v4681 = vpop.permute.xlu0 %4680
    %4682 = vrot.lane.b32.xlu0 %v4663, 1
    %v4683 = vpop.permute.xlu0 %4682
    %4684 = vrot.lane.b32.xlu0 %v4665, 1
    %v4685 = vpop.permute.xlu0 %4684
    %4686 = vrot.lane.b32.xlu0 %v4667, 1
    %v4687 = vpop.permute.xlu0 %4686
    %4688 = vrot.lane.b32.xlu0 %v4669, 1
    %v4689 = vpop.permute.xlu0 %4688
    %4690 = vrot.lane.b32.xlu0 %v4671, 1
    %v4691 = vpop.permute.xlu0 %4690
    %v4692 = vsel %vm3544, %v4673, %v4683
    %v4693 = vsel %vm3544, %v4675, %v4685
    %v4694 = vsel %vm3544, %v4677, %v4687
    %v4695 = vsel %vm3544, %v4679, %v4689
    %v4696 = vsel %vm3544, %v4681, %v4691
    %v4697 = vsel %vm3544, %v4683, %v4673
    %v4698 = vsel %vm3544, %v4685, %v4675
    %v4699 = vsel %vm3544, %v4687, %v4677
    %v4700 = vsel %vm3544, %v4689, %v4679
    %v4701 = vsel %vm3544, %v4691, %v4681
    %v4702 = vmax.f32 %v4662, %v4697
    %v4703 = vmax.f32 %v4663, %v4692
    %v4704 = vmax.f32 %v4664, %v4698
    %v4705 = vmax.f32 %v4665, %v4693
    %v4706 = vmax.f32 %v4666, %v4699
    %v4707 = vmax.f32 %v4667, %v4694
    %v4708 = vmax.f32 %v4668, %v4700
    %v4709 = vmax.f32 %v4669, %v4695
    %v4710 = vmax.f32 %v4670, %v4701
    %v4711 = vmax.f32 %v4671, %v4696
    %v4712 = vld [vmem:[#allocation10] sm:$0xff]
    %v4713 = vld [vmem:[#allocation10 + $0x8] sm:$0xff]
    %v4714 = vld [vmem:[#allocation10 + $0x10] sm:$0xff]
    %v4715 = vld [vmem:[#allocation10 + $0x18] sm:$0xff]
    %v4716 = vld [vmem:[#allocation10 + $0x20] sm:$0xff]
    %v4717 = vld [vmem:[#allocation10 + $0x28] sm:$0xff]
    %v4718 = vld [vmem:[#allocation10 + $0x30] sm:$0xff]
    %v4719 = vld [vmem:[#allocation10 + $0x38] sm:$0xff]
    %v4720 = vld [vmem:[#allocation10 + $0x40] sm:$0xff]
    %v4721 = vld [vmem:[#allocation10 + $0x48] sm:$0xff]
    %v4722 = vld [vmem:[#allocation10 + $0x50] sm:$0xff]
    %v4723 = vld [vmem:[#allocation10 + $0x58] sm:$0xff]
    %v4724 = vld [vmem:[#allocation10 + $0x60] sm:$0xff]
    %v4725 = vld [vmem:[#allocation10 + $0x68] sm:$0xff]
    %v4726 = vld [vmem:[#allocation10 + $0x70] sm:$0xff]
    %v4727 = vld [vmem:[#allocation10 + $0x78] sm:$0xff]
    %v4728 = vld [vmem:[#allocation10 + $0x80] sm:$0xff]
    %v4729 = vld [vmem:[#allocation10 + $0x88] sm:$0xff]
    %v4730 = vld [vmem:[#allocation10 + $0x90] sm:$0xff]
    %v4731 = vld [vmem:[#allocation10 + $0x98] sm:$0xff]
    %v4732 = vld [vmem:[#allocation10 + $0xa0] sm:$0xff]
    %v4733 = vld [vmem:[#allocation10 + $0xa8] sm:$0xff]
    %v4734 = vld [vmem:[#allocation10 + $0xb0] sm:$0xff]
    %v4735 = vld [vmem:[#allocation10 + $0xb8] sm:$0xff]
    %v4736 = vld [vmem:[#allocation10 + $0xc0] sm:$0xff]
    %v4737 = vld [vmem:[#allocation10 + $0xc8] sm:$0xff]
    %v4738 = vld [vmem:[#allocation10 + $0xd0] sm:$0xff]
    %v4739 = vld [vmem:[#allocation10 + $0xd8] sm:$0xff]
    %v4740 = vld [vmem:[#allocation10 + $0xe0] sm:$0xff]
    %v4741 = vld [vmem:[#allocation10 + $0xe8] sm:$0xff]
    %v4742 = vld [vmem:[#allocation10 + $0xf0] sm:$0xff]
    %v4743 = vld [vmem:[#allocation10 + $0xf8] sm:$0xff]
    %s4744 = scalar_lea.vmem [#allocation10], 256
    %v4745 = vld [vmem:[%s4744] sm:$0xff]
    %v4746 = vld [vmem:[%s4744 + $0x8] sm:$0xff]
    %v4747 = vld [vmem:[%s4744 + $0x10] sm:$0xff]
    %v4748 = vld [vmem:[%s4744 + $0x18] sm:$0xff]
    %v4749 = vld [vmem:[%s4744 + $0x20] sm:$0xff]
    %v4750 = vld [vmem:[%s4744 + $0x28] sm:$0xff]
    %v4751 = vld [vmem:[%s4744 + $0x30] sm:$0xff]
    %v4752 = vld [vmem:[%s4744 + $0x38] sm:$0xff]
    %v4753 = vld [vmem:[%s4744 + $0x40] sm:$0xff]
    %v4754 = vld [vmem:[%s4744 + $0x48] sm:$0xff]
    %v4755 = vld [vmem:[%s4744 + $0x50] sm:$0xff]
    %v4756 = vld [vmem:[%s4744 + $0x58] sm:$0xff]
    %v4757 = vld [vmem:[%s4744 + $0x60] sm:$0xff]
    %v4758 = vld [vmem:[%s4744 + $0x68] sm:$0xff]
    %v4759 = vld [vmem:[%s4744 + $0x70] sm:$0xff]
    %v4760 = vld [vmem:[%s4744 + $0x78] sm:$0xff]
    %v4761 = vld [vmem:[%s4744 + $0x80] sm:$0xff]
    %v4762 = vld [vmem:[%s4744 + $0x88] sm:$0xff]
    %v4763 = vld [vmem:[%s4744 + $0x90] sm:$0xff]
    %v4764 = vld [vmem:[%s4744 + $0x98] sm:$0xff]
    %v4765 = vld [vmem:[%s4744 + $0xa0] sm:$0xff]
    %v4766 = vld [vmem:[%s4744 + $0xa8] sm:$0xff]
    %v4767 = vld [vmem:[%s4744 + $0xb0] sm:$0xff]
    %v4768 = vld [vmem:[%s4744 + $0xb8] sm:$0xff]
    %v4769 = vld [vmem:[%s4744 + $0xc0] sm:$0xff]
    %v4770 = vld [vmem:[%s4744 + $0xc8] sm:$0xff]
    %v4771 = vld [vmem:[%s4744 + $0xd0] sm:$0xff]
    %v4772 = vld [vmem:[%s4744 + $0xd8] sm:$0xff]
    %v4773 = vld [vmem:[%s4744 + $0xe0] sm:$0xff]
    %v4774 = vld [vmem:[%s4744 + $0xe8] sm:$0xff]
    %v4775 = vld [vmem:[%s4744 + $0xf0] sm:$0xff]
    %v4776 = vld [vmem:[%s4744 + $0xf8] sm:$0xff]
    %4777 = vmatprep.subr.mxu0 0.0
    %4778 = vmatpush1.msra.mxu0 %v4745
    %4779 = vmatprep.subr.mxu0 0.0
    %4780 = vmatpush1.msra.mxu0 %v4746
    %4781 = vmatprep.subr.mxu0 0.0
    %4782 = vmatpush1.msra.mxu0 %v4747
    %4783 = vmatprep.subr.mxu0 0.0
    %4784 = vmatpush1.msra.mxu0 %v4748
    %4785 = vmatprep.subr.mxu0 0.0
    %4786 = vmatpush1.msra.mxu0 %v4749
    %4787 = vmatprep.subr.mxu0 0.0
    %4788 = vmatpush1.msra.mxu0 %v4750
    %4789 = vmatprep.subr.mxu0 0.0
    %4790 = vmatpush1.msra.mxu0 %v4751
    %4791 = vmatprep.subr.mxu0 0.0
    %4792 = vmatpush1.msra.mxu0 %v4752
    %4793 = vmatprep.subr.mxu0 0.0
    %4794 = vmatpush1.msra.mxu0 %v4753
    %4795 = vmatprep.subr.mxu0 0.0
    %4796 = vmatpush1.msra.mxu0 %v4754
    %4797 = vmatprep.subr.mxu0 0.0
    %4798 = vmatpush1.msra.mxu0 %v4755
    %4799 = vmatprep.subr.mxu0 0.0
    %4800 = vmatpush1.msra.mxu0 %v4756
    %4801 = vmatprep.subr.mxu0 0.0
    %4802 = vmatpush1.msra.mxu0 %v4757
    %4803 = vmatprep.subr.mxu0 0.0
    %4804 = vmatpush1.msra.mxu0 %v4758
    %4805 = vmatprep.subr.mxu0 0.0
    %4806 = vmatpush1.msra.mxu0 %v4759
    %4807 = vmatprep.subr.mxu0 0.0
    %4808 = vmatpush1.msra.mxu0 %v4760
    %4809 = vmatprep.subr.mxu0 0.0
    %4810 = vmatpush1.msra.mxu0 %v4761
    %4811 = vmatprep.subr.mxu0 0.0
    %4812 = vmatpush1.msra.mxu0 %v4762
    %4813 = vmatprep.subr.mxu0 0.0
    %4814 = vmatpush1.msra.mxu0 %v4763
    %4815 = vmatprep.subr.mxu0 0.0
    %4816 = vmatpush1.msra.mxu0 %v4764
    %4817 = vmatprep.subr.mxu0 0.0
    %4818 = vmatpush1.msra.mxu0 %v4765
    %4819 = vmatprep.subr.mxu0 0.0
    %4820 = vmatpush1.msra.mxu0 %v4766
    %4821 = vmatprep.subr.mxu0 0.0
    %4822 = vmatpush1.msra.mxu0 %v4767
    %4823 = vmatprep.subr.mxu0 0.0
    %4824 = vmatpush1.msra.mxu0 %v4768
    %4825 = vmatprep.subr.mxu0 0.0
    %4826 = vmatpush1.msra.mxu0 %v4769
    %4827 = vmatprep.subr.mxu0 0.0
    %4828 = vmatpush1.msra.mxu0 %v4770
    %4829 = vmatprep.subr.mxu0 0.0
    %4830 = vmatpush1.msra.mxu0 %v4771
    %4831 = vmatprep.subr.mxu0 0.0
    %4832 = vmatpush1.msra.mxu0 %v4772
    %4833 = vmatprep.subr.mxu0 0.0
    %4834 = vmatpush1.msra.mxu0 %v4773
    %4835 = vmatprep.subr.mxu0 0.0
    %4836 = vmatpush1.msra.mxu0 %v4774
    %4837 = vmatprep.subr.mxu0 0.0
    %4838 = vmatpush1.msra.mxu0 %v4775
    %4839 = vmatprep.subr.mxu0 0.0
    %4840 = vmatpush1.msra.mxu0 %v4776
    %4841 = vmatprep.mubr.f32.mxu0 %v4705
    %4842 = vmatmul.mubr.f32.gmra.mrb[0].mxu0 %v4704
    %v4843 = vpop.f32.mrb[0].mxu0
    %v4844 = vadd.f32 0.0, %v4843
    %v4845 = vpop.f32.mrb[0].mxu0
    %4846 = vdwg.mxu0
    %4847 = vmatprep.subr.mxu0 0.0
    %4848 = vmatpush1.msra.mxu0 %v4712
    %4849 = vmatprep.subr.mxu0 0.0
    %4850 = vmatpush1.msra.mxu0 %v4713
    %4851 = vmatprep.subr.mxu0 0.0
    %4852 = vmatpush1.msra.mxu0 %v4714
    %4853 = vmatprep.subr.mxu0 0.0
    %4854 = vmatpush1.msra.mxu0 %v4715
    %4855 = vmatprep.subr.mxu0 0.0
    %4856 = vmatpush1.msra.mxu0 %v4716
    %4857 = vmatprep.subr.mxu0 0.0
    %4858 = vmatpush1.msra.mxu0 %v4717
    %4859 = vmatprep.subr.mxu0 0.0
    %4860 = vmatpush1.msra.mxu0 %v4718
    %4861 = vmatprep.subr.mxu0 0.0
    %4862 = vmatpush1.msra.mxu0 %v4719
    %4863 = vmatprep.subr.mxu0 0.0
    %4864 = vmatpush1.msra.mxu0 %v4720
    %4865 = vmatprep.subr.mxu0 0.0
    %4866 = vmatpush1.msra.mxu0 %v4721
    %4867 = vmatprep.subr.mxu0 0.0
    %4868 = vmatpush1.msra.mxu0 %v4722
    %4869 = vmatprep.subr.mxu0 0.0
    %4870 = vmatpush1.msra.mxu0 %v4723
    %4871 = vmatprep.subr.mxu0 0.0
    %4872 = vmatpush1.msra.mxu0 %v4724
    %4873 = vmatprep.subr.mxu0 0.0
    %4874 = vmatpush1.msra.mxu0 %v4725
    %4875 = vmatprep.subr.mxu0 0.0
    %4876 = vmatpush1.msra.mxu0 %v4726
    %4877 = vmatprep.subr.mxu0 0.0
    %4878 = vmatpush1.msra.mxu0 %v4727
    %4879 = vmatprep.subr.mxu0 0.0
    %4880 = vmatpush1.msra.mxu0 %v4728
    %4881 = vmatprep.subr.mxu0 0.0
    %4882 = vmatpush1.msra.mxu0 %v4729
    %4883 = vmatprep.subr.mxu0 0.0
    %4884 = vmatpush1.msra.mxu0 %v4730
    %4885 = vmatprep.subr.mxu0 0.0
    %4886 = vmatpush1.msra.mxu0 %v4731
    %4887 = vmatprep.subr.mxu0 0.0
    %4888 = vmatpush1.msra.mxu0 %v4732
    %4889 = vmatprep.subr.mxu0 0.0
    %4890 = vmatpush1.msra.mxu0 %v4733
    %4891 = vmatprep.subr.mxu0 0.0
    %4892 = vmatpush1.msra.mxu0 %v4734
    %4893 = vmatprep.subr.mxu0 0.0
    %4894 = vmatpush1.msra.mxu0 %v4735
    %4895 = vmatprep.subr.mxu0 0.0
    %4896 = vmatpush1.msra.mxu0 %v4736
    %4897 = vmatprep.subr.mxu0 0.0
    %4898 = vmatpush1.msra.mxu0 %v4737
    %4899 = vmatprep.subr.mxu0 0.0
    %4900 = vmatpush1.msra.mxu0 %v4738
    %4901 = vmatprep.subr.mxu0 0.0
    %4902 = vmatpush1.msra.mxu0 %v4739
    %4903 = vmatprep.subr.mxu0 0.0
    %4904 = vmatpush1.msra.mxu0 %v4740
    %4905 = vmatprep.subr.mxu0 0.0
    %4906 = vmatpush1.msra.mxu0 %v4741
    %4907 = vmatprep.subr.mxu0 0.0
    %4908 = vmatpush1.msra.mxu0 %v4742
    %4909 = vmatprep.subr.mxu0 0.0
    %4910 = vmatpush1.msra.mxu0 %v4743
    %4911 = vmatprep.mubr.f32.mxu0 %v4703
    %4912 = vmatmul.mubr.f32.gmra.mrb[0].mxu0 %v4702
    %v4913 = vpop.f32.mrb[0].mxu0
    %v4914 = vadd.f32 %v4844, %v4913
    %v4915 = vpop.f32.mrb[0].mxu0
    %4916 = vdwg.mxu0
    %s4917 = scalar_lea.vmem [#allocation10], 512
    %v4918 = vld [vmem:[%s4917] sm:$0xff]
    %v4919 = vld [vmem:[%s4917 + $0x8] sm:$0xff]
    %v4920 = vld [vmem:[%s4917 + $0x10] sm:$0xff]
    %v4921 = vld [vmem:[%s4917 + $0x18] sm:$0xff]
    %v4922 = vld [vmem:[%s4917 + $0x20] sm:$0xff]
    %v4923 = vld [vmem:[%s4917 + $0x28] sm:$0xff]
    %v4924 = vld [vmem:[%s4917 + $0x30] sm:$0xff]
    %v4925 = vld [vmem:[%s4917 + $0x38] sm:$0xff]
    %v4926 = vld [vmem:[%s4917 + $0x40] sm:$0xff]
    %v4927 = vld [vmem:[%s4917 + $0x48] sm:$0xff]
    %v4928 = vld [vmem:[%s4917 + $0x50] sm:$0xff]
    %v4929 = vld [vmem:[%s4917 + $0x58] sm:$0xff]
    %v4930 = vld [vmem:[%s4917 + $0x60] sm:$0xff]
    %v4931 = vld [vmem:[%s4917 + $0x68] sm:$0xff]
    %v4932 = vld [vmem:[%s4917 + $0x70] sm:$0xff]
    %v4933 = vld [vmem:[%s4917 + $0x78] sm:$0xff]
    %v4934 = vld [vmem:[%s4917 + $0x80] sm:$0xff]
    %v4935 = vld [vmem:[%s4917 + $0x88] sm:$0xff]
    %v4936 = vld [vmem:[%s4917 + $0x90] sm:$0xff]
    %v4937 = vld [vmem:[%s4917 + $0x98] sm:$0xff]
    %v4938 = vld [vmem:[%s4917 + $0xa0] sm:$0xff]
    %v4939 = vld [vmem:[%s4917 + $0xa8] sm:$0xff]
    %v4940 = vld [vmem:[%s4917 + $0xb0] sm:$0xff]
    %v4941 = vld [vmem:[%s4917 + $0xb8] sm:$0xff]
    %v4942 = vld [vmem:[%s4917 + $0xc0] sm:$0xff]
    %v4943 = vld [vmem:[%s4917 + $0xc8] sm:$0xff]
    %v4944 = vld [vmem:[%s4917 + $0xd0] sm:$0xff]
    %v4945 = vld [vmem:[%s4917 + $0xd8] sm:$0xff]
    %v4946 = vld [vmem:[%s4917 + $0xe0] sm:$0xff]
    %v4947 = vld [vmem:[%s4917 + $0xe8] sm:$0xff]
    %v4948 = vld [vmem:[%s4917 + $0xf0] sm:$0xff]
    %v4949 = vld [vmem:[%s4917 + $0xf8] sm:$0xff]
    %4950 = vmatprep.subr.mxu0 0.0
    %4951 = vmatpush1.msra.mxu0 %v4918
    %4952 = vmatprep.subr.mxu0 0.0
    %4953 = vmatpush1.msra.mxu0 %v4919
    %4954 = vmatprep.subr.mxu0 0.0
    %4955 = vmatpush1.msra.mxu0 %v4920
    %4956 = vmatprep.subr.mxu0 0.0
    %4957 = vmatpush1.msra.mxu0 %v4921
    %4958 = vmatprep.subr.mxu0 0.0
    %4959 = vmatpush1.msra.mxu0 %v4922
    %4960 = vmatprep.subr.mxu0 0.0
    %4961 = vmatpush1.msra.mxu0 %v4923
    %4962 = vmatprep.subr.mxu0 0.0
    %4963 = vmatpush1.msra.mxu0 %v4924
    %4964 = vmatprep.subr.mxu0 0.0
    %4965 = vmatpush1.msra.mxu0 %v4925
    %4966 = vmatprep.subr.mxu0 0.0
    %4967 = vmatpush1.msra.mxu0 %v4926
    %4968 = vmatprep.subr.mxu0 0.0
    %4969 = vmatpush1.msra.mxu0 %v4927
    %4970 = vmatprep.subr.mxu0 0.0
    %4971 = vmatpush1.msra.mxu0 %v4928
    %4972 = vmatprep.subr.mxu0 0.0
    %4973 = vmatpush1.msra.mxu0 %v4929
    %4974 = vmatprep.subr.mxu0 0.0
    %4975 = vmatpush1.msra.mxu0 %v4930
    %4976 = vmatprep.subr.mxu0 0.0
    %4977 = vmatpush1.msra.mxu0 %v4931
    %4978 = vmatprep.subr.mxu0 0.0
    %4979 = vmatpush1.msra.mxu0 %v4932
    %4980 = vmatprep.subr.mxu0 0.0
    %4981 = vmatpush1.msra.mxu0 %v4933
    %4982 = vmatprep.subr.mxu0 0.0
    %4983 = vmatpush1.msra.mxu0 %v4934
    %4984 = vmatprep.subr.mxu0 0.0
    %4985 = vmatpush1.msra.mxu0 %v4935
    %4986 = vmatprep.subr.mxu0 0.0
    %4987 = vmatpush1.msra.mxu0 %v4936
    %4988 = vmatprep.subr.mxu0 0.0
    %4989 = vmatpush1.msra.mxu0 %v4937
    %4990 = vmatprep.subr.mxu0 0.0
    %4991 = vmatpush1.msra.mxu0 %v4938
    %4992 = vmatprep.subr.mxu0 0.0
    %4993 = vmatpush1.msra.mxu0 %v4939
    %4994 = vmatprep.subr.mxu0 0.0
    %4995 = vmatpush1.msra.mxu0 %v4940
    %4996 = vmatprep.subr.mxu0 0.0
    %4997 = vmatpush1.msra.mxu0 %v4941
    %4998 = vmatprep.subr.mxu0 0.0
    %4999 = vmatpush1.msra.mxu0 %v4942
    %5000 = vmatprep.subr.mxu0 0.0
    %5001 = vmatpush1.msra.mxu0 %v4943
    %5002 = vmatprep.subr.mxu0 0.0
    %5003 = vmatpush1.msra.mxu0 %v4944
    %5004 = vmatprep.subr.mxu0 0.0
    %5005 = vmatpush1.msra.mxu0 %v4945
    %5006 = vmatprep.subr.mxu0 0.0
    %5007 = vmatpush1.msra.mxu0 %v4946
    %5008 = vmatprep.subr.mxu0 0.0
    %5009 = vmatpush1.msra.mxu0 %v4947
    %5010 = vmatprep.subr.mxu0 0.0
    %5011 = vmatpush1.msra.mxu0 %v4948
    %5012 = vmatprep.subr.mxu0 0.0
    %5013 = vmatpush1.msra.mxu0 %v4949
    %5014 = vmatprep.mubr.f32.mxu0 %v4707
    %5015 = vmatmul.mubr.f32.gmra.mrb[0].mxu0 %v4706
    %v5016 = vpop.f32.mrb[0].mxu0
    %v5017 = vadd.f32 0.0, %v5016
    %v5018 = vpop.f32.mrb[0].mxu0
    %5019 = vdwg.mxu0
    %v5020 = vadd.f32 %v4914, %v5017
    %s5021 = scalar_lea.vmem [#allocation10], 768
    %v5022 = vld [vmem:[%s5021] sm:$0xff]
    %v5023 = vld [vmem:[%s5021 + $0x8] sm:$0xff]
    %v5024 = vld [vmem:[%s5021 + $0x10] sm:$0xff]
    %v5025 = vld [vmem:[%s5021 + $0x18] sm:$0xff]
    %v5026 = vld [vmem:[%s5021 + $0x20] sm:$0xff]
    %v5027 = vld [vmem:[%s5021 + $0x28] sm:$0xff]
    %v5028 = vld [vmem:[%s5021 + $0x30] sm:$0xff]
    %v5029 = vld [vmem:[%s5021 + $0x38] sm:$0xff]
    %v5030 = vld [vmem:[%s5021 + $0x40] sm:$0xff]
    %v5031 = vld [vmem:[%s5021 + $0x48] sm:$0xff]
    %v5032 = vld [vmem:[%s5021 + $0x50] sm:$0xff]
    %v5033 = vld [vmem:[%s5021 + $0x58] sm:$0xff]
    %v5034 = vld [vmem:[%s5021 + $0x60] sm:$0xff]
    %v5035 = vld [vmem:[%s5021 + $0x68] sm:$0xff]
    %v5036 = vld [vmem:[%s5021 + $0x70] sm:$0xff]
    %v5037 = vld [vmem:[%s5021 + $0x78] sm:$0xff]
    %v5038 = vld [vmem:[%s5021 + $0x80] sm:$0xff]
    %v5039 = vld [vmem:[%s5021 + $0x88] sm:$0xff]
    %v5040 = vld [vmem:[%s5021 + $0x90] sm:$0xff]
    %v5041 = vld [vmem:[%s5021 + $0x98] sm:$0xff]
    %v5042 = vld [vmem:[%s5021 + $0xa0] sm:$0xff]
    %v5043 = vld [vmem:[%s5021 + $0xa8] sm:$0xff]
    %v5044 = vld [vmem:[%s5021 + $0xb0] sm:$0xff]
    %v5045 = vld [vmem:[%s5021 + $0xb8] sm:$0xff]
    %v5046 = vld [vmem:[%s5021 + $0xc0] sm:$0xff]
    %v5047 = vld [vmem:[%s5021 + $0xc8] sm:$0xff]
    %v5048 = vld [vmem:[%s5021 + $0xd0] sm:$0xff]
    %v5049 = vld [vmem:[%s5021 + $0xd8] sm:$0xff]
    %v5050 = vld [vmem:[%s5021 + $0xe0] sm:$0xff]
    %v5051 = vld [vmem:[%s5021 + $0xe8] sm:$0xff]
    %v5052 = vld [vmem:[%s5021 + $0xf0] sm:$0xff]
    %v5053 = vld [vmem:[%s5021 + $0xf8] sm:$0xff]
    %5054 = vmatprep.subr.mxu0 0.0
    %5055 = vmatpush1.msra.mxu0 %v5022
    %5056 = vmatprep.subr.mxu0 0.0
    %5057 = vmatpush1.msra.mxu0 %v5023
    %5058 = vmatprep.subr.mxu0 0.0
    %5059 = vmatpush1.msra.mxu0 %v5024
    %5060 = vmatprep.subr.mxu0 0.0
    %5061 = vmatpush1.msra.mxu0 %v5025
    %5062 = vmatprep.subr.mxu0 0.0
    %5063 = vmatpush1.msra.mxu0 %v5026
    %5064 = vmatprep.subr.mxu0 0.0
    %5065 = vmatpush1.msra.mxu0 %v5027
    %5066 = vmatprep.subr.mxu0 0.0
    %5067 = vmatpush1.msra.mxu0 %v5028
    %5068 = vmatprep.subr.mxu0 0.0
    %5069 = vmatpush1.msra.mxu0 %v5029
    %5070 = vmatprep.subr.mxu0 0.0
    %5071 = vmatpush1.msra.mxu0 %v5030
    %5072 = vmatprep.subr.mxu0 0.0
    %5073 = vmatpush1.msra.mxu0 %v5031
    %5074 = vmatprep.subr.mxu0 0.0
    %5075 = vmatpush1.msra.mxu0 %v5032
    %5076 = vmatprep.subr.mxu0 0.0
    %5077 = vmatpush1.msra.mxu0 %v5033
    %5078 = vmatprep.subr.mxu0 0.0
    %5079 = vmatpush1.msra.mxu0 %v5034
    %5080 = vmatprep.subr.mxu0 0.0
    %5081 = vmatpush1.msra.mxu0 %v5035
    %5082 = vmatprep.subr.mxu0 0.0
    %5083 = vmatpush1.msra.mxu0 %v5036
    %5084 = vmatprep.subr.mxu0 0.0
    %5085 = vmatpush1.msra.mxu0 %v5037
    %5086 = vmatprep.subr.mxu0 0.0
    %5087 = vmatpush1.msra.mxu0 %v5038
    %5088 = vmatprep.subr.mxu0 0.0
    %5089 = vmatpush1.msra.mxu0 %v5039
    %5090 = vmatprep.subr.mxu0 0.0
    %5091 = vmatpush1.msra.mxu0 %v5040
    %5092 = vmatprep.subr.mxu0 0.0
    %5093 = vmatpush1.msra.mxu0 %v5041
    %5094 = vmatprep.subr.mxu0 0.0
    %5095 = vmatpush1.msra.mxu0 %v5042
    %5096 = vmatprep.subr.mxu0 0.0
    %5097 = vmatpush1.msra.mxu0 %v5043
    %5098 = vmatprep.subr.mxu0 0.0
    %5099 = vmatpush1.msra.mxu0 %v5044
    %5100 = vmatprep.subr.mxu0 0.0
    %5101 = vmatpush1.msra.mxu0 %v5045
    %5102 = vmatprep.subr.mxu0 0.0
    %5103 = vmatpush1.msra.mxu0 %v5046
    %5104 = vmatprep.subr.mxu0 0.0
    %5105 = vmatpush1.msra.mxu0 %v5047
    %5106 = vmatprep.subr.mxu0 0.0
    %5107 = vmatpush1.msra.mxu0 %v5048
    %5108 = vmatprep.subr.mxu0 0.0
    %5109 = vmatpush1.msra.mxu0 %v5049
    %5110 = vmatprep.subr.mxu0 0.0
    %5111 = vmatpush1.msra.mxu0 %v5050
    %5112 = vmatprep.subr.mxu0 0.0
    %5113 = vmatpush1.msra.mxu0 %v5051
    %5114 = vmatprep.subr.mxu0 0.0
    %5115 = vmatpush1.msra.mxu0 %v5052
    %5116 = vmatprep.subr.mxu0 0.0
    %5117 = vmatpush1.msra.mxu0 %v5053
    %5118 = vmatprep.mubr.f32.mxu0 %v4709
    %5119 = vmatmul.mubr.f32.gmra.mrb[0].mxu0 %v4708
    %v5120 = vpop.f32.mrb[0].mxu0
    %v5121 = vadd.f32 0.0, %v5120
    %v5122 = vpop.f32.mrb[0].mxu0
    %5123 = vdwg.mxu0
    %v5124 = vadd.f32 %v5020, %v5121
    %s5125 = scalar_lea.vmem [#allocation10], 1024
    %v5126 = vld [vmem:[%s5125] sm:$0xff]
    %v5127 = vld [vmem:[%s5125 + $0x8] sm:$0xff]
    %v5128 = vld [vmem:[%s5125 + $0x10] sm:$0xff]
    %v5129 = vld [vmem:[%s5125 + $0x18] sm:$0xff]
    %v5130 = vld [vmem:[%s5125 + $0x20] sm:$0xff]
    %v5131 = vld [vmem:[%s5125 + $0x28] sm:$0xff]
    %v5132 = vld [vmem:[%s5125 + $0x30] sm:$0xff]
    %v5133 = vld [vmem:[%s5125 + $0x38] sm:$0xff]
    %v5134 = vld [vmem:[%s5125 + $0x40] sm:$0xff]
    %v5135 = vld [vmem:[%s5125 + $0x48] sm:$0xff]
    %v5136 = vld [vmem:[%s5125 + $0x50] sm:$0xff]
    %v5137 = vld [vmem:[%s5125 + $0x58] sm:$0xff]
    %v5138 = vld [vmem:[%s5125 + $0x60] sm:$0xff]
    %v5139 = vld [vmem:[%s5125 + $0x68] sm:$0xff]
    %v5140 = vld [vmem:[%s5125 + $0x70] sm:$0xff]
    %v5141 = vld [vmem:[%s5125 + $0x78] sm:$0xff]
    %v5142 = vld [vmem:[%s5125 + $0x80] sm:$0xff]
    %v5143 = vld [vmem:[%s5125 + $0x88] sm:$0xff]
    %v5144 = vld [vmem:[%s5125 + $0x90] sm:$0xff]
    %v5145 = vld [vmem:[%s5125 + $0x98] sm:$0xff]
    %v5146 = vld [vmem:[%s5125 + $0xa0] sm:$0xff]
    %v5147 = vld [vmem:[%s5125 + $0xa8] sm:$0xff]
    %v5148 = vld [vmem:[%s5125 + $0xb0] sm:$0xff]
    %v5149 = vld [vmem:[%s5125 + $0xb8] sm:$0xff]
    %v5150 = vld [vmem:[%s5125 + $0xc0] sm:$0xff]
    %v5151 = vld [vmem:[%s5125 + $0xc8] sm:$0xff]
    %v5152 = vld [vmem:[%s5125 + $0xd0] sm:$0xff]
    %v5153 = vld [vmem:[%s5125 + $0xd8] sm:$0xff]
    %v5154 = vld [vmem:[%s5125 + $0xe0] sm:$0xff]
    %v5155 = vld [vmem:[%s5125 + $0xe8] sm:$0xff]
    %v5156 = vld [vmem:[%s5125 + $0xf0] sm:$0xff]
    %v5157 = vld [vmem:[%s5125 + $0xf8] sm:$0xff]
    %5158 = vmatprep.subr.mxu0 0.0
    %5159 = vmatpush1.msra.mxu0 %v5126
    %5160 = vmatprep.subr.mxu0 0.0
    %5161 = vmatpush1.msra.mxu0 %v5127
    %5162 = vmatprep.subr.mxu0 0.0
    %5163 = vmatpush1.msra.mxu0 %v5128
    %5164 = vmatprep.subr.mxu0 0.0
    %5165 = vmatpush1.msra.mxu0 %v5129
    %5166 = vmatprep.subr.mxu0 0.0
    %5167 = vmatpush1.msra.mxu0 %v5130
    %5168 = vmatprep.subr.mxu0 0.0
    %5169 = vmatpush1.msra.mxu0 %v5131
    %5170 = vmatprep.subr.mxu0 0.0
    %5171 = vmatpush1.msra.mxu0 %v5132
    %5172 = vmatprep.subr.mxu0 0.0
    %5173 = vmatpush1.msra.mxu0 %v5133
    %5174 = vmatprep.subr.mxu0 0.0
    %5175 = vmatpush1.msra.mxu0 %v5134
    %5176 = vmatprep.subr.mxu0 0.0
    %5177 = vmatpush1.msra.mxu0 %v5135
    %5178 = vmatprep.subr.mxu0 0.0
    %5179 = vmatpush1.msra.mxu0 %v5136
    %5180 = vmatprep.subr.mxu0 0.0
    %5181 = vmatpush1.msra.mxu0 %v5137
    %5182 = vmatprep.subr.mxu0 0.0
    %5183 = vmatpush1.msra.mxu0 %v5138
    %5184 = vmatprep.subr.mxu0 0.0
    %5185 = vmatpush1.msra.mxu0 %v5139
    %5186 = vmatprep.subr.mxu0 0.0
    %5187 = vmatpush1.msra.mxu0 %v5140
    %5188 = vmatprep.subr.mxu0 0.0
    %5189 = vmatpush1.msra.mxu0 %v5141
    %5190 = vmatprep.subr.mxu0 0.0
    %5191 = vmatpush1.msra.mxu0 %v5142
    %5192 = vmatprep.subr.mxu0 0.0
    %5193 = vmatpush1.msra.mxu0 %v5143
    %5194 = vmatprep.subr.mxu0 0.0
    %5195 = vmatpush1.msra.mxu0 %v5144
    %5196 = vmatprep.subr.mxu0 0.0
    %5197 = vmatpush1.msra.mxu0 %v5145
    %5198 = vmatprep.subr.mxu0 0.0
    %5199 = vmatpush1.msra.mxu0 %v5146
    %5200 = vmatprep.subr.mxu0 0.0
    %5201 = vmatpush1.msra.mxu0 %v5147
    %5202 = vmatprep.subr.mxu0 0.0
    %5203 = vmatpush1.msra.mxu0 %v5148
    %5204 = vmatprep.subr.mxu0 0.0
    %5205 = vmatpush1.msra.mxu0 %v5149
    %5206 = vmatprep.subr.mxu0 0.0
    %5207 = vmatpush1.msra.mxu0 %v5150
    %5208 = vmatprep.subr.mxu0 0.0
    %5209 = vmatpush1.msra.mxu0 %v5151
    %5210 = vmatprep.subr.mxu0 0.0
    %5211 = vmatpush1.msra.mxu0 %v5152
    %5212 = vmatprep.subr.mxu0 0.0
    %5213 = vmatpush1.msra.mxu0 %v5153
    %5214 = vmatprep.subr.mxu0 0.0
    %5215 = vmatpush1.msra.mxu0 %v5154
    %5216 = vmatprep.subr.mxu0 0.0
    %5217 = vmatpush1.msra.mxu0 %v5155
    %5218 = vmatprep.subr.mxu0 0.0
    %5219 = vmatpush1.msra.mxu0 %v5156
    %5220 = vmatprep.subr.mxu0 0.0
    %5221 = vmatpush1.msra.mxu0 %v5157
    %5222 = vmatprep.mubr.f32.mxu0 %v4711
    %5223 = vmatmul.mubr.f32.gmra.mrb[0].mxu0 %v4710
    %v5224 = vpop.f32.mrb[0].mxu0
    %v5225 = vadd.f32 0.0, %v5224
    %v5226 = vpop.f32.mrb[0].mxu0
    %5227 = vdwg.mxu0
    %v5228 = vadd.f32 %v5124, %v5225
    %v5229 = vld [vmem:[#allocation11] sm:$0x1]
    %v5231 = vlaneseq
    %v5232 = vshrl.u32 %v5231, 7
    %v5233 = vsub.s32 0, %v5232
    %v5234 = vrot.slane %v5229, %v5233
    %v5236 = vadd.f32 %v5228, %v5234
    %v5237 = vmax.f32 %v5236, 0.0
    %v5238 = vld [vmem:[#allocation13] sm:$0xff]
    %v5239 = vld [vmem:[#allocation13 + $0x8] sm:$0xff]
    %v5240 = vld [vmem:[#allocation13 + $0x10] sm:$0xff]
    %v5241 = vld [vmem:[#allocation13 + $0x18] sm:$0xff]
    %v5242 = vld [vmem:[#allocation13 + $0x20] sm:$0xff]
    %v5243 = vld [vmem:[#allocation13 + $0x28] sm:$0xff]
    %v5244 = vld [vmem:[#allocation13 + $0x30] sm:$0xff]
    %v5245 = vld [vmem:[#allocation13 + $0x38] sm:$0xff]
    %v5246 = vld [vmem:[#allocation13 + $0x40] sm:$0xff]
    %v5247 = vld [vmem:[#allocation13 + $0x48] sm:$0xff]
    %v5248 = vld [vmem:[#allocation13 + $0x50] sm:$0xff]
    %v5249 = vld [vmem:[#allocation13 + $0x58] sm:$0xff]
    %v5250 = vld [vmem:[#allocation13 + $0x60] sm:$0xff]
    %v5251 = vld [vmem:[#allocation13 + $0x68] sm:$0xff]
    %v5252 = vld [vmem:[#allocation13 + $0x70] sm:$0xff]
    %v5253 = vld [vmem:[#allocation13 + $0x78] sm:$0xff]
    %v5254 = vld [vmem:[#allocation14] sm:$0x1]
    %v5256 = vlaneseq
    %v5257 = vshrl.u32 %v5256, 7
    %v5258 = vsub.s32 0, %v5257
    %v5259 = vrot.slane %v5254, %v5258
    %5261 = vmatprep.subr.mxu0 0.0
    %5262 = vmatpush1.msra.mxu0 %v5238
    %5263 = vmatprep.subr.mxu0 0.0
    %5264 = vmatpush1.msra.mxu0 %v5239
    %5265 = vmatprep.subr.mxu0 0.0
    %5266 = vmatpush1.msra.mxu0 %v5240
    %5267 = vmatprep.subr.mxu0 0.0
    %5268 = vmatpush1.msra.mxu0 %v5241
    %5269 = vmatprep.subr.mxu0 0.0
    %5270 = vmatpush1.msra.mxu0 %v5242
    %5271 = vmatprep.subr.mxu0 0.0
    %5272 = vmatpush1.msra.mxu0 %v5243
    %5273 = vmatprep.subr.mxu0 0.0
    %5274 = vmatpush1.msra.mxu0 %v5244
    %5275 = vmatprep.subr.mxu0 0.0
    %5276 = vmatpush1.msra.mxu0 %v5245
    %5277 = vmatprep.subr.mxu0 0.0
    %5278 = vmatpush1.msra.mxu0 %v5246
    %5279 = vmatprep.subr.mxu0 0.0
    %5280 = vmatpush1.msra.mxu0 %v5247
    %5281 = vmatprep.subr.mxu0 0.0
    %5282 = vmatpush1.msra.mxu0 %v5248
    %5283 = vmatprep.subr.mxu0 0.0
    %5284 = vmatpush1.msra.mxu0 %v5249
    %5285 = vmatprep.subr.mxu0 0.0
    %5286 = vmatpush1.msra.mxu0 %v5250
    %5287 = vmatprep.subr.mxu0 0.0
    %5288 = vmatpush1.msra.mxu0 %v5251
    %5289 = vmatprep.subr.mxu0 0.0
    %5290 = vmatpush1.msra.mxu0 %v5252
    %5291 = vmatprep.subr.mxu0 0.0
    %5292 = vmatpush1.msra.mxu0 %v5253
    %5293 = vmatprep.subr.mxu0 0.0
    %5294 = vmatpush1.msra.mxu0 0.0
    %5295 = vmatprep.subr.mxu0 0.0
    %5296 = vmatpush1.msra.mxu0 0.0
    %5297 = vmatprep.subr.mxu0 0.0
    %5298 = vmatpush1.msra.mxu0 0.0
    %5299 = vmatprep.subr.mxu0 0.0
    %5300 = vmatpush1.msra.mxu0 0.0
    %5301 = vmatprep.subr.mxu0 0.0
    %5302 = vmatpush1.msra.mxu0 0.0
    %5303 = vmatprep.subr.mxu0 0.0
    %5304 = vmatpush1.msra.mxu0 0.0
    %5305 = vmatprep.subr.mxu0 0.0
    %5306 = vmatpush1.msra.mxu0 0.0
    %5307 = vmatprep.subr.mxu0 0.0
    %5308 = vmatpush1.msra.mxu0 0.0
    %5309 = vmatprep.subr.mxu0 0.0
    %5310 = vmatpush1.msra.mxu0 0.0
    %5311 = vmatprep.subr.mxu0 0.0
    %5312 = vmatpush1.msra.mxu0 0.0
    %5313 = vmatprep.subr.mxu0 0.0
    %5314 = vmatpush1.msra.mxu0 0.0
    %5315 = vmatprep.subr.mxu0 0.0
    %5316 = vmatpush1.msra.mxu0 0.0
    %5317 = vmatprep.subr.mxu0 0.0
    %5318 = vmatpush1.msra.mxu0 0.0
    %5319 = vmatprep.subr.mxu0 0.0
    %5320 = vmatpush1.msra.mxu0 0.0
    %5321 = vmatprep.subr.mxu0 0.0
    %5322 = vmatpush1.msra.mxu0 0.0
    %5323 = vmatprep.subr.mxu0 0.0
    %5324 = vmatpush1.msra.mxu0 0.0
    %5325 = vmatprep.mubr.f32.mxu0 0.0
    %5326 = vmatmul.mubr.f32.gmra.mrb[0].mxu0 %v5237
    %v5327 = vpop.f32.mrb[0].mxu0
    %v5328 = vadd.f32 %v5259, %v5327
    %v5329 = vpop.f32.mrb[0].mxu0
    %5330 = vdwg.mxu0
    %v5331 = vmax.f32 %v5328, 0.0
    %v5332 = vld [vmem:[#allocation16] sm:$0xff]
    %v5333 = vld [vmem:[#allocation16 + $0x8] sm:$0xff]
    %v5334 = vld [vmem:[#allocation16 + $0x10] sm:$0xff]
    %v5335 = vld [vmem:[#allocation16 + $0x18] sm:$0xff]
    %v5336 = vld [vmem:[#allocation16 + $0x20] sm:$0xff]
    %v5337 = vld [vmem:[#allocation16 + $0x28] sm:$0xff]
    %v5338 = vld [vmem:[#allocation16 + $0x30] sm:$0xff]
    %v5339 = vld [vmem:[#allocation16 + $0x38] sm:$0xff]
    %v5340 = vld [vmem:[#allocation16 + $0x40] sm:$0xff]
    %v5341 = vld [vmem:[#allocation16 + $0x48] sm:$0xff]
    %v5342 = vld [vmem:[#allocation16 + $0x50] sm:$0xff]
    %v5343 = vld [vmem:[#allocation16 + $0x58] sm:$0xff]
    %v5344 = vld [vmem:[#allocation16 + $0x60] sm:$0xff]
    %v5345 = vld [vmem:[#allocation16 + $0x68] sm:$0xff]
    %v5346 = vld [vmem:[#allocation16 + $0x70] sm:$0xff]
    %v5347 = vld [vmem:[#allocation16 + $0x78] sm:$0xff]
    %v5348 = vld [vmem:[#allocation17] sm:$0x1]
    %v5350 = vlaneseq
    %v5351 = vshrl.u32 %v5350, 7
    %v5352 = vsub.s32 0, %v5351
    %v5353 = vrot.slane %v5348, %v5352
    %5355 = vmatprep.subr.mxu0 0.0
    %5356 = vmatpush1.msra.mxu0 %v5332
    %5357 = vmatprep.subr.mxu0 0.0
    %5358 = vmatpush1.msra.mxu0 %v5333
    %5359 = vmatprep.subr.mxu0 0.0
    %5360 = vmatpush1.msra.mxu0 %v5334
    %5361 = vmatprep.subr.mxu0 0.0
    %5362 = vmatpush1.msra.mxu0 %v5335
    %5363 = vmatprep.subr.mxu0 0.0
    %5364 = vmatpush1.msra.mxu0 %v5336
    %5365 = vmatprep.subr.mxu0 0.0
    %5366 = vmatpush1.msra.mxu0 %v5337
    %5367 = vmatprep.subr.mxu0 0.0
    %5368 = vmatpush1.msra.mxu0 %v5338
    %5369 = vmatprep.subr.mxu0 0.0
    %5370 = vmatpush1.msra.mxu0 %v5339
    %5371 = vmatprep.subr.mxu0 0.0
    %5372 = vmatpush1.msra.mxu0 %v5340
    %5373 = vmatprep.subr.mxu0 0.0
    %5374 = vmatpush1.msra.mxu0 %v5341
    %5375 = vmatprep.subr.mxu0 0.0
    %5376 = vmatpush1.msra.mxu0 %v5342
    %5377 = vmatprep.subr.mxu0 0.0
    %5378 = vmatpush1.msra.mxu0 %v5343
    %5379 = vmatprep.subr.mxu0 0.0
    %5380 = vmatpush1.msra.mxu0 %v5344
    %5381 = vmatprep.subr.mxu0 0.0
    %5382 = vmatpush1.msra.mxu0 %v5345
    %5383 = vmatprep.subr.mxu0 0.0
    %5384 = vmatpush1.msra.mxu0 %v5346
    %5385 = vmatprep.subr.mxu0 0.0
    %5386 = vmatpush1.msra.mxu0 %v5347
    %5387 = vmatprep.subr.mxu0 0.0
    %5388 = vmatpush1.msra.mxu0 0.0
    %5389 = vmatprep.subr.mxu0 0.0
    %5390 = vmatpush1.msra.mxu0 0.0
    %5391 = vmatprep.subr.mxu0 0.0
    %5392 = vmatpush1.msra.mxu0 0.0
    %5393 = vmatprep.subr.mxu0 0.0
    %5394 = vmatpush1.msra.mxu0 0.0
    %5395 = vmatprep.subr.mxu0 0.0
    %5396 = vmatpush1.msra.mxu0 0.0
    %5397 = vmatprep.subr.mxu0 0.0
    %5398 = vmatpush1.msra.mxu0 0.0
    %5399 = vmatprep.subr.mxu0 0.0
    %5400 = vmatpush1.msra.mxu0 0.0
    %5401 = vmatprep.subr.mxu0 0.0
    %5402 = vmatpush1.msra.mxu0 0.0
    %5403 = vmatprep.subr.mxu0 0.0
    %5404 = vmatpush1.msra.mxu0 0.0
    %5405 = vmatprep.subr.mxu0 0.0
    %5406 = vmatpush1.msra.mxu0 0.0
    %5407 = vmatprep.subr.mxu0 0.0
    %5408 = vmatpush1.msra.mxu0 0.0
    %5409 = vmatprep.subr.mxu0 0.0
    %5410 = vmatpush1.msra.mxu0 0.0
    %5411 = vmatprep.subr.mxu0 0.0
    %5412 = vmatpush1.msra.mxu0 0.0
    %5413 = vmatprep.subr.mxu0 0.0
    %5414 = vmatpush1.msra.mxu0 0.0
    %5415 = vmatprep.subr.mxu0 0.0
    %5416 = vmatpush1.msra.mxu0 0.0
    %5417 = vmatprep.subr.mxu0 0.0
    %5418 = vmatpush1.msra.mxu0 0.0
    %5419 = vmatprep.mubr.f32.mxu0 0.0
    %5420 = vmatmul.mubr.f32.gmra.mrb[0].mxu0 %v5331
    %v5421 = vpop.f32.mrb[0].mxu0
    %v5422 = vadd.f32 %v5353, %v5421
    %v5423 = vpop.f32.mrb[0].mxu0
    %5424 = vdwg.mxu0
    %5425 = vst [vmem:[%s11] sm:$0xff] %v5422
    // Predicated region
    $region86: #{network_forward.1} parent=1 // pred_check
      _
    $region87: #{network_forward.1} parent=1 // pred_check_branch
      %5427 = sbr.rel (0) target = $region89
    $region88: #{network_forward.1} parent=1 // pred_region
      _
    $region89: #{network_forward.1} parent=1 // pred_fallthru
      _
    // Predicated region
    $region90: #{network_forward.1} parent=1 // pred_check
      _
    $region91: #{network_forward.1} parent=1 // pred_check_branch
      %5429 = sbr.rel (0) target = $region93
    $region92: #{network_forward.1} parent=1 // pred_region
      _
    $region93: #{network_forward.1} parent=1 // pred_fallthru
      _
    %5430 = vsyncpa [#allocation4], 1
    %5431 = vsyncpa [#allocation6], 1
    %5432 = vsyncpa [#allocation9], 1
    %5433 = vsyncpa [#allocation12], 1
    %5434 = vsyncpa [#allocation15], 1
    %5435 = vsyncpa [#allocation18], 1

</llo_original>
